<compile_context>
chip_gen: v6e
topology: v6e:2x2x1
jax: 0.10.0
libtpu: 0.0.40
codegen_flags: <defaults>
</compile_context>

<pallas_src>
import math

import jax
import jax.numpy as jnp
from jax import lax
from jax.experimental import pallas as pl
from jax.experimental.pallas import tpu as pltpu


# ----------------------------- kernel ------------------------------------- #

def _layernorm(x, gamma, beta, eps=1e-5):
    # PyTorch nn.LayerNorm over last dim (biased variance, eps=1e-5),
    # single statistics pass: var = E[x^2] - E[x]^2.
    mean = jnp.mean(x, axis=-1, keepdims=True)
    var = jnp.mean(x * x, axis=-1, keepdims=True) - mean * mean
    return (x - mean) * lax.rsqrt(var + eps) * gamma + beta


def portfolio_kernel(x_ref,
                     wqk_ref, bqk_ref,
                     wvo_ref, bvo_ref, bo_ref,
                     g1_ref, beta1_ref,
                     w1_ref, b1_ref, w2_ref, b2_ref,
                     g2_ref, beta2_ref,
                     lam_ref,
                     out_ref):
    X = x_ref[...]                       # (N, D) activations, carried as a value
    N, D = X.shape
    K = wqk_ref.shape[0]

    # K is small and static -> fully unrolled loop with concrete ref indices.
    for k in range(K):
        # ---- ExpandedMultiHeadAttention (H = 1), fused Q|K projection ----
        # 1/sqrt(D) is pre-folded into Wq; MXU operands in bf16, f32 accumulate.
        Xb = X.astype(jnp.bfloat16)
        qk = jnp.dot(Xb, wqk_ref[k],
                     preferred_element_type=jnp.float32) + bqk_ref[k]      # (N, 2D)
        Q = qk[:, :D]
        Km = qk[:, D:]

        # scores: contract feature dims directly (no Km.T relayout)
        S = lax.dot_general(Q.astype(jnp.bfloat16), Km.astype(jnp.bfloat16),
                            dimension_numbers=(((1,), (1,)), ((), ())),
                            preferred_element_type=jnp.float32)            # (N, N)
        S = S - jnp.max(S, axis=-1, keepdims=True)
        E = jnp.exp(S)                                                     # f32 (v5e-safe)
        denom = jnp.sum(E, axis=-1, keepdims=True)                         # (N, 1)

        # output_layer folded through softmax:  vwo = V @ wo  (computed from the
        # pre-folded Wv@wo weight as a VPU multiply + lane reduce),
        # y = (E @ vwo) / rowsum(E) + bo.
        vwo = jnp.sum(X * wvo_ref[k], axis=-1, keepdims=True) + bvo_ref[k]  # (N, 1)
        y_un = jnp.dot(E, vwo, preferred_element_type=jnp.float32)          # (N, 1)
        y = y_un * pl.reciprocal(denom, approx=True) + bo_ref[k]            # (N, 1)

        # residual broadcasts the (N,1) attention output across all D features,
        # exactly as the PyTorch module does, then LayerNorm.
        X1 = _layernorm(X + y, g1_ref[k], beta1_ref[k])

        # ---- FeedForward (bf16 MXU operands, f32 accumulate/elementwise) ----
        h = jnp.maximum(
            jnp.dot(X1.astype(jnp.bfloat16), w1_ref[k],
                    preferred_element_type=jnp.float32) + b1_ref[k],
            0.0)
        f = jnp.dot(h.astype(jnp.bfloat16), w2_ref[k],
                    preferred_element_type=jnp.float32) + b2_ref[k]
        # nn.Dropout(p=0.1) is identity in eval mode.
        # TODO(synk): stochastic training-mode dropout not implemented (eval semantics).
        X = _layernorm(X1 + f, g2_ref[k], beta2_ref[k])

    # readout: w_t = X @ lambda_out, via VPU multiply + lane reduce
    # (lambda_out stored as a (1, D) row).
    out_ref[...] = jnp.sum(X * lam_ref[...], axis=-1, keepdims=True)


# ----------------------------- wrapper ------------------------------------ #

def portfolio_forward(x, params):
    N, D = x.shape
    inv_sqrt_d = 1.0 / math.sqrt(D)

    # Pack weights for the kernel:
    #  * fuse Q|K along the output dim, fold the 1/sqrt(D) scale into Wq,
    #  * constant-fold output_layer through V:  wvo = Wv @ wo, bvo = bv @ wo,
    #  * store the (D,1) vectors (Wv@wo, lambda_out) as lane rows,
    #  * MXU weight operands pre-cast to bf16 (f32 accumulation in-kernel).
    wqk = jnp.concatenate([params["wq"] * inv_sqrt_d, params["wk"]], axis=-1)   # (K, D, 2D)
    bqk = jnp.concatenate([params["bq"] * inv_sqrt_d, params["bk"]], axis=-1)   # (K, 1, 2D)
    wvo = jnp.einsum("kij,kjo->kio", params["wv"], params["wo"])                # (K, D, 1)
    wvo_row = jnp.swapaxes(wvo, -1, -2)                                         # (K, 1, D)
    bvo = jnp.einsum("kij,kjo->kio", params["bv"], params["wo"])                # (K, 1, 1)
    lam_row = params["lam"].T                                                   # (1, D)

    inputs = (x,
              wqk.astype(jnp.bfloat16), bqk,
              wvo_row, bvo, params["bo"],
              params["g1"], params["beta1"],
              params["w1"].astype(jnp.bfloat16), params["b1"],
              params["w2"].astype(jnp.bfloat16), params["b2"],
              params["g2"], params["beta2"],
              lam_row)

    vmem = pl.BlockSpec(memory_space=pltpu.MemorySpace.VMEM)  # whole array, VMEM-resident

    out = pl.pallas_call(
        portfolio_kernel,
        out_shape=jax.ShapeDtypeStruct((N, 1), jnp.float32),
        in_specs=[vmem] * len(inputs),
        out_specs=vmem,
    )(*inputs)
    return out[:, 0]   # w_t.squeeze()


# ----------------------- deterministic parameter init --------------------- #

def init_params(key, D, K, dF):
    def xavier(k, fan_in, fan_out):
        bound = math.sqrt(6.0 / (fan_in + fan_out))
        return jax.random.uniform(k, (fan_in, fan_out), jnp.float32, -bound, bound)

    keys = jax.random.split(key, 9 * K + 1)
    wq, wk, wv, wo, w1, w2, b1, b2 = [], [], [], [], [], [], [], []
    for i in range(K):
        base = 9 * i
        wq.append(xavier(keys[base + 0], D, D))
        wk.append(xavier(keys[base + 1], D, D))
        wv.append(xavier(keys[base + 2], D, D))
        wo.append(xavier(keys[base + 3], D, 1))
        w1.append(xavier(keys[base + 4], D, dF))
        w2.append(xavier(keys[base + 5], dF, D))
        b1.append(jax.random.uniform(keys[base + 6], (1, dF), jnp.float32,
                                     -1.0 / math.sqrt(D), 1.0 / math.sqrt(D)))
        b2.append(jax.random.uniform(keys[base + 7], (1, D), jnp.float32,
                                     -1.0 / math.sqrt(dF), 1.0 / math.sqrt(dF)))
    params = {
        "wq": jnp.stack(wq), "wk": jnp.stack(wk), "wv": jnp.stack(wv),
        "wo": jnp.stack(wo), "w1": jnp.stack(w1), "w2": jnp.stack(w2),
        # attention / output biases are explicitly zero-initialized in the module
        "bq": jnp.zeros((K, 1, D), jnp.float32),
        "bk": jnp.zeros((K, 1, D), jnp.float32),
        "bv": jnp.zeros((K, 1, D), jnp.float32),
        "bo": jnp.zeros((K, 1, 1), jnp.float32),
        "b1": jnp.stack(b1), "b2": jnp.stack(b2),
        "g1": jnp.ones((K, 1, D), jnp.float32),
        "beta1": jnp.zeros((K, 1, D), jnp.float32),
        "g2": jnp.ones((K, 1, D), jnp.float32),
        "beta2": jnp.zeros((K, 1, D), jnp.float32),
        # lambda_out = randn(D, 1) / 1000
        "lam": jax.random.normal(keys[-1], (D, 1), jnp.float32) / 1000.0,
    }
    return params


# ----------------------------- reference ---------------------------------- #

def _layernorm_ref(x, gamma, beta, eps=1e-5):
    mean = jnp.mean(x, axis=-1, keepdims=True)
    var = jnp.mean((x - mean) ** 2, axis=-1, keepdims=True)
    return (x - mean) * lax.rsqrt(var + eps) * gamma + beta


def reference_forward(x, params):
    X = x
    K = params["wq"].shape[0]
    D = X.shape[-1]
    for i in range(K):
        Q = X @ params["wq"][i] + params["bq"][i]
        Km = X @ params["wk"][i] + params["bk"][i]
        V = X @ params["wv"][i] + params["bv"][i]
        attn = jax.nn.softmax(Q @ Km.T / (D ** 0.5), axis=-1)
        y = (attn @ V) @ params["wo"][i] + params["bo"][i]            # (N, 1)
        X1 = _layernorm_ref(X + y, params["g1"][i], params["beta1"][i])
        h = jax.nn.relu(X1 @ params["w1"][i] + params["b1"][i])
        f = h @ params["w2"][i] + params["b2"][i]
        X = _layernorm_ref(X1 + f, params["g2"][i], params["beta2"][i])
    return (X @ params["lam"])[:, 0]


# ------------------------------- main -------------------------------------- #

if __name__ == "__main__":
    N, D, K, dF = 128, 32, 4, 64          # small shapes consistent with the module
    key = jax.random.PRNGKey(0)
    kx, kp = jax.random.split(key)
    x = jax.random.normal(kx, (N, D), jnp.float32)
    params = init_params(kp, D, K, dF)

    w_kernel = portfolio_forward(x, params)
    jax.block_until_ready(w_kernel)

    w_ref = reference_forward(x, params)
    assert w_kernel.shape == (N,)
    assert jnp.allclose(w_kernel, w_ref, atol=2e-3, rtol=2e-3), "mismatch vs reference"

    print("KERNEL_OK")
</pallas_src>

<mosaic_0001>
module attributes {stable_mosaic.version = 11 : i64} {
  func.func @portfolio_kernel(%arg0: memref<128x32xf32, #tpu.memory_space<vmem>>, %arg1: memref<4x32x64xbf16, #tpu.memory_space<vmem>>, %arg2: memref<4x1x64xf32, #tpu.memory_space<vmem>>, %arg3: memref<4x1x32xf32, #tpu.memory_space<vmem>>, %arg4: memref<4x1x1xf32, #tpu.memory_space<vmem>>, %arg5: memref<4x1x1xf32, #tpu.memory_space<vmem>>, %arg6: memref<4x1x32xf32, #tpu.memory_space<vmem>>, %arg7: memref<4x1x32xf32, #tpu.memory_space<vmem>>, %arg8: memref<4x32x64xbf16, #tpu.memory_space<vmem>>, %arg9: memref<4x1x64xf32, #tpu.memory_space<vmem>>, %arg10: memref<4x64x32xbf16, #tpu.memory_space<vmem>>, %arg11: memref<4x1x32xf32, #tpu.memory_space<vmem>>, %arg12: memref<4x1x32xf32, #tpu.memory_space<vmem>>, %arg13: memref<4x1x32xf32, #tpu.memory_space<vmem>>, %arg14: memref<1x32xf32, #tpu.memory_space<vmem>>, %arg15: memref<128x1xf32, #tpu.memory_space<vmem>>) attributes {dimension_semantics = [], scalar_prefetch = 0 : i64, scratch_operands = 0 : i64, tpu.core_type = #tpu.core_type<tc>} {
    %c0 = arith.constant 0 : index
    %c0_0 = arith.constant 0 : index
    %0 = vector.load %arg0[%c0, %c0_0] : memref<128x32xf32, #tpu.memory_space<vmem>>, vector<128x32xf32>
    %1 = arith.truncf %0 : vector<128x32xf32> to vector<128x32xbf16>
    %c0_1 = arith.constant 0 : index
    %c0_2 = arith.constant 0 : index
    %c0_3 = arith.constant 0 : index
    %2 = vector.load %arg1[%c0_1, %c0_2, %c0_3] : memref<4x32x64xbf16, #tpu.memory_space<vmem>>, vector<1x32x64xbf16>
    %3 = vector.shape_cast %2 : vector<1x32x64xbf16> to vector<32x64xbf16>
    %cst = arith.constant dense<0.000000e+00> : vector<128x64xf32>
    %4 = tpu.matmul %1, %3, %cst {dimension_numbers = #tpu.dot_dimension_numbers<[1], [0], [0], [1], [0, 0, 1, 1], [], []>} : vector<128x32xbf16>, vector<32x64xbf16>, vector<128x64xf32> -> vector<128x64xf32>
    %c0_4 = arith.constant 0 : index
    %c0_5 = arith.constant 0 : index
    %c0_6 = arith.constant 0 : index
    %5 = vector.load %arg2[%c0_4, %c0_5, %c0_6] : memref<4x1x64xf32, #tpu.memory_space<vmem>>, vector<1x1x64xf32>
    %6 = vector.shape_cast %5 : vector<1x1x64xf32> to vector<1x64xf32>
    %7 = vector.broadcast %6 : vector<1x64xf32> to vector<128x64xf32>
    %8 = arith.addf %4, %7 : vector<128x64xf32>
    %9 = vector.extract_strided_slice %8 {offsets = [0, 0], sizes = [128, 32], strides = [1, 1]} : vector<128x64xf32> to vector<128x32xf32>
    %10 = vector.extract_strided_slice %8 {offsets = [0, 32], sizes = [128, 32], strides = [1, 1]} : vector<128x64xf32> to vector<128x32xf32>
    %11 = arith.truncf %9 : vector<128x32xf32> to vector<128x32xbf16>
    %12 = arith.truncf %10 : vector<128x32xf32> to vector<128x32xbf16>
    %cst_7 = arith.constant dense<0.000000e+00> : vector<128x128xf32>
    %13 = tpu.matmul %11, %12, %cst_7 {dimension_numbers = #tpu.dot_dimension_numbers<[1], [1], [0], [0], [0, 0, 1, 0], [], []>} : vector<128x32xbf16>, vector<128x32xbf16>, vector<128x128xf32> -> vector<128x128xf32>
    %cst_8 = arith.constant dense<0xFF800000> : vector<128xf32>
    %14 = vector.multi_reduction <maximumf>, %13, %cst_8 [1] : vector<128x128xf32> to vector<128xf32>
    %15 = vector.shape_cast %14 : vector<128xf32> to vector<128x1xf32>
    %16 = vector.broadcast %15 : vector<128x1xf32> to vector<128x128xf32>
    %17 = arith.subf %13, %16 : vector<128x128xf32>
    %18 = math.exp %17 : vector<128x128xf32>
    %cst_9 = arith.constant dense<0.000000e+00> : vector<128xf32>
    %19 = vector.multi_reduction <add>, %18, %cst_9 [1] : vector<128x128xf32> to vector<128xf32>
    %20 = vector.shape_cast %19 : vector<128xf32> to vector<128x1xf32>
    %c0_10 = arith.constant 0 : index
    %c0_11 = arith.constant 0 : index
    %c0_12 = arith.constant 0 : index
    %21 = vector.load %arg3[%c0_10, %c0_11, %c0_12] : memref<4x1x32xf32, #tpu.memory_space<vmem>>, vector<1x1x32xf32>
    %22 = vector.shape_cast %21 : vector<1x1x32xf32> to vector<1x32xf32>
    %23 = vector.broadcast %22 : vector<1x32xf32> to vector<128x32xf32>
    %24 = arith.mulf %0, %23 : vector<128x32xf32>
    %cst_13 = arith.constant dense<0.000000e+00> : vector<128xf32>
    %25 = vector.multi_reduction <add>, %24, %cst_13 [1] : vector<128x32xf32> to vector<128xf32>
    %26 = vector.shape_cast %25 : vector<128xf32> to vector<128x1xf32>
    %c0_14 = arith.constant 0 : index
    %c0_15 = arith.constant 0 : index
    %c0_16 = arith.constant 0 : index
    %27 = vector.load %arg4[%c0_14, %c0_15, %c0_16] : memref<4x1x1xf32, #tpu.memory_space<vmem>>, vector<1x1x1xf32>
    %28 = vector.shape_cast %27 : vector<1x1x1xf32> to vector<1x1xf32>
    %29 = vector.broadcast %28 : vector<1x1xf32> to vector<128x1xf32>
    %30 = arith.addf %26, %29 : vector<128x1xf32>
    %cst_17 = arith.constant dense<0.000000e+00> : vector<128x1xf32>
    %31 = tpu.matmul %18, %30, %cst_17 {dimension_numbers = #tpu.dot_dimension_numbers<[1], [0], [0], [1], [0, 0, 1, 1], [], []>} : vector<128x128xf32>, vector<128x1xf32>, vector<128x1xf32> -> vector<128x1xf32>
    %32 = tpu.reciprocal %20 {approx = true} : vector<128x1xf32> -> vector<128x1xf32>
    %33 = arith.mulf %31, %32 : vector<128x1xf32>
    %c0_18 = arith.constant 0 : index
    %c0_19 = arith.constant 0 : index
    %c0_20 = arith.constant 0 : index
    %34 = vector.load %arg5[%c0_18, %c0_19, %c0_20] : memref<4x1x1xf32, #tpu.memory_space<vmem>>, vector<1x1x1xf32>
    %35 = vector.shape_cast %34 : vector<1x1x1xf32> to vector<1x1xf32>
    %36 = vector.broadcast %35 : vector<1x1xf32> to vector<128x1xf32>
    %37 = arith.addf %33, %36 : vector<128x1xf32>
    %38 = vector.broadcast %37 : vector<128x1xf32> to vector<128x32xf32>
    %39 = arith.addf %0, %38 : vector<128x32xf32>
    %c0_21 = arith.constant 0 : index
    %c0_22 = arith.constant 0 : index
    %c0_23 = arith.constant 0 : index
    %40 = vector.load %arg6[%c0_21, %c0_22, %c0_23] : memref<4x1x32xf32, #tpu.memory_space<vmem>>, vector<1x1x32xf32>
    %41 = vector.shape_cast %40 : vector<1x1x32xf32> to vector<1x32xf32>
    %c0_24 = arith.constant 0 : index
    %c0_25 = arith.constant 0 : index
    %c0_26 = arith.constant 0 : index
    %42 = vector.load %arg7[%c0_24, %c0_25, %c0_26] : memref<4x1x32xf32, #tpu.memory_space<vmem>>, vector<1x1x32xf32>
    %43 = vector.shape_cast %42 : vector<1x1x32xf32> to vector<1x32xf32>
    %cst_27 = arith.constant dense<0.000000e+00> : vector<128xf32>
    %44 = vector.multi_reduction <add>, %39, %cst_27 [1] : vector<128x32xf32> to vector<128xf32>
    %45 = vector.shape_cast %44 : vector<128xf32> to vector<128x1xf32>
    %cst_28 = arith.constant 3.200000e+01 : f32
    %46 = vector.broadcast %cst_28 : f32 to vector<128x1xf32>
    %47 = arith.divf %45, %46 : vector<128x1xf32>
    %48 = arith.mulf %39, %39 : vector<128x32xf32>
    %cst_29 = arith.constant dense<0.000000e+00> : vector<128xf32>
    %49 = vector.multi_reduction <add>, %48, %cst_29 [1] : vector<128x32xf32> to vector<128xf32>
    %50 = vector.shape_cast %49 : vector<128xf32> to vector<128x1xf32>
    %cst_30 = arith.constant 3.200000e+01 : f32
    %51 = vector.broadcast %cst_30 : f32 to vector<128x1xf32>
    %52 = arith.divf %50, %51 : vector<128x1xf32>
    %53 = arith.mulf %47, %47 : vector<128x1xf32>
    %54 = arith.subf %52, %53 : vector<128x1xf32>
    %55 = vector.broadcast %47 : vector<128x1xf32> to vector<128x32xf32>
    %56 = arith.subf %39, %55 : vector<128x32xf32>
    %cst_31 = arith.constant 9.99999974E-6 : f32
    %57 = vector.broadcast %cst_31 : f32 to vector<128x1xf32>
    %58 = arith.addf %54, %57 : vector<128x1xf32>
    %59 = math.rsqrt %58 : vector<128x1xf32>
    %60 = vector.broadcast %59 : vector<128x1xf32> to vector<128x32xf32>
    %61 = arith.mulf %56, %60 : vector<128x32xf32>
    %62 = vector.broadcast %41 : vector<1x32xf32> to vector<128x32xf32>
    %63 = arith.mulf %61, %62 : vector<128x32xf32>
    %64 = vector.broadcast %43 : vector<1x32xf32> to vector<128x32xf32>
    %65 = arith.addf %63, %64 : vector<128x32xf32>
    %66 = arith.truncf %65 : vector<128x32xf32> to vector<128x32xbf16>
    %c0_32 = arith.constant 0 : index
    %c0_33 = arith.constant 0 : index
    %c0_34 = arith.constant 0 : index
    %67 = vector.load %arg8[%c0_32, %c0_33, %c0_34] : memref<4x32x64xbf16, #tpu.memory_space<vmem>>, vector<1x32x64xbf16>
    %68 = vector.shape_cast %67 : vector<1x32x64xbf16> to vector<32x64xbf16>
    %cst_35 = arith.constant dense<0.000000e+00> : vector<128x64xf32>
    %69 = tpu.matmul %66, %68, %cst_35 {dimension_numbers = #tpu.dot_dimension_numbers<[1], [0], [0], [1], [0, 0, 1, 1], [], []>} : vector<128x32xbf16>, vector<32x64xbf16>, vector<128x64xf32> -> vector<128x64xf32>
    %c0_36 = arith.constant 0 : index
    %c0_37 = arith.constant 0 : index
    %c0_38 = arith.constant 0 : index
    %70 = vector.load %arg9[%c0_36, %c0_37, %c0_38] : memref<4x1x64xf32, #tpu.memory_space<vmem>>, vector<1x1x64xf32>
    %71 = vector.shape_cast %70 : vector<1x1x64xf32> to vector<1x64xf32>
    %72 = vector.broadcast %71 : vector<1x64xf32> to vector<128x64xf32>
    %73 = arith.addf %69, %72 : vector<128x64xf32>
    %cst_39 = arith.constant 0.000000e+00 : f32
    %74 = vector.broadcast %cst_39 : f32 to vector<128x64xf32>
    %75 = arith.maximumf %73, %74 : vector<128x64xf32>
    %76 = arith.truncf %75 : vector<128x64xf32> to vector<128x64xbf16>
    %c0_40 = arith.constant 0 : index
    %c0_41 = arith.constant 0 : index
    %c0_42 = arith.constant 0 : index
    %77 = vector.load %arg10[%c0_40, %c0_41, %c0_42] : memref<4x64x32xbf16, #tpu.memory_space<vmem>>, vector<1x64x32xbf16>
    %78 = vector.shape_cast %77 : vector<1x64x32xbf16> to vector<64x32xbf16>
    %cst_43 = arith.constant dense<0.000000e+00> : vector<128x32xf32>
    %79 = tpu.matmul %76, %78, %cst_43 {dimension_numbers = #tpu.dot_dimension_numbers<[1], [0], [0], [1], [0, 0, 1, 1], [], []>} : vector<128x64xbf16>, vector<64x32xbf16>, vector<128x32xf32> -> vector<128x32xf32>
    %c0_44 = arith.constant 0 : index
    %c0_45 = arith.constant 0 : index
    %c0_46 = arith.constant 0 : index
    %80 = vector.load %arg11[%c0_44, %c0_45, %c0_46] : memref<4x1x32xf32, #tpu.memory_space<vmem>>, vector<1x1x32xf32>
    %81 = vector.shape_cast %80 : vector<1x1x32xf32> to vector<1x32xf32>
    %82 = vector.broadcast %81 : vector<1x32xf32> to vector<128x32xf32>
    %83 = arith.addf %79, %82 : vector<128x32xf32>
    %84 = arith.addf %65, %83 : vector<128x32xf32>
    %c0_47 = arith.constant 0 : index
    %c0_48 = arith.constant 0 : index
    %c0_49 = arith.constant 0 : index
    %85 = vector.load %arg12[%c0_47, %c0_48, %c0_49] : memref<4x1x32xf32, #tpu.memory_space<vmem>>, vector<1x1x32xf32>
    %86 = vector.shape_cast %85 : vector<1x1x32xf32> to vector<1x32xf32>
    %c0_50 = arith.constant 0 : index
    %c0_51 = arith.constant 0 : index
    %c0_52 = arith.constant 0 : index
    %87 = vector.load %arg13[%c0_50, %c0_51, %c0_52] : memref<4x1x32xf32, #tpu.memory_space<vmem>>, vector<1x1x32xf32>
    %88 = vector.shape_cast %87 : vector<1x1x32xf32> to vector<1x32xf32>
    %cst_53 = arith.constant dense<0.000000e+00> : vector<128xf32>
    %89 = vector.multi_reduction <add>, %84, %cst_53 [1] : vector<128x32xf32> to vector<128xf32>
    %90 = vector.shape_cast %89 : vector<128xf32> to vector<128x1xf32>
    %cst_54 = arith.constant 3.200000e+01 : f32
    %91 = vector.broadcast %cst_54 : f32 to vector<128x1xf32>
    %92 = arith.divf %90, %91 : vector<128x1xf32>
    %93 = arith.mulf %84, %84 : vector<128x32xf32>
    %cst_55 = arith.constant dense<0.000000e+00> : vector<128xf32>
    %94 = vector.multi_reduction <add>, %93, %cst_55 [1] : vector<128x32xf32> to vector<128xf32>
    %95 = vector.shape_cast %94 : vector<128xf32> to vector<128x1xf32>
    %cst_56 = arith.constant 3.200000e+01 : f32
    %96 = vector.broadcast %cst_56 : f32 to vector<128x1xf32>
    %97 = arith.divf %95, %96 : vector<128x1xf32>
    %98 = arith.mulf %92, %92 : vector<128x1xf32>
    %99 = arith.subf %97, %98 : vector<128x1xf32>
    %100 = vector.broadcast %92 : vector<128x1xf32> to vector<128x32xf32>
    %101 = arith.subf %84, %100 : vector<128x32xf32>
    %cst_57 = arith.constant 9.99999974E-6 : f32
    %102 = vector.broadcast %cst_57 : f32 to vector<128x1xf32>
    %103 = arith.addf %99, %102 : vector<128x1xf32>
    %104 = math.rsqrt %103 : vector<128x1xf32>
    %105 = vector.broadcast %104 : vector<128x1xf32> to vector<128x32xf32>
    %106 = arith.mulf %101, %105 : vector<128x32xf32>
    %107 = vector.broadcast %86 : vector<1x32xf32> to vector<128x32xf32>
    %108 = arith.mulf %106, %107 : vector<128x32xf32>
    %109 = vector.broadcast %88 : vector<1x32xf32> to vector<128x32xf32>
    %110 = arith.addf %108, %109 : vector<128x32xf32>
    %111 = arith.truncf %110 : vector<128x32xf32> to vector<128x32xbf16>
    %c1 = arith.constant 1 : index
    %c0_58 = arith.constant 0 : index
    %c0_59 = arith.constant 0 : index
    %112 = vector.load %arg1[%c1, %c0_58, %c0_59] : memref<4x32x64xbf16, #tpu.memory_space<vmem>>, vector<1x32x64xbf16>
    %113 = vector.shape_cast %112 : vector<1x32x64xbf16> to vector<32x64xbf16>
    %cst_60 = arith.constant dense<0.000000e+00> : vector<128x64xf32>
    %114 = tpu.matmul %111, %113, %cst_60 {dimension_numbers = #tpu.dot_dimension_numbers<[1], [0], [0], [1], [0, 0, 1, 1], [], []>} : vector<128x32xbf16>, vector<32x64xbf16>, vector<128x64xf32> -> vector<128x64xf32>
    %c1_61 = arith.constant 1 : index
    %c0_62 = arith.constant 0 : index
    %c0_63 = arith.constant 0 : index
    %115 = vector.load %arg2[%c1_61, %c0_62, %c0_63] : memref<4x1x64xf32, #tpu.memory_space<vmem>>, vector<1x1x64xf32>
    %116 = vector.shape_cast %115 : vector<1x1x64xf32> to vector<1x64xf32>
    %117 = vector.broadcast %116 : vector<1x64xf32> to vector<128x64xf32>
    %118 = arith.addf %114, %117 : vector<128x64xf32>
    %119 = vector.extract_strided_slice %118 {offsets = [0, 0], sizes = [128, 32], strides = [1, 1]} : vector<128x64xf32> to vector<128x32xf32>
    %120 = vector.extract_strided_slice %118 {offsets = [0, 32], sizes = [128, 32], strides = [1, 1]} : vector<128x64xf32> to vector<128x32xf32>
    %121 = arith.truncf %119 : vector<128x32xf32> to vector<128x32xbf16>
    %122 = arith.truncf %120 : vector<128x32xf32> to vector<128x32xbf16>
    %cst_64 = arith.constant dense<0.000000e+00> : vector<128x128xf32>
    %123 = tpu.matmul %121, %122, %cst_64 {dimension_numbers = #tpu.dot_dimension_numbers<[1], [1], [0], [0], [0, 0, 1, 0], [], []>} : vector<128x32xbf16>, vector<128x32xbf16>, vector<128x128xf32> -> vector<128x128xf32>
    %cst_65 = arith.constant dense<0xFF800000> : vector<128xf32>
    %124 = vector.multi_reduction <maximumf>, %123, %cst_65 [1] : vector<128x128xf32> to vector<128xf32>
    %125 = vector.shape_cast %124 : vector<128xf32> to vector<128x1xf32>
    %126 = vector.broadcast %125 : vector<128x1xf32> to vector<128x128xf32>
    %127 = arith.subf %123, %126 : vector<128x128xf32>
    %128 = math.exp %127 : vector<128x128xf32>
    %cst_66 = arith.constant dense<0.000000e+00> : vector<128xf32>
    %129 = vector.multi_reduction <add>, %128, %cst_66 [1] : vector<128x128xf32> to vector<128xf32>
    %130 = vector.shape_cast %129 : vector<128xf32> to vector<128x1xf32>
    %c1_67 = arith.constant 1 : index
    %c0_68 = arith.constant 0 : index
    %c0_69 = arith.constant 0 : index
    %131 = vector.load %arg3[%c1_67, %c0_68, %c0_69] : memref<4x1x32xf32, #tpu.memory_space<vmem>>, vector<1x1x32xf32>
    %132 = vector.shape_cast %131 : vector<1x1x32xf32> to vector<1x32xf32>
    %133 = vector.broadcast %132 : vector<1x32xf32> to vector<128x32xf32>
    %134 = arith.mulf %110, %133 : vector<128x32xf32>
    %cst_70 = arith.constant dense<0.000000e+00> : vector<128xf32>
    %135 = vector.multi_reduction <add>, %134, %cst_70 [1] : vector<128x32xf32> to vector<128xf32>
    %136 = vector.shape_cast %135 : vector<128xf32> to vector<128x1xf32>
    %c1_71 = arith.constant 1 : index
    %c0_72 = arith.constant 0 : index
    %c0_73 = arith.constant 0 : index
    %137 = vector.load %arg4[%c1_71, %c0_72, %c0_73] : memref<4x1x1xf32, #tpu.memory_space<vmem>>, vector<1x1x1xf32>
    %138 = vector.shape_cast %137 : vector<1x1x1xf32> to vector<1x1xf32>
    %139 = vector.broadcast %138 : vector<1x1xf32> to vector<128x1xf32>
    %140 = arith.addf %136, %139 : vector<128x1xf32>
    %cst_74 = arith.constant dense<0.000000e+00> : vector<128x1xf32>
    %141 = tpu.matmul %128, %140, %cst_74 {dimension_numbers = #tpu.dot_dimension_numbers<[1], [0], [0], [1], [0, 0, 1, 1], [], []>} : vector<128x128xf32>, vector<128x1xf32>, vector<128x1xf32> -> vector<128x1xf32>
    %142 = tpu.reciprocal %130 {approx = true} : vector<128x1xf32> -> vector<128x1xf32>
    %143 = arith.mulf %141, %142 : vector<128x1xf32>
    %c1_75 = arith.constant 1 : index
    %c0_76 = arith.constant 0 : index
    %c0_77 = arith.constant 0 : index
    %144 = vector.load %arg5[%c1_75, %c0_76, %c0_77] : memref<4x1x1xf32, #tpu.memory_space<vmem>>, vector<1x1x1xf32>
    %145 = vector.shape_cast %144 : vector<1x1x1xf32> to vector<1x1xf32>
    %146 = vector.broadcast %145 : vector<1x1xf32> to vector<128x1xf32>
    %147 = arith.addf %143, %146 : vector<128x1xf32>
    %148 = vector.broadcast %147 : vector<128x1xf32> to vector<128x32xf32>
    %149 = arith.addf %110, %148 : vector<128x32xf32>
    %c1_78 = arith.constant 1 : index
    %c0_79 = arith.constant 0 : index
    %c0_80 = arith.constant 0 : index
    %150 = vector.load %arg6[%c1_78, %c0_79, %c0_80] : memref<4x1x32xf32, #tpu.memory_space<vmem>>, vector<1x1x32xf32>
    %151 = vector.shape_cast %150 : vector<1x1x32xf32> to vector<1x32xf32>
    %c1_81 = arith.constant 1 : index
    %c0_82 = arith.constant 0 : index
    %c0_83 = arith.constant 0 : index
    %152 = vector.load %arg7[%c1_81, %c0_82, %c0_83] : memref<4x1x32xf32, #tpu.memory_space<vmem>>, vector<1x1x32xf32>
    %153 = vector.shape_cast %152 : vector<1x1x32xf32> to vector<1x32xf32>
    %cst_84 = arith.constant dense<0.000000e+00> : vector<128xf32>
    %154 = vector.multi_reduction <add>, %149, %cst_84 [1] : vector<128x32xf32> to vector<128xf32>
    %155 = vector.shape_cast %154 : vector<128xf32> to vector<128x1xf32>
    %cst_85 = arith.constant 3.200000e+01 : f32
    %156 = vector.broadcast %cst_85 : f32 to vector<128x1xf32>
    %157 = arith.divf %155, %156 : vector<128x1xf32>
    %158 = arith.mulf %149, %149 : vector<128x32xf32>
    %cst_86 = arith.constant dense<0.000000e+00> : vector<128xf32>
    %159 = vector.multi_reduction <add>, %158, %cst_86 [1] : vector<128x32xf32> to vector<128xf32>
    %160 = vector.shape_cast %159 : vector<128xf32> to vector<128x1xf32>
    %cst_87 = arith.constant 3.200000e+01 : f32
    %161 = vector.broadcast %cst_87 : f32 to vector<128x1xf32>
    %162 = arith.divf %160, %161 : vector<128x1xf32>
    %163 = arith.mulf %157, %157 : vector<128x1xf32>
    %164 = arith.subf %162, %163 : vector<128x1xf32>
    %165 = vector.broadcast %157 : vector<128x1xf32> to vector<128x32xf32>
    %166 = arith.subf %149, %165 : vector<128x32xf32>
    %cst_88 = arith.constant 9.99999974E-6 : f32
    %167 = vector.broadcast %cst_88 : f32 to vector<128x1xf32>
    %168 = arith.addf %164, %167 : vector<128x1xf32>
    %169 = math.rsqrt %168 : vector<128x1xf32>
    %170 = vector.broadcast %169 : vector<128x1xf32> to vector<128x32xf32>
    %171 = arith.mulf %166, %170 : vector<128x32xf32>
    %172 = vector.broadcast %151 : vector<1x32xf32> to vector<128x32xf32>
    %173 = arith.mulf %171, %172 : vector<128x32xf32>
    %174 = vector.broadcast %153 : vector<1x32xf32> to vector<128x32xf32>
    %175 = arith.addf %173, %174 : vector<128x32xf32>
    %176 = arith.truncf %175 : vector<128x32xf32> to vector<128x32xbf16>
    %c1_89 = arith.constant 1 : index
    %c0_90 = arith.constant 0 : index
    %c0_91 = arith.constant 0 : index
    %177 = vector.load %arg8[%c1_89, %c0_90, %c0_91] : memref<4x32x64xbf16, #tpu.memory_space<vmem>>, vector<1x32x64xbf16>
    %178 = vector.shape_cast %177 : vector<1x32x64xbf16> to vector<32x64xbf16>
    %cst_92 = arith.constant dense<0.000000e+00> : vector<128x64xf32>
    %179 = tpu.matmul %176, %178, %cst_92 {dimension_numbers = #tpu.dot_dimension_numbers<[1], [0], [0], [1], [0, 0, 1, 1], [], []>} : vector<128x32xbf16>, vector<32x64xbf16>, vector<128x64xf32> -> vector<128x64xf32>
    %c1_93 = arith.constant 1 : index
    %c0_94 = arith.constant 0 : index
    %c0_95 = arith.constant 0 : index
    %180 = vector.load %arg9[%c1_93, %c0_94, %c0_95] : memref<4x1x64xf32, #tpu.memory_space<vmem>>, vector<1x1x64xf32>
    %181 = vector.shape_cast %180 : vector<1x1x64xf32> to vector<1x64xf32>
    %182 = vector.broadcast %181 : vector<1x64xf32> to vector<128x64xf32>
    %183 = arith.addf %179, %182 : vector<128x64xf32>
    %cst_96 = arith.constant 0.000000e+00 : f32
    %184 = vector.broadcast %cst_96 : f32 to vector<128x64xf32>
    %185 = arith.maximumf %183, %184 : vector<128x64xf32>
    %186 = arith.truncf %185 : vector<128x64xf32> to vector<128x64xbf16>
    %c1_97 = arith.constant 1 : index
    %c0_98 = arith.constant 0 : index
    %c0_99 = arith.constant 0 : index
    %187 = vector.load %arg10[%c1_97, %c0_98, %c0_99] : memref<4x64x32xbf16, #tpu.memory_space<vmem>>, vector<1x64x32xbf16>
    %188 = vector.shape_cast %187 : vector<1x64x32xbf16> to vector<64x32xbf16>
    %cst_100 = arith.constant dense<0.000000e+00> : vector<128x32xf32>
    %189 = tpu.matmul %186, %188, %cst_100 {dimension_numbers = #tpu.dot_dimension_numbers<[1], [0], [0], [1], [0, 0, 1, 1], [], []>} : vector<128x64xbf16>, vector<64x32xbf16>, vector<128x32xf32> -> vector<128x32xf32>
    %c1_101 = arith.constant 1 : index
    %c0_102 = arith.constant 0 : index
    %c0_103 = arith.constant 0 : index
    %190 = vector.load %arg11[%c1_101, %c0_102, %c0_103] : memref<4x1x32xf32, #tpu.memory_space<vmem>>, vector<1x1x32xf32>
    %191 = vector.shape_cast %190 : vector<1x1x32xf32> to vector<1x32xf32>
    %192 = vector.broadcast %191 : vector<1x32xf32> to vector<128x32xf32>
    %193 = arith.addf %189, %192 : vector<128x32xf32>
    %194 = arith.addf %175, %193 : vector<128x32xf32>
    %c1_104 = arith.constant 1 : index
    %c0_105 = arith.constant 0 : index
    %c0_106 = arith.constant 0 : index
    %195 = vector.load %arg12[%c1_104, %c0_105, %c0_106] : memref<4x1x32xf32, #tpu.memory_space<vmem>>, vector<1x1x32xf32>
    %196 = vector.shape_cast %195 : vector<1x1x32xf32> to vector<1x32xf32>
    %c1_107 = arith.constant 1 : index
    %c0_108 = arith.constant 0 : index
    %c0_109 = arith.constant 0 : index
    %197 = vector.load %arg13[%c1_107, %c0_108, %c0_109] : memref<4x1x32xf32, #tpu.memory_space<vmem>>, vector<1x1x32xf32>
    %198 = vector.shape_cast %197 : vector<1x1x32xf32> to vector<1x32xf32>
    %cst_110 = arith.constant dense<0.000000e+00> : vector<128xf32>
    %199 = vector.multi_reduction <add>, %194, %cst_110 [1] : vector<128x32xf32> to vector<128xf32>
    %200 = vector.shape_cast %199 : vector<128xf32> to vector<128x1xf32>
    %cst_111 = arith.constant 3.200000e+01 : f32
    %201 = vector.broadcast %cst_111 : f32 to vector<128x1xf32>
    %202 = arith.divf %200, %201 : vector<128x1xf32>
    %203 = arith.mulf %194, %194 : vector<128x32xf32>
    %cst_112 = arith.constant dense<0.000000e+00> : vector<128xf32>
    %204 = vector.multi_reduction <add>, %203, %cst_112 [1] : vector<128x32xf32> to vector<128xf32>
    %205 = vector.shape_cast %204 : vector<128xf32> to vector<128x1xf32>
    %cst_113 = arith.constant 3.200000e+01 : f32
    %206 = vector.broadcast %cst_113 : f32 to vector<128x1xf32>
    %207 = arith.divf %205, %206 : vector<128x1xf32>
    %208 = arith.mulf %202, %202 : vector<128x1xf32>
    %209 = arith.subf %207, %208 : vector<128x1xf32>
    %210 = vector.broadcast %202 : vector<128x1xf32> to vector<128x32xf32>
    %211 = arith.subf %194, %210 : vector<128x32xf32>
    %cst_114 = arith.constant 9.99999974E-6 : f32
    %212 = vector.broadcast %cst_114 : f32 to vector<128x1xf32>
    %213 = arith.addf %209, %212 : vector<128x1xf32>
    %214 = math.rsqrt %213 : vector<128x1xf32>
    %215 = vector.broadcast %214 : vector<128x1xf32> to vector<128x32xf32>
    %216 = arith.mulf %211, %215 : vector<128x32xf32>
    %217 = vector.broadcast %196 : vector<1x32xf32> to vector<128x32xf32>
    %218 = arith.mulf %216, %217 : vector<128x32xf32>
    %219 = vector.broadcast %198 : vector<1x32xf32> to vector<128x32xf32>
    %220 = arith.addf %218, %219 : vector<128x32xf32>
    %221 = arith.truncf %220 : vector<128x32xf32> to vector<128x32xbf16>
    %c2 = arith.constant 2 : index
    %c0_115 = arith.constant 0 : index
    %c0_116 = arith.constant 0 : index
    %222 = vector.load %arg1[%c2, %c0_115, %c0_116] : memref<4x32x64xbf16, #tpu.memory_space<vmem>>, vector<1x32x64xbf16>
    %223 = vector.shape_cast %222 : vector<1x32x64xbf16> to vector<32x64xbf16>
    %cst_117 = arith.constant dense<0.000000e+00> : vector<128x64xf32>
    %224 = tpu.matmul %221, %223, %cst_117 {dimension_numbers = #tpu.dot_dimension_numbers<[1], [0], [0], [1], [0, 0, 1, 1], [], []>} : vector<128x32xbf16>, vector<32x64xbf16>, vector<128x64xf32> -> vector<128x64xf32>
    %c2_118 = arith.constant 2 : index
    %c0_119 = arith.constant 0 : index
    %c0_120 = arith.constant 0 : index
    %225 = vector.load %arg2[%c2_118, %c0_119, %c0_120] : memref<4x1x64xf32, #tpu.memory_space<vmem>>, vector<1x1x64xf32>
    %226 = vector.shape_cast %225 : vector<1x1x64xf32> to vector<1x64xf32>
    %227 = vector.broadcast %226 : vector<1x64xf32> to vector<128x64xf32>
    %228 = arith.addf %224, %227 : vector<128x64xf32>
    %229 = vector.extract_strided_slice %228 {offsets = [0, 0], sizes = [128, 32], strides = [1, 1]} : vector<128x64xf32> to vector<128x32xf32>
    %230 = vector.extract_strided_slice %228 {offsets = [0, 32], sizes = [128, 32], strides = [1, 1]} : vector<128x64xf32> to vector<128x32xf32>
    %231 = arith.truncf %229 : vector<128x32xf32> to vector<128x32xbf16>
    %232 = arith.truncf %230 : vector<128x32xf32> to vector<128x32xbf16>
    %cst_121 = arith.constant dense<0.000000e+00> : vector<128x128xf32>
    %233 = tpu.matmul %231, %232, %cst_121 {dimension_numbers = #tpu.dot_dimension_numbers<[1], [1], [0], [0], [0, 0, 1, 0], [], []>} : vector<128x32xbf16>, vector<128x32xbf16>, vector<128x128xf32> -> vector<128x128xf32>
    %cst_122 = arith.constant dense<0xFF800000> : vector<128xf32>
    %234 = vector.multi_reduction <maximumf>, %233, %cst_122 [1] : vector<128x128xf32> to vector<128xf32>
    %235 = vector.shape_cast %234 : vector<128xf32> to vector<128x1xf32>
    %236 = vector.broadcast %235 : vector<128x1xf32> to vector<128x128xf32>
    %237 = arith.subf %233, %236 : vector<128x128xf32>
    %238 = math.exp %237 : vector<128x128xf32>
    %cst_123 = arith.constant dense<0.000000e+00> : vector<128xf32>
    %239 = vector.multi_reduction <add>, %238, %cst_123 [1] : vector<128x128xf32> to vector<128xf32>
    %240 = vector.shape_cast %239 : vector<128xf32> to vector<128x1xf32>
    %c2_124 = arith.constant 2 : index
    %c0_125 = arith.constant 0 : index
    %c0_126 = arith.constant 0 : index
    %241 = vector.load %arg3[%c2_124, %c0_125, %c0_126] : memref<4x1x32xf32, #tpu.memory_space<vmem>>, vector<1x1x32xf32>
    %242 = vector.shape_cast %241 : vector<1x1x32xf32> to vector<1x32xf32>
    %243 = vector.broadcast %242 : vector<1x32xf32> to vector<128x32xf32>
    %244 = arith.mulf %220, %243 : vector<128x32xf32>
    %cst_127 = arith.constant dense<0.000000e+00> : vector<128xf32>
    %245 = vector.multi_reduction <add>, %244, %cst_127 [1] : vector<128x32xf32> to vector<128xf32>
    %246 = vector.shape_cast %245 : vector<128xf32> to vector<128x1xf32>
    %c2_128 = arith.constant 2 : index
    %c0_129 = arith.constant 0 : index
    %c0_130 = arith.constant 0 : index
    %247 = vector.load %arg4[%c2_128, %c0_129, %c0_130] : memref<4x1x1xf32, #tpu.memory_space<vmem>>, vector<1x1x1xf32>
    %248 = vector.shape_cast %247 : vector<1x1x1xf32> to vector<1x1xf32>
    %249 = vector.broadcast %248 : vector<1x1xf32> to vector<128x1xf32>
    %250 = arith.addf %246, %249 : vector<128x1xf32>
    %cst_131 = arith.constant dense<0.000000e+00> : vector<128x1xf32>
    %251 = tpu.matmul %238, %250, %cst_131 {dimension_numbers = #tpu.dot_dimension_numbers<[1], [0], [0], [1], [0, 0, 1, 1], [], []>} : vector<128x128xf32>, vector<128x1xf32>, vector<128x1xf32> -> vector<128x1xf32>
    %252 = tpu.reciprocal %240 {approx = true} : vector<128x1xf32> -> vector<128x1xf32>
    %253 = arith.mulf %251, %252 : vector<128x1xf32>
    %c2_132 = arith.constant 2 : index
    %c0_133 = arith.constant 0 : index
    %c0_134 = arith.constant 0 : index
    %254 = vector.load %arg5[%c2_132, %c0_133, %c0_134] : memref<4x1x1xf32, #tpu.memory_space<vmem>>, vector<1x1x1xf32>
    %255 = vector.shape_cast %254 : vector<1x1x1xf32> to vector<1x1xf32>
    %256 = vector.broadcast %255 : vector<1x1xf32> to vector<128x1xf32>
    %257 = arith.addf %253, %256 : vector<128x1xf32>
    %258 = vector.broadcast %257 : vector<128x1xf32> to vector<128x32xf32>
    %259 = arith.addf %220, %258 : vector<128x32xf32>
    %c2_135 = arith.constant 2 : index
    %c0_136 = arith.constant 0 : index
    %c0_137 = arith.constant 0 : index
    %260 = vector.load %arg6[%c2_135, %c0_136, %c0_137] : memref<4x1x32xf32, #tpu.memory_space<vmem>>, vector<1x1x32xf32>
    %261 = vector.shape_cast %260 : vector<1x1x32xf32> to vector<1x32xf32>
    %c2_138 = arith.constant 2 : index
    %c0_139 = arith.constant 0 : index
    %c0_140 = arith.constant 0 : index
    %262 = vector.load %arg7[%c2_138, %c0_139, %c0_140] : memref<4x1x32xf32, #tpu.memory_space<vmem>>, vector<1x1x32xf32>
    %263 = vector.shape_cast %262 : vector<1x1x32xf32> to vector<1x32xf32>
    %cst_141 = arith.constant dense<0.000000e+00> : vector<128xf32>
    %264 = vector.multi_reduction <add>, %259, %cst_141 [1] : vector<128x32xf32> to vector<128xf32>
    %265 = vector.shape_cast %264 : vector<128xf32> to vector<128x1xf32>
    %cst_142 = arith.constant 3.200000e+01 : f32
    %266 = vector.broadcast %cst_142 : f32 to vector<128x1xf32>
    %267 = arith.divf %265, %266 : vector<128x1xf32>
    %268 = arith.mulf %259, %259 : vector<128x32xf32>
    %cst_143 = arith.constant dense<0.000000e+00> : vector<128xf32>
    %269 = vector.multi_reduction <add>, %268, %cst_143 [1] : vector<128x32xf32> to vector<128xf32>
    %270 = vector.shape_cast %269 : vector<128xf32> to vector<128x1xf32>
    %cst_144 = arith.constant 3.200000e+01 : f32
    %271 = vector.broadcast %cst_144 : f32 to vector<128x1xf32>
    %272 = arith.divf %270, %271 : vector<128x1xf32>
    %273 = arith.mulf %267, %267 : vector<128x1xf32>
    %274 = arith.subf %272, %273 : vector<128x1xf32>
    %275 = vector.broadcast %267 : vector<128x1xf32> to vector<128x32xf32>
    %276 = arith.subf %259, %275 : vector<128x32xf32>
    %cst_145 = arith.constant 9.99999974E-6 : f32
    %277 = vector.broadcast %cst_145 : f32 to vector<128x1xf32>
    %278 = arith.addf %274, %277 : vector<128x1xf32>
    %279 = math.rsqrt %278 : vector<128x1xf32>
    %280 = vector.broadcast %279 : vector<128x1xf32> to vector<128x32xf32>
    %281 = arith.mulf %276, %280 : vector<128x32xf32>
    %282 = vector.broadcast %261 : vector<1x32xf32> to vector<128x32xf32>
    %283 = arith.mulf %281, %282 : vector<128x32xf32>
    %284 = vector.broadcast %263 : vector<1x32xf32> to vector<128x32xf32>
    %285 = arith.addf %283, %284 : vector<128x32xf32>
    %286 = arith.truncf %285 : vector<128x32xf32> to vector<128x32xbf16>
    %c2_146 = arith.constant 2 : index
    %c0_147 = arith.constant 0 : index
    %c0_148 = arith.constant 0 : index
    %287 = vector.load %arg8[%c2_146, %c0_147, %c0_148] : memref<4x32x64xbf16, #tpu.memory_space<vmem>>, vector<1x32x64xbf16>
    %288 = vector.shape_cast %287 : vector<1x32x64xbf16> to vector<32x64xbf16>
    %cst_149 = arith.constant dense<0.000000e+00> : vector<128x64xf32>
    %289 = tpu.matmul %286, %288, %cst_149 {dimension_numbers = #tpu.dot_dimension_numbers<[1], [0], [0], [1], [0, 0, 1, 1], [], []>} : vector<128x32xbf16>, vector<32x64xbf16>, vector<128x64xf32> -> vector<128x64xf32>
    %c2_150 = arith.constant 2 : index
    %c0_151 = arith.constant 0 : index
    %c0_152 = arith.constant 0 : index
    %290 = vector.load %arg9[%c2_150, %c0_151, %c0_152] : memref<4x1x64xf32, #tpu.memory_space<vmem>>, vector<1x1x64xf32>
    %291 = vector.shape_cast %290 : vector<1x1x64xf32> to vector<1x64xf32>
    %292 = vector.broadcast %291 : vector<1x64xf32> to vector<128x64xf32>
    %293 = arith.addf %289, %292 : vector<128x64xf32>
    %cst_153 = arith.constant 0.000000e+00 : f32
    %294 = vector.broadcast %cst_153 : f32 to vector<128x64xf32>
    %295 = arith.maximumf %293, %294 : vector<128x64xf32>
    %296 = arith.truncf %295 : vector<128x64xf32> to vector<128x64xbf16>
    %c2_154 = arith.constant 2 : index
    %c0_155 = arith.constant 0 : index
    %c0_156 = arith.constant 0 : index
    %297 = vector.load %arg10[%c2_154, %c0_155, %c0_156] : memref<4x64x32xbf16, #tpu.memory_space<vmem>>, vector<1x64x32xbf16>
    %298 = vector.shape_cast %297 : vector<1x64x32xbf16> to vector<64x32xbf16>
    %cst_157 = arith.constant dense<0.000000e+00> : vector<128x32xf32>
    %299 = tpu.matmul %296, %298, %cst_157 {dimension_numbers = #tpu.dot_dimension_numbers<[1], [0], [0], [1], [0, 0, 1, 1], [], []>} : vector<128x64xbf16>, vector<64x32xbf16>, vector<128x32xf32> -> vector<128x32xf32>
    %c2_158 = arith.constant 2 : index
    %c0_159 = arith.constant 0 : index
    %c0_160 = arith.constant 0 : index
    %300 = vector.load %arg11[%c2_158, %c0_159, %c0_160] : memref<4x1x32xf32, #tpu.memory_space<vmem>>, vector<1x1x32xf32>
    %301 = vector.shape_cast %300 : vector<1x1x32xf32> to vector<1x32xf32>
    %302 = vector.broadcast %301 : vector<1x32xf32> to vector<128x32xf32>
    %303 = arith.addf %299, %302 : vector<128x32xf32>
    %304 = arith.addf %285, %303 : vector<128x32xf32>
    %c2_161 = arith.constant 2 : index
    %c0_162 = arith.constant 0 : index
    %c0_163 = arith.constant 0 : index
    %305 = vector.load %arg12[%c2_161, %c0_162, %c0_163] : memref<4x1x32xf32, #tpu.memory_space<vmem>>, vector<1x1x32xf32>
    %306 = vector.shape_cast %305 : vector<1x1x32xf32> to vector<1x32xf32>
    %c2_164 = arith.constant 2 : index
    %c0_165 = arith.constant 0 : index
    %c0_166 = arith.constant 0 : index
    %307 = vector.load %arg13[%c2_164, %c0_165, %c0_166] : memref<4x1x32xf32, #tpu.memory_space<vmem>>, vector<1x1x32xf32>
    %308 = vector.shape_cast %307 : vector<1x1x32xf32> to vector<1x32xf32>
    %cst_167 = arith.constant dense<0.000000e+00> : vector<128xf32>
    %309 = vector.multi_reduction <add>, %304, %cst_167 [1] : vector<128x32xf32> to vector<128xf32>
    %310 = vector.shape_cast %309 : vector<128xf32> to vector<128x1xf32>
    %cst_168 = arith.constant 3.200000e+01 : f32
    %311 = vector.broadcast %cst_168 : f32 to vector<128x1xf32>
    %312 = arith.divf %310, %311 : vector<128x1xf32>
    %313 = arith.mulf %304, %304 : vector<128x32xf32>
    %cst_169 = arith.constant dense<0.000000e+00> : vector<128xf32>
    %314 = vector.multi_reduction <add>, %313, %cst_169 [1] : vector<128x32xf32> to vector<128xf32>
    %315 = vector.shape_cast %314 : vector<128xf32> to vector<128x1xf32>
    %cst_170 = arith.constant 3.200000e+01 : f32
    %316 = vector.broadcast %cst_170 : f32 to vector<128x1xf32>
    %317 = arith.divf %315, %316 : vector<128x1xf32>
    %318 = arith.mulf %312, %312 : vector<128x1xf32>
    %319 = arith.subf %317, %318 : vector<128x1xf32>
    %320 = vector.broadcast %312 : vector<128x1xf32> to vector<128x32xf32>
    %321 = arith.subf %304, %320 : vector<128x32xf32>
    %cst_171 = arith.constant 9.99999974E-6 : f32
    %322 = vector.broadcast %cst_171 : f32 to vector<128x1xf32>
    %323 = arith.addf %319, %322 : vector<128x1xf32>
    %324 = math.rsqrt %323 : vector<128x1xf32>
    %325 = vector.broadcast %324 : vector<128x1xf32> to vector<128x32xf32>
    %326 = arith.mulf %321, %325 : vector<128x32xf32>
    %327 = vector.broadcast %306 : vector<1x32xf32> to vector<128x32xf32>
    %328 = arith.mulf %326, %327 : vector<128x32xf32>
    %329 = vector.broadcast %308 : vector<1x32xf32> to vector<128x32xf32>
    %330 = arith.addf %328, %329 : vector<128x32xf32>
    %331 = arith.truncf %330 : vector<128x32xf32> to vector<128x32xbf16>
    %c3 = arith.constant 3 : index
    %c0_172 = arith.constant 0 : index
    %c0_173 = arith.constant 0 : index
    %332 = vector.load %arg1[%c3, %c0_172, %c0_173] : memref<4x32x64xbf16, #tpu.memory_space<vmem>>, vector<1x32x64xbf16>
    %333 = vector.shape_cast %332 : vector<1x32x64xbf16> to vector<32x64xbf16>
    %cst_174 = arith.constant dense<0.000000e+00> : vector<128x64xf32>
    %334 = tpu.matmul %331, %333, %cst_174 {dimension_numbers = #tpu.dot_dimension_numbers<[1], [0], [0], [1], [0, 0, 1, 1], [], []>} : vector<128x32xbf16>, vector<32x64xbf16>, vector<128x64xf32> -> vector<128x64xf32>
    %c3_175 = arith.constant 3 : index
    %c0_176 = arith.constant 0 : index
    %c0_177 = arith.constant 0 : index
    %335 = vector.load %arg2[%c3_175, %c0_176, %c0_177] : memref<4x1x64xf32, #tpu.memory_space<vmem>>, vector<1x1x64xf32>
    %336 = vector.shape_cast %335 : vector<1x1x64xf32> to vector<1x64xf32>
    %337 = vector.broadcast %336 : vector<1x64xf32> to vector<128x64xf32>
    %338 = arith.addf %334, %337 : vector<128x64xf32>
    %339 = vector.extract_strided_slice %338 {offsets = [0, 0], sizes = [128, 32], strides = [1, 1]} : vector<128x64xf32> to vector<128x32xf32>
    %340 = vector.extract_strided_slice %338 {offsets = [0, 32], sizes = [128, 32], strides = [1, 1]} : vector<128x64xf32> to vector<128x32xf32>
    %341 = arith.truncf %339 : vector<128x32xf32> to vector<128x32xbf16>
    %342 = arith.truncf %340 : vector<128x32xf32> to vector<128x32xbf16>
    %cst_178 = arith.constant dense<0.000000e+00> : vector<128x128xf32>
    %343 = tpu.matmul %341, %342, %cst_178 {dimension_numbers = #tpu.dot_dimension_numbers<[1], [1], [0], [0], [0, 0, 1, 0], [], []>} : vector<128x32xbf16>, vector<128x32xbf16>, vector<128x128xf32> -> vector<128x128xf32>
    %cst_179 = arith.constant dense<0xFF800000> : vector<128xf32>
    %344 = vector.multi_reduction <maximumf>, %343, %cst_179 [1] : vector<128x128xf32> to vector<128xf32>
    %345 = vector.shape_cast %344 : vector<128xf32> to vector<128x1xf32>
    %346 = vector.broadcast %345 : vector<128x1xf32> to vector<128x128xf32>
    %347 = arith.subf %343, %346 : vector<128x128xf32>
    %348 = math.exp %347 : vector<128x128xf32>
    %cst_180 = arith.constant dense<0.000000e+00> : vector<128xf32>
    %349 = vector.multi_reduction <add>, %348, %cst_180 [1] : vector<128x128xf32> to vector<128xf32>
    %350 = vector.shape_cast %349 : vector<128xf32> to vector<128x1xf32>
    %c3_181 = arith.constant 3 : index
    %c0_182 = arith.constant 0 : index
    %c0_183 = arith.constant 0 : index
    %351 = vector.load %arg3[%c3_181, %c0_182, %c0_183] : memref<4x1x32xf32, #tpu.memory_space<vmem>>, vector<1x1x32xf32>
    %352 = vector.shape_cast %351 : vector<1x1x32xf32> to vector<1x32xf32>
    %353 = vector.broadcast %352 : vector<1x32xf32> to vector<128x32xf32>
    %354 = arith.mulf %330, %353 : vector<128x32xf32>
    %cst_184 = arith.constant dense<0.000000e+00> : vector<128xf32>
    %355 = vector.multi_reduction <add>, %354, %cst_184 [1] : vector<128x32xf32> to vector<128xf32>
    %356 = vector.shape_cast %355 : vector<128xf32> to vector<128x1xf32>
    %c3_185 = arith.constant 3 : index
    %c0_186 = arith.constant 0 : index
    %c0_187 = arith.constant 0 : index
    %357 = vector.load %arg4[%c3_185, %c0_186, %c0_187] : memref<4x1x1xf32, #tpu.memory_space<vmem>>, vector<1x1x1xf32>
    %358 = vector.shape_cast %357 : vector<1x1x1xf32> to vector<1x1xf32>
    %359 = vector.broadcast %358 : vector<1x1xf32> to vector<128x1xf32>
    %360 = arith.addf %356, %359 : vector<128x1xf32>
    %cst_188 = arith.constant dense<0.000000e+00> : vector<128x1xf32>
    %361 = tpu.matmul %348, %360, %cst_188 {dimension_numbers = #tpu.dot_dimension_numbers<[1], [0], [0], [1], [0, 0, 1, 1], [], []>} : vector<128x128xf32>, vector<128x1xf32>, vector<128x1xf32> -> vector<128x1xf32>
    %362 = tpu.reciprocal %350 {approx = true} : vector<128x1xf32> -> vector<128x1xf32>
    %363 = arith.mulf %361, %362 : vector<128x1xf32>
    %c3_189 = arith.constant 3 : index
    %c0_190 = arith.constant 0 : index
    %c0_191 = arith.constant 0 : index
    %364 = vector.load %arg5[%c3_189, %c0_190, %c0_191] : memref<4x1x1xf32, #tpu.memory_space<vmem>>, vector<1x1x1xf32>
    %365 = vector.shape_cast %364 : vector<1x1x1xf32> to vector<1x1xf32>
    %366 = vector.broadcast %365 : vector<1x1xf32> to vector<128x1xf32>
    %367 = arith.addf %363, %366 : vector<128x1xf32>
    %368 = vector.broadcast %367 : vector<128x1xf32> to vector<128x32xf32>
    %369 = arith.addf %330, %368 : vector<128x32xf32>
    %c3_192 = arith.constant 3 : index
    %c0_193 = arith.constant 0 : index
    %c0_194 = arith.constant 0 : index
    %370 = vector.load %arg6[%c3_192, %c0_193, %c0_194] : memref<4x1x32xf32, #tpu.memory_space<vmem>>, vector<1x1x32xf32>
    %371 = vector.shape_cast %370 : vector<1x1x32xf32> to vector<1x32xf32>
    %c3_195 = arith.constant 3 : index
    %c0_196 = arith.constant 0 : index
    %c0_197 = arith.constant 0 : index
    %372 = vector.load %arg7[%c3_195, %c0_196, %c0_197] : memref<4x1x32xf32, #tpu.memory_space<vmem>>, vector<1x1x32xf32>
    %373 = vector.shape_cast %372 : vector<1x1x32xf32> to vector<1x32xf32>
    %cst_198 = arith.constant dense<0.000000e+00> : vector<128xf32>
    %374 = vector.multi_reduction <add>, %369, %cst_198 [1] : vector<128x32xf32> to vector<128xf32>
    %375 = vector.shape_cast %374 : vector<128xf32> to vector<128x1xf32>
    %cst_199 = arith.constant 3.200000e+01 : f32
    %376 = vector.broadcast %cst_199 : f32 to vector<128x1xf32>
    %377 = arith.divf %375, %376 : vector<128x1xf32>
    %378 = arith.mulf %369, %369 : vector<128x32xf32>
    %cst_200 = arith.constant dense<0.000000e+00> : vector<128xf32>
    %379 = vector.multi_reduction <add>, %378, %cst_200 [1] : vector<128x32xf32> to vector<128xf32>
    %380 = vector.shape_cast %379 : vector<128xf32> to vector<128x1xf32>
    %cst_201 = arith.constant 3.200000e+01 : f32
    %381 = vector.broadcast %cst_201 : f32 to vector<128x1xf32>
    %382 = arith.divf %380, %381 : vector<128x1xf32>
    %383 = arith.mulf %377, %377 : vector<128x1xf32>
    %384 = arith.subf %382, %383 : vector<128x1xf32>
    %385 = vector.broadcast %377 : vector<128x1xf32> to vector<128x32xf32>
    %386 = arith.subf %369, %385 : vector<128x32xf32>
    %cst_202 = arith.constant 9.99999974E-6 : f32
    %387 = vector.broadcast %cst_202 : f32 to vector<128x1xf32>
    %388 = arith.addf %384, %387 : vector<128x1xf32>
    %389 = math.rsqrt %388 : vector<128x1xf32>
    %390 = vector.broadcast %389 : vector<128x1xf32> to vector<128x32xf32>
    %391 = arith.mulf %386, %390 : vector<128x32xf32>
    %392 = vector.broadcast %371 : vector<1x32xf32> to vector<128x32xf32>
    %393 = arith.mulf %391, %392 : vector<128x32xf32>
    %394 = vector.broadcast %373 : vector<1x32xf32> to vector<128x32xf32>
    %395 = arith.addf %393, %394 : vector<128x32xf32>
    %396 = arith.truncf %395 : vector<128x32xf32> to vector<128x32xbf16>
    %c3_203 = arith.constant 3 : index
    %c0_204 = arith.constant 0 : index
    %c0_205 = arith.constant 0 : index
    %397 = vector.load %arg8[%c3_203, %c0_204, %c0_205] : memref<4x32x64xbf16, #tpu.memory_space<vmem>>, vector<1x32x64xbf16>
    %398 = vector.shape_cast %397 : vector<1x32x64xbf16> to vector<32x64xbf16>
    %cst_206 = arith.constant dense<0.000000e+00> : vector<128x64xf32>
    %399 = tpu.matmul %396, %398, %cst_206 {dimension_numbers = #tpu.dot_dimension_numbers<[1], [0], [0], [1], [0, 0, 1, 1], [], []>} : vector<128x32xbf16>, vector<32x64xbf16>, vector<128x64xf32> -> vector<128x64xf32>
    %c3_207 = arith.constant 3 : index
    %c0_208 = arith.constant 0 : index
    %c0_209 = arith.constant 0 : index
    %400 = vector.load %arg9[%c3_207, %c0_208, %c0_209] : memref<4x1x64xf32, #tpu.memory_space<vmem>>, vector<1x1x64xf32>
    %401 = vector.shape_cast %400 : vector<1x1x64xf32> to vector<1x64xf32>
    %402 = vector.broadcast %401 : vector<1x64xf32> to vector<128x64xf32>
    %403 = arith.addf %399, %402 : vector<128x64xf32>
    %cst_210 = arith.constant 0.000000e+00 : f32
    %404 = vector.broadcast %cst_210 : f32 to vector<128x64xf32>
    %405 = arith.maximumf %403, %404 : vector<128x64xf32>
    %406 = arith.truncf %405 : vector<128x64xf32> to vector<128x64xbf16>
    %c3_211 = arith.constant 3 : index
    %c0_212 = arith.constant 0 : index
    %c0_213 = arith.constant 0 : index
    %407 = vector.load %arg10[%c3_211, %c0_212, %c0_213] : memref<4x64x32xbf16, #tpu.memory_space<vmem>>, vector<1x64x32xbf16>
    %408 = vector.shape_cast %407 : vector<1x64x32xbf16> to vector<64x32xbf16>
    %cst_214 = arith.constant dense<0.000000e+00> : vector<128x32xf32>
    %409 = tpu.matmul %406, %408, %cst_214 {dimension_numbers = #tpu.dot_dimension_numbers<[1], [0], [0], [1], [0, 0, 1, 1], [], []>} : vector<128x64xbf16>, vector<64x32xbf16>, vector<128x32xf32> -> vector<128x32xf32>
    %c3_215 = arith.constant 3 : index
    %c0_216 = arith.constant 0 : index
    %c0_217 = arith.constant 0 : index
    %410 = vector.load %arg11[%c3_215, %c0_216, %c0_217] : memref<4x1x32xf32, #tpu.memory_space<vmem>>, vector<1x1x32xf32>
    %411 = vector.shape_cast %410 : vector<1x1x32xf32> to vector<1x32xf32>
    %412 = vector.broadcast %411 : vector<1x32xf32> to vector<128x32xf32>
    %413 = arith.addf %409, %412 : vector<128x32xf32>
    %414 = arith.addf %395, %413 : vector<128x32xf32>
    %c3_218 = arith.constant 3 : index
    %c0_219 = arith.constant 0 : index
    %c0_220 = arith.constant 0 : index
    %415 = vector.load %arg12[%c3_218, %c0_219, %c0_220] : memref<4x1x32xf32, #tpu.memory_space<vmem>>, vector<1x1x32xf32>
    %416 = vector.shape_cast %415 : vector<1x1x32xf32> to vector<1x32xf32>
    %c3_221 = arith.constant 3 : index
    %c0_222 = arith.constant 0 : index
    %c0_223 = arith.constant 0 : index
    %417 = vector.load %arg13[%c3_221, %c0_222, %c0_223] : memref<4x1x32xf32, #tpu.memory_space<vmem>>, vector<1x1x32xf32>
    %418 = vector.shape_cast %417 : vector<1x1x32xf32> to vector<1x32xf32>
    %cst_224 = arith.constant dense<0.000000e+00> : vector<128xf32>
    %419 = vector.multi_reduction <add>, %414, %cst_224 [1] : vector<128x32xf32> to vector<128xf32>
    %420 = vector.shape_cast %419 : vector<128xf32> to vector<128x1xf32>
    %cst_225 = arith.constant 3.200000e+01 : f32
    %421 = vector.broadcast %cst_225 : f32 to vector<128x1xf32>
    %422 = arith.divf %420, %421 : vector<128x1xf32>
    %423 = arith.mulf %414, %414 : vector<128x32xf32>
    %cst_226 = arith.constant dense<0.000000e+00> : vector<128xf32>
    %424 = vector.multi_reduction <add>, %423, %cst_226 [1] : vector<128x32xf32> to vector<128xf32>
    %425 = vector.shape_cast %424 : vector<128xf32> to vector<128x1xf32>
    %cst_227 = arith.constant 3.200000e+01 : f32
    %426 = vector.broadcast %cst_227 : f32 to vector<128x1xf32>
    %427 = arith.divf %425, %426 : vector<128x1xf32>
    %428 = arith.mulf %422, %422 : vector<128x1xf32>
    %429 = arith.subf %427, %428 : vector<128x1xf32>
    %430 = vector.broadcast %422 : vector<128x1xf32> to vector<128x32xf32>
    %431 = arith.subf %414, %430 : vector<128x32xf32>
    %cst_228 = arith.constant 9.99999974E-6 : f32
    %432 = vector.broadcast %cst_228 : f32 to vector<128x1xf32>
    %433 = arith.addf %429, %432 : vector<128x1xf32>
    %434 = math.rsqrt %433 : vector<128x1xf32>
    %435 = vector.broadcast %434 : vector<128x1xf32> to vector<128x32xf32>
    %436 = arith.mulf %431, %435 : vector<128x32xf32>
    %437 = vector.broadcast %416 : vector<1x32xf32> to vector<128x32xf32>
    %438 = arith.mulf %436, %437 : vector<128x32xf32>
    %439 = vector.broadcast %418 : vector<1x32xf32> to vector<128x32xf32>
    %440 = arith.addf %438, %439 : vector<128x32xf32>
    %c0_229 = arith.constant 0 : index
    %c0_230 = arith.constant 0 : index
    %441 = vector.load %arg14[%c0_229, %c0_230] : memref<1x32xf32, #tpu.memory_space<vmem>>, vector<1x32xf32>
    %442 = vector.broadcast %441 : vector<1x32xf32> to vector<128x32xf32>
    %443 = arith.mulf %440, %442 : vector<128x32xf32>
    %cst_231 = arith.constant dense<0.000000e+00> : vector<128xf32>
    %444 = vector.multi_reduction <add>, %443, %cst_231 [1] : vector<128x32xf32> to vector<128xf32>
    %445 = vector.shape_cast %444 : vector<128xf32> to vector<128x1xf32>
    %c0_232 = arith.constant 0 : index
    %c0_233 = arith.constant 0 : index
    %446 = vector.load %arg15[%c0_232, %c0_233] : memref<128x1xf32, #tpu.memory_space<vmem>>, vector<128x1xf32>
    tpu.vector_store %arg15[%c0_232, %c0_233], %445 {strides = array<i32>} : memref<128x1xf32, #tpu.memory_space<vmem>>, vector<128x1xf32>,
    return
  }
}

</mosaic_0001>

<llo_original>
// kernel: tpu_custom_call.1
$region0: #{tpu_custom_call.1}
  #allocation0 [shape = 'u32[]', space=smem, size = 0x4, offset = 0x4, fixed_abs, tag = 'smem constant byte address 0x4 - core index']
  #allocation1 [shape = 'u32[144,128]{1,0:T(1,128)}', space=vmem, size = 0x12000, scoped, tag = 'internal scratch']
  %s0 = inlined_call_operand.vmem [shape: f32[128,32], index: 0, kind: input, shape index: {}]
  %s1 = inlined_call_operand.vmem [shape: bf16[4,32,64], index: 1, kind: input, shape index: {}]
  %s2 = inlined_call_operand.vmem [shape: f32[4,1,64], index: 2, kind: input, shape index: {}]
  %s3 = inlined_call_operand.vmem [shape: f32[4,1,32], index: 3, kind: input, shape index: {}]
  %s4 = inlined_call_operand.vmem [shape: f32[4,1,1], index: 4, kind: input, shape index: {}]
  %s5 = inlined_call_operand.vmem [shape: f32[4,1,1], index: 5, kind: input, shape index: {}]
  %s6 = inlined_call_operand.vmem [shape: f32[4,1,32], index: 6, kind: input, shape index: {}]
  %s7 = inlined_call_operand.vmem [shape: f32[4,1,32], index: 7, kind: input, shape index: {}]
  %s8 = inlined_call_operand.vmem [shape: bf16[4,32,64], index: 8, kind: input, shape index: {}]
  %s9 = inlined_call_operand.vmem [shape: f32[4,1,64], index: 9, kind: input, shape index: {}]
  %s10 = inlined_call_operand.vmem [shape: bf16[4,64,32], index: 10, kind: input, shape index: {}]
  %s11 = inlined_call_operand.vmem [shape: f32[4,1,32], index: 11, kind: input, shape index: {}]
  %s12 = inlined_call_operand.vmem [shape: f32[4,1,32], index: 12, kind: input, shape index: {}]
  %s13 = inlined_call_operand.vmem [shape: f32[4,1,32], index: 13, kind: input, shape index: {}]
  %s14 = inlined_call_operand.vmem [shape: f32[1,32], index: 14, kind: input, shape index: {}]
  %s15 = inlined_call_operand.vmem [shape: f32[128,1], index: 15, kind: output, shape index: {}]
  %s16 = sld [smem:[#allocation0]]
  $region70: #{tpu_custom_call.1} parent=0
    _
  %s18 = ssub.s32 1, %s16
  %s19 = scalar_select 0, %s18, %s16
  // Predicated region
  $region2: #{tpu_custom_call.1} parent=0 // pred_check
    _
  $region3: #{tpu_custom_call.1} parent=0 // pred_check_branch
    %21 = sbr.rel (0) target = $region5
  $region4: #{tpu_custom_call.1} parent=0 // pred_region
    _
  $region5: #{tpu_custom_call.1} parent=0 // pred_fallthru
    _
  // Predicated region
  $region6: #{tpu_custom_call.1} parent=0 // pred_check
    _
  $region7: #{tpu_custom_call.1} parent=0 // pred_check_branch
    %23 = sbr.rel (0) target = $region9
  $region8: #{tpu_custom_call.1} parent=0 // pred_region
    _
  $region9: #{tpu_custom_call.1} parent=0 // pred_fallthru
    _
  // Predicated region
  $region10: #{tpu_custom_call.1} parent=0 // pred_check
    _
  $region11: #{tpu_custom_call.1} parent=0 // pred_check_branch
    %25 = sbr.rel (0) target = $region13
  $region12: #{tpu_custom_call.1} parent=0 // pred_region
    _
  $region13: #{tpu_custom_call.1} parent=0 // pred_fallthru
    _
  // Predicated region
  $region14: #{tpu_custom_call.1} parent=0 // pred_check
    _
  $region15: #{tpu_custom_call.1} parent=0 // pred_check_branch
    %27 = sbr.rel (0) target = $region17
  $region16: #{tpu_custom_call.1} parent=0 // pred_region
    _
  $region17: #{tpu_custom_call.1} parent=0 // pred_fallthru
    _
  // Predicated region
  $region18: #{tpu_custom_call.1} parent=0 // pred_check
    _
  $region19: #{tpu_custom_call.1} parent=0 // pred_check_branch
    %29 = sbr.rel (0) target = $region21
  $region20: #{tpu_custom_call.1} parent=0 // pred_region
    _
  $region21: #{tpu_custom_call.1} parent=0 // pred_fallthru
    _
  // Predicated region
  $region22: #{tpu_custom_call.1} parent=0 // pred_check
    _
  $region23: #{tpu_custom_call.1} parent=0 // pred_check_branch
    %31 = sbr.rel (0) target = $region25
  $region24: #{tpu_custom_call.1} parent=0 // pred_region
    _
  $region25: #{tpu_custom_call.1} parent=0 // pred_fallthru
    _
  // Predicated region
  $region26: #{tpu_custom_call.1} parent=0 // pred_check
    _
  $region27: #{tpu_custom_call.1} parent=0 // pred_check_branch
    %33 = sbr.rel (0) target = $region29
  $region28: #{tpu_custom_call.1} parent=0 // pred_region
    _
  $region29: #{tpu_custom_call.1} parent=0 // pred_fallthru
    _
  // Predicated region
  $region30: #{tpu_custom_call.1} parent=0 // pred_check
    _
  $region31: #{tpu_custom_call.1} parent=0 // pred_check_branch
    %35 = sbr.rel (0) target = $region33
  $region32: #{tpu_custom_call.1} parent=0 // pred_region
    _
  $region33: #{tpu_custom_call.1} parent=0 // pred_fallthru
    _
  // Predicated region
  $region34: #{tpu_custom_call.1} parent=0 // pred_check
    _
  $region35: #{tpu_custom_call.1} parent=0 // pred_check_branch
    %37 = sbr.rel (0) target = $region37
  $region36: #{tpu_custom_call.1} parent=0 // pred_region
    _
  $region37: #{tpu_custom_call.1} parent=0 // pred_fallthru
    _
  // Predicated region
  $region38: #{tpu_custom_call.1} parent=0 // pred_check
    _
  $region39: #{tpu_custom_call.1} parent=0 // pred_check_branch
    %39 = sbr.rel (0) target = $region41
  $region40: #{tpu_custom_call.1} parent=0 // pred_region
    _
  $region41: #{tpu_custom_call.1} parent=0 // pred_fallthru
    _
  // Predicated region
  $region42: #{tpu_custom_call.1} parent=0 // pred_check
    _
  $region43: #{tpu_custom_call.1} parent=0 // pred_check_branch
    %41 = sbr.rel (0) target = $region45
  $region44: #{tpu_custom_call.1} parent=0 // pred_region
    _
  $region45: #{tpu_custom_call.1} parent=0 // pred_fallthru
    _
  // Predicated region
  $region46: #{tpu_custom_call.1} parent=0 // pred_check
    _
  $region47: #{tpu_custom_call.1} parent=0 // pred_check_branch
    %43 = sbr.rel (0) target = $region49
  $region48: #{tpu_custom_call.1} parent=0 // pred_region
    _
  $region49: #{tpu_custom_call.1} parent=0 // pred_fallthru
    _
  // Predicated region
  $region50: #{tpu_custom_call.1} parent=0 // pred_check
    _
  $region51: #{tpu_custom_call.1} parent=0 // pred_check_branch
    %45 = sbr.rel (0) target = $region53
  $region52: #{tpu_custom_call.1} parent=0 // pred_region
    _
  $region53: #{tpu_custom_call.1} parent=0 // pred_fallthru
    _
  // Predicated region
  $region54: #{tpu_custom_call.1} parent=0 // pred_check
    _
  $region55: #{tpu_custom_call.1} parent=0 // pred_check_branch
    %47 = sbr.rel (0) target = $region57
  $region56: #{tpu_custom_call.1} parent=0 // pred_region
    _
  $region57: #{tpu_custom_call.1} parent=0 // pred_fallthru
    _
  // Predicated region
  $region58: #{tpu_custom_call.1} parent=0 // pred_check
    _
  $region59: #{tpu_custom_call.1} parent=0 // pred_check_branch
    %49 = sbr.rel (0) target = $region61
  $region60: #{tpu_custom_call.1} parent=0 // pred_region
    _
  $region61: #{tpu_custom_call.1} parent=0 // pred_fallthru
    _
  %v51 = vld [vmem:[%s0] sm:$0xff]
  %v52 = vld [vmem:[%s0 + $0x8] sm:$0xff]
  %v53 = vld [vmem:[%s0 + $0x10] sm:$0xff]
  %v54 = vld [vmem:[%s0 + $0x18] sm:$0xff]
  %v55 = vld [vmem:[%s0 + $0x20] sm:$0xff]
  %v56 = vld [vmem:[%s0 + $0x28] sm:$0xff]
  %v57 = vld [vmem:[%s0 + $0x30] sm:$0xff]
  %v58 = vld [vmem:[%s0 + $0x38] sm:$0xff]
  %v59 = vld [vmem:[%s0 + $0x40] sm:$0xff]
  %v60 = vld [vmem:[%s0 + $0x48] sm:$0xff]
  %v61 = vld [vmem:[%s0 + $0x50] sm:$0xff]
  %v62 = vld [vmem:[%s0 + $0x58] sm:$0xff]
  %v63 = vld [vmem:[%s0 + $0x60] sm:$0xff]
  %v64 = vld [vmem:[%s0 + $0x68] sm:$0xff]
  %v65 = vld [vmem:[%s0 + $0x70] sm:$0xff]
  %v66 = vld [vmem:[%s0 + $0x78] sm:$0xff]
  %v67 = vpack.c.bf16 %v52, %v51
  %v68 = vpack.c.bf16 %v54, %v53
  %v69 = vpack.c.bf16 %v56, %v55
  %v70 = vpack.c.bf16 %v58, %v57
  %v71 = vpack.c.bf16 %v60, %v59
  %v72 = vpack.c.bf16 %v62, %v61
  %v73 = vpack.c.bf16 %v64, %v63
  %v74 = vpack.c.bf16 %v66, %v65
  %v75 = vld [vmem:[%s1] sm:$0xf]
  %v76 = vld [vmem:[%s1 + $0x4] sm:$0xf]
  %v77 = vld [vmem:[%s1 + $0x8] sm:$0xf]
  %v78 = vld [vmem:[%s1 + $0xc] sm:$0xf]
  %v79 = vld [vmem:[%s2] sm:$0x1]
  %v81 = vlaneseq
  %v82 = vshrl.u32 %v81, 7
  %v83 = vsub.s32 0, %v82
  %v84 = vrot.slane %v79, %v83
  %v90 = vunpack.c.l.b16 %v75
  %v91 = vunpack.c.l.b16 %v76
  %v92 = vunpack.c.l.b16 %v77
  %v93 = vunpack.c.l.b16 %v78
  %v94 = vpack.c.b16 %v91, %v90
  %v95 = vpack.c.b16 %v93, %v92
  %vm98 = vcmask 261120
  %v100 = vsel %vm98, %v67, 0
  %v103 = vsel %vm98, %v68, 0
  %v106 = vsel %vm98, %v69, 0
  %v109 = vsel %vm98, %v70, 0
  %v112 = vsel %vm98, %v71, 0
  %v115 = vsel %vm98, %v72, 0
  %v118 = vsel %vm98, %v73, 0
  %v121 = vsel %vm98, %v74, 0
  %123 = vmatprep.subr.bf16.mxu0 0
  %124 = vmatpush1.bf16.msra.mxu0 0
  %125 = vmatprep.subr.bf16.mxu0 0
  %126 = vmatpush1.bf16.msra.mxu0 0
  %127 = vmatprep.subr.bf16.mxu0 0
  %128 = vmatpush1.bf16.msra.mxu0 0
  %129 = vmatprep.subr.bf16.mxu0 0
  %130 = vmatpush1.bf16.msra.mxu0 0
  %131 = vmatprep.subr.bf16.mxu0 0
  %132 = vmatpush1.bf16.msra.mxu0 0
  %133 = vmatprep.subr.bf16.mxu0 0
  %134 = vmatpush1.bf16.msra.mxu0 0
  %135 = vmatprep.subr.bf16.mxu0 0
  %136 = vmatpush1.bf16.msra.mxu0 %v95
  %137 = vmatprep.subr.bf16.mxu0 0
  %138 = vmatpush1.bf16.msra.mxu0 %v94
  %139 = vmatprep.subr.bf16.mxu0 0
  %140 = vmatpush2.bf16.msra.mxu0 0
  %141 = vmatprep.subr.bf16.mxu0 0
  %142 = vmatpush2.bf16.msra.mxu0 0
  %143 = vmatprep.subr.bf16.mxu0 0
  %144 = vmatpush2.bf16.msra.mxu0 0
  %145 = vmatprep.subr.bf16.mxu0 0
  %146 = vmatpush2.bf16.msra.mxu0 0
  %147 = vmatprep.subr.bf16.mxu0 0
  %148 = vmatpush2.bf16.msra.mxu0 0
  %149 = vmatprep.subr.bf16.mxu0 0
  %150 = vmatpush2.bf16.msra.mxu0 0
  %151 = vmatprep.subr.bf16.mxu0 0
  %152 = vmatpush2.bf16.msra.mxu0 0
  %153 = vmatprep.subr.bf16.mxu0 0
  %154 = vmatpush2.bf16.msra.mxu0 0
  %155 = vmatprep.mubr.bf16.mxu0 0
  %156 = vmatmul.mubr.bf16.gmra.mxu0 %v100
  %v157 = vpop.f32.mrf.mxu0
  %v158 = vadd.f32 %v84, %v157
  %v159 = vpop.f32.mrf.mxu0
  %v160 = vpop.f32.mrf.mxu0
  %v161 = vadd.f32 %v84, %v160
  %v162 = vpop.f32.mrf.mxu0
  %163 = vmatprep.mubr.bf16.mxu0 0
  %164 = vmatmul.mubr.bf16.gmra.mxu0 %v103
  %v165 = vpop.f32.mrf.mxu0
  %v166 = vadd.f32 %v84, %v165
  %v167 = vpop.f32.mrf.mxu0
  %v168 = vpop.f32.mrf.mxu0
  %v169 = vadd.f32 %v84, %v168
  %v170 = vpop.f32.mrf.mxu0
  %171 = vmatprep.mubr.bf16.mxu0 0
  %172 = vmatmul.mubr.bf16.gmra.mxu0 %v106
  %v173 = vpop.f32.mrf.mxu0
  %v174 = vadd.f32 %v84, %v173
  %v175 = vpop.f32.mrf.mxu0
  %v176 = vpop.f32.mrf.mxu0
  %v177 = vadd.f32 %v84, %v176
  %v178 = vpop.f32.mrf.mxu0
  %179 = vmatprep.mubr.bf16.mxu0 0
  %180 = vmatmul.mubr.bf16.gmra.mxu0 %v109
  %v181 = vpop.f32.mrf.mxu0
  %v182 = vadd.f32 %v84, %v181
  %v183 = vpop.f32.mrf.mxu0
  %v184 = vpop.f32.mrf.mxu0
  %v185 = vadd.f32 %v84, %v184
  %v186 = vpop.f32.mrf.mxu0
  %187 = vmatprep.mubr.bf16.mxu0 0
  %188 = vmatmul.mubr.bf16.gmra.mxu0 %v112
  %v189 = vpop.f32.mrf.mxu0
  %v190 = vadd.f32 %v84, %v189
  %v191 = vpop.f32.mrf.mxu0
  %v192 = vpop.f32.mrf.mxu0
  %v193 = vadd.f32 %v84, %v192
  %v194 = vpop.f32.mrf.mxu0
  %195 = vmatprep.mubr.bf16.mxu0 0
  %196 = vmatmul.mubr.bf16.gmra.mxu0 %v115
  %v197 = vpop.f32.mrf.mxu0
  %v198 = vadd.f32 %v84, %v197
  %v199 = vpop.f32.mrf.mxu0
  %v200 = vpop.f32.mrf.mxu0
  %v201 = vadd.f32 %v84, %v200
  %v202 = vpop.f32.mrf.mxu0
  %203 = vmatprep.mubr.bf16.mxu0 0
  %204 = vmatmul.mubr.bf16.gmra.mxu0 %v118
  %v205 = vpop.f32.mrf.mxu0
  %v206 = vadd.f32 %v84, %v205
  %v207 = vpop.f32.mrf.mxu0
  %v208 = vpop.f32.mrf.mxu0
  %v209 = vadd.f32 %v84, %v208
  %v210 = vpop.f32.mrf.mxu0
  %211 = vmatprep.mubr.bf16.mxu0 0
  %212 = vmatmul.mubr.bf16.gmra.mxu0 %v121
  %v213 = vpop.f32.mrf.mxu0
  %v214 = vadd.f32 %v84, %v213
  %v215 = vpop.f32.mrf.mxu0
  %v216 = vpop.f32.mrf.mxu0
  %v217 = vadd.f32 %v84, %v216
  %v218 = vpop.f32.mrf.mxu0
  %219 = vdwg.mxu0
  %v220 = vpack.c.bf16 %v161, %v158
  %v221 = vpack.c.bf16 %v169, %v166
  %v222 = vpack.c.bf16 %v177, %v174
  %v223 = vpack.c.bf16 %v185, %v182
  %v224 = vpack.c.bf16 %v193, %v190
  %v225 = vpack.c.bf16 %v201, %v198
  %v226 = vpack.c.bf16 %v209, %v206
  %v227 = vpack.c.bf16 %v217, %v214
  %236 = vrot.lane.b32.xlu0 %v220, 96
  %v237 = vpop.permute.xlu0 %236
  %238 = vrot.lane.b32.xlu0 %v221, 96
  %v239 = vpop.permute.xlu0 %238
  %240 = vrot.lane.b32.xlu0 %v222, 96
  %v241 = vpop.permute.xlu0 %240
  %242 = vrot.lane.b32.xlu0 %v223, 96
  %v243 = vpop.permute.xlu0 %242
  %244 = vrot.lane.b32.xlu0 %v224, 96
  %v245 = vpop.permute.xlu0 %244
  %246 = vrot.lane.b32.xlu0 %v225, 96
  %v247 = vpop.permute.xlu0 %246
  %248 = vrot.lane.b32.xlu0 %v226, 96
  %v249 = vpop.permute.xlu0 %248
  %250 = vrot.lane.b32.xlu0 %v227, 96
  %v251 = vpop.permute.xlu0 %250
  %v253 = vsel %vm98, %v220, 0
  %v256 = vsel %vm98, %v221, 0
  %v259 = vsel %vm98, %v222, 0
  %v262 = vsel %vm98, %v223, 0
  %v265 = vsel %vm98, %v224, 0
  %v268 = vsel %vm98, %v225, 0
  %v271 = vsel %vm98, %v226, 0
  %v274 = vsel %vm98, %v227, 0
  %v277 = vsel %vm98, %v237, 0
  %v280 = vsel %vm98, %v239, 0
  %v283 = vsel %vm98, %v241, 0
  %v286 = vsel %vm98, %v243, 0
  %v289 = vsel %vm98, %v245, 0
  %v292 = vsel %vm98, %v247, 0
  %v295 = vsel %vm98, %v249, 0
  %v298 = vsel %vm98, %v251, 0
  %300 = vmatprep.subr.bf16.mxu0 0
  %301 = vmatpush1.bf16.xpose.msra.mxu0 %v298
  %302 = vmatprep.subr.bf16.mxu0 0
  %303 = vmatpush1.bf16.xpose.msra.mxu0 %v295
  %304 = vmatprep.subr.bf16.mxu0 0
  %305 = vmatpush1.bf16.xpose.msra.mxu0 %v292
  %306 = vmatprep.subr.bf16.mxu0 0
  %307 = vmatpush1.bf16.xpose.msra.mxu0 %v289
  %308 = vmatprep.subr.bf16.mxu0 0
  %309 = vmatpush1.bf16.xpose.msra.mxu0 %v286
  %310 = vmatprep.subr.bf16.mxu0 0
  %311 = vmatpush1.bf16.xpose.msra.mxu0 %v283
  %312 = vmatprep.subr.bf16.mxu0 0
  %313 = vmatpush1.bf16.xpose.msra.mxu0 %v280
  %314 = vmatprep.subr.bf16.mxu0 0
  %315 = vmatpush1.bf16.xpose.msra.mxu0 %v277
  %316 = vmatprep.subr.bf16.mxu0 0
  %317 = vmatpush2.bf16.xpose.msra.mxu0 0
  %318 = vmatprep.subr.bf16.mxu0 0
  %319 = vmatpush2.bf16.xpose.msra.mxu0 0
  %320 = vmatprep.subr.bf16.mxu0 0
  %321 = vmatpush2.bf16.xpose.msra.mxu0 0
  %322 = vmatprep.subr.bf16.mxu0 0
  %323 = vmatpush2.bf16.xpose.msra.mxu0 0
  %324 = vmatprep.subr.bf16.mxu0 0
  %325 = vmatpush2.bf16.xpose.msra.mxu0 0
  %326 = vmatprep.subr.bf16.mxu0 0
  %327 = vmatpush2.bf16.xpose.msra.mxu0 0
  %328 = vmatprep.subr.bf16.mxu0 0
  %329 = vmatpush2.bf16.xpose.msra.mxu0 0
  %330 = vmatprep.subr.bf16.mxu0 0
  %331 = vmatpush2.bf16.xpose.msra.mxu0 0
  %332 = vmatprep.mubr.bf16.mxu0 0
  %333 = vmatmul.mubr.bf16.gmra.mxu0 %v253
  %v334 = vpop.f32.mrf.mxu0
  %v335 = vadd.f32 0.0, %v334
  %v336 = vpop.f32.mrf.mxu0
  %v337 = vpop.f32.mrf.mxu0
  %v338 = vadd.f32 0.0, %v337
  %v339 = vpop.f32.mrf.mxu0
  %340 = vmatprep.mubr.bf16.mxu0 0
  %341 = vmatmul.mubr.bf16.gmra.mxu0 %v256
  %v342 = vpop.f32.mrf.mxu0
  %v343 = vadd.f32 0.0, %v342
  %v344 = vpop.f32.mrf.mxu0
  %v345 = vpop.f32.mrf.mxu0
  %v346 = vadd.f32 0.0, %v345
  %v347 = vpop.f32.mrf.mxu0
  %348 = vmatprep.mubr.bf16.mxu0 0
  %349 = vmatmul.mubr.bf16.gmra.mxu0 %v259
  %v350 = vpop.f32.mrf.mxu0
  %v351 = vadd.f32 0.0, %v350
  %v352 = vpop.f32.mrf.mxu0
  %v353 = vpop.f32.mrf.mxu0
  %v354 = vadd.f32 0.0, %v353
  %v355 = vpop.f32.mrf.mxu0
  %356 = vmatprep.mubr.bf16.mxu0 0
  %357 = vmatmul.mubr.bf16.gmra.mxu0 %v262
  %v358 = vpop.f32.mrf.mxu0
  %v359 = vadd.f32 0.0, %v358
  %v360 = vpop.f32.mrf.mxu0
  %v361 = vpop.f32.mrf.mxu0
  %v362 = vadd.f32 0.0, %v361
  %v363 = vpop.f32.mrf.mxu0
  %364 = vmatprep.mubr.bf16.mxu0 0
  %365 = vmatmul.mubr.bf16.gmra.mxu0 %v265
  %v366 = vpop.f32.mrf.mxu0
  %v367 = vadd.f32 0.0, %v366
  %v368 = vpop.f32.mrf.mxu0
  %v369 = vpop.f32.mrf.mxu0
  %v370 = vadd.f32 0.0, %v369
  %v371 = vpop.f32.mrf.mxu0
  %372 = vmatprep.mubr.bf16.mxu0 0
  %373 = vmatmul.mubr.bf16.gmra.mxu0 %v268
  %v374 = vpop.f32.mrf.mxu0
  %v375 = vadd.f32 0.0, %v374
  %v376 = vpop.f32.mrf.mxu0
  %v377 = vpop.f32.mrf.mxu0
  %v378 = vadd.f32 0.0, %v377
  %v379 = vpop.f32.mrf.mxu0
  %380 = vmatprep.mubr.bf16.mxu0 0
  %381 = vmatmul.mubr.bf16.gmra.mxu0 %v271
  %v382 = vpop.f32.mrf.mxu0
  %v383 = vadd.f32 0.0, %v382
  %v384 = vpop.f32.mrf.mxu0
  %v385 = vpop.f32.mrf.mxu0
  %v386 = vadd.f32 0.0, %v385
  %v387 = vpop.f32.mrf.mxu0
  %388 = vmatprep.mubr.bf16.mxu0 0
  %389 = vmatmul.mubr.bf16.gmra.mxu0 %v274
  %v390 = vpop.f32.mrf.mxu0
  %v391 = vadd.f32 0.0, %v390
  %v392 = vpop.f32.mrf.mxu0
  %v393 = vpop.f32.mrf.mxu0
  %v394 = vadd.f32 0.0, %v393
  %v395 = vpop.f32.mrf.mxu0
  %396 = vdwg.mxu0
  %397 = vmax.xlane.f32.xlu0 %v335
  %v398 = vpop.xlane.xlu0 %397
  %399 = vmax.xlane.f32.xlu0 %v338
  %v400 = vpop.xlane.xlu0 %399
  %401 = vmax.xlane.f32.xlu0 %v343
  %v402 = vpop.xlane.xlu0 %401
  %403 = vmax.xlane.f32.xlu0 %v346
  %v404 = vpop.xlane.xlu0 %403
  %405 = vmax.xlane.f32.xlu0 %v351
  %v406 = vpop.xlane.xlu0 %405
  %407 = vmax.xlane.f32.xlu0 %v354
  %v408 = vpop.xlane.xlu0 %407
  %409 = vmax.xlane.f32.xlu0 %v359
  %v410 = vpop.xlane.xlu0 %409
  %411 = vmax.xlane.f32.xlu0 %v362
  %v412 = vpop.xlane.xlu0 %411
  %413 = vmax.xlane.f32.xlu0 %v367
  %v414 = vpop.xlane.xlu0 %413
  %415 = vmax.xlane.f32.xlu0 %v370
  %v416 = vpop.xlane.xlu0 %415
  %417 = vmax.xlane.f32.xlu0 %v375
  %v418 = vpop.xlane.xlu0 %417
  %419 = vmax.xlane.f32.xlu0 %v378
  %v420 = vpop.xlane.xlu0 %419
  %421 = vmax.xlane.f32.xlu0 %v383
  %v422 = vpop.xlane.xlu0 %421
  %423 = vmax.xlane.f32.xlu0 %v386
  %v424 = vpop.xlane.xlu0 %423
  %425 = vmax.xlane.f32.xlu0 %v391
  %v426 = vpop.xlane.xlu0 %425
  %427 = vmax.xlane.f32.xlu0 %v394
  %v428 = vpop.xlane.xlu0 %427
  %v429 = vsub.f32 %v335, %v398
  %v430 = vsub.f32 %v338, %v400
  %v431 = vsub.f32 %v343, %v402
  %v432 = vsub.f32 %v346, %v404
  %v433 = vsub.f32 %v351, %v406
  %v434 = vsub.f32 %v354, %v408
  %v435 = vsub.f32 %v359, %v410
  %v436 = vsub.f32 %v362, %v412
  %v437 = vsub.f32 %v367, %v414
  %v438 = vsub.f32 %v370, %v416
  %v439 = vsub.f32 %v375, %v418
  %v440 = vsub.f32 %v378, %v420
  %v441 = vsub.f32 %v383, %v422
  %v442 = vsub.f32 %v386, %v424
  %v443 = vsub.f32 %v391, %v426
  %v444 = vsub.f32 %v394, %v428
  %v445 = vmul.f32 %v429, 1.442695
  %v446 = vpow.pop %v445
  %v447 = vmul.f32 %v430, 1.442695
  %v448 = vpow.pop %v447
  %v449 = vmul.f32 %v431, 1.442695
  %v450 = vpow.pop %v449
  %v451 = vmul.f32 %v432, 1.442695
  %v452 = vpow.pop %v451
  %v453 = vmul.f32 %v433, 1.442695
  %v454 = vpow.pop %v453
  %v455 = vmul.f32 %v434, 1.442695
  %v456 = vpow.pop %v455
  %v457 = vmul.f32 %v435, 1.442695
  %v458 = vpow.pop %v457
  %v459 = vmul.f32 %v436, 1.442695
  %v460 = vpow.pop %v459
  %v461 = vmul.f32 %v437, 1.442695
  %v462 = vpow.pop %v461
  %v463 = vmul.f32 %v438, 1.442695
  %v464 = vpow.pop %v463
  %v465 = vmul.f32 %v439, 1.442695
  %v466 = vpow.pop %v465
  %v467 = vmul.f32 %v440, 1.442695
  %v468 = vpow.pop %v467
  %v469 = vmul.f32 %v441, 1.442695
  %v470 = vpow.pop %v469
  %v471 = vmul.f32 %v442, 1.442695
  %v472 = vpow.pop %v471
  %v473 = vmul.f32 %v443, 1.442695
  %v474 = vpow.pop %v473
  %v475 = vmul.f32 %v444, 1.442695
  %v476 = vpow.pop %v475
  %477 = vadd.xlane.f32.xlu0 %v446
  %v478 = vpop.xlane.xlu0 %477
  %479 = vadd.xlane.f32.xlu0 %v448
  %v480 = vpop.xlane.xlu0 %479
  %481 = vadd.xlane.f32.xlu0 %v450
  %v482 = vpop.xlane.xlu0 %481
  %483 = vadd.xlane.f32.xlu0 %v452
  %v484 = vpop.xlane.xlu0 %483
  %485 = vadd.xlane.f32.xlu0 %v454
  %v486 = vpop.xlane.xlu0 %485
  %487 = vadd.xlane.f32.xlu0 %v456
  %v488 = vpop.xlane.xlu0 %487
  %489 = vadd.xlane.f32.xlu0 %v458
  %v490 = vpop.xlane.xlu0 %489
  %491 = vadd.xlane.f32.xlu0 %v460
  %v492 = vpop.xlane.xlu0 %491
  %493 = vadd.xlane.f32.xlu0 %v462
  %v494 = vpop.xlane.xlu0 %493
  %495 = vadd.xlane.f32.xlu0 %v464
  %v496 = vpop.xlane.xlu0 %495
  %497 = vadd.xlane.f32.xlu0 %v466
  %v498 = vpop.xlane.xlu0 %497
  %499 = vadd.xlane.f32.xlu0 %v468
  %v500 = vpop.xlane.xlu0 %499
  %501 = vadd.xlane.f32.xlu0 %v470
  %v502 = vpop.xlane.xlu0 %501
  %503 = vadd.xlane.f32.xlu0 %v472
  %v504 = vpop.xlane.xlu0 %503
  %505 = vadd.xlane.f32.xlu0 %v474
  %v506 = vpop.xlane.xlu0 %505
  %507 = vadd.xlane.f32.xlu0 %v476
  %v508 = vpop.xlane.xlu0 %507
  %v509 = vld [vmem:[%s3] sm:$0x1]
  %v511 = vlaneseq
  %v512 = vshrl.u32 %v511, 7
  %v513 = vsub.s32 0, %v512
  %v514 = vrot.slane %v509, %v513
  %v516 = vmul.f32 %v51, %v514
  %v517 = vmul.f32 %v52, %v514
  %v518 = vmul.f32 %v53, %v514
  %v519 = vmul.f32 %v54, %v514
  %v520 = vmul.f32 %v55, %v514
  %v521 = vmul.f32 %v56, %v514
  %v522 = vmul.f32 %v57, %v514
  %v523 = vmul.f32 %v58, %v514
  %v524 = vmul.f32 %v59, %v514
  %v525 = vmul.f32 %v60, %v514
  %v526 = vmul.f32 %v61, %v514
  %v527 = vmul.f32 %v62, %v514
  %v528 = vmul.f32 %v63, %v514
  %v529 = vmul.f32 %v64, %v514
  %v530 = vmul.f32 %v65, %v514
  %v531 = vmul.f32 %v66, %v514
  %v532 = vsel %vm98, %v516, 0.0
  %533 = vadd.xlane.f32.xlu0 %v532
  %v534 = vpop.xlane.xlu0 %533
  %v535 = vsel %vm98, %v517, 0.0
  %536 = vadd.xlane.f32.xlu0 %v535
  %v537 = vpop.xlane.xlu0 %536
  %v538 = vsel %vm98, %v518, 0.0
  %539 = vadd.xlane.f32.xlu0 %v538
  %v540 = vpop.xlane.xlu0 %539
  %v541 = vsel %vm98, %v519, 0.0
  %542 = vadd.xlane.f32.xlu0 %v541
  %v543 = vpop.xlane.xlu0 %542
  %v544 = vsel %vm98, %v520, 0.0
  %545 = vadd.xlane.f32.xlu0 %v544
  %v546 = vpop.xlane.xlu0 %545
  %v547 = vsel %vm98, %v521, 0.0
  %548 = vadd.xlane.f32.xlu0 %v547
  %v549 = vpop.xlane.xlu0 %548
  %v550 = vsel %vm98, %v522, 0.0
  %551 = vadd.xlane.f32.xlu0 %v550
  %v552 = vpop.xlane.xlu0 %551
  %v553 = vsel %vm98, %v523, 0.0
  %554 = vadd.xlane.f32.xlu0 %v553
  %v555 = vpop.xlane.xlu0 %554
  %v556 = vsel %vm98, %v524, 0.0
  %557 = vadd.xlane.f32.xlu0 %v556
  %v558 = vpop.xlane.xlu0 %557
  %v559 = vsel %vm98, %v525, 0.0
  %560 = vadd.xlane.f32.xlu0 %v559
  %v561 = vpop.xlane.xlu0 %560
  %v562 = vsel %vm98, %v526, 0.0
  %563 = vadd.xlane.f32.xlu0 %v562
  %v564 = vpop.xlane.xlu0 %563
  %v565 = vsel %vm98, %v527, 0.0
  %566 = vadd.xlane.f32.xlu0 %v565
  %v567 = vpop.xlane.xlu0 %566
  %v568 = vsel %vm98, %v528, 0.0
  %569 = vadd.xlane.f32.xlu0 %v568
  %v570 = vpop.xlane.xlu0 %569
  %v571 = vsel %vm98, %v529, 0.0
  %572 = vadd.xlane.f32.xlu0 %v571
  %v573 = vpop.xlane.xlu0 %572
  %v574 = vsel %vm98, %v530, 0.0
  %575 = vadd.xlane.f32.xlu0 %v574
  %v576 = vpop.xlane.xlu0 %575
  %v577 = vsel %vm98, %v531, 0.0
  %578 = vadd.xlane.f32.xlu0 %v577
  %v579 = vpop.xlane.xlu0 %578
  %v580 = vld [vmem:[%s4] sm:$0x1]
  %v582 = vlaneseq
  %v583 = vshrl.u32 %v582, 7
  %v584 = vsub.s32 0, %v583
  %v585 = vrot.slane %v580, %v584
  %v587 = vadd.f32 %v534, %v585
  %v588 = vadd.f32 %v537, %v585
  %v589 = vadd.f32 %v540, %v585
  %v590 = vadd.f32 %v543, %v585
  %v591 = vadd.f32 %v546, %v585
  %v592 = vadd.f32 %v549, %v585
  %v593 = vadd.f32 %v552, %v585
  %v594 = vadd.f32 %v555, %v585
  %v595 = vadd.f32 %v558, %v585
  %v596 = vadd.f32 %v561, %v585
  %v597 = vadd.f32 %v564, %v585
  %v598 = vadd.f32 %v567, %v585
  %v599 = vadd.f32 %v570, %v585
  %v600 = vadd.f32 %v573, %v585
  %v601 = vadd.f32 %v576, %v585
  %v602 = vadd.f32 %v579, %v585
  %603 = vmatprep.subr.mxu0 0.0
  %604 = vmatpush1.msra.mxu0 %v602
  %605 = vmatprep.subr.mxu0 0.0
  %606 = vmatpush1.msra.mxu0 %v601
  %607 = vmatprep.subr.mxu0 0.0
  %608 = vmatpush1.msra.mxu0 %v600
  %609 = vmatprep.subr.mxu0 0.0
  %610 = vmatpush1.msra.mxu0 %v599
  %611 = vmatprep.subr.mxu0 0.0
  %612 = vmatpush1.msra.mxu0 %v598
  %613 = vmatprep.subr.mxu0 0.0
  %614 = vmatpush1.msra.mxu0 %v597
  %615 = vmatprep.subr.mxu0 0.0
  %616 = vmatpush1.msra.mxu0 %v596
  %617 = vmatprep.subr.mxu0 0.0
  %618 = vmatpush1.msra.mxu0 %v595
  %619 = vmatprep.subr.mxu0 0.0
  %620 = vmatpush1.msra.mxu0 %v594
  %621 = vmatprep.subr.mxu0 0.0
  %622 = vmatpush1.msra.mxu0 %v593
  %623 = vmatprep.subr.mxu0 0.0
  %624 = vmatpush1.msra.mxu0 %v592
  %625 = vmatprep.subr.mxu0 0.0
  %626 = vmatpush1.msra.mxu0 %v591
  %627 = vmatprep.subr.mxu0 0.0
  %628 = vmatpush1.msra.mxu0 %v590
  %629 = vmatprep.subr.mxu0 0.0
  %630 = vmatpush1.msra.mxu0 %v589
  %631 = vmatprep.subr.mxu0 0.0
  %632 = vmatpush1.msra.mxu0 %v588
  %633 = vmatprep.subr.mxu0 0.0
  %634 = vmatpush1.msra.mxu0 %v587
  %635 = vmatprep.subr.mxu0 0.0
  %636 = vmatpush2.msra.mxu0 0.0
  %637 = vmatprep.subr.mxu0 0.0
  %638 = vmatpush2.msra.mxu0 0.0
  %639 = vmatprep.subr.mxu0 0.0
  %640 = vmatpush2.msra.mxu0 0.0
  %641 = vmatprep.subr.mxu0 0.0
  %642 = vmatpush2.msra.mxu0 0.0
  %643 = vmatprep.subr.mxu0 0.0
  %644 = vmatpush2.msra.mxu0 0.0
  %645 = vmatprep.subr.mxu0 0.0
  %646 = vmatpush2.msra.mxu0 0.0
  %647 = vmatprep.subr.mxu0 0.0
  %648 = vmatpush2.msra.mxu0 0.0
  %649 = vmatprep.subr.mxu0 0.0
  %650 = vmatpush2.msra.mxu0 0.0
  %651 = vmatprep.subr.mxu0 0.0
  %652 = vmatpush2.msra.mxu0 0.0
  %653 = vmatprep.subr.mxu0 0.0
  %654 = vmatpush2.msra.mxu0 0.0
  %655 = vmatprep.subr.mxu0 0.0
  %656 = vmatpush2.msra.mxu0 0.0
  %657 = vmatprep.subr.mxu0 0.0
  %658 = vmatpush2.msra.mxu0 0.0
  %659 = vmatprep.subr.mxu0 0.0
  %660 = vmatpush2.msra.mxu0 0.0
  %661 = vmatprep.subr.mxu0 0.0
  %662 = vmatpush2.msra.mxu0 0.0
  %663 = vmatprep.subr.mxu0 0.0
  %664 = vmatpush2.msra.mxu0 0.0
  %665 = vmatprep.subr.mxu0 0.0
  %666 = vmatpush2.msra.mxu0 0.0
  %667 = vmatprep.mubr.f32.mxu0 0.0
  %668 = vmatmul.mubr.f32.gmra.mxu0 %v446
  %v669 = vpop.f32.mrf.mxu0
  %v670 = vadd.f32 0.0, %v669
  %v671 = vpop.f32.mrf.mxu0
  %672 = vmatprep.mubr.f32.mxu0 0.0
  %673 = vmatmul.mubr.f32.gmra.mxu0 %v448
  %v674 = vpop.f32.mrf.mxu0
  %v675 = vadd.f32 0.0, %v674
  %v676 = vpop.f32.mrf.mxu0
  %677 = vmatprep.mubr.f32.mxu0 0.0
  %678 = vmatmul.mubr.f32.gmra.mxu0 %v450
  %v679 = vpop.f32.mrf.mxu0
  %v680 = vadd.f32 0.0, %v679
  %v681 = vpop.f32.mrf.mxu0
  %682 = vmatprep.mubr.f32.mxu0 0.0
  %683 = vmatmul.mubr.f32.gmra.mxu0 %v452
  %v684 = vpop.f32.mrf.mxu0
  %v685 = vadd.f32 0.0, %v684
  %v686 = vpop.f32.mrf.mxu0
  %687 = vmatprep.mubr.f32.mxu0 0.0
  %688 = vmatmul.mubr.f32.gmra.mxu0 %v454
  %v689 = vpop.f32.mrf.mxu0
  %v690 = vadd.f32 0.0, %v689
  %v691 = vpop.f32.mrf.mxu0
  %692 = vmatprep.mubr.f32.mxu0 0.0
  %693 = vmatmul.mubr.f32.gmra.mxu0 %v456
  %v694 = vpop.f32.mrf.mxu0
  %v695 = vadd.f32 0.0, %v694
  %v696 = vpop.f32.mrf.mxu0
  %697 = vmatprep.mubr.f32.mxu0 0.0
  %698 = vmatmul.mubr.f32.gmra.mxu0 %v458
  %v699 = vpop.f32.mrf.mxu0
  %v700 = vadd.f32 0.0, %v699
  %v701 = vpop.f32.mrf.mxu0
  %702 = vmatprep.mubr.f32.mxu0 0.0
  %703 = vmatmul.mubr.f32.gmra.mxu0 %v460
  %v704 = vpop.f32.mrf.mxu0
  %v705 = vadd.f32 0.0, %v704
  %v706 = vpop.f32.mrf.mxu0
  %707 = vmatprep.mubr.f32.mxu0 0.0
  %708 = vmatmul.mubr.f32.gmra.mxu0 %v462
  %v709 = vpop.f32.mrf.mxu0
  %v710 = vadd.f32 0.0, %v709
  %v711 = vpop.f32.mrf.mxu0
  %712 = vmatprep.mubr.f32.mxu0 0.0
  %713 = vmatmul.mubr.f32.gmra.mxu0 %v464
  %v714 = vpop.f32.mrf.mxu0
  %v715 = vadd.f32 0.0, %v714
  %v716 = vpop.f32.mrf.mxu0
  %717 = vmatprep.mubr.f32.mxu0 0.0
  %718 = vmatmul.mubr.f32.gmra.mxu0 %v466
  %v719 = vpop.f32.mrf.mxu0
  %v720 = vadd.f32 0.0, %v719
  %v721 = vpop.f32.mrf.mxu0
  %722 = vmatprep.mubr.f32.mxu0 0.0
  %723 = vmatmul.mubr.f32.gmra.mxu0 %v468
  %v724 = vpop.f32.mrf.mxu0
  %v725 = vadd.f32 0.0, %v724
  %v726 = vpop.f32.mrf.mxu0
  %727 = vmatprep.mubr.f32.mxu0 0.0
  %728 = vmatmul.mubr.f32.gmra.mxu0 %v470
  %v729 = vpop.f32.mrf.mxu0
  %v730 = vadd.f32 0.0, %v729
  %v731 = vpop.f32.mrf.mxu0
  %732 = vmatprep.mubr.f32.mxu0 0.0
  %733 = vmatmul.mubr.f32.gmra.mxu0 %v472
  %v734 = vpop.f32.mrf.mxu0
  %v735 = vadd.f32 0.0, %v734
  %v736 = vpop.f32.mrf.mxu0
  %737 = vmatprep.mubr.f32.mxu0 0.0
  %738 = vmatmul.mubr.f32.gmra.mxu0 %v474
  %v739 = vpop.f32.mrf.mxu0
  %v740 = vadd.f32 0.0, %v739
  %v741 = vpop.f32.mrf.mxu0
  %742 = vmatprep.mubr.f32.mxu0 0.0
  %743 = vmatmul.mubr.f32.gmra.mxu0 %v476
  %v744 = vpop.f32.mrf.mxu0
  %v745 = vadd.f32 0.0, %v744
  %v746 = vpop.f32.mrf.mxu0
  %747 = vdwg.mxu0
  %v748 = vrcp.pop %v478
  %v749 = vrcp.pop %v480
  %v750 = vrcp.pop %v482
  %v751 = vrcp.pop %v484
  %v752 = vrcp.pop %v486
  %v753 = vrcp.pop %v488
  %v754 = vrcp.pop %v490
  %v755 = vrcp.pop %v492
  %v756 = vrcp.pop %v494
  %v757 = vrcp.pop %v496
  %v758 = vrcp.pop %v498
  %v759 = vrcp.pop %v500
  %v760 = vrcp.pop %v502
  %v761 = vrcp.pop %v504
  %v762 = vrcp.pop %v506
  %v763 = vrcp.pop %v508
  %v764 = vmul.f32 %v670, %v748
  %v765 = vmul.f32 %v675, %v749
  %v766 = vmul.f32 %v680, %v750
  %v767 = vmul.f32 %v685, %v751
  %v768 = vmul.f32 %v690, %v752
  %v769 = vmul.f32 %v695, %v753
  %v770 = vmul.f32 %v700, %v754
  %v771 = vmul.f32 %v705, %v755
  %v772 = vmul.f32 %v710, %v756
  %v773 = vmul.f32 %v715, %v757
  %v774 = vmul.f32 %v720, %v758
  %v775 = vmul.f32 %v725, %v759
  %v776 = vmul.f32 %v730, %v760
  %v777 = vmul.f32 %v735, %v761
  %v778 = vmul.f32 %v740, %v762
  %v779 = vmul.f32 %v745, %v763
  %v780 = vld [vmem:[%s5] sm:$0x1]
  %v782 = vlaneseq
  %v783 = vshrl.u32 %v782, 7
  %v784 = vsub.s32 0, %v783
  %v785 = vrot.slane %v780, %v784
  %v787 = vadd.f32 %v764, %v785
  %v788 = vadd.f32 %v765, %v785
  %v789 = vadd.f32 %v766, %v785
  %v790 = vadd.f32 %v767, %v785
  %v791 = vadd.f32 %v768, %v785
  %v792 = vadd.f32 %v769, %v785
  %v793 = vadd.f32 %v770, %v785
  %v794 = vadd.f32 %v771, %v785
  %v795 = vadd.f32 %v772, %v785
  %v796 = vadd.f32 %v773, %v785
  %v797 = vadd.f32 %v774, %v785
  %v798 = vadd.f32 %v775, %v785
  %v799 = vadd.f32 %v776, %v785
  %v800 = vadd.f32 %v777, %v785
  %v801 = vadd.f32 %v778, %v785
  %v802 = vadd.f32 %v779, %v785
  %804 = vset.pattern.permute.xlu0 0
  %805 = vperm.xlu0 %804, %v787
  %v806 = vpop.permute.xlu0 %805
  %809 = vset.pattern.permute.xlu0 0
  %810 = vperm.xlu0 %809, %v788
  %v811 = vpop.permute.xlu0 %810
  %814 = vset.pattern.permute.xlu0 0
  %815 = vperm.xlu0 %814, %v789
  %v816 = vpop.permute.xlu0 %815
  %819 = vset.pattern.permute.xlu0 0
  %820 = vperm.xlu0 %819, %v790
  %v821 = vpop.permute.xlu0 %820
  %824 = vset.pattern.permute.xlu0 0
  %825 = vperm.xlu0 %824, %v791
  %v826 = vpop.permute.xlu0 %825
  %829 = vset.pattern.permute.xlu0 0
  %830 = vperm.xlu0 %829, %v792
  %v831 = vpop.permute.xlu0 %830
  %834 = vset.pattern.permute.xlu0 0
  %835 = vperm.xlu0 %834, %v793
  %v836 = vpop.permute.xlu0 %835
  %839 = vset.pattern.permute.xlu0 0
  %840 = vperm.xlu0 %839, %v794
  %v841 = vpop.permute.xlu0 %840
  %844 = vset.pattern.permute.xlu0 0
  %845 = vperm.xlu0 %844, %v795
  %v846 = vpop.permute.xlu0 %845
  %849 = vset.pattern.permute.xlu0 0
  %850 = vperm.xlu0 %849, %v796
  %v851 = vpop.permute.xlu0 %850
  %854 = vset.pattern.permute.xlu0 0
  %855 = vperm.xlu0 %854, %v797
  %v856 = vpop.permute.xlu0 %855
  %859 = vset.pattern.permute.xlu0 0
  %860 = vperm.xlu0 %859, %v798
  %v861 = vpop.permute.xlu0 %860
  %864 = vset.pattern.permute.xlu0 0
  %865 = vperm.xlu0 %864, %v799
  %v866 = vpop.permute.xlu0 %865
  %869 = vset.pattern.permute.xlu0 0
  %870 = vperm.xlu0 %869, %v800
  %v871 = vpop.permute.xlu0 %870
  %874 = vset.pattern.permute.xlu0 0
  %875 = vperm.xlu0 %874, %v801
  %v876 = vpop.permute.xlu0 %875
  %879 = vset.pattern.permute.xlu0 0
  %880 = vperm.xlu0 %879, %v802
  %v881 = vpop.permute.xlu0 %880
  %v883 = vadd.f32 %v51, %v806
  %v884 = vadd.f32 %v52, %v811
  %v885 = vadd.f32 %v53, %v816
  %v886 = vadd.f32 %v54, %v821
  %v887 = vadd.f32 %v55, %v826
  %v888 = vadd.f32 %v56, %v831
  %v889 = vadd.f32 %v57, %v836
  %v890 = vadd.f32 %v58, %v841
  %v891 = vadd.f32 %v59, %v846
  %v892 = vadd.f32 %v60, %v851
  %v893 = vadd.f32 %v61, %v856
  %v894 = vadd.f32 %v62, %v861
  %v895 = vadd.f32 %v63, %v866
  %v896 = vadd.f32 %v64, %v871
  %v897 = vadd.f32 %v65, %v876
  %v898 = vadd.f32 %v66, %v881
  %v899 = vld [vmem:[%s6] sm:$0x1]
  %v900 = vld [vmem:[%s7] sm:$0x1]
  %v901 = vsel %vm98, %v883, 0.0
  %902 = vadd.xlane.f32.xlu0 %v901
  %v903 = vpop.xlane.xlu0 %902
  %v904 = vsel %vm98, %v884, 0.0
  %905 = vadd.xlane.f32.xlu0 %v904
  %v906 = vpop.xlane.xlu0 %905
  %v907 = vsel %vm98, %v885, 0.0
  %908 = vadd.xlane.f32.xlu0 %v907
  %v909 = vpop.xlane.xlu0 %908
  %v910 = vsel %vm98, %v886, 0.0
  %911 = vadd.xlane.f32.xlu0 %v910
  %v912 = vpop.xlane.xlu0 %911
  %v913 = vsel %vm98, %v887, 0.0
  %914 = vadd.xlane.f32.xlu0 %v913
  %v915 = vpop.xlane.xlu0 %914
  %v916 = vsel %vm98, %v888, 0.0
  %917 = vadd.xlane.f32.xlu0 %v916
  %v918 = vpop.xlane.xlu0 %917
  %v919 = vsel %vm98, %v889, 0.0
  %920 = vadd.xlane.f32.xlu0 %v919
  %v921 = vpop.xlane.xlu0 %920
  %v922 = vsel %vm98, %v890, 0.0
  %923 = vadd.xlane.f32.xlu0 %v922
  %v924 = vpop.xlane.xlu0 %923
  %v925 = vsel %vm98, %v891, 0.0
  %926 = vadd.xlane.f32.xlu0 %v925
  %v927 = vpop.xlane.xlu0 %926
  %v928 = vsel %vm98, %v892, 0.0
  %929 = vadd.xlane.f32.xlu0 %v928
  %v930 = vpop.xlane.xlu0 %929
  %v931 = vsel %vm98, %v893, 0.0
  %932 = vadd.xlane.f32.xlu0 %v931
  %v933 = vpop.xlane.xlu0 %932
  %v934 = vsel %vm98, %v894, 0.0
  %935 = vadd.xlane.f32.xlu0 %v934
  %v936 = vpop.xlane.xlu0 %935
  %v937 = vsel %vm98, %v895, 0.0
  %938 = vadd.xlane.f32.xlu0 %v937
  %v939 = vpop.xlane.xlu0 %938
  %v940 = vsel %vm98, %v896, 0.0
  %941 = vadd.xlane.f32.xlu0 %v940
  %v942 = vpop.xlane.xlu0 %941
  %v943 = vsel %vm98, %v897, 0.0
  %944 = vadd.xlane.f32.xlu0 %v943
  %v945 = vpop.xlane.xlu0 %944
  %v946 = vsel %vm98, %v898, 0.0
  %947 = vadd.xlane.f32.xlu0 %v946
  %v948 = vpop.xlane.xlu0 %947
  %v949 = vrcp.pop 32.0
  %v950 = vmul.f32 %v903, %v949
  %v951 = vmul.f32 %v906, %v949
  %v952 = vmul.f32 %v909, %v949
  %v953 = vmul.f32 %v912, %v949
  %v954 = vmul.f32 %v915, %v949
  %v955 = vmul.f32 %v918, %v949
  %v956 = vmul.f32 %v921, %v949
  %v957 = vmul.f32 %v924, %v949
  %v958 = vmul.f32 %v927, %v949
  %v959 = vmul.f32 %v930, %v949
  %v960 = vmul.f32 %v933, %v949
  %v961 = vmul.f32 %v936, %v949
  %v962 = vmul.f32 %v939, %v949
  %v963 = vmul.f32 %v942, %v949
  %v964 = vmul.f32 %v945, %v949
  %v965 = vmul.f32 %v948, %v949
  %v966 = vmul.f32 %v883, %v883
  %v967 = vmul.f32 %v884, %v884
  %v968 = vmul.f32 %v885, %v885
  %v969 = vmul.f32 %v886, %v886
  %v970 = vmul.f32 %v887, %v887
  %v971 = vmul.f32 %v888, %v888
  %v972 = vmul.f32 %v889, %v889
  %v973 = vmul.f32 %v890, %v890
  %v974 = vmul.f32 %v891, %v891
  %v975 = vmul.f32 %v892, %v892
  %v976 = vmul.f32 %v893, %v893
  %v977 = vmul.f32 %v894, %v894
  %v978 = vmul.f32 %v895, %v895
  %v979 = vmul.f32 %v896, %v896
  %v980 = vmul.f32 %v897, %v897
  %v981 = vmul.f32 %v898, %v898
  %v982 = vsel %vm98, %v966, 0.0
  %983 = vadd.xlane.f32.xlu0 %v982
  %v984 = vpop.xlane.xlu0 %983
  %v985 = vsel %vm98, %v967, 0.0
  %986 = vadd.xlane.f32.xlu0 %v985
  %v987 = vpop.xlane.xlu0 %986
  %v988 = vsel %vm98, %v968, 0.0
  %989 = vadd.xlane.f32.xlu0 %v988
  %v990 = vpop.xlane.xlu0 %989
  %v991 = vsel %vm98, %v969, 0.0
  %992 = vadd.xlane.f32.xlu0 %v991
  %v993 = vpop.xlane.xlu0 %992
  %v994 = vsel %vm98, %v970, 0.0
  %995 = vadd.xlane.f32.xlu0 %v994
  %v996 = vpop.xlane.xlu0 %995
  %v997 = vsel %vm98, %v971, 0.0
  %998 = vadd.xlane.f32.xlu0 %v997
  %v999 = vpop.xlane.xlu0 %998
  %v1000 = vsel %vm98, %v972, 0.0
  %1001 = vadd.xlane.f32.xlu0 %v1000
  %v1002 = vpop.xlane.xlu0 %1001
  %v1003 = vsel %vm98, %v973, 0.0
  %1004 = vadd.xlane.f32.xlu0 %v1003
  %v1005 = vpop.xlane.xlu0 %1004
  %v1006 = vsel %vm98, %v974, 0.0
  %1007 = vadd.xlane.f32.xlu0 %v1006
  %v1008 = vpop.xlane.xlu0 %1007
  %v1009 = vsel %vm98, %v975, 0.0
  %1010 = vadd.xlane.f32.xlu0 %v1009
  %v1011 = vpop.xlane.xlu0 %1010
  %v1012 = vsel %vm98, %v976, 0.0
  %1013 = vadd.xlane.f32.xlu0 %v1012
  %v1014 = vpop.xlane.xlu0 %1013
  %v1015 = vsel %vm98, %v977, 0.0
  %1016 = vadd.xlane.f32.xlu0 %v1015
  %v1017 = vpop.xlane.xlu0 %1016
  %v1018 = vsel %vm98, %v978, 0.0
  %1019 = vadd.xlane.f32.xlu0 %v1018
  %v1020 = vpop.xlane.xlu0 %1019
  %v1021 = vsel %vm98, %v979, 0.0
  %1022 = vadd.xlane.f32.xlu0 %v1021
  %v1023 = vpop.xlane.xlu0 %1022
  %v1024 = vsel %vm98, %v980, 0.0
  %1025 = vadd.xlane.f32.xlu0 %v1024
  %v1026 = vpop.xlane.xlu0 %1025
  %v1027 = vsel %vm98, %v981, 0.0
  %1028 = vadd.xlane.f32.xlu0 %v1027
  %v1029 = vpop.xlane.xlu0 %1028
  %v1030 = vmul.f32 %v984, %v949
  %v1031 = vmul.f32 %v987, %v949
  %v1032 = vmul.f32 %v990, %v949
  %v1033 = vmul.f32 %v993, %v949
  %v1034 = vmul.f32 %v996, %v949
  %v1035 = vmul.f32 %v999, %v949
  %v1036 = vmul.f32 %v1002, %v949
  %v1037 = vmul.f32 %v1005, %v949
  %v1038 = vmul.f32 %v1008, %v949
  %v1039 = vmul.f32 %v1011, %v949
  %v1040 = vmul.f32 %v1014, %v949
  %v1041 = vmul.f32 %v1017, %v949
  %v1042 = vmul.f32 %v1020, %v949
  %v1043 = vmul.f32 %v1023, %v949
  %v1044 = vmul.f32 %v1026, %v949
  %v1045 = vmul.f32 %v1029, %v949
  %v1046 = vmul.f32 %v950, %v950
  %v1047 = vmul.f32 %v951, %v951
  %v1048 = vmul.f32 %v952, %v952
  %v1049 = vmul.f32 %v953, %v953
  %v1050 = vmul.f32 %v954, %v954
  %v1051 = vmul.f32 %v955, %v955
  %v1052 = vmul.f32 %v956, %v956
  %v1053 = vmul.f32 %v957, %v957
  %v1054 = vmul.f32 %v958, %v958
  %v1055 = vmul.f32 %v959, %v959
  %v1056 = vmul.f32 %v960, %v960
  %v1057 = vmul.f32 %v961, %v961
  %v1058 = vmul.f32 %v962, %v962
  %v1059 = vmul.f32 %v963, %v963
  %v1060 = vmul.f32 %v964, %v964
  %v1061 = vmul.f32 %v965, %v965
  %v1062 = vsub.f32 %v1030, %v1046
  %v1063 = vsub.f32 %v1031, %v1047
  %v1064 = vsub.f32 %v1032, %v1048
  %v1065 = vsub.f32 %v1033, %v1049
  %v1066 = vsub.f32 %v1034, %v1050
  %v1067 = vsub.f32 %v1035, %v1051
  %v1068 = vsub.f32 %v1036, %v1052
  %v1069 = vsub.f32 %v1037, %v1053
  %v1070 = vsub.f32 %v1038, %v1054
  %v1071 = vsub.f32 %v1039, %v1055
  %v1072 = vsub.f32 %v1040, %v1056
  %v1073 = vsub.f32 %v1041, %v1057
  %v1074 = vsub.f32 %v1042, %v1058
  %v1075 = vsub.f32 %v1043, %v1059
  %v1076 = vsub.f32 %v1044, %v1060
  %v1077 = vsub.f32 %v1045, %v1061
  %v1078 = vsub.f32 %v883, %v950
  %v1079 = vsub.f32 %v884, %v951
  %v1080 = vsub.f32 %v885, %v952
  %v1081 = vsub.f32 %v886, %v953
  %v1082 = vsub.f32 %v887, %v954
  %v1083 = vsub.f32 %v888, %v955
  %v1084 = vsub.f32 %v889, %v956
  %v1085 = vsub.f32 %v890, %v957
  %v1086 = vsub.f32 %v891, %v958
  %v1087 = vsub.f32 %v892, %v959
  %v1088 = vsub.f32 %v893, %v960
  %v1089 = vsub.f32 %v894, %v961
  %v1090 = vsub.f32 %v895, %v962
  %v1091 = vsub.f32 %v896, %v963
  %v1092 = vsub.f32 %v897, %v964
  %v1093 = vsub.f32 %v898, %v965
  %v1094 = vadd.f32 %v1062, 1e-05
  %v1095 = vadd.f32 %v1063, 1e-05
  %v1096 = vadd.f32 %v1064, 1e-05
  %v1097 = vadd.f32 %v1065, 1e-05
  %v1098 = vadd.f32 %v1066, 1e-05
  %v1099 = vadd.f32 %v1067, 1e-05
  %v1100 = vadd.f32 %v1068, 1e-05
  %v1101 = vadd.f32 %v1069, 1e-05
  %v1102 = vadd.f32 %v1070, 1e-05
  %v1103 = vadd.f32 %v1071, 1e-05
  %v1104 = vadd.f32 %v1072, 1e-05
  %v1105 = vadd.f32 %v1073, 1e-05
  %v1106 = vadd.f32 %v1074, 1e-05
  %v1107 = vadd.f32 %v1075, 1e-05
  %v1108 = vadd.f32 %v1076, 1e-05
  %v1109 = vadd.f32 %v1077, 1e-05
  %v1110 = vrsqrt.pop %v1094
  %v1111 = vrsqrt.pop %v1095
  %v1112 = vrsqrt.pop %v1096
  %v1113 = vrsqrt.pop %v1097
  %v1114 = vrsqrt.pop %v1098
  %v1115 = vrsqrt.pop %v1099
  %v1116 = vrsqrt.pop %v1100
  %v1117 = vrsqrt.pop %v1101
  %v1118 = vrsqrt.pop %v1102
  %v1119 = vrsqrt.pop %v1103
  %v1120 = vrsqrt.pop %v1104
  %v1121 = vrsqrt.pop %v1105
  %v1122 = vrsqrt.pop %v1106
  %v1123 = vrsqrt.pop %v1107
  %v1124 = vrsqrt.pop %v1108
  %v1125 = vrsqrt.pop %v1109
  %v1126 = vmul.f32 %v1078, %v1110
  %v1127 = vmul.f32 %v1079, %v1111
  %v1128 = vmul.f32 %v1080, %v1112
  %v1129 = vmul.f32 %v1081, %v1113
  %v1130 = vmul.f32 %v1082, %v1114
  %v1131 = vmul.f32 %v1083, %v1115
  %v1132 = vmul.f32 %v1084, %v1116
  %v1133 = vmul.f32 %v1085, %v1117
  %v1134 = vmul.f32 %v1086, %v1118
  %v1135 = vmul.f32 %v1087, %v1119
  %v1136 = vmul.f32 %v1088, %v1120
  %v1137 = vmul.f32 %v1089, %v1121
  %v1138 = vmul.f32 %v1090, %v1122
  %v1139 = vmul.f32 %v1091, %v1123
  %v1140 = vmul.f32 %v1092, %v1124
  %v1141 = vmul.f32 %v1093, %v1125
  %v1143 = vlaneseq
  %v1144 = vshrl.u32 %v1143, 7
  %v1145 = vsub.s32 0, %v1144
  %v1146 = vrot.slane %v899, %v1145
  %v1148 = vmul.f32 %v1126, %v1146
  %v1149 = vmul.f32 %v1127, %v1146
  %v1150 = vmul.f32 %v1128, %v1146
  %v1151 = vmul.f32 %v1129, %v1146
  %v1152 = vmul.f32 %v1130, %v1146
  %v1153 = vmul.f32 %v1131, %v1146
  %v1154 = vmul.f32 %v1132, %v1146
  %v1155 = vmul.f32 %v1133, %v1146
  %v1156 = vmul.f32 %v1134, %v1146
  %v1157 = vmul.f32 %v1135, %v1146
  %v1158 = vmul.f32 %v1136, %v1146
  %v1159 = vmul.f32 %v1137, %v1146
  %v1160 = vmul.f32 %v1138, %v1146
  %v1161 = vmul.f32 %v1139, %v1146
  %v1162 = vmul.f32 %v1140, %v1146
  %v1163 = vmul.f32 %v1141, %v1146
  %v1165 = vlaneseq
  %v1166 = vshrl.u32 %v1165, 7
  %v1167 = vsub.s32 0, %v1166
  %v1168 = vrot.slane %v900, %v1167
  %v1170 = vadd.f32 %v1148, %v1168
  %v1171 = vadd.f32 %v1149, %v1168
  %v1172 = vadd.f32 %v1150, %v1168
  %v1173 = vadd.f32 %v1151, %v1168
  %v1174 = vadd.f32 %v1152, %v1168
  %v1175 = vadd.f32 %v1153, %v1168
  %v1176 = vadd.f32 %v1154, %v1168
  %v1177 = vadd.f32 %v1155, %v1168
  %v1178 = vadd.f32 %v1156, %v1168
  %v1179 = vadd.f32 %v1157, %v1168
  %v1180 = vadd.f32 %v1158, %v1168
  %v1181 = vadd.f32 %v1159, %v1168
  %v1182 = vadd.f32 %v1160, %v1168
  %v1183 = vadd.f32 %v1161, %v1168
  %v1184 = vadd.f32 %v1162, %v1168
  %v1185 = vadd.f32 %v1163, %v1168
  %v1186 = vpack.c.bf16 %v1171, %v1170
  %v1187 = vpack.c.bf16 %v1173, %v1172
  %v1188 = vpack.c.bf16 %v1175, %v1174
  %v1189 = vpack.c.bf16 %v1177, %v1176
  %v1190 = vpack.c.bf16 %v1179, %v1178
  %v1191 = vpack.c.bf16 %v1181, %v1180
  %v1192 = vpack.c.bf16 %v1183, %v1182
  %v1193 = vpack.c.bf16 %v1185, %v1184
  %v1194 = vld [vmem:[%s8] sm:$0xf]
  %v1195 = vld [vmem:[%s8 + $0x4] sm:$0xf]
  %v1196 = vld [vmem:[%s8 + $0x8] sm:$0xf]
  %v1197 = vld [vmem:[%s8 + $0xc] sm:$0xf]
  %v1198 = vld [vmem:[%s9] sm:$0x1]
  %v1200 = vlaneseq
  %v1201 = vshrl.u32 %v1200, 7
  %v1202 = vsub.s32 0, %v1201
  %v1203 = vrot.slane %v1198, %v1202
  %v1209 = vunpack.c.l.b16 %v1194
  %v1210 = vunpack.c.l.b16 %v1195
  %v1211 = vunpack.c.l.b16 %v1196
  %v1212 = vunpack.c.l.b16 %v1197
  %v1213 = vpack.c.b16 %v1210, %v1209
  %v1214 = vpack.c.b16 %v1212, %v1211
  %v1218 = vsel %vm98, %v1186, 0
  %v1221 = vsel %vm98, %v1187, 0
  %v1224 = vsel %vm98, %v1188, 0
  %v1227 = vsel %vm98, %v1189, 0
  %v1230 = vsel %vm98, %v1190, 0
  %v1233 = vsel %vm98, %v1191, 0
  %v1236 = vsel %vm98, %v1192, 0
  %v1239 = vsel %vm98, %v1193, 0
  %1241 = vmatprep.subr.bf16.mxu0 0
  %1242 = vmatpush1.bf16.msra.mxu0 0
  %1243 = vmatprep.subr.bf16.mxu0 0
  %1244 = vmatpush1.bf16.msra.mxu0 0
  %1245 = vmatprep.subr.bf16.mxu0 0
  %1246 = vmatpush1.bf16.msra.mxu0 0
  %1247 = vmatprep.subr.bf16.mxu0 0
  %1248 = vmatpush1.bf16.msra.mxu0 0
  %1249 = vmatprep.subr.bf16.mxu0 0
  %1250 = vmatpush1.bf16.msra.mxu0 0
  %1251 = vmatprep.subr.bf16.mxu0 0
  %1252 = vmatpush1.bf16.msra.mxu0 0
  %1253 = vmatprep.subr.bf16.mxu0 0
  %1254 = vmatpush1.bf16.msra.mxu0 %v1214
  %1255 = vmatprep.subr.bf16.mxu0 0
  %1256 = vmatpush1.bf16.msra.mxu0 %v1213
  %1257 = vmatprep.subr.bf16.mxu0 0
  %1258 = vmatpush2.bf16.msra.mxu0 0
  %1259 = vmatprep.subr.bf16.mxu0 0
  %1260 = vmatpush2.bf16.msra.mxu0 0
  %1261 = vmatprep.subr.bf16.mxu0 0
  %1262 = vmatpush2.bf16.msra.mxu0 0
  %1263 = vmatprep.subr.bf16.mxu0 0
  %1264 = vmatpush2.bf16.msra.mxu0 0
  %1265 = vmatprep.subr.bf16.mxu0 0
  %1266 = vmatpush2.bf16.msra.mxu0 0
  %1267 = vmatprep.subr.bf16.mxu0 0
  %1268 = vmatpush2.bf16.msra.mxu0 0
  %1269 = vmatprep.subr.bf16.mxu0 0
  %1270 = vmatpush2.bf16.msra.mxu0 0
  %1271 = vmatprep.subr.bf16.mxu0 0
  %1272 = vmatpush2.bf16.msra.mxu0 0
  %1273 = vmatprep.mubr.bf16.mxu0 0
  %1274 = vmatmul.mubr.bf16.gmra.mxu0 %v1218
  %v1275 = vpop.f32.mrf.mxu0
  %v1276 = vadd.f32 %v1203, %v1275
  %v1277 = vpop.f32.mrf.mxu0
  %v1278 = vpop.f32.mrf.mxu0
  %v1279 = vadd.f32 %v1203, %v1278
  %v1280 = vpop.f32.mrf.mxu0
  %1281 = vmatprep.mubr.bf16.mxu0 0
  %1282 = vmatmul.mubr.bf16.gmra.mxu0 %v1221
  %v1283 = vpop.f32.mrf.mxu0
  %v1284 = vadd.f32 %v1203, %v1283
  %v1285 = vpop.f32.mrf.mxu0
  %v1286 = vpop.f32.mrf.mxu0
  %v1287 = vadd.f32 %v1203, %v1286
  %v1288 = vpop.f32.mrf.mxu0
  %1289 = vmatprep.mubr.bf16.mxu0 0
  %1290 = vmatmul.mubr.bf16.gmra.mxu0 %v1224
  %v1291 = vpop.f32.mrf.mxu0
  %v1292 = vadd.f32 %v1203, %v1291
  %v1293 = vpop.f32.mrf.mxu0
  %v1294 = vpop.f32.mrf.mxu0
  %v1295 = vadd.f32 %v1203, %v1294
  %v1296 = vpop.f32.mrf.mxu0
  %1297 = vmatprep.mubr.bf16.mxu0 0
  %1298 = vmatmul.mubr.bf16.gmra.mxu0 %v1227
  %v1299 = vpop.f32.mrf.mxu0
  %v1300 = vadd.f32 %v1203, %v1299
  %v1301 = vpop.f32.mrf.mxu0
  %v1302 = vpop.f32.mrf.mxu0
  %v1303 = vadd.f32 %v1203, %v1302
  %v1304 = vpop.f32.mrf.mxu0
  %1305 = vmatprep.mubr.bf16.mxu0 0
  %1306 = vmatmul.mubr.bf16.gmra.mxu0 %v1230
  %v1307 = vpop.f32.mrf.mxu0
  %v1308 = vadd.f32 %v1203, %v1307
  %v1309 = vpop.f32.mrf.mxu0
  %v1310 = vpop.f32.mrf.mxu0
  %v1311 = vadd.f32 %v1203, %v1310
  %v1312 = vpop.f32.mrf.mxu0
  %1313 = vmatprep.mubr.bf16.mxu0 0
  %1314 = vmatmul.mubr.bf16.gmra.mxu0 %v1233
  %v1315 = vpop.f32.mrf.mxu0
  %v1316 = vadd.f32 %v1203, %v1315
  %v1317 = vpop.f32.mrf.mxu0
  %v1318 = vpop.f32.mrf.mxu0
  %v1319 = vadd.f32 %v1203, %v1318
  %v1320 = vpop.f32.mrf.mxu0
  %1321 = vmatprep.mubr.bf16.mxu0 0
  %1322 = vmatmul.mubr.bf16.gmra.mxu0 %v1236
  %v1323 = vpop.f32.mrf.mxu0
  %v1324 = vadd.f32 %v1203, %v1323
  %v1325 = vpop.f32.mrf.mxu0
  %v1326 = vpop.f32.mrf.mxu0
  %v1327 = vadd.f32 %v1203, %v1326
  %v1328 = vpop.f32.mrf.mxu0
  %1329 = vmatprep.mubr.bf16.mxu0 0
  %1330 = vmatmul.mubr.bf16.gmra.mxu0 %v1239
  %v1331 = vpop.f32.mrf.mxu0
  %v1332 = vadd.f32 %v1203, %v1331
  %v1333 = vpop.f32.mrf.mxu0
  %v1334 = vpop.f32.mrf.mxu0
  %v1335 = vadd.f32 %v1203, %v1334
  %v1336 = vpop.f32.mrf.mxu0
  %1337 = vdwg.mxu0
  %v1338 = vmax.f32 %v1276, 0.0
  %v1339 = vmax.f32 %v1279, 0.0
  %v1340 = vmax.f32 %v1284, 0.0
  %v1341 = vmax.f32 %v1287, 0.0
  %v1342 = vmax.f32 %v1292, 0.0
  %v1343 = vmax.f32 %v1295, 0.0
  %v1344 = vmax.f32 %v1300, 0.0
  %v1345 = vmax.f32 %v1303, 0.0
  %v1346 = vmax.f32 %v1308, 0.0
  %v1347 = vmax.f32 %v1311, 0.0
  %v1348 = vmax.f32 %v1316, 0.0
  %v1349 = vmax.f32 %v1319, 0.0
  %v1350 = vmax.f32 %v1324, 0.0
  %v1351 = vmax.f32 %v1327, 0.0
  %v1352 = vmax.f32 %v1332, 0.0
  %v1353 = vmax.f32 %v1335, 0.0
  %v1354 = vpack.c.bf16 %v1339, %v1338
  %v1355 = vpack.c.bf16 %v1341, %v1340
  %v1356 = vpack.c.bf16 %v1343, %v1342
  %v1357 = vpack.c.bf16 %v1345, %v1344
  %v1358 = vpack.c.bf16 %v1347, %v1346
  %v1359 = vpack.c.bf16 %v1349, %v1348
  %v1360 = vpack.c.bf16 %v1351, %v1350
  %v1361 = vpack.c.bf16 %v1353, %v1352
  %v1362 = vld [vmem:[%s10] sm:$0xf]
  %v1363 = vld [vmem:[%s10 + $0x4] sm:$0xf]
  %v1364 = vld [vmem:[%s10 + $0x8] sm:$0xf]
  %v1365 = vld [vmem:[%s10 + $0xc] sm:$0xf]
  %v1366 = vld [vmem:[%s10 + $0x10] sm:$0xf]
  %v1367 = vld [vmem:[%s10 + $0x14] sm:$0xf]
  %v1368 = vld [vmem:[%s10 + $0x18] sm:$0xf]
  %v1369 = vld [vmem:[%s10 + $0x1c] sm:$0xf]
  %v1370 = vld [vmem:[%s11] sm:$0x1]
  %v1372 = vlaneseq
  %v1373 = vshrl.u32 %v1372, 7
  %v1374 = vsub.s32 0, %v1373
  %v1375 = vrot.slane %v1370, %v1374
  %v1385 = vunpack.c.l.b16 %v1362
  %v1386 = vunpack.c.l.b16 %v1363
  %v1387 = vunpack.c.l.b16 %v1364
  %v1388 = vunpack.c.l.b16 %v1365
  %v1389 = vunpack.c.l.b16 %v1366
  %v1390 = vunpack.c.l.b16 %v1367
  %v1391 = vunpack.c.l.b16 %v1368
  %v1392 = vunpack.c.l.b16 %v1369
  %v1393 = vpack.c.b16 %v1386, %v1385
  %v1394 = vpack.c.b16 %v1388, %v1387
  %v1395 = vpack.c.b16 %v1390, %v1389
  %v1396 = vpack.c.b16 %v1392, %v1391
  %vm1401 = vcmask 523264
  %v1403 = vsel %vm1401, %v1354, 0
  %v1406 = vsel %vm1401, %v1355, 0
  %v1409 = vsel %vm1401, %v1356, 0
  %v1412 = vsel %vm1401, %v1357, 0
  %v1415 = vsel %vm1401, %v1358, 0
  %v1418 = vsel %vm1401, %v1359, 0
  %v1421 = vsel %vm1401, %v1360, 0
  %v1424 = vsel %vm1401, %v1361, 0
  %1426 = vmatprep.subr.bf16.mxu0 0
  %1427 = vmatpush1.bf16.msra.mxu0 0
  %1428 = vmatprep.subr.bf16.mxu0 0
  %1429 = vmatpush1.bf16.msra.mxu0 0
  %1430 = vmatprep.subr.bf16.mxu0 0
  %1431 = vmatpush1.bf16.msra.mxu0 0
  %1432 = vmatprep.subr.bf16.mxu0 0
  %1433 = vmatpush1.bf16.msra.mxu0 0
  %1434 = vmatprep.subr.bf16.mxu0 0
  %1435 = vmatpush1.bf16.msra.mxu0 %v1396
  %1436 = vmatprep.subr.bf16.mxu0 0
  %1437 = vmatpush1.bf16.msra.mxu0 %v1395
  %1438 = vmatprep.subr.bf16.mxu0 0
  %1439 = vmatpush1.bf16.msra.mxu0 %v1394
  %1440 = vmatprep.subr.bf16.mxu0 0
  %1441 = vmatpush1.bf16.msra.mxu0 %v1393
  %1442 = vmatprep.subr.bf16.mxu0 0
  %1443 = vmatpush2.bf16.msra.mxu0 0
  %1444 = vmatprep.subr.bf16.mxu0 0
  %1445 = vmatpush2.bf16.msra.mxu0 0
  %1446 = vmatprep.subr.bf16.mxu0 0
  %1447 = vmatpush2.bf16.msra.mxu0 0
  %1448 = vmatprep.subr.bf16.mxu0 0
  %1449 = vmatpush2.bf16.msra.mxu0 0
  %1450 = vmatprep.subr.bf16.mxu0 0
  %1451 = vmatpush2.bf16.msra.mxu0 0
  %1452 = vmatprep.subr.bf16.mxu0 0
  %1453 = vmatpush2.bf16.msra.mxu0 0
  %1454 = vmatprep.subr.bf16.mxu0 0
  %1455 = vmatpush2.bf16.msra.mxu0 0
  %1456 = vmatprep.subr.bf16.mxu0 0
  %1457 = vmatpush2.bf16.msra.mxu0 0
  %1458 = vmatprep.mubr.bf16.mxu0 0
  %1459 = vmatmul.mubr.bf16.gmra.mxu0 %v1403
  %v1460 = vpop.f32.mrf.mxu0
  %v1461 = vadd.f32 %v1375, %v1460
  %v1462 = vpop.f32.mrf.mxu0
  %v1463 = vpop.f32.mrf.mxu0
  %v1464 = vadd.f32 %v1375, %v1463
  %v1465 = vpop.f32.mrf.mxu0
  %1466 = vmatprep.mubr.bf16.mxu0 0
  %1467 = vmatmul.mubr.bf16.gmra.mxu0 %v1406
  %v1468 = vpop.f32.mrf.mxu0
  %v1469 = vadd.f32 %v1375, %v1468
  %v1470 = vpop.f32.mrf.mxu0
  %v1471 = vpop.f32.mrf.mxu0
  %v1472 = vadd.f32 %v1375, %v1471
  %v1473 = vpop.f32.mrf.mxu0
  %1474 = vmatprep.mubr.bf16.mxu0 0
  %1475 = vmatmul.mubr.bf16.gmra.mxu0 %v1409
  %v1476 = vpop.f32.mrf.mxu0
  %v1477 = vadd.f32 %v1375, %v1476
  %v1478 = vpop.f32.mrf.mxu0
  %v1479 = vpop.f32.mrf.mxu0
  %v1480 = vadd.f32 %v1375, %v1479
  %v1481 = vpop.f32.mrf.mxu0
  %1482 = vmatprep.mubr.bf16.mxu0 0
  %1483 = vmatmul.mubr.bf16.gmra.mxu0 %v1412
  %v1484 = vpop.f32.mrf.mxu0
  %v1485 = vadd.f32 %v1375, %v1484
  %v1486 = vpop.f32.mrf.mxu0
  %v1487 = vpop.f32.mrf.mxu0
  %v1488 = vadd.f32 %v1375, %v1487
  %v1489 = vpop.f32.mrf.mxu0
  %1490 = vmatprep.mubr.bf16.mxu0 0
  %1491 = vmatmul.mubr.bf16.gmra.mxu0 %v1415
  %v1492 = vpop.f32.mrf.mxu0
  %v1493 = vadd.f32 %v1375, %v1492
  %v1494 = vpop.f32.mrf.mxu0
  %v1495 = vpop.f32.mrf.mxu0
  %v1496 = vadd.f32 %v1375, %v1495
  %v1497 = vpop.f32.mrf.mxu0
  %1498 = vmatprep.mubr.bf16.mxu0 0
  %1499 = vmatmul.mubr.bf16.gmra.mxu0 %v1418
  %v1500 = vpop.f32.mrf.mxu0
  %v1501 = vadd.f32 %v1375, %v1500
  %v1502 = vpop.f32.mrf.mxu0
  %v1503 = vpop.f32.mrf.mxu0
  %v1504 = vadd.f32 %v1375, %v1503
  %v1505 = vpop.f32.mrf.mxu0
  %1506 = vmatprep.mubr.bf16.mxu0 0
  %1507 = vmatmul.mubr.bf16.gmra.mxu0 %v1421
  %v1508 = vpop.f32.mrf.mxu0
  %v1509 = vadd.f32 %v1375, %v1508
  %v1510 = vpop.f32.mrf.mxu0
  %v1511 = vpop.f32.mrf.mxu0
  %v1512 = vadd.f32 %v1375, %v1511
  %v1513 = vpop.f32.mrf.mxu0
  %1514 = vmatprep.mubr.bf16.mxu0 0
  %1515 = vmatmul.mubr.bf16.gmra.mxu0 %v1424
  %v1516 = vpop.f32.mrf.mxu0
  %v1517 = vadd.f32 %v1375, %v1516
  %v1518 = vpop.f32.mrf.mxu0
  %v1519 = vpop.f32.mrf.mxu0
  %v1520 = vadd.f32 %v1375, %v1519
  %v1521 = vpop.f32.mrf.mxu0
  %1522 = vdwg.mxu0
  %v1523 = vadd.f32 %v1170, %v1461
  %v1524 = vadd.f32 %v1171, %v1464
  %v1525 = vadd.f32 %v1172, %v1469
  %v1526 = vadd.f32 %v1173, %v1472
  %v1527 = vadd.f32 %v1174, %v1477
  %v1528 = vadd.f32 %v1175, %v1480
  %v1529 = vadd.f32 %v1176, %v1485
  %v1530 = vadd.f32 %v1177, %v1488
  %v1531 = vadd.f32 %v1178, %v1493
  %v1532 = vadd.f32 %v1179, %v1496
  %v1533 = vadd.f32 %v1180, %v1501
  %v1534 = vadd.f32 %v1181, %v1504
  %v1535 = vadd.f32 %v1182, %v1509
  %v1536 = vadd.f32 %v1183, %v1512
  %v1537 = vadd.f32 %v1184, %v1517
  %v1538 = vadd.f32 %v1185, %v1520
  %v1539 = vld [vmem:[%s12] sm:$0x1]
  %v1540 = vld [vmem:[%s13] sm:$0x1]
  %v1541 = vsel %vm98, %v1523, 0.0
  %1542 = vadd.xlane.f32.xlu0 %v1541
  %v1543 = vpop.xlane.xlu0 %1542
  %v1544 = vsel %vm98, %v1524, 0.0
  %1545 = vadd.xlane.f32.xlu0 %v1544
  %v1546 = vpop.xlane.xlu0 %1545
  %v1547 = vsel %vm98, %v1525, 0.0
  %1548 = vadd.xlane.f32.xlu0 %v1547
  %v1549 = vpop.xlane.xlu0 %1548
  %v1550 = vsel %vm98, %v1526, 0.0
  %1551 = vadd.xlane.f32.xlu0 %v1550
  %v1552 = vpop.xlane.xlu0 %1551
  %v1553 = vsel %vm98, %v1527, 0.0
  %1554 = vadd.xlane.f32.xlu0 %v1553
  %v1555 = vpop.xlane.xlu0 %1554
  %v1556 = vsel %vm98, %v1528, 0.0
  %1557 = vadd.xlane.f32.xlu0 %v1556
  %v1558 = vpop.xlane.xlu0 %1557
  %v1559 = vsel %vm98, %v1529, 0.0
  %1560 = vadd.xlane.f32.xlu0 %v1559
  %v1561 = vpop.xlane.xlu0 %1560
  %v1562 = vsel %vm98, %v1530, 0.0
  %1563 = vadd.xlane.f32.xlu0 %v1562
  %v1564 = vpop.xlane.xlu0 %1563
  %v1565 = vsel %vm98, %v1531, 0.0
  %1566 = vadd.xlane.f32.xlu0 %v1565
  %v1567 = vpop.xlane.xlu0 %1566
  %v1568 = vsel %vm98, %v1532, 0.0
  %1569 = vadd.xlane.f32.xlu0 %v1568
  %v1570 = vpop.xlane.xlu0 %1569
  %v1571 = vsel %vm98, %v1533, 0.0
  %1572 = vadd.xlane.f32.xlu0 %v1571
  %v1573 = vpop.xlane.xlu0 %1572
  %v1574 = vsel %vm98, %v1534, 0.0
  %1575 = vadd.xlane.f32.xlu0 %v1574
  %v1576 = vpop.xlane.xlu0 %1575
  %v1577 = vsel %vm98, %v1535, 0.0
  %1578 = vadd.xlane.f32.xlu0 %v1577
  %v1579 = vpop.xlane.xlu0 %1578
  %v1580 = vsel %vm98, %v1536, 0.0
  %1581 = vadd.xlane.f32.xlu0 %v1580
  %v1582 = vpop.xlane.xlu0 %1581
  %v1583 = vsel %vm98, %v1537, 0.0
  %1584 = vadd.xlane.f32.xlu0 %v1583
  %v1585 = vpop.xlane.xlu0 %1584
  %v1586 = vsel %vm98, %v1538, 0.0
  %1587 = vadd.xlane.f32.xlu0 %v1586
  %v1588 = vpop.xlane.xlu0 %1587
  %v1589 = vmul.f32 %v1543, %v949
  %v1590 = vmul.f32 %v1546, %v949
  %v1591 = vmul.f32 %v1549, %v949
  %v1592 = vmul.f32 %v1552, %v949
  %v1593 = vmul.f32 %v1555, %v949
  %v1594 = vmul.f32 %v1558, %v949
  %v1595 = vmul.f32 %v1561, %v949
  %v1596 = vmul.f32 %v1564, %v949
  %v1597 = vmul.f32 %v1567, %v949
  %v1598 = vmul.f32 %v1570, %v949
  %v1599 = vmul.f32 %v1573, %v949
  %v1600 = vmul.f32 %v1576, %v949
  %v1601 = vmul.f32 %v1579, %v949
  %v1602 = vmul.f32 %v1582, %v949
  %v1603 = vmul.f32 %v1585, %v949
  %v1604 = vmul.f32 %v1588, %v949
  %v1605 = vmul.f32 %v1523, %v1523
  %v1606 = vmul.f32 %v1524, %v1524
  %v1607 = vmul.f32 %v1525, %v1525
  %v1608 = vmul.f32 %v1526, %v1526
  %v1609 = vmul.f32 %v1527, %v1527
  %v1610 = vmul.f32 %v1528, %v1528
  %v1611 = vmul.f32 %v1529, %v1529
  %v1612 = vmul.f32 %v1530, %v1530
  %v1613 = vmul.f32 %v1531, %v1531
  %v1614 = vmul.f32 %v1532, %v1532
  %v1615 = vmul.f32 %v1533, %v1533
  %v1616 = vmul.f32 %v1534, %v1534
  %v1617 = vmul.f32 %v1535, %v1535
  %v1618 = vmul.f32 %v1536, %v1536
  %v1619 = vmul.f32 %v1537, %v1537
  %v1620 = vmul.f32 %v1538, %v1538
  %v1621 = vsel %vm98, %v1605, 0.0
  %1622 = vadd.xlane.f32.xlu0 %v1621
  %v1623 = vpop.xlane.xlu0 %1622
  %v1624 = vsel %vm98, %v1606, 0.0
  %1625 = vadd.xlane.f32.xlu0 %v1624
  %v1626 = vpop.xlane.xlu0 %1625
  %v1627 = vsel %vm98, %v1607, 0.0
  %1628 = vadd.xlane.f32.xlu0 %v1627
  %v1629 = vpop.xlane.xlu0 %1628
  %v1630 = vsel %vm98, %v1608, 0.0
  %1631 = vadd.xlane.f32.xlu0 %v1630
  %v1632 = vpop.xlane.xlu0 %1631
  %v1633 = vsel %vm98, %v1609, 0.0
  %1634 = vadd.xlane.f32.xlu0 %v1633
  %v1635 = vpop.xlane.xlu0 %1634
  %v1636 = vsel %vm98, %v1610, 0.0
  %1637 = vadd.xlane.f32.xlu0 %v1636
  %v1638 = vpop.xlane.xlu0 %1637
  %v1639 = vsel %vm98, %v1611, 0.0
  %1640 = vadd.xlane.f32.xlu0 %v1639
  %v1641 = vpop.xlane.xlu0 %1640
  %v1642 = vsel %vm98, %v1612, 0.0
  %1643 = vadd.xlane.f32.xlu0 %v1642
  %v1644 = vpop.xlane.xlu0 %1643
  %v1645 = vsel %vm98, %v1613, 0.0
  %1646 = vadd.xlane.f32.xlu0 %v1645
  %v1647 = vpop.xlane.xlu0 %1646
  %v1648 = vsel %vm98, %v1614, 0.0
  %1649 = vadd.xlane.f32.xlu0 %v1648
  %v1650 = vpop.xlane.xlu0 %1649
  %v1651 = vsel %vm98, %v1615, 0.0
  %1652 = vadd.xlane.f32.xlu0 %v1651
  %v1653 = vpop.xlane.xlu0 %1652
  %v1654 = vsel %vm98, %v1616, 0.0
  %1655 = vadd.xlane.f32.xlu0 %v1654
  %v1656 = vpop.xlane.xlu0 %1655
  %v1657 = vsel %vm98, %v1617, 0.0
  %1658 = vadd.xlane.f32.xlu0 %v1657
  %v1659 = vpop.xlane.xlu0 %1658
  %v1660 = vsel %vm98, %v1618, 0.0
  %1661 = vadd.xlane.f32.xlu0 %v1660
  %v1662 = vpop.xlane.xlu0 %1661
  %v1663 = vsel %vm98, %v1619, 0.0
  %1664 = vadd.xlane.f32.xlu0 %v1663
  %v1665 = vpop.xlane.xlu0 %1664
  %v1666 = vsel %vm98, %v1620, 0.0
  %1667 = vadd.xlane.f32.xlu0 %v1666
  %v1668 = vpop.xlane.xlu0 %1667
  %v1669 = vmul.f32 %v1623, %v949
  %v1670 = vmul.f32 %v1626, %v949
  %v1671 = vmul.f32 %v1629, %v949
  %v1672 = vmul.f32 %v1632, %v949
  %v1673 = vmul.f32 %v1635, %v949
  %v1674 = vmul.f32 %v1638, %v949
  %v1675 = vmul.f32 %v1641, %v949
  %v1676 = vmul.f32 %v1644, %v949
  %v1677 = vmul.f32 %v1647, %v949
  %v1678 = vmul.f32 %v1650, %v949
  %v1679 = vmul.f32 %v1653, %v949
  %v1680 = vmul.f32 %v1656, %v949
  %v1681 = vmul.f32 %v1659, %v949
  %v1682 = vmul.f32 %v1662, %v949
  %v1683 = vmul.f32 %v1665, %v949
  %v1684 = vmul.f32 %v1668, %v949
  %v1685 = vmul.f32 %v1589, %v1589
  %v1686 = vmul.f32 %v1590, %v1590
  %v1687 = vmul.f32 %v1591, %v1591
  %v1688 = vmul.f32 %v1592, %v1592
  %v1689 = vmul.f32 %v1593, %v1593
  %v1690 = vmul.f32 %v1594, %v1594
  %v1691 = vmul.f32 %v1595, %v1595
  %v1692 = vmul.f32 %v1596, %v1596
  %v1693 = vmul.f32 %v1597, %v1597
  %v1694 = vmul.f32 %v1598, %v1598
  %v1695 = vmul.f32 %v1599, %v1599
  %v1696 = vmul.f32 %v1600, %v1600
  %v1697 = vmul.f32 %v1601, %v1601
  %v1698 = vmul.f32 %v1602, %v1602
  %v1699 = vmul.f32 %v1603, %v1603
  %v1700 = vmul.f32 %v1604, %v1604
  %v1701 = vsub.f32 %v1669, %v1685
  %v1702 = vsub.f32 %v1670, %v1686
  %v1703 = vsub.f32 %v1671, %v1687
  %v1704 = vsub.f32 %v1672, %v1688
  %v1705 = vsub.f32 %v1673, %v1689
  %v1706 = vsub.f32 %v1674, %v1690
  %v1707 = vsub.f32 %v1675, %v1691
  %v1708 = vsub.f32 %v1676, %v1692
  %v1709 = vsub.f32 %v1677, %v1693
  %v1710 = vsub.f32 %v1678, %v1694
  %v1711 = vsub.f32 %v1679, %v1695
  %v1712 = vsub.f32 %v1680, %v1696
  %v1713 = vsub.f32 %v1681, %v1697
  %v1714 = vsub.f32 %v1682, %v1698
  %v1715 = vsub.f32 %v1683, %v1699
  %v1716 = vsub.f32 %v1684, %v1700
  %v1717 = vsub.f32 %v1523, %v1589
  %v1718 = vsub.f32 %v1524, %v1590
  %v1719 = vsub.f32 %v1525, %v1591
  %v1720 = vsub.f32 %v1526, %v1592
  %v1721 = vsub.f32 %v1527, %v1593
  %v1722 = vsub.f32 %v1528, %v1594
  %v1723 = vsub.f32 %v1529, %v1595
  %v1724 = vsub.f32 %v1530, %v1596
  %v1725 = vsub.f32 %v1531, %v1597
  %v1726 = vsub.f32 %v1532, %v1598
  %v1727 = vsub.f32 %v1533, %v1599
  %v1728 = vsub.f32 %v1534, %v1600
  %v1729 = vsub.f32 %v1535, %v1601
  %v1730 = vsub.f32 %v1536, %v1602
  %v1731 = vsub.f32 %v1537, %v1603
  %v1732 = vsub.f32 %v1538, %v1604
  %v1733 = vadd.f32 %v1701, 1e-05
  %v1734 = vadd.f32 %v1702, 1e-05
  %v1735 = vadd.f32 %v1703, 1e-05
  %v1736 = vadd.f32 %v1704, 1e-05
  %v1737 = vadd.f32 %v1705, 1e-05
  %v1738 = vadd.f32 %v1706, 1e-05
  %v1739 = vadd.f32 %v1707, 1e-05
  %v1740 = vadd.f32 %v1708, 1e-05
  %v1741 = vadd.f32 %v1709, 1e-05
  %v1742 = vadd.f32 %v1710, 1e-05
  %v1743 = vadd.f32 %v1711, 1e-05
  %v1744 = vadd.f32 %v1712, 1e-05
  %v1745 = vadd.f32 %v1713, 1e-05
  %v1746 = vadd.f32 %v1714, 1e-05
  %v1747 = vadd.f32 %v1715, 1e-05
  %v1748 = vadd.f32 %v1716, 1e-05
  %v1749 = vrsqrt.pop %v1733
  %v1750 = vrsqrt.pop %v1734
  %v1751 = vrsqrt.pop %v1735
  %v1752 = vrsqrt.pop %v1736
  %v1753 = vrsqrt.pop %v1737
  %v1754 = vrsqrt.pop %v1738
  %v1755 = vrsqrt.pop %v1739
  %v1756 = vrsqrt.pop %v1740
  %v1757 = vrsqrt.pop %v1741
  %v1758 = vrsqrt.pop %v1742
  %v1759 = vrsqrt.pop %v1743
  %v1760 = vrsqrt.pop %v1744
  %v1761 = vrsqrt.pop %v1745
  %v1762 = vrsqrt.pop %v1746
  %v1763 = vrsqrt.pop %v1747
  %v1764 = vrsqrt.pop %v1748
  %v1765 = vmul.f32 %v1717, %v1749
  %v1766 = vmul.f32 %v1718, %v1750
  %v1767 = vmul.f32 %v1719, %v1751
  %v1768 = vmul.f32 %v1720, %v1752
  %v1769 = vmul.f32 %v1721, %v1753
  %v1770 = vmul.f32 %v1722, %v1754
  %v1771 = vmul.f32 %v1723, %v1755
  %v1772 = vmul.f32 %v1724, %v1756
  %v1773 = vmul.f32 %v1725, %v1757
  %v1774 = vmul.f32 %v1726, %v1758
  %v1775 = vmul.f32 %v1727, %v1759
  %v1776 = vmul.f32 %v1728, %v1760
  %v1777 = vmul.f32 %v1729, %v1761
  %v1778 = vmul.f32 %v1730, %v1762
  %v1779 = vmul.f32 %v1731, %v1763
  %v1780 = vmul.f32 %v1732, %v1764
  %v1782 = vlaneseq
  %v1783 = vshrl.u32 %v1782, 7
  %v1784 = vsub.s32 0, %v1783
  %v1785 = vrot.slane %v1539, %v1784
  %v1787 = vmul.f32 %v1765, %v1785
  %v1788 = vmul.f32 %v1766, %v1785
  %v1789 = vmul.f32 %v1767, %v1785
  %v1790 = vmul.f32 %v1768, %v1785
  %v1791 = vmul.f32 %v1769, %v1785
  %v1792 = vmul.f32 %v1770, %v1785
  %v1793 = vmul.f32 %v1771, %v1785
  %v1794 = vmul.f32 %v1772, %v1785
  %v1795 = vmul.f32 %v1773, %v1785
  %v1796 = vmul.f32 %v1774, %v1785
  %v1797 = vmul.f32 %v1775, %v1785
  %v1798 = vmul.f32 %v1776, %v1785
  %v1799 = vmul.f32 %v1777, %v1785
  %v1800 = vmul.f32 %v1778, %v1785
  %v1801 = vmul.f32 %v1779, %v1785
  %v1802 = vmul.f32 %v1780, %v1785
  %v1804 = vlaneseq
  %v1805 = vshrl.u32 %v1804, 7
  %v1806 = vsub.s32 0, %v1805
  %v1807 = vrot.slane %v1540, %v1806
  %v1809 = vadd.f32 %v1787, %v1807
  %v1810 = vadd.f32 %v1788, %v1807
  %v1811 = vadd.f32 %v1789, %v1807
  %v1812 = vadd.f32 %v1790, %v1807
  %v1813 = vadd.f32 %v1791, %v1807
  %v1814 = vadd.f32 %v1792, %v1807
  %v1815 = vadd.f32 %v1793, %v1807
  %v1816 = vadd.f32 %v1794, %v1807
  %v1817 = vadd.f32 %v1795, %v1807
  %v1818 = vadd.f32 %v1796, %v1807
  %v1819 = vadd.f32 %v1797, %v1807
  %v1820 = vadd.f32 %v1798, %v1807
  %v1821 = vadd.f32 %v1799, %v1807
  %v1822 = vadd.f32 %v1800, %v1807
  %v1823 = vadd.f32 %v1801, %v1807
  %v1824 = vadd.f32 %v1802, %v1807
  %v1825 = vpack.c.bf16 %v1810, %v1809
  %v1826 = vpack.c.bf16 %v1812, %v1811
  %v1827 = vpack.c.bf16 %v1814, %v1813
  %v1828 = vpack.c.bf16 %v1816, %v1815
  %v1829 = vpack.c.bf16 %v1818, %v1817
  %v1830 = vpack.c.bf16 %v1820, %v1819
  %v1831 = vpack.c.bf16 %v1822, %v1821
  %v1832 = vpack.c.bf16 %v1824, %v1823
  %s1833 = scalar_lea.vmem %s1, 16
  %v1834 = vld [vmem:[%s1833] sm:$0xf]
  %v1835 = vld [vmem:[%s1833 + $0x4] sm:$0xf]
  %v1836 = vld [vmem:[%s1833 + $0x8] sm:$0xf]
  %v1837 = vld [vmem:[%s1833 + $0xc] sm:$0xf]
  %s1838 = scalar_lea.vmem %s2, 1
  %v1839 = vld [vmem:[%s1838] sm:$0x1]
  %v1841 = vlaneseq
  %v1842 = vshrl.u32 %v1841, 7
  %v1843 = vsub.s32 0, %v1842
  %v1844 = vrot.slane %v1839, %v1843
  %v1850 = vunpack.c.l.b16 %v1834
  %v1851 = vunpack.c.l.b16 %v1835
  %v1852 = vunpack.c.l.b16 %v1836
  %v1853 = vunpack.c.l.b16 %v1837
  %v1854 = vpack.c.b16 %v1851, %v1850
  %v1855 = vpack.c.b16 %v1853, %v1852
  %v1859 = vsel %vm98, %v1825, 0
  %v1862 = vsel %vm98, %v1826, 0
  %v1865 = vsel %vm98, %v1827, 0
  %v1868 = vsel %vm98, %v1828, 0
  %v1871 = vsel %vm98, %v1829, 0
  %v1874 = vsel %vm98, %v1830, 0
  %v1877 = vsel %vm98, %v1831, 0
  %v1880 = vsel %vm98, %v1832, 0
  %1882 = vmatprep.subr.bf16.mxu0 0
  %1883 = vmatpush1.bf16.msra.mxu0 0
  %1884 = vmatprep.subr.bf16.mxu0 0
  %1885 = vmatpush1.bf16.msra.mxu0 0
  %1886 = vmatprep.subr.bf16.mxu0 0
  %1887 = vmatpush1.bf16.msra.mxu0 0
  %1888 = vmatprep.subr.bf16.mxu0 0
  %1889 = vmatpush1.bf16.msra.mxu0 0
  %1890 = vmatprep.subr.bf16.mxu0 0
  %1891 = vmatpush1.bf16.msra.mxu0 0
  %1892 = vmatprep.subr.bf16.mxu0 0
  %1893 = vmatpush1.bf16.msra.mxu0 0
  %1894 = vmatprep.subr.bf16.mxu0 0
  %1895 = vmatpush1.bf16.msra.mxu0 %v1855
  %1896 = vmatprep.subr.bf16.mxu0 0
  %1897 = vmatpush1.bf16.msra.mxu0 %v1854
  %1898 = vmatprep.subr.bf16.mxu0 0
  %1899 = vmatpush2.bf16.msra.mxu0 0
  %1900 = vmatprep.subr.bf16.mxu0 0
  %1901 = vmatpush2.bf16.msra.mxu0 0
  %1902 = vmatprep.subr.bf16.mxu0 0
  %1903 = vmatpush2.bf16.msra.mxu0 0
  %1904 = vmatprep.subr.bf16.mxu0 0
  %1905 = vmatpush2.bf16.msra.mxu0 0
  %1906 = vmatprep.subr.bf16.mxu0 0
  %1907 = vmatpush2.bf16.msra.mxu0 0
  %1908 = vmatprep.subr.bf16.mxu0 0
  %1909 = vmatpush2.bf16.msra.mxu0 0
  %1910 = vmatprep.subr.bf16.mxu0 0
  %1911 = vmatpush2.bf16.msra.mxu0 0
  %1912 = vmatprep.subr.bf16.mxu0 0
  %1913 = vmatpush2.bf16.msra.mxu0 0
  %1914 = vmatprep.mubr.bf16.mxu0 0
  %1915 = vmatmul.mubr.bf16.gmra.mxu0 %v1859
  %v1916 = vpop.f32.mrf.mxu0
  %v1917 = vadd.f32 %v1844, %v1916
  %v1918 = vpop.f32.mrf.mxu0
  %v1919 = vpop.f32.mrf.mxu0
  %v1920 = vadd.f32 %v1844, %v1919
  %v1921 = vpop.f32.mrf.mxu0
  %1922 = vmatprep.mubr.bf16.mxu0 0
  %1923 = vmatmul.mubr.bf16.gmra.mxu0 %v1862
  %v1924 = vpop.f32.mrf.mxu0
  %v1925 = vadd.f32 %v1844, %v1924
  %v1926 = vpop.f32.mrf.mxu0
  %v1927 = vpop.f32.mrf.mxu0
  %v1928 = vadd.f32 %v1844, %v1927
  %v1929 = vpop.f32.mrf.mxu0
  %1930 = vmatprep.mubr.bf16.mxu0 0
  %1931 = vmatmul.mubr.bf16.gmra.mxu0 %v1865
  %v1932 = vpop.f32.mrf.mxu0
  %v1933 = vadd.f32 %v1844, %v1932
  %v1934 = vpop.f32.mrf.mxu0
  %v1935 = vpop.f32.mrf.mxu0
  %v1936 = vadd.f32 %v1844, %v1935
  %v1937 = vpop.f32.mrf.mxu0
  %1938 = vmatprep.mubr.bf16.mxu0 0
  %1939 = vmatmul.mubr.bf16.gmra.mxu0 %v1868
  %v1940 = vpop.f32.mrf.mxu0
  %v1941 = vadd.f32 %v1844, %v1940
  %v1942 = vpop.f32.mrf.mxu0
  %v1943 = vpop.f32.mrf.mxu0
  %v1944 = vadd.f32 %v1844, %v1943
  %v1945 = vpop.f32.mrf.mxu0
  %1946 = vmatprep.mubr.bf16.mxu0 0
  %1947 = vmatmul.mubr.bf16.gmra.mxu0 %v1871
  %v1948 = vpop.f32.mrf.mxu0
  %v1949 = vadd.f32 %v1844, %v1948
  %v1950 = vpop.f32.mrf.mxu0
  %v1951 = vpop.f32.mrf.mxu0
  %v1952 = vadd.f32 %v1844, %v1951
  %v1953 = vpop.f32.mrf.mxu0
  %1954 = vmatprep.mubr.bf16.mxu0 0
  %1955 = vmatmul.mubr.bf16.gmra.mxu0 %v1874
  %v1956 = vpop.f32.mrf.mxu0
  %v1957 = vadd.f32 %v1844, %v1956
  %v1958 = vpop.f32.mrf.mxu0
  %v1959 = vpop.f32.mrf.mxu0
  %v1960 = vadd.f32 %v1844, %v1959
  %v1961 = vpop.f32.mrf.mxu0
  %1962 = vmatprep.mubr.bf16.mxu0 0
  %1963 = vmatmul.mubr.bf16.gmra.mxu0 %v1877
  %v1964 = vpop.f32.mrf.mxu0
  %v1965 = vadd.f32 %v1844, %v1964
  %v1966 = vpop.f32.mrf.mxu0
  %v1967 = vpop.f32.mrf.mxu0
  %v1968 = vadd.f32 %v1844, %v1967
  %v1969 = vpop.f32.mrf.mxu0
  %1970 = vmatprep.mubr.bf16.mxu0 0
  %1971 = vmatmul.mubr.bf16.gmra.mxu0 %v1880
  %v1972 = vpop.f32.mrf.mxu0
  %v1973 = vadd.f32 %v1844, %v1972
  %v1974 = vpop.f32.mrf.mxu0
  %v1975 = vpop.f32.mrf.mxu0
  %v1976 = vadd.f32 %v1844, %v1975
  %v1977 = vpop.f32.mrf.mxu0
  %1978 = vdwg.mxu0
  %v1979 = vpack.c.bf16 %v1920, %v1917
  %v1980 = vpack.c.bf16 %v1928, %v1925
  %v1981 = vpack.c.bf16 %v1936, %v1933
  %v1982 = vpack.c.bf16 %v1944, %v1941
  %v1983 = vpack.c.bf16 %v1952, %v1949
  %v1984 = vpack.c.bf16 %v1960, %v1957
  %v1985 = vpack.c.bf16 %v1968, %v1965
  %v1986 = vpack.c.bf16 %v1976, %v1973
  %1995 = vrot.lane.b32.xlu0 %v1979, 96
  %v1996 = vpop.permute.xlu0 %1995
  %1997 = vrot.lane.b32.xlu0 %v1980, 96
  %v1998 = vpop.permute.xlu0 %1997
  %1999 = vrot.lane.b32.xlu0 %v1981, 96
  %v2000 = vpop.permute.xlu0 %1999
  %2001 = vrot.lane.b32.xlu0 %v1982, 96
  %v2002 = vpop.permute.xlu0 %2001
  %2003 = vrot.lane.b32.xlu0 %v1983, 96
  %v2004 = vpop.permute.xlu0 %2003
  %2005 = vrot.lane.b32.xlu0 %v1984, 96
  %v2006 = vpop.permute.xlu0 %2005
  %2007 = vrot.lane.b32.xlu0 %v1985, 96
  %v2008 = vpop.permute.xlu0 %2007
  %2009 = vrot.lane.b32.xlu0 %v1986, 96
  %v2010 = vpop.permute.xlu0 %2009
  %v2012 = vsel %vm98, %v1979, 0
  %v2015 = vsel %vm98, %v1980, 0
  %v2018 = vsel %vm98, %v1981, 0
  %v2021 = vsel %vm98, %v1982, 0
  %v2024 = vsel %vm98, %v1983, 0
  %v2027 = vsel %vm98, %v1984, 0
  %v2030 = vsel %vm98, %v1985, 0
  %v2033 = vsel %vm98, %v1986, 0
  %v2036 = vsel %vm98, %v1996, 0
  %v2039 = vsel %vm98, %v1998, 0
  %v2042 = vsel %vm98, %v2000, 0
  %v2045 = vsel %vm98, %v2002, 0
  %v2048 = vsel %vm98, %v2004, 0
  %v2051 = vsel %vm98, %v2006, 0
  %v2054 = vsel %vm98, %v2008, 0
  %v2057 = vsel %vm98, %v2010, 0
  %2059 = vmatprep.subr.bf16.mxu0 0
  %2060 = vmatpush1.bf16.xpose.msra.mxu0 %v2057
  %2061 = vmatprep.subr.bf16.mxu0 0
  %2062 = vmatpush1.bf16.xpose.msra.mxu0 %v2054
  %2063 = vmatprep.subr.bf16.mxu0 0
  %2064 = vmatpush1.bf16.xpose.msra.mxu0 %v2051
  %2065 = vmatprep.subr.bf16.mxu0 0
  %2066 = vmatpush1.bf16.xpose.msra.mxu0 %v2048
  %2067 = vmatprep.subr.bf16.mxu0 0
  %2068 = vmatpush1.bf16.xpose.msra.mxu0 %v2045
  %2069 = vmatprep.subr.bf16.mxu0 0
  %2070 = vmatpush1.bf16.xpose.msra.mxu0 %v2042
  %2071 = vmatprep.subr.bf16.mxu0 0
  %2072 = vmatpush1.bf16.xpose.msra.mxu0 %v2039
  %2073 = vmatprep.subr.bf16.mxu0 0
  %2074 = vmatpush1.bf16.xpose.msra.mxu0 %v2036
  %2075 = vmatprep.subr.bf16.mxu0 0
  %2076 = vmatpush2.bf16.xpose.msra.mxu0 0
  %2077 = vmatprep.subr.bf16.mxu0 0
  %2078 = vmatpush2.bf16.xpose.msra.mxu0 0
  %2079 = vmatprep.subr.bf16.mxu0 0
  %2080 = vmatpush2.bf16.xpose.msra.mxu0 0
  %2081 = vmatprep.subr.bf16.mxu0 0
  %2082 = vmatpush2.bf16.xpose.msra.mxu0 0
  %2083 = vmatprep.subr.bf16.mxu0 0
  %2084 = vmatpush2.bf16.xpose.msra.mxu0 0
  %2085 = vmatprep.subr.bf16.mxu0 0
  %2086 = vmatpush2.bf16.xpose.msra.mxu0 0
  %2087 = vmatprep.subr.bf16.mxu0 0
  %2088 = vmatpush2.bf16.xpose.msra.mxu0 0
  %2089 = vmatprep.subr.bf16.mxu0 0
  %2090 = vmatpush2.bf16.xpose.msra.mxu0 0
  %2091 = vmatprep.mubr.bf16.mxu0 0
  %2092 = vmatmul.mubr.bf16.gmra.mxu0 %v2012
  %v2093 = vpop.f32.mrf.mxu0
  %v2094 = vadd.f32 0.0, %v2093
  %v2095 = vpop.f32.mrf.mxu0
  %v2096 = vpop.f32.mrf.mxu0
  %v2097 = vadd.f32 0.0, %v2096
  %v2098 = vpop.f32.mrf.mxu0
  %2099 = vmatprep.mubr.bf16.mxu0 0
  %2100 = vmatmul.mubr.bf16.gmra.mxu0 %v2015
  %v2101 = vpop.f32.mrf.mxu0
  %v2102 = vadd.f32 0.0, %v2101
  %v2103 = vpop.f32.mrf.mxu0
  %v2104 = vpop.f32.mrf.mxu0
  %v2105 = vadd.f32 0.0, %v2104
  %v2106 = vpop.f32.mrf.mxu0
  %2107 = vmatprep.mubr.bf16.mxu0 0
  %2108 = vmatmul.mubr.bf16.gmra.mxu0 %v2018
  %v2109 = vpop.f32.mrf.mxu0
  %v2110 = vadd.f32 0.0, %v2109
  %v2111 = vpop.f32.mrf.mxu0
  %v2112 = vpop.f32.mrf.mxu0
  %v2113 = vadd.f32 0.0, %v2112
  %v2114 = vpop.f32.mrf.mxu0
  %2115 = vmatprep.mubr.bf16.mxu0 0
  %2116 = vmatmul.mubr.bf16.gmra.mxu0 %v2021
  %v2117 = vpop.f32.mrf.mxu0
  %v2118 = vadd.f32 0.0, %v2117
  %v2119 = vpop.f32.mrf.mxu0
  %v2120 = vpop.f32.mrf.mxu0
  %v2121 = vadd.f32 0.0, %v2120
  %v2122 = vpop.f32.mrf.mxu0
  %2123 = vmatprep.mubr.bf16.mxu0 0
  %2124 = vmatmul.mubr.bf16.gmra.mxu0 %v2024
  %v2125 = vpop.f32.mrf.mxu0
  %v2126 = vadd.f32 0.0, %v2125
  %v2127 = vpop.f32.mrf.mxu0
  %v2128 = vpop.f32.mrf.mxu0
  %v2129 = vadd.f32 0.0, %v2128
  %v2130 = vpop.f32.mrf.mxu0
  %2131 = vmatprep.mubr.bf16.mxu0 0
  %2132 = vmatmul.mubr.bf16.gmra.mxu0 %v2027
  %v2133 = vpop.f32.mrf.mxu0
  %v2134 = vadd.f32 0.0, %v2133
  %v2135 = vpop.f32.mrf.mxu0
  %v2136 = vpop.f32.mrf.mxu0
  %v2137 = vadd.f32 0.0, %v2136
  %v2138 = vpop.f32.mrf.mxu0
  %2139 = vmatprep.mubr.bf16.mxu0 0
  %2140 = vmatmul.mubr.bf16.gmra.mxu0 %v2030
  %v2141 = vpop.f32.mrf.mxu0
  %v2142 = vadd.f32 0.0, %v2141
  %v2143 = vpop.f32.mrf.mxu0
  %v2144 = vpop.f32.mrf.mxu0
  %v2145 = vadd.f32 0.0, %v2144
  %v2146 = vpop.f32.mrf.mxu0
  %2147 = vmatprep.mubr.bf16.mxu0 0
  %2148 = vmatmul.mubr.bf16.gmra.mxu0 %v2033
  %v2149 = vpop.f32.mrf.mxu0
  %v2150 = vadd.f32 0.0, %v2149
  %v2151 = vpop.f32.mrf.mxu0
  %v2152 = vpop.f32.mrf.mxu0
  %v2153 = vadd.f32 0.0, %v2152
  %v2154 = vpop.f32.mrf.mxu0
  %2155 = vdwg.mxu0
  %2156 = vmax.xlane.f32.xlu0 %v2094
  %v2157 = vpop.xlane.xlu0 %2156
  %2158 = vmax.xlane.f32.xlu0 %v2097
  %v2159 = vpop.xlane.xlu0 %2158
  %2160 = vmax.xlane.f32.xlu0 %v2102
  %v2161 = vpop.xlane.xlu0 %2160
  %2162 = vmax.xlane.f32.xlu0 %v2105
  %v2163 = vpop.xlane.xlu0 %2162
  %2164 = vmax.xlane.f32.xlu0 %v2110
  %v2165 = vpop.xlane.xlu0 %2164
  %2166 = vmax.xlane.f32.xlu0 %v2113
  %v2167 = vpop.xlane.xlu0 %2166
  %2168 = vmax.xlane.f32.xlu0 %v2118
  %v2169 = vpop.xlane.xlu0 %2168
  %2170 = vmax.xlane.f32.xlu0 %v2121
  %v2171 = vpop.xlane.xlu0 %2170
  %2172 = vmax.xlane.f32.xlu0 %v2126
  %v2173 = vpop.xlane.xlu0 %2172
  %2174 = vmax.xlane.f32.xlu0 %v2129
  %v2175 = vpop.xlane.xlu0 %2174
  %2176 = vmax.xlane.f32.xlu0 %v2134
  %v2177 = vpop.xlane.xlu0 %2176
  %2178 = vmax.xlane.f32.xlu0 %v2137
  %v2179 = vpop.xlane.xlu0 %2178
  %2180 = vmax.xlane.f32.xlu0 %v2142
  %v2181 = vpop.xlane.xlu0 %2180
  %2182 = vmax.xlane.f32.xlu0 %v2145
  %v2183 = vpop.xlane.xlu0 %2182
  %2184 = vmax.xlane.f32.xlu0 %v2150
  %v2185 = vpop.xlane.xlu0 %2184
  %2186 = vmax.xlane.f32.xlu0 %v2153
  %v2187 = vpop.xlane.xlu0 %2186
  %v2188 = vsub.f32 %v2094, %v2157
  %v2189 = vsub.f32 %v2097, %v2159
  %v2190 = vsub.f32 %v2102, %v2161
  %v2191 = vsub.f32 %v2105, %v2163
  %v2192 = vsub.f32 %v2110, %v2165
  %v2193 = vsub.f32 %v2113, %v2167
  %v2194 = vsub.f32 %v2118, %v2169
  %v2195 = vsub.f32 %v2121, %v2171
  %v2196 = vsub.f32 %v2126, %v2173
  %v2197 = vsub.f32 %v2129, %v2175
  %v2198 = vsub.f32 %v2134, %v2177
  %v2199 = vsub.f32 %v2137, %v2179
  %v2200 = vsub.f32 %v2142, %v2181
  %v2201 = vsub.f32 %v2145, %v2183
  %v2202 = vsub.f32 %v2150, %v2185
  %v2203 = vsub.f32 %v2153, %v2187
  %v2204 = vmul.f32 %v2188, 1.442695
  %v2205 = vpow.pop %v2204
  %v2206 = vmul.f32 %v2189, 1.442695
  %v2207 = vpow.pop %v2206
  %v2208 = vmul.f32 %v2190, 1.442695
  %v2209 = vpow.pop %v2208
  %v2210 = vmul.f32 %v2191, 1.442695
  %v2211 = vpow.pop %v2210
  %v2212 = vmul.f32 %v2192, 1.442695
  %v2213 = vpow.pop %v2212
  %v2214 = vmul.f32 %v2193, 1.442695
  %v2215 = vpow.pop %v2214
  %v2216 = vmul.f32 %v2194, 1.442695
  %v2217 = vpow.pop %v2216
  %v2218 = vmul.f32 %v2195, 1.442695
  %v2219 = vpow.pop %v2218
  %v2220 = vmul.f32 %v2196, 1.442695
  %v2221 = vpow.pop %v2220
  %v2222 = vmul.f32 %v2197, 1.442695
  %v2223 = vpow.pop %v2222
  %v2224 = vmul.f32 %v2198, 1.442695
  %v2225 = vpow.pop %v2224
  %v2226 = vmul.f32 %v2199, 1.442695
  %v2227 = vpow.pop %v2226
  %v2228 = vmul.f32 %v2200, 1.442695
  %v2229 = vpow.pop %v2228
  %v2230 = vmul.f32 %v2201, 1.442695
  %v2231 = vpow.pop %v2230
  %v2232 = vmul.f32 %v2202, 1.442695
  %v2233 = vpow.pop %v2232
  %v2234 = vmul.f32 %v2203, 1.442695
  %v2235 = vpow.pop %v2234
  %2236 = vadd.xlane.f32.xlu0 %v2205
  %v2237 = vpop.xlane.xlu0 %2236
  %2238 = vadd.xlane.f32.xlu0 %v2207
  %v2239 = vpop.xlane.xlu0 %2238
  %2240 = vadd.xlane.f32.xlu0 %v2209
  %v2241 = vpop.xlane.xlu0 %2240
  %2242 = vadd.xlane.f32.xlu0 %v2211
  %v2243 = vpop.xlane.xlu0 %2242
  %2244 = vadd.xlane.f32.xlu0 %v2213
  %v2245 = vpop.xlane.xlu0 %2244
  %2246 = vadd.xlane.f32.xlu0 %v2215
  %v2247 = vpop.xlane.xlu0 %2246
  %2248 = vadd.xlane.f32.xlu0 %v2217
  %v2249 = vpop.xlane.xlu0 %2248
  %2250 = vadd.xlane.f32.xlu0 %v2219
  %v2251 = vpop.xlane.xlu0 %2250
  %2252 = vadd.xlane.f32.xlu0 %v2221
  %v2253 = vpop.xlane.xlu0 %2252
  %2254 = vadd.xlane.f32.xlu0 %v2223
  %v2255 = vpop.xlane.xlu0 %2254
  %2256 = vadd.xlane.f32.xlu0 %v2225
  %v2257 = vpop.xlane.xlu0 %2256
  %2258 = vadd.xlane.f32.xlu0 %v2227
  %v2259 = vpop.xlane.xlu0 %2258
  %2260 = vadd.xlane.f32.xlu0 %v2229
  %v2261 = vpop.xlane.xlu0 %2260
  %2262 = vadd.xlane.f32.xlu0 %v2231
  %v2263 = vpop.xlane.xlu0 %2262
  %2264 = vadd.xlane.f32.xlu0 %v2233
  %v2265 = vpop.xlane.xlu0 %2264
  %2266 = vadd.xlane.f32.xlu0 %v2235
  %v2267 = vpop.xlane.xlu0 %2266
  %s2268 = scalar_lea.vmem %s3, 1
  %v2269 = vld [vmem:[%s2268] sm:$0x1]
  %v2271 = vlaneseq
  %v2272 = vshrl.u32 %v2271, 7
  %v2273 = vsub.s32 0, %v2272
  %v2274 = vrot.slane %v2269, %v2273
  %v2276 = vmul.f32 %v1809, %v2274
  %v2277 = vmul.f32 %v1810, %v2274
  %v2278 = vmul.f32 %v1811, %v2274
  %v2279 = vmul.f32 %v1812, %v2274
  %v2280 = vmul.f32 %v1813, %v2274
  %v2281 = vmul.f32 %v1814, %v2274
  %v2282 = vmul.f32 %v1815, %v2274
  %v2283 = vmul.f32 %v1816, %v2274
  %v2284 = vmul.f32 %v1817, %v2274
  %v2285 = vmul.f32 %v1818, %v2274
  %v2286 = vmul.f32 %v1819, %v2274
  %v2287 = vmul.f32 %v1820, %v2274
  %v2288 = vmul.f32 %v1821, %v2274
  %v2289 = vmul.f32 %v1822, %v2274
  %v2290 = vmul.f32 %v1823, %v2274
  %v2291 = vmul.f32 %v1824, %v2274
  %v2292 = vsel %vm98, %v2276, 0.0
  %2293 = vadd.xlane.f32.xlu0 %v2292
  %v2294 = vpop.xlane.xlu0 %2293
  %v2295 = vsel %vm98, %v2277, 0.0
  %2296 = vadd.xlane.f32.xlu0 %v2295
  %v2297 = vpop.xlane.xlu0 %2296
  %v2298 = vsel %vm98, %v2278, 0.0
  %2299 = vadd.xlane.f32.xlu0 %v2298
  %v2300 = vpop.xlane.xlu0 %2299
  %v2301 = vsel %vm98, %v2279, 0.0
  %2302 = vadd.xlane.f32.xlu0 %v2301
  %v2303 = vpop.xlane.xlu0 %2302
  %v2304 = vsel %vm98, %v2280, 0.0
  %2305 = vadd.xlane.f32.xlu0 %v2304
  %v2306 = vpop.xlane.xlu0 %2305
  %v2307 = vsel %vm98, %v2281, 0.0
  %2308 = vadd.xlane.f32.xlu0 %v2307
  %v2309 = vpop.xlane.xlu0 %2308
  %v2310 = vsel %vm98, %v2282, 0.0
  %2311 = vadd.xlane.f32.xlu0 %v2310
  %v2312 = vpop.xlane.xlu0 %2311
  %v2313 = vsel %vm98, %v2283, 0.0
  %2314 = vadd.xlane.f32.xlu0 %v2313
  %v2315 = vpop.xlane.xlu0 %2314
  %v2316 = vsel %vm98, %v2284, 0.0
  %2317 = vadd.xlane.f32.xlu0 %v2316
  %v2318 = vpop.xlane.xlu0 %2317
  %v2319 = vsel %vm98, %v2285, 0.0
  %2320 = vadd.xlane.f32.xlu0 %v2319
  %v2321 = vpop.xlane.xlu0 %2320
  %v2322 = vsel %vm98, %v2286, 0.0
  %2323 = vadd.xlane.f32.xlu0 %v2322
  %v2324 = vpop.xlane.xlu0 %2323
  %v2325 = vsel %vm98, %v2287, 0.0
  %2326 = vadd.xlane.f32.xlu0 %v2325
  %v2327 = vpop.xlane.xlu0 %2326
  %v2328 = vsel %vm98, %v2288, 0.0
  %2329 = vadd.xlane.f32.xlu0 %v2328
  %v2330 = vpop.xlane.xlu0 %2329
  %v2331 = vsel %vm98, %v2289, 0.0
  %2332 = vadd.xlane.f32.xlu0 %v2331
  %v2333 = vpop.xlane.xlu0 %2332
  %v2334 = vsel %vm98, %v2290, 0.0
  %2335 = vadd.xlane.f32.xlu0 %v2334
  %v2336 = vpop.xlane.xlu0 %2335
  %v2337 = vsel %vm98, %v2291, 0.0
  %2338 = vadd.xlane.f32.xlu0 %v2337
  %v2339 = vpop.xlane.xlu0 %2338
  %s2340 = scalar_lea.vmem %s4, 1
  %v2341 = vld [vmem:[%s2340] sm:$0x1]
  %v2343 = vlaneseq
  %v2344 = vshrl.u32 %v2343, 7
  %v2345 = vsub.s32 0, %v2344
  %v2346 = vrot.slane %v2341, %v2345
  %v2348 = vadd.f32 %v2294, %v2346
  %v2349 = vadd.f32 %v2297, %v2346
  %v2350 = vadd.f32 %v2300, %v2346
  %v2351 = vadd.f32 %v2303, %v2346
  %v2352 = vadd.f32 %v2306, %v2346
  %v2353 = vadd.f32 %v2309, %v2346
  %v2354 = vadd.f32 %v2312, %v2346
  %v2355 = vadd.f32 %v2315, %v2346
  %v2356 = vadd.f32 %v2318, %v2346
  %v2357 = vadd.f32 %v2321, %v2346
  %v2358 = vadd.f32 %v2324, %v2346
  %v2359 = vadd.f32 %v2327, %v2346
  %v2360 = vadd.f32 %v2330, %v2346
  %v2361 = vadd.f32 %v2333, %v2346
  %v2362 = vadd.f32 %v2336, %v2346
  %v2363 = vadd.f32 %v2339, %v2346
  %2364 = vmatprep.subr.mxu0 0.0
  %2365 = vmatpush1.msra.mxu0 %v2363
  %2366 = vmatprep.subr.mxu0 0.0
  %2367 = vmatpush1.msra.mxu0 %v2362
  %2368 = vmatprep.subr.mxu0 0.0
  %2369 = vmatpush1.msra.mxu0 %v2361
  %2370 = vmatprep.subr.mxu0 0.0
  %2371 = vmatpush1.msra.mxu0 %v2360
  %2372 = vmatprep.subr.mxu0 0.0
  %2373 = vmatpush1.msra.mxu0 %v2359
  %2374 = vmatprep.subr.mxu0 0.0
  %2375 = vmatpush1.msra.mxu0 %v2358
  %2376 = vmatprep.subr.mxu0 0.0
  %2377 = vmatpush1.msra.mxu0 %v2357
  %2378 = vmatprep.subr.mxu0 0.0
  %2379 = vmatpush1.msra.mxu0 %v2356
  %2380 = vmatprep.subr.mxu0 0.0
  %2381 = vmatpush1.msra.mxu0 %v2355
  %2382 = vmatprep.subr.mxu0 0.0
  %2383 = vmatpush1.msra.mxu0 %v2354
  %2384 = vmatprep.subr.mxu0 0.0
  %2385 = vmatpush1.msra.mxu0 %v2353
  %2386 = vmatprep.subr.mxu0 0.0
  %2387 = vmatpush1.msra.mxu0 %v2352
  %2388 = vmatprep.subr.mxu0 0.0
  %2389 = vmatpush1.msra.mxu0 %v2351
  %2390 = vmatprep.subr.mxu0 0.0
  %2391 = vmatpush1.msra.mxu0 %v2350
  %2392 = vmatprep.subr.mxu0 0.0
  %2393 = vmatpush1.msra.mxu0 %v2349
  %2394 = vmatprep.subr.mxu0 0.0
  %2395 = vmatpush1.msra.mxu0 %v2348
  %2396 = vmatprep.subr.mxu0 0.0
  %2397 = vmatpush2.msra.mxu0 0.0
  %2398 = vmatprep.subr.mxu0 0.0
  %2399 = vmatpush2.msra.mxu0 0.0
  %2400 = vmatprep.subr.mxu0 0.0
  %2401 = vmatpush2.msra.mxu0 0.0
  %2402 = vmatprep.subr.mxu0 0.0
  %2403 = vmatpush2.msra.mxu0 0.0
  %2404 = vmatprep.subr.mxu0 0.0
  %2405 = vmatpush2.msra.mxu0 0.0
  %2406 = vmatprep.subr.mxu0 0.0
  %2407 = vmatpush2.msra.mxu0 0.0
  %2408 = vmatprep.subr.mxu0 0.0
  %2409 = vmatpush2.msra.mxu0 0.0
  %2410 = vmatprep.subr.mxu0 0.0
  %2411 = vmatpush2.msra.mxu0 0.0
  %2412 = vmatprep.subr.mxu0 0.0
  %2413 = vmatpush2.msra.mxu0 0.0
  %2414 = vmatprep.subr.mxu0 0.0
  %2415 = vmatpush2.msra.mxu0 0.0
  %2416 = vmatprep.subr.mxu0 0.0
  %2417 = vmatpush2.msra.mxu0 0.0
  %2418 = vmatprep.subr.mxu0 0.0
  %2419 = vmatpush2.msra.mxu0 0.0
  %2420 = vmatprep.subr.mxu0 0.0
  %2421 = vmatpush2.msra.mxu0 0.0
  %2422 = vmatprep.subr.mxu0 0.0
  %2423 = vmatpush2.msra.mxu0 0.0
  %2424 = vmatprep.subr.mxu0 0.0
  %2425 = vmatpush2.msra.mxu0 0.0
  %2426 = vmatprep.subr.mxu0 0.0
  %2427 = vmatpush2.msra.mxu0 0.0
  %2428 = vmatprep.mubr.f32.mxu0 0.0
  %2429 = vmatmul.mubr.f32.gmra.mxu0 %v2205
  %v2430 = vpop.f32.mrf.mxu0
  %v2431 = vadd.f32 0.0, %v2430
  %v2432 = vpop.f32.mrf.mxu0
  %2433 = vmatprep.mubr.f32.mxu0 0.0
  %2434 = vmatmul.mubr.f32.gmra.mxu0 %v2207
  %v2435 = vpop.f32.mrf.mxu0
  %v2436 = vadd.f32 0.0, %v2435
  %v2437 = vpop.f32.mrf.mxu0
  %2438 = vmatprep.mubr.f32.mxu0 0.0
  %2439 = vmatmul.mubr.f32.gmra.mxu0 %v2209
  %v2440 = vpop.f32.mrf.mxu0
  %v2441 = vadd.f32 0.0, %v2440
  %v2442 = vpop.f32.mrf.mxu0
  %2443 = vmatprep.mubr.f32.mxu0 0.0
  %2444 = vmatmul.mubr.f32.gmra.mxu0 %v2211
  %v2445 = vpop.f32.mrf.mxu0
  %v2446 = vadd.f32 0.0, %v2445
  %v2447 = vpop.f32.mrf.mxu0
  %2448 = vmatprep.mubr.f32.mxu0 0.0
  %2449 = vmatmul.mubr.f32.gmra.mxu0 %v2213
  %v2450 = vpop.f32.mrf.mxu0
  %v2451 = vadd.f32 0.0, %v2450
  %v2452 = vpop.f32.mrf.mxu0
  %2453 = vmatprep.mubr.f32.mxu0 0.0
  %2454 = vmatmul.mubr.f32.gmra.mxu0 %v2215
  %v2455 = vpop.f32.mrf.mxu0
  %v2456 = vadd.f32 0.0, %v2455
  %v2457 = vpop.f32.mrf.mxu0
  %2458 = vmatprep.mubr.f32.mxu0 0.0
  %2459 = vmatmul.mubr.f32.gmra.mxu0 %v2217
  %v2460 = vpop.f32.mrf.mxu0
  %v2461 = vadd.f32 0.0, %v2460
  %v2462 = vpop.f32.mrf.mxu0
  %2463 = vmatprep.mubr.f32.mxu0 0.0
  %2464 = vmatmul.mubr.f32.gmra.mxu0 %v2219
  %v2465 = vpop.f32.mrf.mxu0
  %v2466 = vadd.f32 0.0, %v2465
  %v2467 = vpop.f32.mrf.mxu0
  %2468 = vmatprep.mubr.f32.mxu0 0.0
  %2469 = vmatmul.mubr.f32.gmra.mxu0 %v2221
  %v2470 = vpop.f32.mrf.mxu0
  %v2471 = vadd.f32 0.0, %v2470
  %v2472 = vpop.f32.mrf.mxu0
  %2473 = vmatprep.mubr.f32.mxu0 0.0
  %2474 = vmatmul.mubr.f32.gmra.mxu0 %v2223
  %v2475 = vpop.f32.mrf.mxu0
  %v2476 = vadd.f32 0.0, %v2475
  %v2477 = vpop.f32.mrf.mxu0
  %2478 = vmatprep.mubr.f32.mxu0 0.0
  %2479 = vmatmul.mubr.f32.gmra.mxu0 %v2225
  %v2480 = vpop.f32.mrf.mxu0
  %v2481 = vadd.f32 0.0, %v2480
  %v2482 = vpop.f32.mrf.mxu0
  %2483 = vmatprep.mubr.f32.mxu0 0.0
  %2484 = vmatmul.mubr.f32.gmra.mxu0 %v2227
  %v2485 = vpop.f32.mrf.mxu0
  %v2486 = vadd.f32 0.0, %v2485
  %v2487 = vpop.f32.mrf.mxu0
  %2488 = vmatprep.mubr.f32.mxu0 0.0
  %2489 = vmatmul.mubr.f32.gmra.mxu0 %v2229
  %v2490 = vpop.f32.mrf.mxu0
  %v2491 = vadd.f32 0.0, %v2490
  %v2492 = vpop.f32.mrf.mxu0
  %2493 = vmatprep.mubr.f32.mxu0 0.0
  %2494 = vmatmul.mubr.f32.gmra.mxu0 %v2231
  %v2495 = vpop.f32.mrf.mxu0
  %v2496 = vadd.f32 0.0, %v2495
  %v2497 = vpop.f32.mrf.mxu0
  %2498 = vmatprep.mubr.f32.mxu0 0.0
  %2499 = vmatmul.mubr.f32.gmra.mxu0 %v2233
  %v2500 = vpop.f32.mrf.mxu0
  %v2501 = vadd.f32 0.0, %v2500
  %v2502 = vpop.f32.mrf.mxu0
  %2503 = vmatprep.mubr.f32.mxu0 0.0
  %2504 = vmatmul.mubr.f32.gmra.mxu0 %v2235
  %v2505 = vpop.f32.mrf.mxu0
  %v2506 = vadd.f32 0.0, %v2505
  %v2507 = vpop.f32.mrf.mxu0
  %2508 = vdwg.mxu0
  %v2509 = vrcp.pop %v2237
  %v2510 = vrcp.pop %v2239
  %v2511 = vrcp.pop %v2241
  %v2512 = vrcp.pop %v2243
  %v2513 = vrcp.pop %v2245
  %v2514 = vrcp.pop %v2247
  %v2515 = vrcp.pop %v2249
  %v2516 = vrcp.pop %v2251
  %v2517 = vrcp.pop %v2253
  %v2518 = vrcp.pop %v2255
  %v2519 = vrcp.pop %v2257
  %v2520 = vrcp.pop %v2259
  %v2521 = vrcp.pop %v2261
  %v2522 = vrcp.pop %v2263
  %v2523 = vrcp.pop %v2265
  %v2524 = vrcp.pop %v2267
  %v2525 = vmul.f32 %v2431, %v2509
  %v2526 = vmul.f32 %v2436, %v2510
  %v2527 = vmul.f32 %v2441, %v2511
  %v2528 = vmul.f32 %v2446, %v2512
  %v2529 = vmul.f32 %v2451, %v2513
  %v2530 = vmul.f32 %v2456, %v2514
  %v2531 = vmul.f32 %v2461, %v2515
  %v2532 = vmul.f32 %v2466, %v2516
  %v2533 = vmul.f32 %v2471, %v2517
  %v2534 = vmul.f32 %v2476, %v2518
  %v2535 = vmul.f32 %v2481, %v2519
  %v2536 = vmul.f32 %v2486, %v2520
  %v2537 = vmul.f32 %v2491, %v2521
  %v2538 = vmul.f32 %v2496, %v2522
  %v2539 = vmul.f32 %v2501, %v2523
  %v2540 = vmul.f32 %v2506, %v2524
  %s2541 = scalar_lea.vmem %s5, 1
  %v2542 = vld [vmem:[%s2541] sm:$0x1]
  %v2544 = vlaneseq
  %v2545 = vshrl.u32 %v2544, 7
  %v2546 = vsub.s32 0, %v2545
  %v2547 = vrot.slane %v2542, %v2546
  %v2549 = vadd.f32 %v2525, %v2547
  %v2550 = vadd.f32 %v2526, %v2547
  %v2551 = vadd.f32 %v2527, %v2547
  %v2552 = vadd.f32 %v2528, %v2547
  %v2553 = vadd.f32 %v2529, %v2547
  %v2554 = vadd.f32 %v2530, %v2547
  %v2555 = vadd.f32 %v2531, %v2547
  %v2556 = vadd.f32 %v2532, %v2547
  %v2557 = vadd.f32 %v2533, %v2547
  %v2558 = vadd.f32 %v2534, %v2547
  %v2559 = vadd.f32 %v2535, %v2547
  %v2560 = vadd.f32 %v2536, %v2547
  %v2561 = vadd.f32 %v2537, %v2547
  %v2562 = vadd.f32 %v2538, %v2547
  %v2563 = vadd.f32 %v2539, %v2547
  %v2564 = vadd.f32 %v2540, %v2547
  %2566 = vset.pattern.permute.xlu0 0
  %2567 = vperm.xlu0 %2566, %v2549
  %v2568 = vpop.permute.xlu0 %2567
  %2571 = vset.pattern.permute.xlu0 0
  %2572 = vperm.xlu0 %2571, %v2550
  %v2573 = vpop.permute.xlu0 %2572
  %2576 = vset.pattern.permute.xlu0 0
  %2577 = vperm.xlu0 %2576, %v2551
  %v2578 = vpop.permute.xlu0 %2577
  %2581 = vset.pattern.permute.xlu0 0
  %2582 = vperm.xlu0 %2581, %v2552
  %v2583 = vpop.permute.xlu0 %2582
  %2586 = vset.pattern.permute.xlu0 0
  %2587 = vperm.xlu0 %2586, %v2553
  %v2588 = vpop.permute.xlu0 %2587
  %2591 = vset.pattern.permute.xlu0 0
  %2592 = vperm.xlu0 %2591, %v2554
  %v2593 = vpop.permute.xlu0 %2592
  %2596 = vset.pattern.permute.xlu0 0
  %2597 = vperm.xlu0 %2596, %v2555
  %v2598 = vpop.permute.xlu0 %2597
  %2601 = vset.pattern.permute.xlu0 0
  %2602 = vperm.xlu0 %2601, %v2556
  %v2603 = vpop.permute.xlu0 %2602
  %2606 = vset.pattern.permute.xlu0 0
  %2607 = vperm.xlu0 %2606, %v2557
  %v2608 = vpop.permute.xlu0 %2607
  %2611 = vset.pattern.permute.xlu0 0
  %2612 = vperm.xlu0 %2611, %v2558
  %v2613 = vpop.permute.xlu0 %2612
  %2616 = vset.pattern.permute.xlu0 0
  %2617 = vperm.xlu0 %2616, %v2559
  %v2618 = vpop.permute.xlu0 %2617
  %2621 = vset.pattern.permute.xlu0 0
  %2622 = vperm.xlu0 %2621, %v2560
  %v2623 = vpop.permute.xlu0 %2622
  %2626 = vset.pattern.permute.xlu0 0
  %2627 = vperm.xlu0 %2626, %v2561
  %v2628 = vpop.permute.xlu0 %2627
  %2631 = vset.pattern.permute.xlu0 0
  %2632 = vperm.xlu0 %2631, %v2562
  %v2633 = vpop.permute.xlu0 %2632
  %2636 = vset.pattern.permute.xlu0 0
  %2637 = vperm.xlu0 %2636, %v2563
  %v2638 = vpop.permute.xlu0 %2637
  %2641 = vset.pattern.permute.xlu0 0
  %2642 = vperm.xlu0 %2641, %v2564
  %v2643 = vpop.permute.xlu0 %2642
  %v2645 = vadd.f32 %v1809, %v2568
  %v2646 = vadd.f32 %v1810, %v2573
  %v2647 = vadd.f32 %v1811, %v2578
  %v2648 = vadd.f32 %v1812, %v2583
  %v2649 = vadd.f32 %v1813, %v2588
  %v2650 = vadd.f32 %v1814, %v2593
  %v2651 = vadd.f32 %v1815, %v2598
  %v2652 = vadd.f32 %v1816, %v2603
  %v2653 = vadd.f32 %v1817, %v2608
  %v2654 = vadd.f32 %v1818, %v2613
  %v2655 = vadd.f32 %v1819, %v2618
  %v2656 = vadd.f32 %v1820, %v2623
  %v2657 = vadd.f32 %v1821, %v2628
  %v2658 = vadd.f32 %v1822, %v2633
  %v2659 = vadd.f32 %v1823, %v2638
  %v2660 = vadd.f32 %v1824, %v2643
  %s2661 = scalar_lea.vmem %s6, 1
  %v2662 = vld [vmem:[%s2661] sm:$0x1]
  %s2663 = scalar_lea.vmem %s7, 1
  %v2664 = vld [vmem:[%s2663] sm:$0x1]
  %v2665 = vsel %vm98, %v2645, 0.0
  %2666 = vadd.xlane.f32.xlu0 %v2665
  %v2667 = vpop.xlane.xlu0 %2666
  %v2668 = vsel %vm98, %v2646, 0.0
  %2669 = vadd.xlane.f32.xlu0 %v2668
  %v2670 = vpop.xlane.xlu0 %2669
  %v2671 = vsel %vm98, %v2647, 0.0
  %2672 = vadd.xlane.f32.xlu0 %v2671
  %v2673 = vpop.xlane.xlu0 %2672
  %v2674 = vsel %vm98, %v2648, 0.0
  %2675 = vadd.xlane.f32.xlu0 %v2674
  %v2676 = vpop.xlane.xlu0 %2675
  %v2677 = vsel %vm98, %v2649, 0.0
  %2678 = vadd.xlane.f32.xlu0 %v2677
  %v2679 = vpop.xlane.xlu0 %2678
  %v2680 = vsel %vm98, %v2650, 0.0
  %2681 = vadd.xlane.f32.xlu0 %v2680
  %v2682 = vpop.xlane.xlu0 %2681
  %v2683 = vsel %vm98, %v2651, 0.0
  %2684 = vadd.xlane.f32.xlu0 %v2683
  %v2685 = vpop.xlane.xlu0 %2684
  %v2686 = vsel %vm98, %v2652, 0.0
  %2687 = vadd.xlane.f32.xlu0 %v2686
  %v2688 = vpop.xlane.xlu0 %2687
  %v2689 = vsel %vm98, %v2653, 0.0
  %2690 = vadd.xlane.f32.xlu0 %v2689
  %v2691 = vpop.xlane.xlu0 %2690
  %v2692 = vsel %vm98, %v2654, 0.0
  %2693 = vadd.xlane.f32.xlu0 %v2692
  %v2694 = vpop.xlane.xlu0 %2693
  %v2695 = vsel %vm98, %v2655, 0.0
  %2696 = vadd.xlane.f32.xlu0 %v2695
  %v2697 = vpop.xlane.xlu0 %2696
  %v2698 = vsel %vm98, %v2656, 0.0
  %2699 = vadd.xlane.f32.xlu0 %v2698
  %v2700 = vpop.xlane.xlu0 %2699
  %v2701 = vsel %vm98, %v2657, 0.0
  %2702 = vadd.xlane.f32.xlu0 %v2701
  %v2703 = vpop.xlane.xlu0 %2702
  %v2704 = vsel %vm98, %v2658, 0.0
  %2705 = vadd.xlane.f32.xlu0 %v2704
  %v2706 = vpop.xlane.xlu0 %2705
  %v2707 = vsel %vm98, %v2659, 0.0
  %2708 = vadd.xlane.f32.xlu0 %v2707
  %v2709 = vpop.xlane.xlu0 %2708
  %v2710 = vsel %vm98, %v2660, 0.0
  %2711 = vadd.xlane.f32.xlu0 %v2710
  %v2712 = vpop.xlane.xlu0 %2711
  %v2713 = vmul.f32 %v2667, %v949
  %v2714 = vmul.f32 %v2670, %v949
  %v2715 = vmul.f32 %v2673, %v949
  %v2716 = vmul.f32 %v2676, %v949
  %v2717 = vmul.f32 %v2679, %v949
  %v2718 = vmul.f32 %v2682, %v949
  %v2719 = vmul.f32 %v2685, %v949
  %v2720 = vmul.f32 %v2688, %v949
  %v2721 = vmul.f32 %v2691, %v949
  %v2722 = vmul.f32 %v2694, %v949
  %v2723 = vmul.f32 %v2697, %v949
  %v2724 = vmul.f32 %v2700, %v949
  %v2725 = vmul.f32 %v2703, %v949
  %v2726 = vmul.f32 %v2706, %v949
  %v2727 = vmul.f32 %v2709, %v949
  %v2728 = vmul.f32 %v2712, %v949
  %v2729 = vmul.f32 %v2645, %v2645
  %v2730 = vmul.f32 %v2646, %v2646
  %v2731 = vmul.f32 %v2647, %v2647
  %v2732 = vmul.f32 %v2648, %v2648
  %v2733 = vmul.f32 %v2649, %v2649
  %v2734 = vmul.f32 %v2650, %v2650
  %v2735 = vmul.f32 %v2651, %v2651
  %v2736 = vmul.f32 %v2652, %v2652
  %v2737 = vmul.f32 %v2653, %v2653
  %v2738 = vmul.f32 %v2654, %v2654
  %v2739 = vmul.f32 %v2655, %v2655
  %v2740 = vmul.f32 %v2656, %v2656
  %v2741 = vmul.f32 %v2657, %v2657
  %v2742 = vmul.f32 %v2658, %v2658
  %v2743 = vmul.f32 %v2659, %v2659
  %v2744 = vmul.f32 %v2660, %v2660
  %v2745 = vsel %vm98, %v2729, 0.0
  %2746 = vadd.xlane.f32.xlu0 %v2745
  %v2747 = vpop.xlane.xlu0 %2746
  %v2748 = vsel %vm98, %v2730, 0.0
  %2749 = vadd.xlane.f32.xlu0 %v2748
  %v2750 = vpop.xlane.xlu0 %2749
  %v2751 = vsel %vm98, %v2731, 0.0
  %2752 = vadd.xlane.f32.xlu0 %v2751
  %v2753 = vpop.xlane.xlu0 %2752
  %v2754 = vsel %vm98, %v2732, 0.0
  %2755 = vadd.xlane.f32.xlu0 %v2754
  %v2756 = vpop.xlane.xlu0 %2755
  %v2757 = vsel %vm98, %v2733, 0.0
  %2758 = vadd.xlane.f32.xlu0 %v2757
  %v2759 = vpop.xlane.xlu0 %2758
  %v2760 = vsel %vm98, %v2734, 0.0
  %2761 = vadd.xlane.f32.xlu0 %v2760
  %v2762 = vpop.xlane.xlu0 %2761
  %v2763 = vsel %vm98, %v2735, 0.0
  %2764 = vadd.xlane.f32.xlu0 %v2763
  %v2765 = vpop.xlane.xlu0 %2764
  %v2766 = vsel %vm98, %v2736, 0.0
  %2767 = vadd.xlane.f32.xlu0 %v2766
  %v2768 = vpop.xlane.xlu0 %2767
  %v2769 = vsel %vm98, %v2737, 0.0
  %2770 = vadd.xlane.f32.xlu0 %v2769
  %v2771 = vpop.xlane.xlu0 %2770
  %v2772 = vsel %vm98, %v2738, 0.0
  %2773 = vadd.xlane.f32.xlu0 %v2772
  %v2774 = vpop.xlane.xlu0 %2773
  %v2775 = vsel %vm98, %v2739, 0.0
  %2776 = vadd.xlane.f32.xlu0 %v2775
  %v2777 = vpop.xlane.xlu0 %2776
  %v2778 = vsel %vm98, %v2740, 0.0
  %2779 = vadd.xlane.f32.xlu0 %v2778
  %v2780 = vpop.xlane.xlu0 %2779
  %v2781 = vsel %vm98, %v2741, 0.0
  %2782 = vadd.xlane.f32.xlu0 %v2781
  %v2783 = vpop.xlane.xlu0 %2782
  %v2784 = vsel %vm98, %v2742, 0.0
  %2785 = vadd.xlane.f32.xlu0 %v2784
  %v2786 = vpop.xlane.xlu0 %2785
  %v2787 = vsel %vm98, %v2743, 0.0
  %2788 = vadd.xlane.f32.xlu0 %v2787
  %v2789 = vpop.xlane.xlu0 %2788
  %v2790 = vsel %vm98, %v2744, 0.0
  %2791 = vadd.xlane.f32.xlu0 %v2790
  %v2792 = vpop.xlane.xlu0 %2791
  %v2793 = vmul.f32 %v2747, %v949
  %v2794 = vmul.f32 %v2750, %v949
  %v2795 = vmul.f32 %v2753, %v949
  %v2796 = vmul.f32 %v2756, %v949
  %v2797 = vmul.f32 %v2759, %v949
  %v2798 = vmul.f32 %v2762, %v949
  %v2799 = vmul.f32 %v2765, %v949
  %v2800 = vmul.f32 %v2768, %v949
  %v2801 = vmul.f32 %v2771, %v949
  %v2802 = vmul.f32 %v2774, %v949
  %v2803 = vmul.f32 %v2777, %v949
  %v2804 = vmul.f32 %v2780, %v949
  %v2805 = vmul.f32 %v2783, %v949
  %v2806 = vmul.f32 %v2786, %v949
  %v2807 = vmul.f32 %v2789, %v949
  %v2808 = vmul.f32 %v2792, %v949
  %v2809 = vmul.f32 %v2713, %v2713
  %v2810 = vmul.f32 %v2714, %v2714
  %v2811 = vmul.f32 %v2715, %v2715
  %v2812 = vmul.f32 %v2716, %v2716
  %v2813 = vmul.f32 %v2717, %v2717
  %v2814 = vmul.f32 %v2718, %v2718
  %v2815 = vmul.f32 %v2719, %v2719
  %v2816 = vmul.f32 %v2720, %v2720
  %v2817 = vmul.f32 %v2721, %v2721
  %v2818 = vmul.f32 %v2722, %v2722
  %v2819 = vmul.f32 %v2723, %v2723
  %v2820 = vmul.f32 %v2724, %v2724
  %v2821 = vmul.f32 %v2725, %v2725
  %v2822 = vmul.f32 %v2726, %v2726
  %v2823 = vmul.f32 %v2727, %v2727
  %v2824 = vmul.f32 %v2728, %v2728
  %v2825 = vsub.f32 %v2793, %v2809
  %v2826 = vsub.f32 %v2794, %v2810
  %v2827 = vsub.f32 %v2795, %v2811
  %v2828 = vsub.f32 %v2796, %v2812
  %v2829 = vsub.f32 %v2797, %v2813
  %v2830 = vsub.f32 %v2798, %v2814
  %v2831 = vsub.f32 %v2799, %v2815
  %v2832 = vsub.f32 %v2800, %v2816
  %v2833 = vsub.f32 %v2801, %v2817
  %v2834 = vsub.f32 %v2802, %v2818
  %v2835 = vsub.f32 %v2803, %v2819
  %v2836 = vsub.f32 %v2804, %v2820
  %v2837 = vsub.f32 %v2805, %v2821
  %v2838 = vsub.f32 %v2806, %v2822
  %v2839 = vsub.f32 %v2807, %v2823
  %v2840 = vsub.f32 %v2808, %v2824
  %v2841 = vsub.f32 %v2645, %v2713
  %v2842 = vsub.f32 %v2646, %v2714
  %v2843 = vsub.f32 %v2647, %v2715
  %v2844 = vsub.f32 %v2648, %v2716
  %v2845 = vsub.f32 %v2649, %v2717
  %v2846 = vsub.f32 %v2650, %v2718
  %v2847 = vsub.f32 %v2651, %v2719
  %v2848 = vsub.f32 %v2652, %v2720
  %v2849 = vsub.f32 %v2653, %v2721
  %v2850 = vsub.f32 %v2654, %v2722
  %v2851 = vsub.f32 %v2655, %v2723
  %v2852 = vsub.f32 %v2656, %v2724
  %v2853 = vsub.f32 %v2657, %v2725
  %v2854 = vsub.f32 %v2658, %v2726
  %v2855 = vsub.f32 %v2659, %v2727
  %v2856 = vsub.f32 %v2660, %v2728
  %v2857 = vadd.f32 %v2825, 1e-05
  %v2858 = vadd.f32 %v2826, 1e-05
  %v2859 = vadd.f32 %v2827, 1e-05
  %v2860 = vadd.f32 %v2828, 1e-05
  %v2861 = vadd.f32 %v2829, 1e-05
  %v2862 = vadd.f32 %v2830, 1e-05
  %v2863 = vadd.f32 %v2831, 1e-05
  %v2864 = vadd.f32 %v2832, 1e-05
  %v2865 = vadd.f32 %v2833, 1e-05
  %v2866 = vadd.f32 %v2834, 1e-05
  %v2867 = vadd.f32 %v2835, 1e-05
  %v2868 = vadd.f32 %v2836, 1e-05
  %v2869 = vadd.f32 %v2837, 1e-05
  %v2870 = vadd.f32 %v2838, 1e-05
  %v2871 = vadd.f32 %v2839, 1e-05
  %v2872 = vadd.f32 %v2840, 1e-05
  %v2873 = vrsqrt.pop %v2857
  %v2874 = vrsqrt.pop %v2858
  %v2875 = vrsqrt.pop %v2859
  %v2876 = vrsqrt.pop %v2860
  %v2877 = vrsqrt.pop %v2861
  %v2878 = vrsqrt.pop %v2862
  %v2879 = vrsqrt.pop %v2863
  %v2880 = vrsqrt.pop %v2864
  %v2881 = vrsqrt.pop %v2865
  %v2882 = vrsqrt.pop %v2866
  %v2883 = vrsqrt.pop %v2867
  %v2884 = vrsqrt.pop %v2868
  %v2885 = vrsqrt.pop %v2869
  %v2886 = vrsqrt.pop %v2870
  %v2887 = vrsqrt.pop %v2871
  %v2888 = vrsqrt.pop %v2872
  %v2889 = vmul.f32 %v2841, %v2873
  %v2890 = vmul.f32 %v2842, %v2874
  %v2891 = vmul.f32 %v2843, %v2875
  %v2892 = vmul.f32 %v2844, %v2876
  %v2893 = vmul.f32 %v2845, %v2877
  %v2894 = vmul.f32 %v2846, %v2878
  %v2895 = vmul.f32 %v2847, %v2879
  %v2896 = vmul.f32 %v2848, %v2880
  %v2897 = vmul.f32 %v2849, %v2881
  %v2898 = vmul.f32 %v2850, %v2882
  %v2899 = vmul.f32 %v2851, %v2883
  %v2900 = vmul.f32 %v2852, %v2884
  %v2901 = vmul.f32 %v2853, %v2885
  %v2902 = vmul.f32 %v2854, %v2886
  %v2903 = vmul.f32 %v2855, %v2887
  %v2904 = vmul.f32 %v2856, %v2888
  %v2906 = vlaneseq
  %v2907 = vshrl.u32 %v2906, 7
  %v2908 = vsub.s32 0, %v2907
  %v2909 = vrot.slane %v2662, %v2908
  %v2911 = vmul.f32 %v2889, %v2909
  %v2912 = vmul.f32 %v2890, %v2909
  %v2913 = vmul.f32 %v2891, %v2909
  %v2914 = vmul.f32 %v2892, %v2909
  %v2915 = vmul.f32 %v2893, %v2909
  %v2916 = vmul.f32 %v2894, %v2909
  %v2917 = vmul.f32 %v2895, %v2909
  %v2918 = vmul.f32 %v2896, %v2909
  %v2919 = vmul.f32 %v2897, %v2909
  %v2920 = vmul.f32 %v2898, %v2909
  %v2921 = vmul.f32 %v2899, %v2909
  %v2922 = vmul.f32 %v2900, %v2909
  %v2923 = vmul.f32 %v2901, %v2909
  %v2924 = vmul.f32 %v2902, %v2909
  %v2925 = vmul.f32 %v2903, %v2909
  %v2926 = vmul.f32 %v2904, %v2909
  %v2928 = vlaneseq
  %v2929 = vshrl.u32 %v2928, 7
  %v2930 = vsub.s32 0, %v2929
  %v2931 = vrot.slane %v2664, %v2930
  %v2933 = vadd.f32 %v2911, %v2931
  %v2934 = vadd.f32 %v2912, %v2931
  %v2935 = vadd.f32 %v2913, %v2931
  %v2936 = vadd.f32 %v2914, %v2931
  %v2937 = vadd.f32 %v2915, %v2931
  %v2938 = vadd.f32 %v2916, %v2931
  %v2939 = vadd.f32 %v2917, %v2931
  %v2940 = vadd.f32 %v2918, %v2931
  %v2941 = vadd.f32 %v2919, %v2931
  %v2942 = vadd.f32 %v2920, %v2931
  %v2943 = vadd.f32 %v2921, %v2931
  %v2944 = vadd.f32 %v2922, %v2931
  %v2945 = vadd.f32 %v2923, %v2931
  %v2946 = vadd.f32 %v2924, %v2931
  %v2947 = vadd.f32 %v2925, %v2931
  %v2948 = vadd.f32 %v2926, %v2931
  %v2949 = vpack.c.bf16 %v2934, %v2933
  %v2950 = vpack.c.bf16 %v2936, %v2935
  %v2951 = vpack.c.bf16 %v2938, %v2937
  %v2952 = vpack.c.bf16 %v2940, %v2939
  %v2953 = vpack.c.bf16 %v2942, %v2941
  %v2954 = vpack.c.bf16 %v2944, %v2943
  %v2955 = vpack.c.bf16 %v2946, %v2945
  %v2956 = vpack.c.bf16 %v2948, %v2947
  %s2957 = scalar_lea.vmem %s8, 16
  %v2958 = vld [vmem:[%s2957] sm:$0xf]
  %v2959 = vld [vmem:[%s2957 + $0x4] sm:$0xf]
  %v2960 = vld [vmem:[%s2957 + $0x8] sm:$0xf]
  %v2961 = vld [vmem:[%s2957 + $0xc] sm:$0xf]
  %s2962 = scalar_lea.vmem %s9, 1
  %v2963 = vld [vmem:[%s2962] sm:$0x1]
  %v2965 = vlaneseq
  %v2966 = vshrl.u32 %v2965, 7
  %v2967 = vsub.s32 0, %v2966
  %v2968 = vrot.slane %v2963, %v2967
  %v2974 = vunpack.c.l.b16 %v2958
  %v2975 = vunpack.c.l.b16 %v2959
  %v2976 = vunpack.c.l.b16 %v2960
  %v2977 = vunpack.c.l.b16 %v2961
  %v2978 = vpack.c.b16 %v2975, %v2974
  %v2979 = vpack.c.b16 %v2977, %v2976
  %v2983 = vsel %vm98, %v2949, 0
  %v2986 = vsel %vm98, %v2950, 0
  %v2989 = vsel %vm98, %v2951, 0
  %v2992 = vsel %vm98, %v2952, 0
  %v2995 = vsel %vm98, %v2953, 0
  %v2998 = vsel %vm98, %v2954, 0
  %v3001 = vsel %vm98, %v2955, 0
  %v3004 = vsel %vm98, %v2956, 0
  %3006 = vmatprep.subr.bf16.mxu0 0
  %3007 = vmatpush1.bf16.msra.mxu0 0
  %3008 = vmatprep.subr.bf16.mxu0 0
  %3009 = vmatpush1.bf16.msra.mxu0 0
  %3010 = vmatprep.subr.bf16.mxu0 0
  %3011 = vmatpush1.bf16.msra.mxu0 0
  %3012 = vmatprep.subr.bf16.mxu0 0
  %3013 = vmatpush1.bf16.msra.mxu0 0
  %3014 = vmatprep.subr.bf16.mxu0 0
  %3015 = vmatpush1.bf16.msra.mxu0 0
  %3016 = vmatprep.subr.bf16.mxu0 0
  %3017 = vmatpush1.bf16.msra.mxu0 0
  %3018 = vmatprep.subr.bf16.mxu0 0
  %3019 = vmatpush1.bf16.msra.mxu0 %v2979
  %3020 = vmatprep.subr.bf16.mxu0 0
  %3021 = vmatpush1.bf16.msra.mxu0 %v2978
  %3022 = vmatprep.subr.bf16.mxu0 0
  %3023 = vmatpush2.bf16.msra.mxu0 0
  %3024 = vmatprep.subr.bf16.mxu0 0
  %3025 = vmatpush2.bf16.msra.mxu0 0
  %3026 = vmatprep.subr.bf16.mxu0 0
  %3027 = vmatpush2.bf16.msra.mxu0 0
  %3028 = vmatprep.subr.bf16.mxu0 0
  %3029 = vmatpush2.bf16.msra.mxu0 0
  %3030 = vmatprep.subr.bf16.mxu0 0
  %3031 = vmatpush2.bf16.msra.mxu0 0
  %3032 = vmatprep.subr.bf16.mxu0 0
  %3033 = vmatpush2.bf16.msra.mxu0 0
  %3034 = vmatprep.subr.bf16.mxu0 0
  %3035 = vmatpush2.bf16.msra.mxu0 0
  %3036 = vmatprep.subr.bf16.mxu0 0
  %3037 = vmatpush2.bf16.msra.mxu0 0
  %3038 = vmatprep.mubr.bf16.mxu0 0
  %3039 = vmatmul.mubr.bf16.gmra.mxu0 %v2983
  %v3040 = vpop.f32.mrf.mxu0
  %v3041 = vadd.f32 %v2968, %v3040
  %v3042 = vpop.f32.mrf.mxu0
  %v3043 = vpop.f32.mrf.mxu0
  %v3044 = vadd.f32 %v2968, %v3043
  %v3045 = vpop.f32.mrf.mxu0
  %3046 = vmatprep.mubr.bf16.mxu0 0
  %3047 = vmatmul.mubr.bf16.gmra.mxu0 %v2986
  %v3048 = vpop.f32.mrf.mxu0
  %v3049 = vadd.f32 %v2968, %v3048
  %v3050 = vpop.f32.mrf.mxu0
  %v3051 = vpop.f32.mrf.mxu0
  %v3052 = vadd.f32 %v2968, %v3051
  %v3053 = vpop.f32.mrf.mxu0
  %3054 = vmatprep.mubr.bf16.mxu0 0
  %3055 = vmatmul.mubr.bf16.gmra.mxu0 %v2989
  %v3056 = vpop.f32.mrf.mxu0
  %v3057 = vadd.f32 %v2968, %v3056
  %v3058 = vpop.f32.mrf.mxu0
  %v3059 = vpop.f32.mrf.mxu0
  %v3060 = vadd.f32 %v2968, %v3059
  %v3061 = vpop.f32.mrf.mxu0
  %3062 = vmatprep.mubr.bf16.mxu0 0
  %3063 = vmatmul.mubr.bf16.gmra.mxu0 %v2992
  %v3064 = vpop.f32.mrf.mxu0
  %v3065 = vadd.f32 %v2968, %v3064
  %v3066 = vpop.f32.mrf.mxu0
  %v3067 = vpop.f32.mrf.mxu0
  %v3068 = vadd.f32 %v2968, %v3067
  %v3069 = vpop.f32.mrf.mxu0
  %3070 = vmatprep.mubr.bf16.mxu0 0
  %3071 = vmatmul.mubr.bf16.gmra.mxu0 %v2995
  %v3072 = vpop.f32.mrf.mxu0
  %v3073 = vadd.f32 %v2968, %v3072
  %v3074 = vpop.f32.mrf.mxu0
  %v3075 = vpop.f32.mrf.mxu0
  %v3076 = vadd.f32 %v2968, %v3075
  %v3077 = vpop.f32.mrf.mxu0
  %3078 = vmatprep.mubr.bf16.mxu0 0
  %3079 = vmatmul.mubr.bf16.gmra.mxu0 %v2998
  %v3080 = vpop.f32.mrf.mxu0
  %v3081 = vadd.f32 %v2968, %v3080
  %v3082 = vpop.f32.mrf.mxu0
  %v3083 = vpop.f32.mrf.mxu0
  %v3084 = vadd.f32 %v2968, %v3083
  %v3085 = vpop.f32.mrf.mxu0
  %3086 = vmatprep.mubr.bf16.mxu0 0
  %3087 = vmatmul.mubr.bf16.gmra.mxu0 %v3001
  %v3088 = vpop.f32.mrf.mxu0
  %v3089 = vadd.f32 %v2968, %v3088
  %v3090 = vpop.f32.mrf.mxu0
  %v3091 = vpop.f32.mrf.mxu0
  %v3092 = vadd.f32 %v2968, %v3091
  %v3093 = vpop.f32.mrf.mxu0
  %3094 = vmatprep.mubr.bf16.mxu0 0
  %3095 = vmatmul.mubr.bf16.gmra.mxu0 %v3004
  %v3096 = vpop.f32.mrf.mxu0
  %v3097 = vadd.f32 %v2968, %v3096
  %v3098 = vpop.f32.mrf.mxu0
  %v3099 = vpop.f32.mrf.mxu0
  %v3100 = vadd.f32 %v2968, %v3099
  %v3101 = vpop.f32.mrf.mxu0
  %3102 = vdwg.mxu0
  %v3103 = vmax.f32 %v3041, 0.0
  %v3104 = vmax.f32 %v3044, 0.0
  %v3105 = vmax.f32 %v3049, 0.0
  %v3106 = vmax.f32 %v3052, 0.0
  %v3107 = vmax.f32 %v3057, 0.0
  %v3108 = vmax.f32 %v3060, 0.0
  %v3109 = vmax.f32 %v3065, 0.0
  %v3110 = vmax.f32 %v3068, 0.0
  %v3111 = vmax.f32 %v3073, 0.0
  %v3112 = vmax.f32 %v3076, 0.0
  %v3113 = vmax.f32 %v3081, 0.0
  %v3114 = vmax.f32 %v3084, 0.0
  %v3115 = vmax.f32 %v3089, 0.0
  %v3116 = vmax.f32 %v3092, 0.0
  %v3117 = vmax.f32 %v3097, 0.0
  %v3118 = vmax.f32 %v3100, 0.0
  %v3119 = vpack.c.bf16 %v3104, %v3103
  %v3120 = vpack.c.bf16 %v3106, %v3105
  %v3121 = vpack.c.bf16 %v3108, %v3107
  %v3122 = vpack.c.bf16 %v3110, %v3109
  %v3123 = vpack.c.bf16 %v3112, %v3111
  %v3124 = vpack.c.bf16 %v3114, %v3113
  %v3125 = vpack.c.bf16 %v3116, %v3115
  %v3126 = vpack.c.bf16 %v3118, %v3117
  %s3127 = scalar_lea.vmem %s10, 32
  %v3128 = vld [vmem:[%s3127] sm:$0xf]
  %v3129 = vld [vmem:[%s3127 + $0x4] sm:$0xf]
  %v3130 = vld [vmem:[%s3127 + $0x8] sm:$0xf]
  %v3131 = vld [vmem:[%s3127 + $0xc] sm:$0xf]
  %v3132 = vld [vmem:[%s3127 + $0x10] sm:$0xf]
  %v3133 = vld [vmem:[%s3127 + $0x14] sm:$0xf]
  %v3134 = vld [vmem:[%s3127 + $0x18] sm:$0xf]
  %v3135 = vld [vmem:[%s3127 + $0x1c] sm:$0xf]
  %s3136 = scalar_lea.vmem %s11, 1
  %v3137 = vld [vmem:[%s3136] sm:$0x1]
  %v3139 = vlaneseq
  %v3140 = vshrl.u32 %v3139, 7
  %v3141 = vsub.s32 0, %v3140
  %v3142 = vrot.slane %v3137, %v3141
  %v3152 = vunpack.c.l.b16 %v3128
  %v3153 = vunpack.c.l.b16 %v3129
  %v3154 = vunpack.c.l.b16 %v3130
  %v3155 = vunpack.c.l.b16 %v3131
  %v3156 = vunpack.c.l.b16 %v3132
  %v3157 = vunpack.c.l.b16 %v3133
  %v3158 = vunpack.c.l.b16 %v3134
  %v3159 = vunpack.c.l.b16 %v3135
  %v3160 = vpack.c.b16 %v3153, %v3152
  %v3161 = vpack.c.b16 %v3155, %v3154
  %v3162 = vpack.c.b16 %v3157, %v3156
  %v3163 = vpack.c.b16 %v3159, %v3158
  %v3169 = vsel %vm1401, %v3119, 0
  %v3172 = vsel %vm1401, %v3120, 0
  %v3175 = vsel %vm1401, %v3121, 0
  %v3178 = vsel %vm1401, %v3122, 0
  %v3181 = vsel %vm1401, %v3123, 0
  %v3184 = vsel %vm1401, %v3124, 0
  %v3187 = vsel %vm1401, %v3125, 0
  %v3190 = vsel %vm1401, %v3126, 0
  %3192 = vmatprep.subr.bf16.mxu0 0
  %3193 = vmatpush1.bf16.msra.mxu0 0
  %3194 = vmatprep.subr.bf16.mxu0 0
  %3195 = vmatpush1.bf16.msra.mxu0 0
  %3196 = vmatprep.subr.bf16.mxu0 0
  %3197 = vmatpush1.bf16.msra.mxu0 0
  %3198 = vmatprep.subr.bf16.mxu0 0
  %3199 = vmatpush1.bf16.msra.mxu0 0
  %3200 = vmatprep.subr.bf16.mxu0 0
  %3201 = vmatpush1.bf16.msra.mxu0 %v3163
  %3202 = vmatprep.subr.bf16.mxu0 0
  %3203 = vmatpush1.bf16.msra.mxu0 %v3162
  %3204 = vmatprep.subr.bf16.mxu0 0
  %3205 = vmatpush1.bf16.msra.mxu0 %v3161
  %3206 = vmatprep.subr.bf16.mxu0 0
  %3207 = vmatpush1.bf16.msra.mxu0 %v3160
  %3208 = vmatprep.subr.bf16.mxu0 0
  %3209 = vmatpush2.bf16.msra.mxu0 0
  %3210 = vmatprep.subr.bf16.mxu0 0
  %3211 = vmatpush2.bf16.msra.mxu0 0
  %3212 = vmatprep.subr.bf16.mxu0 0
  %3213 = vmatpush2.bf16.msra.mxu0 0
  %3214 = vmatprep.subr.bf16.mxu0 0
  %3215 = vmatpush2.bf16.msra.mxu0 0
  %3216 = vmatprep.subr.bf16.mxu0 0
  %3217 = vmatpush2.bf16.msra.mxu0 0
  %3218 = vmatprep.subr.bf16.mxu0 0
  %3219 = vmatpush2.bf16.msra.mxu0 0
  %3220 = vmatprep.subr.bf16.mxu0 0
  %3221 = vmatpush2.bf16.msra.mxu0 0
  %3222 = vmatprep.subr.bf16.mxu0 0
  %3223 = vmatpush2.bf16.msra.mxu0 0
  %3224 = vmatprep.mubr.bf16.mxu0 0
  %3225 = vmatmul.mubr.bf16.gmra.mxu0 %v3169
  %v3226 = vpop.f32.mrf.mxu0
  %v3227 = vadd.f32 %v3142, %v3226
  %v3228 = vpop.f32.mrf.mxu0
  %v3229 = vpop.f32.mrf.mxu0
  %v3230 = vadd.f32 %v3142, %v3229
  %v3231 = vpop.f32.mrf.mxu0
  %3232 = vmatprep.mubr.bf16.mxu0 0
  %3233 = vmatmul.mubr.bf16.gmra.mxu0 %v3172
  %v3234 = vpop.f32.mrf.mxu0
  %v3235 = vadd.f32 %v3142, %v3234
  %v3236 = vpop.f32.mrf.mxu0
  %v3237 = vpop.f32.mrf.mxu0
  %v3238 = vadd.f32 %v3142, %v3237
  %v3239 = vpop.f32.mrf.mxu0
  %3240 = vmatprep.mubr.bf16.mxu0 0
  %3241 = vmatmul.mubr.bf16.gmra.mxu0 %v3175
  %v3242 = vpop.f32.mrf.mxu0
  %v3243 = vadd.f32 %v3142, %v3242
  %v3244 = vpop.f32.mrf.mxu0
  %v3245 = vpop.f32.mrf.mxu0
  %v3246 = vadd.f32 %v3142, %v3245
  %v3247 = vpop.f32.mrf.mxu0
  %3248 = vmatprep.mubr.bf16.mxu0 0
  %3249 = vmatmul.mubr.bf16.gmra.mxu0 %v3178
  %v3250 = vpop.f32.mrf.mxu0
  %v3251 = vadd.f32 %v3142, %v3250
  %v3252 = vpop.f32.mrf.mxu0
  %v3253 = vpop.f32.mrf.mxu0
  %v3254 = vadd.f32 %v3142, %v3253
  %v3255 = vpop.f32.mrf.mxu0
  %3256 = vmatprep.mubr.bf16.mxu0 0
  %3257 = vmatmul.mubr.bf16.gmra.mxu0 %v3181
  %v3258 = vpop.f32.mrf.mxu0
  %v3259 = vadd.f32 %v3142, %v3258
  %v3260 = vpop.f32.mrf.mxu0
  %v3261 = vpop.f32.mrf.mxu0
  %v3262 = vadd.f32 %v3142, %v3261
  %v3263 = vpop.f32.mrf.mxu0
  %3264 = vmatprep.mubr.bf16.mxu0 0
  %3265 = vmatmul.mubr.bf16.gmra.mxu0 %v3184
  %v3266 = vpop.f32.mrf.mxu0
  %v3267 = vadd.f32 %v3142, %v3266
  %v3268 = vpop.f32.mrf.mxu0
  %v3269 = vpop.f32.mrf.mxu0
  %v3270 = vadd.f32 %v3142, %v3269
  %v3271 = vpop.f32.mrf.mxu0
  %3272 = vmatprep.mubr.bf16.mxu0 0
  %3273 = vmatmul.mubr.bf16.gmra.mxu0 %v3187
  %v3274 = vpop.f32.mrf.mxu0
  %v3275 = vadd.f32 %v3142, %v3274
  %v3276 = vpop.f32.mrf.mxu0
  %v3277 = vpop.f32.mrf.mxu0
  %v3278 = vadd.f32 %v3142, %v3277
  %v3279 = vpop.f32.mrf.mxu0
  %3280 = vmatprep.mubr.bf16.mxu0 0
  %3281 = vmatmul.mubr.bf16.gmra.mxu0 %v3190
  %v3282 = vpop.f32.mrf.mxu0
  %v3283 = vadd.f32 %v3142, %v3282
  %v3284 = vpop.f32.mrf.mxu0
  %v3285 = vpop.f32.mrf.mxu0
  %v3286 = vadd.f32 %v3142, %v3285
  %v3287 = vpop.f32.mrf.mxu0
  %3288 = vdwg.mxu0
  %v3289 = vadd.f32 %v2933, %v3227
  %v3290 = vadd.f32 %v2934, %v3230
  %v3291 = vadd.f32 %v2935, %v3235
  %v3292 = vadd.f32 %v2936, %v3238
  %v3293 = vadd.f32 %v2937, %v3243
  %v3294 = vadd.f32 %v2938, %v3246
  %v3295 = vadd.f32 %v2939, %v3251
  %v3296 = vadd.f32 %v2940, %v3254
  %v3297 = vadd.f32 %v2941, %v3259
  %v3298 = vadd.f32 %v2942, %v3262
  %v3299 = vadd.f32 %v2943, %v3267
  %v3300 = vadd.f32 %v2944, %v3270
  %v3301 = vadd.f32 %v2945, %v3275
  %v3302 = vadd.f32 %v2946, %v3278
  %v3303 = vadd.f32 %v2947, %v3283
  %v3304 = vadd.f32 %v2948, %v3286
  %s3305 = scalar_lea.vmem %s12, 1
  %v3306 = vld [vmem:[%s3305] sm:$0x1]
  %s3307 = scalar_lea.vmem %s13, 1
  %v3308 = vld [vmem:[%s3307] sm:$0x1]
  %v3309 = vsel %vm98, %v3289, 0.0
  %3310 = vadd.xlane.f32.xlu0 %v3309
  %v3311 = vpop.xlane.xlu0 %3310
  %v3312 = vsel %vm98, %v3290, 0.0
  %3313 = vadd.xlane.f32.xlu0 %v3312
  %v3314 = vpop.xlane.xlu0 %3313
  %v3315 = vsel %vm98, %v3291, 0.0
  %3316 = vadd.xlane.f32.xlu0 %v3315
  %v3317 = vpop.xlane.xlu0 %3316
  %v3318 = vsel %vm98, %v3292, 0.0
  %3319 = vadd.xlane.f32.xlu0 %v3318
  %v3320 = vpop.xlane.xlu0 %3319
  %v3321 = vsel %vm98, %v3293, 0.0
  %3322 = vadd.xlane.f32.xlu0 %v3321
  %v3323 = vpop.xlane.xlu0 %3322
  %v3324 = vsel %vm98, %v3294, 0.0
  %3325 = vadd.xlane.f32.xlu0 %v3324
  %v3326 = vpop.xlane.xlu0 %3325
  %v3327 = vsel %vm98, %v3295, 0.0
  %3328 = vadd.xlane.f32.xlu0 %v3327
  %v3329 = vpop.xlane.xlu0 %3328
  %v3330 = vsel %vm98, %v3296, 0.0
  %3331 = vadd.xlane.f32.xlu0 %v3330
  %v3332 = vpop.xlane.xlu0 %3331
  %v3333 = vsel %vm98, %v3297, 0.0
  %3334 = vadd.xlane.f32.xlu0 %v3333
  %v3335 = vpop.xlane.xlu0 %3334
  %v3336 = vsel %vm98, %v3298, 0.0
  %3337 = vadd.xlane.f32.xlu0 %v3336
  %v3338 = vpop.xlane.xlu0 %3337
  %v3339 = vsel %vm98, %v3299, 0.0
  %3340 = vadd.xlane.f32.xlu0 %v3339
  %v3341 = vpop.xlane.xlu0 %3340
  %v3342 = vsel %vm98, %v3300, 0.0
  %3343 = vadd.xlane.f32.xlu0 %v3342
  %v3344 = vpop.xlane.xlu0 %3343
  %v3345 = vsel %vm98, %v3301, 0.0
  %3346 = vadd.xlane.f32.xlu0 %v3345
  %v3347 = vpop.xlane.xlu0 %3346
  %v3348 = vsel %vm98, %v3302, 0.0
  %3349 = vadd.xlane.f32.xlu0 %v3348
  %v3350 = vpop.xlane.xlu0 %3349
  %v3351 = vsel %vm98, %v3303, 0.0
  %3352 = vadd.xlane.f32.xlu0 %v3351
  %v3353 = vpop.xlane.xlu0 %3352
  %v3354 = vsel %vm98, %v3304, 0.0
  %3355 = vadd.xlane.f32.xlu0 %v3354
  %v3356 = vpop.xlane.xlu0 %3355
  %v3357 = vmul.f32 %v3311, %v949
  %v3358 = vmul.f32 %v3314, %v949
  %v3359 = vmul.f32 %v3317, %v949
  %v3360 = vmul.f32 %v3320, %v949
  %v3361 = vmul.f32 %v3323, %v949
  %v3362 = vmul.f32 %v3326, %v949
  %v3363 = vmul.f32 %v3329, %v949
  %v3364 = vmul.f32 %v3332, %v949
  %v3365 = vmul.f32 %v3335, %v949
  %v3366 = vmul.f32 %v3338, %v949
  %v3367 = vmul.f32 %v3341, %v949
  %v3368 = vmul.f32 %v3344, %v949
  %v3369 = vmul.f32 %v3347, %v949
  %v3370 = vmul.f32 %v3350, %v949
  %v3371 = vmul.f32 %v3353, %v949
  %v3372 = vmul.f32 %v3356, %v949
  %v3373 = vmul.f32 %v3289, %v3289
  %v3374 = vmul.f32 %v3290, %v3290
  %v3375 = vmul.f32 %v3291, %v3291
  %v3376 = vmul.f32 %v3292, %v3292
  %v3377 = vmul.f32 %v3293, %v3293
  %v3378 = vmul.f32 %v3294, %v3294
  %v3379 = vmul.f32 %v3295, %v3295
  %v3380 = vmul.f32 %v3296, %v3296
  %v3381 = vmul.f32 %v3297, %v3297
  %v3382 = vmul.f32 %v3298, %v3298
  %v3383 = vmul.f32 %v3299, %v3299
  %v3384 = vmul.f32 %v3300, %v3300
  %v3385 = vmul.f32 %v3301, %v3301
  %v3386 = vmul.f32 %v3302, %v3302
  %v3387 = vmul.f32 %v3303, %v3303
  %v3388 = vmul.f32 %v3304, %v3304
  %v3389 = vsel %vm98, %v3373, 0.0
  %3390 = vadd.xlane.f32.xlu0 %v3389
  %v3391 = vpop.xlane.xlu0 %3390
  %v3392 = vsel %vm98, %v3374, 0.0
  %3393 = vadd.xlane.f32.xlu0 %v3392
  %v3394 = vpop.xlane.xlu0 %3393
  %v3395 = vsel %vm98, %v3375, 0.0
  %3396 = vadd.xlane.f32.xlu0 %v3395
  %v3397 = vpop.xlane.xlu0 %3396
  %v3398 = vsel %vm98, %v3376, 0.0
  %3399 = vadd.xlane.f32.xlu0 %v3398
  %v3400 = vpop.xlane.xlu0 %3399
  %v3401 = vsel %vm98, %v3377, 0.0
  %3402 = vadd.xlane.f32.xlu0 %v3401
  %v3403 = vpop.xlane.xlu0 %3402
  %v3404 = vsel %vm98, %v3378, 0.0
  %3405 = vadd.xlane.f32.xlu0 %v3404
  %v3406 = vpop.xlane.xlu0 %3405
  %v3407 = vsel %vm98, %v3379, 0.0
  %3408 = vadd.xlane.f32.xlu0 %v3407
  %v3409 = vpop.xlane.xlu0 %3408
  %v3410 = vsel %vm98, %v3380, 0.0
  %3411 = vadd.xlane.f32.xlu0 %v3410
  %v3412 = vpop.xlane.xlu0 %3411
  %v3413 = vsel %vm98, %v3381, 0.0
  %3414 = vadd.xlane.f32.xlu0 %v3413
  %v3415 = vpop.xlane.xlu0 %3414
  %v3416 = vsel %vm98, %v3382, 0.0
  %3417 = vadd.xlane.f32.xlu0 %v3416
  %v3418 = vpop.xlane.xlu0 %3417
  %v3419 = vsel %vm98, %v3383, 0.0
  %3420 = vadd.xlane.f32.xlu0 %v3419
  %v3421 = vpop.xlane.xlu0 %3420
  %v3422 = vsel %vm98, %v3384, 0.0
  %3423 = vadd.xlane.f32.xlu0 %v3422
  %v3424 = vpop.xlane.xlu0 %3423
  %v3425 = vsel %vm98, %v3385, 0.0
  %3426 = vadd.xlane.f32.xlu0 %v3425
  %v3427 = vpop.xlane.xlu0 %3426
  %v3428 = vsel %vm98, %v3386, 0.0
  %3429 = vadd.xlane.f32.xlu0 %v3428
  %v3430 = vpop.xlane.xlu0 %3429
  %v3431 = vsel %vm98, %v3387, 0.0
  %3432 = vadd.xlane.f32.xlu0 %v3431
  %v3433 = vpop.xlane.xlu0 %3432
  %v3434 = vsel %vm98, %v3388, 0.0
  %3435 = vadd.xlane.f32.xlu0 %v3434
  %v3436 = vpop.xlane.xlu0 %3435
  %v3437 = vmul.f32 %v3391, %v949
  %v3438 = vmul.f32 %v3394, %v949
  %v3439 = vmul.f32 %v3397, %v949
  %v3440 = vmul.f32 %v3400, %v949
  %v3441 = vmul.f32 %v3403, %v949
  %v3442 = vmul.f32 %v3406, %v949
  %v3443 = vmul.f32 %v3409, %v949
  %v3444 = vmul.f32 %v3412, %v949
  %v3445 = vmul.f32 %v3415, %v949
  %v3446 = vmul.f32 %v3418, %v949
  %v3447 = vmul.f32 %v3421, %v949
  %v3448 = vmul.f32 %v3424, %v949
  %v3449 = vmul.f32 %v3427, %v949
  %v3450 = vmul.f32 %v3430, %v949
  %v3451 = vmul.f32 %v3433, %v949
  %v3452 = vmul.f32 %v3436, %v949
  %v3453 = vmul.f32 %v3357, %v3357
  %v3454 = vmul.f32 %v3358, %v3358
  %v3455 = vmul.f32 %v3359, %v3359
  %v3456 = vmul.f32 %v3360, %v3360
  %v3457 = vmul.f32 %v3361, %v3361
  %v3458 = vmul.f32 %v3362, %v3362
  %v3459 = vmul.f32 %v3363, %v3363
  %v3460 = vmul.f32 %v3364, %v3364
  %v3461 = vmul.f32 %v3365, %v3365
  %v3462 = vmul.f32 %v3366, %v3366
  %v3463 = vmul.f32 %v3367, %v3367
  %v3464 = vmul.f32 %v3368, %v3368
  %v3465 = vmul.f32 %v3369, %v3369
  %v3466 = vmul.f32 %v3370, %v3370
  %v3467 = vmul.f32 %v3371, %v3371
  %v3468 = vmul.f32 %v3372, %v3372
  %v3469 = vsub.f32 %v3437, %v3453
  %v3470 = vsub.f32 %v3438, %v3454
  %v3471 = vsub.f32 %v3439, %v3455
  %v3472 = vsub.f32 %v3440, %v3456
  %v3473 = vsub.f32 %v3441, %v3457
  %v3474 = vsub.f32 %v3442, %v3458
  %v3475 = vsub.f32 %v3443, %v3459
  %v3476 = vsub.f32 %v3444, %v3460
  %v3477 = vsub.f32 %v3445, %v3461
  %v3478 = vsub.f32 %v3446, %v3462
  %v3479 = vsub.f32 %v3447, %v3463
  %v3480 = vsub.f32 %v3448, %v3464
  %v3481 = vsub.f32 %v3449, %v3465
  %v3482 = vsub.f32 %v3450, %v3466
  %v3483 = vsub.f32 %v3451, %v3467
  %v3484 = vsub.f32 %v3452, %v3468
  %v3485 = vsub.f32 %v3289, %v3357
  %v3486 = vsub.f32 %v3290, %v3358
  %v3487 = vsub.f32 %v3291, %v3359
  %v3488 = vsub.f32 %v3292, %v3360
  %v3489 = vsub.f32 %v3293, %v3361
  %v3490 = vsub.f32 %v3294, %v3362
  %v3491 = vsub.f32 %v3295, %v3363
  %v3492 = vsub.f32 %v3296, %v3364
  %v3493 = vsub.f32 %v3297, %v3365
  %v3494 = vsub.f32 %v3298, %v3366
  %v3495 = vsub.f32 %v3299, %v3367
  %v3496 = vsub.f32 %v3300, %v3368
  %v3497 = vsub.f32 %v3301, %v3369
  %v3498 = vsub.f32 %v3302, %v3370
  %v3499 = vsub.f32 %v3303, %v3371
  %v3500 = vsub.f32 %v3304, %v3372
  %v3501 = vadd.f32 %v3469, 1e-05
  %v3502 = vadd.f32 %v3470, 1e-05
  %v3503 = vadd.f32 %v3471, 1e-05
  %v3504 = vadd.f32 %v3472, 1e-05
  %v3505 = vadd.f32 %v3473, 1e-05
  %v3506 = vadd.f32 %v3474, 1e-05
  %v3507 = vadd.f32 %v3475, 1e-05
  %v3508 = vadd.f32 %v3476, 1e-05
  %v3509 = vadd.f32 %v3477, 1e-05
  %v3510 = vadd.f32 %v3478, 1e-05
  %v3511 = vadd.f32 %v3479, 1e-05
  %v3512 = vadd.f32 %v3480, 1e-05
  %v3513 = vadd.f32 %v3481, 1e-05
  %v3514 = vadd.f32 %v3482, 1e-05
  %v3515 = vadd.f32 %v3483, 1e-05
  %v3516 = vadd.f32 %v3484, 1e-05
  %v3517 = vrsqrt.pop %v3501
  %v3518 = vrsqrt.pop %v3502
  %v3519 = vrsqrt.pop %v3503
  %v3520 = vrsqrt.pop %v3504
  %v3521 = vrsqrt.pop %v3505
  %v3522 = vrsqrt.pop %v3506
  %v3523 = vrsqrt.pop %v3507
  %v3524 = vrsqrt.pop %v3508
  %v3525 = vrsqrt.pop %v3509
  %v3526 = vrsqrt.pop %v3510
  %v3527 = vrsqrt.pop %v3511
  %v3528 = vrsqrt.pop %v3512
  %v3529 = vrsqrt.pop %v3513
  %v3530 = vrsqrt.pop %v3514
  %v3531 = vrsqrt.pop %v3515
  %v3532 = vrsqrt.pop %v3516
  %v3533 = vmul.f32 %v3485, %v3517
  %v3534 = vmul.f32 %v3486, %v3518
  %v3535 = vmul.f32 %v3487, %v3519
  %v3536 = vmul.f32 %v3488, %v3520
  %v3537 = vmul.f32 %v3489, %v3521
  %v3538 = vmul.f32 %v3490, %v3522
  %v3539 = vmul.f32 %v3491, %v3523
  %v3540 = vmul.f32 %v3492, %v3524
  %v3541 = vmul.f32 %v3493, %v3525
  %v3542 = vmul.f32 %v3494, %v3526
  %v3543 = vmul.f32 %v3495, %v3527
  %v3544 = vmul.f32 %v3496, %v3528
  %v3545 = vmul.f32 %v3497, %v3529
  %v3546 = vmul.f32 %v3498, %v3530
  %v3547 = vmul.f32 %v3499, %v3531
  %v3548 = vmul.f32 %v3500, %v3532
  %v3550 = vlaneseq
  %v3551 = vshrl.u32 %v3550, 7
  %v3552 = vsub.s32 0, %v3551
  %v3553 = vrot.slane %v3306, %v3552
  %v3555 = vmul.f32 %v3533, %v3553
  %v3556 = vmul.f32 %v3534, %v3553
  %v3557 = vmul.f32 %v3535, %v3553
  %v3558 = vmul.f32 %v3536, %v3553
  %v3559 = vmul.f32 %v3537, %v3553
  %v3560 = vmul.f32 %v3538, %v3553
  %v3561 = vmul.f32 %v3539, %v3553
  %v3562 = vmul.f32 %v3540, %v3553
  %v3563 = vmul.f32 %v3541, %v3553
  %v3564 = vmul.f32 %v3542, %v3553
  %v3565 = vmul.f32 %v3543, %v3553
  %v3566 = vmul.f32 %v3544, %v3553
  %v3567 = vmul.f32 %v3545, %v3553
  %v3568 = vmul.f32 %v3546, %v3553
  %v3569 = vmul.f32 %v3547, %v3553
  %v3570 = vmul.f32 %v3548, %v3553
  %v3572 = vlaneseq
  %v3573 = vshrl.u32 %v3572, 7
  %v3574 = vsub.s32 0, %v3573
  %v3575 = vrot.slane %v3308, %v3574
  %v3577 = vadd.f32 %v3555, %v3575
  %v3578 = vadd.f32 %v3556, %v3575
  %v3579 = vadd.f32 %v3557, %v3575
  %v3580 = vadd.f32 %v3558, %v3575
  %v3581 = vadd.f32 %v3559, %v3575
  %v3582 = vadd.f32 %v3560, %v3575
  %v3583 = vadd.f32 %v3561, %v3575
  %v3584 = vadd.f32 %v3562, %v3575
  %v3585 = vadd.f32 %v3563, %v3575
  %v3586 = vadd.f32 %v3564, %v3575
  %v3587 = vadd.f32 %v3565, %v3575
  %v3588 = vadd.f32 %v3566, %v3575
  %v3589 = vadd.f32 %v3567, %v3575
  %v3590 = vadd.f32 %v3568, %v3575
  %v3591 = vadd.f32 %v3569, %v3575
  %v3592 = vadd.f32 %v3570, %v3575
  %v3593 = vpack.c.bf16 %v3578, %v3577
  %v3594 = vpack.c.bf16 %v3580, %v3579
  %v3595 = vpack.c.bf16 %v3582, %v3581
  %v3596 = vpack.c.bf16 %v3584, %v3583
  %v3597 = vpack.c.bf16 %v3586, %v3585
  %v3598 = vpack.c.bf16 %v3588, %v3587
  %v3599 = vpack.c.bf16 %v3590, %v3589
  %v3600 = vpack.c.bf16 %v3592, %v3591
  %s3601 = scalar_lea.vmem %s1, 32
  %v3602 = vld [vmem:[%s3601] sm:$0xf]
  %v3603 = vld [vmem:[%s3601 + $0x4] sm:$0xf]
  %v3604 = vld [vmem:[%s3601 + $0x8] sm:$0xf]
  %v3605 = vld [vmem:[%s3601 + $0xc] sm:$0xf]
  %s3606 = scalar_lea.vmem %s2, 2
  %v3607 = vld [vmem:[%s3606] sm:$0x1]
  %v3609 = vlaneseq
  %v3610 = vshrl.u32 %v3609, 7
  %v3611 = vsub.s32 0, %v3610
  %v3612 = vrot.slane %v3607, %v3611
  %v3618 = vunpack.c.l.b16 %v3602
  %v3619 = vunpack.c.l.b16 %v3603
  %v3620 = vunpack.c.l.b16 %v3604
  %v3621 = vunpack.c.l.b16 %v3605
  %v3622 = vpack.c.b16 %v3619, %v3618
  %v3623 = vpack.c.b16 %v3621, %v3620
  %v3627 = vsel %vm98, %v3593, 0
  %v3630 = vsel %vm98, %v3594, 0
  %v3633 = vsel %vm98, %v3595, 0
  %v3636 = vsel %vm98, %v3596, 0
  %v3639 = vsel %vm98, %v3597, 0
  %v3642 = vsel %vm98, %v3598, 0
  %v3645 = vsel %vm98, %v3599, 0
  %v3648 = vsel %vm98, %v3600, 0
  %3650 = vmatprep.subr.bf16.mxu0 0
  %3651 = vmatpush1.bf16.msra.mxu0 0
  %3652 = vmatprep.subr.bf16.mxu0 0
  %3653 = vmatpush1.bf16.msra.mxu0 0
  %3654 = vmatprep.subr.bf16.mxu0 0
  %3655 = vmatpush1.bf16.msra.mxu0 0
  %3656 = vmatprep.subr.bf16.mxu0 0
  %3657 = vmatpush1.bf16.msra.mxu0 0
  %3658 = vmatprep.subr.bf16.mxu0 0
  %3659 = vmatpush1.bf16.msra.mxu0 0
  %3660 = vmatprep.subr.bf16.mxu0 0
  %3661 = vmatpush1.bf16.msra.mxu0 0
  %3662 = vmatprep.subr.bf16.mxu0 0
  %3663 = vmatpush1.bf16.msra.mxu0 %v3623
  %3664 = vmatprep.subr.bf16.mxu0 0
  %3665 = vmatpush1.bf16.msra.mxu0 %v3622
  %3666 = vmatprep.subr.bf16.mxu0 0
  %3667 = vmatpush2.bf16.msra.mxu0 0
  %3668 = vmatprep.subr.bf16.mxu0 0
  %3669 = vmatpush2.bf16.msra.mxu0 0
  %3670 = vmatprep.subr.bf16.mxu0 0
  %3671 = vmatpush2.bf16.msra.mxu0 0
  %3672 = vmatprep.subr.bf16.mxu0 0
  %3673 = vmatpush2.bf16.msra.mxu0 0
  %3674 = vmatprep.subr.bf16.mxu0 0
  %3675 = vmatpush2.bf16.msra.mxu0 0
  %3676 = vmatprep.subr.bf16.mxu0 0
  %3677 = vmatpush2.bf16.msra.mxu0 0
  %3678 = vmatprep.subr.bf16.mxu0 0
  %3679 = vmatpush2.bf16.msra.mxu0 0
  %3680 = vmatprep.subr.bf16.mxu0 0
  %3681 = vmatpush2.bf16.msra.mxu0 0
  %3682 = vmatprep.mubr.bf16.mxu0 0
  %3683 = vmatmul.mubr.bf16.gmra.mxu0 %v3627
  %v3684 = vpop.f32.mrf.mxu0
  %v3685 = vadd.f32 %v3612, %v3684
  %v3686 = vpop.f32.mrf.mxu0
  %v3687 = vpop.f32.mrf.mxu0
  %v3688 = vadd.f32 %v3612, %v3687
  %v3689 = vpop.f32.mrf.mxu0
  %3690 = vmatprep.mubr.bf16.mxu0 0
  %3691 = vmatmul.mubr.bf16.gmra.mxu0 %v3630
  %v3692 = vpop.f32.mrf.mxu0
  %v3693 = vadd.f32 %v3612, %v3692
  %v3694 = vpop.f32.mrf.mxu0
  %v3695 = vpop.f32.mrf.mxu0
  %v3696 = vadd.f32 %v3612, %v3695
  %v3697 = vpop.f32.mrf.mxu0
  %3698 = vmatprep.mubr.bf16.mxu0 0
  %3699 = vmatmul.mubr.bf16.gmra.mxu0 %v3633
  %v3700 = vpop.f32.mrf.mxu0
  %v3701 = vadd.f32 %v3612, %v3700
  %v3702 = vpop.f32.mrf.mxu0
  %v3703 = vpop.f32.mrf.mxu0
  %v3704 = vadd.f32 %v3612, %v3703
  %v3705 = vpop.f32.mrf.mxu0
  %3706 = vmatprep.mubr.bf16.mxu0 0
  %3707 = vmatmul.mubr.bf16.gmra.mxu0 %v3636
  %v3708 = vpop.f32.mrf.mxu0
  %v3709 = vadd.f32 %v3612, %v3708
  %v3710 = vpop.f32.mrf.mxu0
  %v3711 = vpop.f32.mrf.mxu0
  %v3712 = vadd.f32 %v3612, %v3711
  %v3713 = vpop.f32.mrf.mxu0
  %3714 = vmatprep.mubr.bf16.mxu0 0
  %3715 = vmatmul.mubr.bf16.gmra.mxu0 %v3639
  %v3716 = vpop.f32.mrf.mxu0
  %v3717 = vadd.f32 %v3612, %v3716
  %v3718 = vpop.f32.mrf.mxu0
  %v3719 = vpop.f32.mrf.mxu0
  %v3720 = vadd.f32 %v3612, %v3719
  %v3721 = vpop.f32.mrf.mxu0
  %3722 = vmatprep.mubr.bf16.mxu0 0
  %3723 = vmatmul.mubr.bf16.gmra.mxu0 %v3642
  %v3724 = vpop.f32.mrf.mxu0
  %v3725 = vadd.f32 %v3612, %v3724
  %v3726 = vpop.f32.mrf.mxu0
  %v3727 = vpop.f32.mrf.mxu0
  %v3728 = vadd.f32 %v3612, %v3727
  %v3729 = vpop.f32.mrf.mxu0
  %3730 = vmatprep.mubr.bf16.mxu0 0
  %3731 = vmatmul.mubr.bf16.gmra.mxu0 %v3645
  %v3732 = vpop.f32.mrf.mxu0
  %v3733 = vadd.f32 %v3612, %v3732
  %v3734 = vpop.f32.mrf.mxu0
  %v3735 = vpop.f32.mrf.mxu0
  %v3736 = vadd.f32 %v3612, %v3735
  %v3737 = vpop.f32.mrf.mxu0
  %3738 = vmatprep.mubr.bf16.mxu0 0
  %3739 = vmatmul.mubr.bf16.gmra.mxu0 %v3648
  %v3740 = vpop.f32.mrf.mxu0
  %v3741 = vadd.f32 %v3612, %v3740
  %v3742 = vpop.f32.mrf.mxu0
  %v3743 = vpop.f32.mrf.mxu0
  %v3744 = vadd.f32 %v3612, %v3743
  %v3745 = vpop.f32.mrf.mxu0
  %3746 = vdwg.mxu0
  %v3747 = vpack.c.bf16 %v3688, %v3685
  %v3748 = vpack.c.bf16 %v3696, %v3693
  %v3749 = vpack.c.bf16 %v3704, %v3701
  %v3750 = vpack.c.bf16 %v3712, %v3709
  %v3751 = vpack.c.bf16 %v3720, %v3717
  %v3752 = vpack.c.bf16 %v3728, %v3725
  %v3753 = vpack.c.bf16 %v3736, %v3733
  %v3754 = vpack.c.bf16 %v3744, %v3741
  %3763 = vrot.lane.b32.xlu0 %v3747, 96
  %v3764 = vpop.permute.xlu0 %3763
  %3765 = vrot.lane.b32.xlu0 %v3748, 96
  %v3766 = vpop.permute.xlu0 %3765
  %3767 = vrot.lane.b32.xlu0 %v3749, 96
  %v3768 = vpop.permute.xlu0 %3767
  %3769 = vrot.lane.b32.xlu0 %v3750, 96
  %v3770 = vpop.permute.xlu0 %3769
  %3771 = vrot.lane.b32.xlu0 %v3751, 96
  %v3772 = vpop.permute.xlu0 %3771
  %3773 = vrot.lane.b32.xlu0 %v3752, 96
  %v3774 = vpop.permute.xlu0 %3773
  %3775 = vrot.lane.b32.xlu0 %v3753, 96
  %v3776 = vpop.permute.xlu0 %3775
  %3777 = vrot.lane.b32.xlu0 %v3754, 96
  %v3778 = vpop.permute.xlu0 %3777
  %v3780 = vsel %vm98, %v3747, 0
  %v3783 = vsel %vm98, %v3748, 0
  %v3786 = vsel %vm98, %v3749, 0
  %v3789 = vsel %vm98, %v3750, 0
  %v3792 = vsel %vm98, %v3751, 0
  %v3795 = vsel %vm98, %v3752, 0
  %v3798 = vsel %vm98, %v3753, 0
  %v3801 = vsel %vm98, %v3754, 0
  %v3804 = vsel %vm98, %v3764, 0
  %v3807 = vsel %vm98, %v3766, 0
  %v3810 = vsel %vm98, %v3768, 0
  %v3813 = vsel %vm98, %v3770, 0
  %v3816 = vsel %vm98, %v3772, 0
  %v3819 = vsel %vm98, %v3774, 0
  %v3822 = vsel %vm98, %v3776, 0
  %v3825 = vsel %vm98, %v3778, 0
  %3827 = vmatprep.subr.bf16.mxu0 0
  %3828 = vmatpush1.bf16.xpose.msra.mxu0 %v3825
  %3829 = vmatprep.subr.bf16.mxu0 0
  %3830 = vmatpush1.bf16.xpose.msra.mxu0 %v3822
  %3831 = vmatprep.subr.bf16.mxu0 0
  %3832 = vmatpush1.bf16.xpose.msra.mxu0 %v3819
  %3833 = vmatprep.subr.bf16.mxu0 0
  %3834 = vmatpush1.bf16.xpose.msra.mxu0 %v3816
  %3835 = vmatprep.subr.bf16.mxu0 0
  %3836 = vmatpush1.bf16.xpose.msra.mxu0 %v3813
  %3837 = vmatprep.subr.bf16.mxu0 0
  %3838 = vmatpush1.bf16.xpose.msra.mxu0 %v3810
  %3839 = vmatprep.subr.bf16.mxu0 0
  %3840 = vmatpush1.bf16.xpose.msra.mxu0 %v3807
  %3841 = vmatprep.subr.bf16.mxu0 0
  %3842 = vmatpush1.bf16.xpose.msra.mxu0 %v3804
  %3843 = vmatprep.subr.bf16.mxu0 0
  %3844 = vmatpush2.bf16.xpose.msra.mxu0 0
  %3845 = vmatprep.subr.bf16.mxu0 0
  %3846 = vmatpush2.bf16.xpose.msra.mxu0 0
  %3847 = vmatprep.subr.bf16.mxu0 0
  %3848 = vmatpush2.bf16.xpose.msra.mxu0 0
  %3849 = vmatprep.subr.bf16.mxu0 0
  %3850 = vmatpush2.bf16.xpose.msra.mxu0 0
  %3851 = vmatprep.subr.bf16.mxu0 0
  %3852 = vmatpush2.bf16.xpose.msra.mxu0 0
  %3853 = vmatprep.subr.bf16.mxu0 0
  %3854 = vmatpush2.bf16.xpose.msra.mxu0 0
  %3855 = vmatprep.subr.bf16.mxu0 0
  %3856 = vmatpush2.bf16.xpose.msra.mxu0 0
  %3857 = vmatprep.subr.bf16.mxu0 0
  %3858 = vmatpush2.bf16.xpose.msra.mxu0 0
  %3859 = vmatprep.mubr.bf16.mxu0 0
  %3860 = vmatmul.mubr.bf16.gmra.mxu0 %v3780
  %v3861 = vpop.f32.mrf.mxu0
  %v3862 = vadd.f32 0.0, %v3861
  %v3863 = vpop.f32.mrf.mxu0
  %v3864 = vpop.f32.mrf.mxu0
  %v3865 = vadd.f32 0.0, %v3864
  %v3866 = vpop.f32.mrf.mxu0
  %3867 = vmatprep.mubr.bf16.mxu0 0
  %3868 = vmatmul.mubr.bf16.gmra.mxu0 %v3783
  %v3869 = vpop.f32.mrf.mxu0
  %v3870 = vadd.f32 0.0, %v3869
  %v3871 = vpop.f32.mrf.mxu0
  %v3872 = vpop.f32.mrf.mxu0
  %v3873 = vadd.f32 0.0, %v3872
  %v3874 = vpop.f32.mrf.mxu0
  %3875 = vmatprep.mubr.bf16.mxu0 0
  %3876 = vmatmul.mubr.bf16.gmra.mxu0 %v3786
  %v3877 = vpop.f32.mrf.mxu0
  %v3878 = vadd.f32 0.0, %v3877
  %v3879 = vpop.f32.mrf.mxu0
  %v3880 = vpop.f32.mrf.mxu0
  %v3881 = vadd.f32 0.0, %v3880
  %v3882 = vpop.f32.mrf.mxu0
  %3883 = vmatprep.mubr.bf16.mxu0 0
  %3884 = vmatmul.mubr.bf16.gmra.mxu0 %v3789
  %v3885 = vpop.f32.mrf.mxu0
  %v3886 = vadd.f32 0.0, %v3885
  %v3887 = vpop.f32.mrf.mxu0
  %v3888 = vpop.f32.mrf.mxu0
  %v3889 = vadd.f32 0.0, %v3888
  %v3890 = vpop.f32.mrf.mxu0
  %3891 = vmatprep.mubr.bf16.mxu0 0
  %3892 = vmatmul.mubr.bf16.gmra.mxu0 %v3792
  %v3893 = vpop.f32.mrf.mxu0
  %v3894 = vadd.f32 0.0, %v3893
  %v3895 = vpop.f32.mrf.mxu0
  %v3896 = vpop.f32.mrf.mxu0
  %v3897 = vadd.f32 0.0, %v3896
  %v3898 = vpop.f32.mrf.mxu0
  %3899 = vmatprep.mubr.bf16.mxu0 0
  %3900 = vmatmul.mubr.bf16.gmra.mxu0 %v3795
  %v3901 = vpop.f32.mrf.mxu0
  %v3902 = vadd.f32 0.0, %v3901
  %v3903 = vpop.f32.mrf.mxu0
  %v3904 = vpop.f32.mrf.mxu0
  %v3905 = vadd.f32 0.0, %v3904
  %v3906 = vpop.f32.mrf.mxu0
  %3907 = vmatprep.mubr.bf16.mxu0 0
  %3908 = vmatmul.mubr.bf16.gmra.mxu0 %v3798
  %v3909 = vpop.f32.mrf.mxu0
  %v3910 = vadd.f32 0.0, %v3909
  %v3911 = vpop.f32.mrf.mxu0
  %v3912 = vpop.f32.mrf.mxu0
  %v3913 = vadd.f32 0.0, %v3912
  %v3914 = vpop.f32.mrf.mxu0
  %3915 = vmatprep.mubr.bf16.mxu0 0
  %3916 = vmatmul.mubr.bf16.gmra.mxu0 %v3801
  %v3917 = vpop.f32.mrf.mxu0
  %v3918 = vadd.f32 0.0, %v3917
  %v3919 = vpop.f32.mrf.mxu0
  %v3920 = vpop.f32.mrf.mxu0
  %v3921 = vadd.f32 0.0, %v3920
  %v3922 = vpop.f32.mrf.mxu0
  %3923 = vdwg.mxu0
  %3924 = vmax.xlane.f32.xlu0 %v3862
  %v3925 = vpop.xlane.xlu0 %3924
  %3926 = vmax.xlane.f32.xlu0 %v3865
  %v3927 = vpop.xlane.xlu0 %3926
  %3928 = vmax.xlane.f32.xlu0 %v3870
  %v3929 = vpop.xlane.xlu0 %3928
  %3930 = vmax.xlane.f32.xlu0 %v3873
  %v3931 = vpop.xlane.xlu0 %3930
  %3932 = vmax.xlane.f32.xlu0 %v3878
  %v3933 = vpop.xlane.xlu0 %3932
  %3934 = vmax.xlane.f32.xlu0 %v3881
  %v3935 = vpop.xlane.xlu0 %3934
  %3936 = vmax.xlane.f32.xlu0 %v3886
  %v3937 = vpop.xlane.xlu0 %3936
  %3938 = vmax.xlane.f32.xlu0 %v3889
  %v3939 = vpop.xlane.xlu0 %3938
  %3940 = vmax.xlane.f32.xlu0 %v3894
  %v3941 = vpop.xlane.xlu0 %3940
  %3942 = vmax.xlane.f32.xlu0 %v3897
  %v3943 = vpop.xlane.xlu0 %3942
  %3944 = vmax.xlane.f32.xlu0 %v3902
  %v3945 = vpop.xlane.xlu0 %3944
  %3946 = vmax.xlane.f32.xlu0 %v3905
  %v3947 = vpop.xlane.xlu0 %3946
  %3948 = vmax.xlane.f32.xlu0 %v3910
  %v3949 = vpop.xlane.xlu0 %3948
  %3950 = vmax.xlane.f32.xlu0 %v3913
  %v3951 = vpop.xlane.xlu0 %3950
  %3952 = vmax.xlane.f32.xlu0 %v3918
  %v3953 = vpop.xlane.xlu0 %3952
  %3954 = vmax.xlane.f32.xlu0 %v3921
  %v3955 = vpop.xlane.xlu0 %3954
  %v3956 = vsub.f32 %v3862, %v3925
  %v3957 = vsub.f32 %v3865, %v3927
  %v3958 = vsub.f32 %v3870, %v3929
  %v3959 = vsub.f32 %v3873, %v3931
  %v3960 = vsub.f32 %v3878, %v3933
  %v3961 = vsub.f32 %v3881, %v3935
  %v3962 = vsub.f32 %v3886, %v3937
  %v3963 = vsub.f32 %v3889, %v3939
  %v3964 = vsub.f32 %v3894, %v3941
  %v3965 = vsub.f32 %v3897, %v3943
  %v3966 = vsub.f32 %v3902, %v3945
  %v3967 = vsub.f32 %v3905, %v3947
  %v3968 = vsub.f32 %v3910, %v3949
  %v3969 = vsub.f32 %v3913, %v3951
  %v3970 = vsub.f32 %v3918, %v3953
  %v3971 = vsub.f32 %v3921, %v3955
  %v3972 = vmul.f32 %v3956, 1.442695
  %v3973 = vpow.pop %v3972
  %v3974 = vmul.f32 %v3957, 1.442695
  %v3975 = vpow.pop %v3974
  %v3976 = vmul.f32 %v3958, 1.442695
  %v3977 = vpow.pop %v3976
  %v3978 = vmul.f32 %v3959, 1.442695
  %v3979 = vpow.pop %v3978
  %v3980 = vmul.f32 %v3960, 1.442695
  %v3981 = vpow.pop %v3980
  %v3982 = vmul.f32 %v3961, 1.442695
  %v3983 = vpow.pop %v3982
  %v3984 = vmul.f32 %v3962, 1.442695
  %v3985 = vpow.pop %v3984
  %v3986 = vmul.f32 %v3963, 1.442695
  %v3987 = vpow.pop %v3986
  %v3988 = vmul.f32 %v3964, 1.442695
  %v3989 = vpow.pop %v3988
  %v3990 = vmul.f32 %v3965, 1.442695
  %v3991 = vpow.pop %v3990
  %v3992 = vmul.f32 %v3966, 1.442695
  %v3993 = vpow.pop %v3992
  %v3994 = vmul.f32 %v3967, 1.442695
  %v3995 = vpow.pop %v3994
  %v3996 = vmul.f32 %v3968, 1.442695
  %v3997 = vpow.pop %v3996
  %v3998 = vmul.f32 %v3969, 1.442695
  %v3999 = vpow.pop %v3998
  %v4000 = vmul.f32 %v3970, 1.442695
  %v4001 = vpow.pop %v4000
  %v4002 = vmul.f32 %v3971, 1.442695
  %v4003 = vpow.pop %v4002
  %4004 = vadd.xlane.f32.xlu0 %v3973
  %v4005 = vpop.xlane.xlu0 %4004
  %4006 = vadd.xlane.f32.xlu0 %v3975
  %v4007 = vpop.xlane.xlu0 %4006
  %4008 = vadd.xlane.f32.xlu0 %v3977
  %v4009 = vpop.xlane.xlu0 %4008
  %4010 = vadd.xlane.f32.xlu0 %v3979
  %v4011 = vpop.xlane.xlu0 %4010
  %4012 = vadd.xlane.f32.xlu0 %v3981
  %v4013 = vpop.xlane.xlu0 %4012
  %4014 = vadd.xlane.f32.xlu0 %v3983
  %v4015 = vpop.xlane.xlu0 %4014
  %4016 = vadd.xlane.f32.xlu0 %v3985
  %v4017 = vpop.xlane.xlu0 %4016
  %4018 = vadd.xlane.f32.xlu0 %v3987
  %v4019 = vpop.xlane.xlu0 %4018
  %4020 = vadd.xlane.f32.xlu0 %v3989
  %v4021 = vpop.xlane.xlu0 %4020
  %4022 = vadd.xlane.f32.xlu0 %v3991
  %v4023 = vpop.xlane.xlu0 %4022
  %4024 = vadd.xlane.f32.xlu0 %v3993
  %v4025 = vpop.xlane.xlu0 %4024
  %4026 = vadd.xlane.f32.xlu0 %v3995
  %v4027 = vpop.xlane.xlu0 %4026
  %4028 = vadd.xlane.f32.xlu0 %v3997
  %v4029 = vpop.xlane.xlu0 %4028
  %4030 = vadd.xlane.f32.xlu0 %v3999
  %v4031 = vpop.xlane.xlu0 %4030
  %4032 = vadd.xlane.f32.xlu0 %v4001
  %v4033 = vpop.xlane.xlu0 %4032
  %4034 = vadd.xlane.f32.xlu0 %v4003
  %v4035 = vpop.xlane.xlu0 %4034
  %s4036 = scalar_lea.vmem %s3, 2
  %v4037 = vld [vmem:[%s4036] sm:$0x1]
  %v4039 = vlaneseq
  %v4040 = vshrl.u32 %v4039, 7
  %v4041 = vsub.s32 0, %v4040
  %v4042 = vrot.slane %v4037, %v4041
  %v4044 = vmul.f32 %v3577, %v4042
  %v4045 = vmul.f32 %v3578, %v4042
  %v4046 = vmul.f32 %v3579, %v4042
  %v4047 = vmul.f32 %v3580, %v4042
  %v4048 = vmul.f32 %v3581, %v4042
  %v4049 = vmul.f32 %v3582, %v4042
  %v4050 = vmul.f32 %v3583, %v4042
  %v4051 = vmul.f32 %v3584, %v4042
  %v4052 = vmul.f32 %v3585, %v4042
  %v4053 = vmul.f32 %v3586, %v4042
  %v4054 = vmul.f32 %v3587, %v4042
  %v4055 = vmul.f32 %v3588, %v4042
  %v4056 = vmul.f32 %v3589, %v4042
  %v4057 = vmul.f32 %v3590, %v4042
  %v4058 = vmul.f32 %v3591, %v4042
  %v4059 = vmul.f32 %v3592, %v4042
  %v4060 = vsel %vm98, %v4044, 0.0
  %4061 = vadd.xlane.f32.xlu0 %v4060
  %v4062 = vpop.xlane.xlu0 %4061
  %v4063 = vsel %vm98, %v4045, 0.0
  %4064 = vadd.xlane.f32.xlu0 %v4063
  %v4065 = vpop.xlane.xlu0 %4064
  %v4066 = vsel %vm98, %v4046, 0.0
  %4067 = vadd.xlane.f32.xlu0 %v4066
  %v4068 = vpop.xlane.xlu0 %4067
  %v4069 = vsel %vm98, %v4047, 0.0
  %4070 = vadd.xlane.f32.xlu0 %v4069
  %v4071 = vpop.xlane.xlu0 %4070
  %v4072 = vsel %vm98, %v4048, 0.0
  %4073 = vadd.xlane.f32.xlu0 %v4072
  %v4074 = vpop.xlane.xlu0 %4073
  %v4075 = vsel %vm98, %v4049, 0.0
  %4076 = vadd.xlane.f32.xlu0 %v4075
  %v4077 = vpop.xlane.xlu0 %4076
  %v4078 = vsel %vm98, %v4050, 0.0
  %4079 = vadd.xlane.f32.xlu0 %v4078
  %v4080 = vpop.xlane.xlu0 %4079
  %v4081 = vsel %vm98, %v4051, 0.0
  %4082 = vadd.xlane.f32.xlu0 %v4081
  %v4083 = vpop.xlane.xlu0 %4082
  %v4084 = vsel %vm98, %v4052, 0.0
  %4085 = vadd.xlane.f32.xlu0 %v4084
  %v4086 = vpop.xlane.xlu0 %4085
  %v4087 = vsel %vm98, %v4053, 0.0
  %4088 = vadd.xlane.f32.xlu0 %v4087
  %v4089 = vpop.xlane.xlu0 %4088
  %v4090 = vsel %vm98, %v4054, 0.0
  %4091 = vadd.xlane.f32.xlu0 %v4090
  %v4092 = vpop.xlane.xlu0 %4091
  %v4093 = vsel %vm98, %v4055, 0.0
  %4094 = vadd.xlane.f32.xlu0 %v4093
  %v4095 = vpop.xlane.xlu0 %4094
  %v4096 = vsel %vm98, %v4056, 0.0
  %4097 = vadd.xlane.f32.xlu0 %v4096
  %v4098 = vpop.xlane.xlu0 %4097
  %v4099 = vsel %vm98, %v4057, 0.0
  %4100 = vadd.xlane.f32.xlu0 %v4099
  %v4101 = vpop.xlane.xlu0 %4100
  %v4102 = vsel %vm98, %v4058, 0.0
  %4103 = vadd.xlane.f32.xlu0 %v4102
  %v4104 = vpop.xlane.xlu0 %4103
  %v4105 = vsel %vm98, %v4059, 0.0
  %4106 = vadd.xlane.f32.xlu0 %v4105
  %v4107 = vpop.xlane.xlu0 %4106
  %s4108 = scalar_lea.vmem %s4, 2
  %v4109 = vld [vmem:[%s4108] sm:$0x1]
  %v4111 = vlaneseq
  %v4112 = vshrl.u32 %v4111, 7
  %v4113 = vsub.s32 0, %v4112
  %v4114 = vrot.slane %v4109, %v4113
  %v4116 = vadd.f32 %v4062, %v4114
  %v4117 = vadd.f32 %v4065, %v4114
  %v4118 = vadd.f32 %v4068, %v4114
  %v4119 = vadd.f32 %v4071, %v4114
  %v4120 = vadd.f32 %v4074, %v4114
  %v4121 = vadd.f32 %v4077, %v4114
  %v4122 = vadd.f32 %v4080, %v4114
  %v4123 = vadd.f32 %v4083, %v4114
  %v4124 = vadd.f32 %v4086, %v4114
  %v4125 = vadd.f32 %v4089, %v4114
  %v4126 = vadd.f32 %v4092, %v4114
  %v4127 = vadd.f32 %v4095, %v4114
  %v4128 = vadd.f32 %v4098, %v4114
  %v4129 = vadd.f32 %v4101, %v4114
  %v4130 = vadd.f32 %v4104, %v4114
  %v4131 = vadd.f32 %v4107, %v4114
  %4132 = vmatprep.subr.mxu0 0.0
  %4133 = vmatpush1.msra.mxu0 %v4131
  %4134 = vmatprep.subr.mxu0 0.0
  %4135 = vmatpush1.msra.mxu0 %v4130
  %4136 = vmatprep.subr.mxu0 0.0
  %4137 = vmatpush1.msra.mxu0 %v4129
  %4138 = vmatprep.subr.mxu0 0.0
  %4139 = vmatpush1.msra.mxu0 %v4128
  %4140 = vmatprep.subr.mxu0 0.0
  %4141 = vmatpush1.msra.mxu0 %v4127
  %4142 = vmatprep.subr.mxu0 0.0
  %4143 = vmatpush1.msra.mxu0 %v4126
  %4144 = vmatprep.subr.mxu0 0.0
  %4145 = vmatpush1.msra.mxu0 %v4125
  %4146 = vmatprep.subr.mxu0 0.0
  %4147 = vmatpush1.msra.mxu0 %v4124
  %4148 = vmatprep.subr.mxu0 0.0
  %4149 = vmatpush1.msra.mxu0 %v4123
  %4150 = vmatprep.subr.mxu0 0.0
  %4151 = vmatpush1.msra.mxu0 %v4122
  %4152 = vmatprep.subr.mxu0 0.0
  %4153 = vmatpush1.msra.mxu0 %v4121
  %4154 = vmatprep.subr.mxu0 0.0
  %4155 = vmatpush1.msra.mxu0 %v4120
  %4156 = vmatprep.subr.mxu0 0.0
  %4157 = vmatpush1.msra.mxu0 %v4119
  %4158 = vmatprep.subr.mxu0 0.0
  %4159 = vmatpush1.msra.mxu0 %v4118
  %4160 = vmatprep.subr.mxu0 0.0
  %4161 = vmatpush1.msra.mxu0 %v4117
  %4162 = vmatprep.subr.mxu0 0.0
  %4163 = vmatpush1.msra.mxu0 %v4116
  %4164 = vmatprep.subr.mxu0 0.0
  %4165 = vmatpush2.msra.mxu0 0.0
  %4166 = vmatprep.subr.mxu0 0.0
  %4167 = vmatpush2.msra.mxu0 0.0
  %4168 = vmatprep.subr.mxu0 0.0
  %4169 = vmatpush2.msra.mxu0 0.0
  %4170 = vmatprep.subr.mxu0 0.0
  %4171 = vmatpush2.msra.mxu0 0.0
  %4172 = vmatprep.subr.mxu0 0.0
  %4173 = vmatpush2.msra.mxu0 0.0
  %4174 = vmatprep.subr.mxu0 0.0
  %4175 = vmatpush2.msra.mxu0 0.0
  %4176 = vmatprep.subr.mxu0 0.0
  %4177 = vmatpush2.msra.mxu0 0.0
  %4178 = vmatprep.subr.mxu0 0.0
  %4179 = vmatpush2.msra.mxu0 0.0
  %4180 = vmatprep.subr.mxu0 0.0
  %4181 = vmatpush2.msra.mxu0 0.0
  %4182 = vmatprep.subr.mxu0 0.0
  %4183 = vmatpush2.msra.mxu0 0.0
  %4184 = vmatprep.subr.mxu0 0.0
  %4185 = vmatpush2.msra.mxu0 0.0
  %4186 = vmatprep.subr.mxu0 0.0
  %4187 = vmatpush2.msra.mxu0 0.0
  %4188 = vmatprep.subr.mxu0 0.0
  %4189 = vmatpush2.msra.mxu0 0.0
  %4190 = vmatprep.subr.mxu0 0.0
  %4191 = vmatpush2.msra.mxu0 0.0
  %4192 = vmatprep.subr.mxu0 0.0
  %4193 = vmatpush2.msra.mxu0 0.0
  %4194 = vmatprep.subr.mxu0 0.0
  %4195 = vmatpush2.msra.mxu0 0.0
  %4196 = vmatprep.mubr.f32.mxu0 0.0
  %4197 = vmatmul.mubr.f32.gmra.mxu0 %v3973
  %v4198 = vpop.f32.mrf.mxu0
  %v4199 = vadd.f32 0.0, %v4198
  %v4200 = vpop.f32.mrf.mxu0
  %4201 = vmatprep.mubr.f32.mxu0 0.0
  %4202 = vmatmul.mubr.f32.gmra.mxu0 %v3975
  %v4203 = vpop.f32.mrf.mxu0
  %v4204 = vadd.f32 0.0, %v4203
  %v4205 = vpop.f32.mrf.mxu0
  %4206 = vmatprep.mubr.f32.mxu0 0.0
  %4207 = vmatmul.mubr.f32.gmra.mxu0 %v3977
  %v4208 = vpop.f32.mrf.mxu0
  %v4209 = vadd.f32 0.0, %v4208
  %v4210 = vpop.f32.mrf.mxu0
  %4211 = vmatprep.mubr.f32.mxu0 0.0
  %4212 = vmatmul.mubr.f32.gmra.mxu0 %v3979
  %v4213 = vpop.f32.mrf.mxu0
  %v4214 = vadd.f32 0.0, %v4213
  %v4215 = vpop.f32.mrf.mxu0
  %4216 = vmatprep.mubr.f32.mxu0 0.0
  %4217 = vmatmul.mubr.f32.gmra.mxu0 %v3981
  %v4218 = vpop.f32.mrf.mxu0
  %v4219 = vadd.f32 0.0, %v4218
  %v4220 = vpop.f32.mrf.mxu0
  %4221 = vmatprep.mubr.f32.mxu0 0.0
  %4222 = vmatmul.mubr.f32.gmra.mxu0 %v3983
  %v4223 = vpop.f32.mrf.mxu0
  %v4224 = vadd.f32 0.0, %v4223
  %v4225 = vpop.f32.mrf.mxu0
  %4226 = vmatprep.mubr.f32.mxu0 0.0
  %4227 = vmatmul.mubr.f32.gmra.mxu0 %v3985
  %v4228 = vpop.f32.mrf.mxu0
  %v4229 = vadd.f32 0.0, %v4228
  %v4230 = vpop.f32.mrf.mxu0
  %4231 = vmatprep.mubr.f32.mxu0 0.0
  %4232 = vmatmul.mubr.f32.gmra.mxu0 %v3987
  %v4233 = vpop.f32.mrf.mxu0
  %v4234 = vadd.f32 0.0, %v4233
  %v4235 = vpop.f32.mrf.mxu0
  %4236 = vmatprep.mubr.f32.mxu0 0.0
  %4237 = vmatmul.mubr.f32.gmra.mxu0 %v3989
  %v4238 = vpop.f32.mrf.mxu0
  %v4239 = vadd.f32 0.0, %v4238
  %v4240 = vpop.f32.mrf.mxu0
  %4241 = vmatprep.mubr.f32.mxu0 0.0
  %4242 = vmatmul.mubr.f32.gmra.mxu0 %v3991
  %v4243 = vpop.f32.mrf.mxu0
  %v4244 = vadd.f32 0.0, %v4243
  %v4245 = vpop.f32.mrf.mxu0
  %4246 = vmatprep.mubr.f32.mxu0 0.0
  %4247 = vmatmul.mubr.f32.gmra.mxu0 %v3993
  %v4248 = vpop.f32.mrf.mxu0
  %v4249 = vadd.f32 0.0, %v4248
  %v4250 = vpop.f32.mrf.mxu0
  %4251 = vmatprep.mubr.f32.mxu0 0.0
  %4252 = vmatmul.mubr.f32.gmra.mxu0 %v3995
  %v4253 = vpop.f32.mrf.mxu0
  %v4254 = vadd.f32 0.0, %v4253
  %v4255 = vpop.f32.mrf.mxu0
  %4256 = vmatprep.mubr.f32.mxu0 0.0
  %4257 = vmatmul.mubr.f32.gmra.mxu0 %v3997
  %v4258 = vpop.f32.mrf.mxu0
  %v4259 = vadd.f32 0.0, %v4258
  %v4260 = vpop.f32.mrf.mxu0
  %4261 = vmatprep.mubr.f32.mxu0 0.0
  %4262 = vmatmul.mubr.f32.gmra.mxu0 %v3999
  %v4263 = vpop.f32.mrf.mxu0
  %v4264 = vadd.f32 0.0, %v4263
  %v4265 = vpop.f32.mrf.mxu0
  %4266 = vmatprep.mubr.f32.mxu0 0.0
  %4267 = vmatmul.mubr.f32.gmra.mxu0 %v4001
  %v4268 = vpop.f32.mrf.mxu0
  %v4269 = vadd.f32 0.0, %v4268
  %v4270 = vpop.f32.mrf.mxu0
  %4271 = vmatprep.mubr.f32.mxu0 0.0
  %4272 = vmatmul.mubr.f32.gmra.mxu0 %v4003
  %v4273 = vpop.f32.mrf.mxu0
  %v4274 = vadd.f32 0.0, %v4273
  %v4275 = vpop.f32.mrf.mxu0
  %4276 = vdwg.mxu0
  %v4277 = vrcp.pop %v4005
  %v4278 = vrcp.pop %v4007
  %v4279 = vrcp.pop %v4009
  %v4280 = vrcp.pop %v4011
  %v4281 = vrcp.pop %v4013
  %v4282 = vrcp.pop %v4015
  %v4283 = vrcp.pop %v4017
  %v4284 = vrcp.pop %v4019
  %v4285 = vrcp.pop %v4021
  %v4286 = vrcp.pop %v4023
  %v4287 = vrcp.pop %v4025
  %v4288 = vrcp.pop %v4027
  %v4289 = vrcp.pop %v4029
  %v4290 = vrcp.pop %v4031
  %v4291 = vrcp.pop %v4033
  %v4292 = vrcp.pop %v4035
  %v4293 = vmul.f32 %v4199, %v4277
  %v4294 = vmul.f32 %v4204, %v4278
  %v4295 = vmul.f32 %v4209, %v4279
  %v4296 = vmul.f32 %v4214, %v4280
  %v4297 = vmul.f32 %v4219, %v4281
  %v4298 = vmul.f32 %v4224, %v4282
  %v4299 = vmul.f32 %v4229, %v4283
  %v4300 = vmul.f32 %v4234, %v4284
  %v4301 = vmul.f32 %v4239, %v4285
  %v4302 = vmul.f32 %v4244, %v4286
  %v4303 = vmul.f32 %v4249, %v4287
  %v4304 = vmul.f32 %v4254, %v4288
  %v4305 = vmul.f32 %v4259, %v4289
  %v4306 = vmul.f32 %v4264, %v4290
  %v4307 = vmul.f32 %v4269, %v4291
  %v4308 = vmul.f32 %v4274, %v4292
  %s4309 = scalar_lea.vmem %s5, 2
  %v4310 = vld [vmem:[%s4309] sm:$0x1]
  %v4312 = vlaneseq
  %v4313 = vshrl.u32 %v4312, 7
  %v4314 = vsub.s32 0, %v4313
  %v4315 = vrot.slane %v4310, %v4314
  %v4317 = vadd.f32 %v4293, %v4315
  %v4318 = vadd.f32 %v4294, %v4315
  %v4319 = vadd.f32 %v4295, %v4315
  %v4320 = vadd.f32 %v4296, %v4315
  %v4321 = vadd.f32 %v4297, %v4315
  %v4322 = vadd.f32 %v4298, %v4315
  %v4323 = vadd.f32 %v4299, %v4315
  %v4324 = vadd.f32 %v4300, %v4315
  %v4325 = vadd.f32 %v4301, %v4315
  %v4326 = vadd.f32 %v4302, %v4315
  %v4327 = vadd.f32 %v4303, %v4315
  %v4328 = vadd.f32 %v4304, %v4315
  %v4329 = vadd.f32 %v4305, %v4315
  %v4330 = vadd.f32 %v4306, %v4315
  %v4331 = vadd.f32 %v4307, %v4315
  %v4332 = vadd.f32 %v4308, %v4315
  %4334 = vset.pattern.permute.xlu0 0
  %4335 = vperm.xlu0 %4334, %v4317
  %v4336 = vpop.permute.xlu0 %4335
  %4339 = vset.pattern.permute.xlu0 0
  %4340 = vperm.xlu0 %4339, %v4318
  %v4341 = vpop.permute.xlu0 %4340
  %4344 = vset.pattern.permute.xlu0 0
  %4345 = vperm.xlu0 %4344, %v4319
  %v4346 = vpop.permute.xlu0 %4345
  %4349 = vset.pattern.permute.xlu0 0
  %4350 = vperm.xlu0 %4349, %v4320
  %v4351 = vpop.permute.xlu0 %4350
  %4354 = vset.pattern.permute.xlu0 0
  %4355 = vperm.xlu0 %4354, %v4321
  %v4356 = vpop.permute.xlu0 %4355
  %4359 = vset.pattern.permute.xlu0 0
  %4360 = vperm.xlu0 %4359, %v4322
  %v4361 = vpop.permute.xlu0 %4360
  %4364 = vset.pattern.permute.xlu0 0
  %4365 = vperm.xlu0 %4364, %v4323
  %v4366 = vpop.permute.xlu0 %4365
  %4369 = vset.pattern.permute.xlu0 0
  %4370 = vperm.xlu0 %4369, %v4324
  %v4371 = vpop.permute.xlu0 %4370
  %4374 = vset.pattern.permute.xlu0 0
  %4375 = vperm.xlu0 %4374, %v4325
  %v4376 = vpop.permute.xlu0 %4375
  %4379 = vset.pattern.permute.xlu0 0
  %4380 = vperm.xlu0 %4379, %v4326
  %v4381 = vpop.permute.xlu0 %4380
  %4384 = vset.pattern.permute.xlu0 0
  %4385 = vperm.xlu0 %4384, %v4327
  %v4386 = vpop.permute.xlu0 %4385
  %4389 = vset.pattern.permute.xlu0 0
  %4390 = vperm.xlu0 %4389, %v4328
  %v4391 = vpop.permute.xlu0 %4390
  %4394 = vset.pattern.permute.xlu0 0
  %4395 = vperm.xlu0 %4394, %v4329
  %v4396 = vpop.permute.xlu0 %4395
  %4399 = vset.pattern.permute.xlu0 0
  %4400 = vperm.xlu0 %4399, %v4330
  %v4401 = vpop.permute.xlu0 %4400
  %4404 = vset.pattern.permute.xlu0 0
  %4405 = vperm.xlu0 %4404, %v4331
  %v4406 = vpop.permute.xlu0 %4405
  %4409 = vset.pattern.permute.xlu0 0
  %4410 = vperm.xlu0 %4409, %v4332
  %v4411 = vpop.permute.xlu0 %4410
  %v4413 = vadd.f32 %v3577, %v4336
  %v4414 = vadd.f32 %v3578, %v4341
  %v4415 = vadd.f32 %v3579, %v4346
  %v4416 = vadd.f32 %v3580, %v4351
  %v4417 = vadd.f32 %v3581, %v4356
  %v4418 = vadd.f32 %v3582, %v4361
  %v4419 = vadd.f32 %v3583, %v4366
  %v4420 = vadd.f32 %v3584, %v4371
  %v4421 = vadd.f32 %v3585, %v4376
  %v4422 = vadd.f32 %v3586, %v4381
  %v4423 = vadd.f32 %v3587, %v4386
  %v4424 = vadd.f32 %v3588, %v4391
  %v4425 = vadd.f32 %v3589, %v4396
  %v4426 = vadd.f32 %v3590, %v4401
  %v4427 = vadd.f32 %v3591, %v4406
  %v4428 = vadd.f32 %v3592, %v4411
  %s4429 = scalar_lea.vmem %s6, 2
  %v4430 = vld [vmem:[%s4429] sm:$0x1]
  %s4431 = scalar_lea.vmem %s7, 2
  %v4432 = vld [vmem:[%s4431] sm:$0x1]
  %v4433 = vsel %vm98, %v4413, 0.0
  %4434 = vadd.xlane.f32.xlu0 %v4433
  %v4435 = vpop.xlane.xlu0 %4434
  %v4436 = vsel %vm98, %v4414, 0.0
  %4437 = vadd.xlane.f32.xlu0 %v4436
  %v4438 = vpop.xlane.xlu0 %4437
  %v4439 = vsel %vm98, %v4415, 0.0
  %4440 = vadd.xlane.f32.xlu0 %v4439
  %v4441 = vpop.xlane.xlu0 %4440
  %v4442 = vsel %vm98, %v4416, 0.0
  %4443 = vadd.xlane.f32.xlu0 %v4442
  %v4444 = vpop.xlane.xlu0 %4443
  %v4445 = vsel %vm98, %v4417, 0.0
  %4446 = vadd.xlane.f32.xlu0 %v4445
  %v4447 = vpop.xlane.xlu0 %4446
  %v4448 = vsel %vm98, %v4418, 0.0
  %4449 = vadd.xlane.f32.xlu0 %v4448
  %v4450 = vpop.xlane.xlu0 %4449
  %v4451 = vsel %vm98, %v4419, 0.0
  %4452 = vadd.xlane.f32.xlu0 %v4451
  %v4453 = vpop.xlane.xlu0 %4452
  %v4454 = vsel %vm98, %v4420, 0.0
  %4455 = vadd.xlane.f32.xlu0 %v4454
  %v4456 = vpop.xlane.xlu0 %4455
  %v4457 = vsel %vm98, %v4421, 0.0
  %4458 = vadd.xlane.f32.xlu0 %v4457
  %v4459 = vpop.xlane.xlu0 %4458
  %v4460 = vsel %vm98, %v4422, 0.0
  %4461 = vadd.xlane.f32.xlu0 %v4460
  %v4462 = vpop.xlane.xlu0 %4461
  %v4463 = vsel %vm98, %v4423, 0.0
  %4464 = vadd.xlane.f32.xlu0 %v4463
  %v4465 = vpop.xlane.xlu0 %4464
  %v4466 = vsel %vm98, %v4424, 0.0
  %4467 = vadd.xlane.f32.xlu0 %v4466
  %v4468 = vpop.xlane.xlu0 %4467
  %v4469 = vsel %vm98, %v4425, 0.0
  %4470 = vadd.xlane.f32.xlu0 %v4469
  %v4471 = vpop.xlane.xlu0 %4470
  %v4472 = vsel %vm98, %v4426, 0.0
  %4473 = vadd.xlane.f32.xlu0 %v4472
  %v4474 = vpop.xlane.xlu0 %4473
  %v4475 = vsel %vm98, %v4427, 0.0
  %4476 = vadd.xlane.f32.xlu0 %v4475
  %v4477 = vpop.xlane.xlu0 %4476
  %v4478 = vsel %vm98, %v4428, 0.0
  %4479 = vadd.xlane.f32.xlu0 %v4478
  %v4480 = vpop.xlane.xlu0 %4479
  %v4481 = vmul.f32 %v4435, %v949
  %v4482 = vmul.f32 %v4438, %v949
  %v4483 = vmul.f32 %v4441, %v949
  %v4484 = vmul.f32 %v4444, %v949
  %v4485 = vmul.f32 %v4447, %v949
  %v4486 = vmul.f32 %v4450, %v949
  %v4487 = vmul.f32 %v4453, %v949
  %v4488 = vmul.f32 %v4456, %v949
  %v4489 = vmul.f32 %v4459, %v949
  %v4490 = vmul.f32 %v4462, %v949
  %v4491 = vmul.f32 %v4465, %v949
  %v4492 = vmul.f32 %v4468, %v949
  %v4493 = vmul.f32 %v4471, %v949
  %v4494 = vmul.f32 %v4474, %v949
  %v4495 = vmul.f32 %v4477, %v949
  %v4496 = vmul.f32 %v4480, %v949
  %v4497 = vmul.f32 %v4413, %v4413
  %v4498 = vmul.f32 %v4414, %v4414
  %v4499 = vmul.f32 %v4415, %v4415
  %v4500 = vmul.f32 %v4416, %v4416
  %v4501 = vmul.f32 %v4417, %v4417
  %v4502 = vmul.f32 %v4418, %v4418
  %v4503 = vmul.f32 %v4419, %v4419
  %v4504 = vmul.f32 %v4420, %v4420
  %v4505 = vmul.f32 %v4421, %v4421
  %v4506 = vmul.f32 %v4422, %v4422
  %v4507 = vmul.f32 %v4423, %v4423
  %v4508 = vmul.f32 %v4424, %v4424
  %v4509 = vmul.f32 %v4425, %v4425
  %v4510 = vmul.f32 %v4426, %v4426
  %v4511 = vmul.f32 %v4427, %v4427
  %v4512 = vmul.f32 %v4428, %v4428
  %v4513 = vsel %vm98, %v4497, 0.0
  %4514 = vadd.xlane.f32.xlu0 %v4513
  %v4515 = vpop.xlane.xlu0 %4514
  %v4516 = vsel %vm98, %v4498, 0.0
  %4517 = vadd.xlane.f32.xlu0 %v4516
  %v4518 = vpop.xlane.xlu0 %4517
  %v4519 = vsel %vm98, %v4499, 0.0
  %4520 = vadd.xlane.f32.xlu0 %v4519
  %v4521 = vpop.xlane.xlu0 %4520
  %v4522 = vsel %vm98, %v4500, 0.0
  %4523 = vadd.xlane.f32.xlu0 %v4522
  %v4524 = vpop.xlane.xlu0 %4523
  %v4525 = vsel %vm98, %v4501, 0.0
  %4526 = vadd.xlane.f32.xlu0 %v4525
  %v4527 = vpop.xlane.xlu0 %4526
  %v4528 = vsel %vm98, %v4502, 0.0
  %4529 = vadd.xlane.f32.xlu0 %v4528
  %v4530 = vpop.xlane.xlu0 %4529
  %v4531 = vsel %vm98, %v4503, 0.0
  %4532 = vadd.xlane.f32.xlu0 %v4531
  %v4533 = vpop.xlane.xlu0 %4532
  %v4534 = vsel %vm98, %v4504, 0.0
  %4535 = vadd.xlane.f32.xlu0 %v4534
  %v4536 = vpop.xlane.xlu0 %4535
  %v4537 = vsel %vm98, %v4505, 0.0
  %4538 = vadd.xlane.f32.xlu0 %v4537
  %v4539 = vpop.xlane.xlu0 %4538
  %v4540 = vsel %vm98, %v4506, 0.0
  %4541 = vadd.xlane.f32.xlu0 %v4540
  %v4542 = vpop.xlane.xlu0 %4541
  %v4543 = vsel %vm98, %v4507, 0.0
  %4544 = vadd.xlane.f32.xlu0 %v4543
  %v4545 = vpop.xlane.xlu0 %4544
  %v4546 = vsel %vm98, %v4508, 0.0
  %4547 = vadd.xlane.f32.xlu0 %v4546
  %v4548 = vpop.xlane.xlu0 %4547
  %v4549 = vsel %vm98, %v4509, 0.0
  %4550 = vadd.xlane.f32.xlu0 %v4549
  %v4551 = vpop.xlane.xlu0 %4550
  %v4552 = vsel %vm98, %v4510, 0.0
  %4553 = vadd.xlane.f32.xlu0 %v4552
  %v4554 = vpop.xlane.xlu0 %4553
  %v4555 = vsel %vm98, %v4511, 0.0
  %4556 = vadd.xlane.f32.xlu0 %v4555
  %v4557 = vpop.xlane.xlu0 %4556
  %v4558 = vsel %vm98, %v4512, 0.0
  %4559 = vadd.xlane.f32.xlu0 %v4558
  %v4560 = vpop.xlane.xlu0 %4559
  %v4561 = vmul.f32 %v4515, %v949
  %v4562 = vmul.f32 %v4518, %v949
  %v4563 = vmul.f32 %v4521, %v949
  %v4564 = vmul.f32 %v4524, %v949
  %v4565 = vmul.f32 %v4527, %v949
  %v4566 = vmul.f32 %v4530, %v949
  %v4567 = vmul.f32 %v4533, %v949
  %v4568 = vmul.f32 %v4536, %v949
  %v4569 = vmul.f32 %v4539, %v949
  %v4570 = vmul.f32 %v4542, %v949
  %v4571 = vmul.f32 %v4545, %v949
  %v4572 = vmul.f32 %v4548, %v949
  %v4573 = vmul.f32 %v4551, %v949
  %v4574 = vmul.f32 %v4554, %v949
  %v4575 = vmul.f32 %v4557, %v949
  %v4576 = vmul.f32 %v4560, %v949
  %v4577 = vmul.f32 %v4481, %v4481
  %v4578 = vmul.f32 %v4482, %v4482
  %v4579 = vmul.f32 %v4483, %v4483
  %v4580 = vmul.f32 %v4484, %v4484
  %v4581 = vmul.f32 %v4485, %v4485
  %v4582 = vmul.f32 %v4486, %v4486
  %v4583 = vmul.f32 %v4487, %v4487
  %v4584 = vmul.f32 %v4488, %v4488
  %v4585 = vmul.f32 %v4489, %v4489
  %v4586 = vmul.f32 %v4490, %v4490
  %v4587 = vmul.f32 %v4491, %v4491
  %v4588 = vmul.f32 %v4492, %v4492
  %v4589 = vmul.f32 %v4493, %v4493
  %v4590 = vmul.f32 %v4494, %v4494
  %v4591 = vmul.f32 %v4495, %v4495
  %v4592 = vmul.f32 %v4496, %v4496
  %v4593 = vsub.f32 %v4561, %v4577
  %v4594 = vsub.f32 %v4562, %v4578
  %v4595 = vsub.f32 %v4563, %v4579
  %v4596 = vsub.f32 %v4564, %v4580
  %v4597 = vsub.f32 %v4565, %v4581
  %v4598 = vsub.f32 %v4566, %v4582
  %v4599 = vsub.f32 %v4567, %v4583
  %v4600 = vsub.f32 %v4568, %v4584
  %v4601 = vsub.f32 %v4569, %v4585
  %v4602 = vsub.f32 %v4570, %v4586
  %v4603 = vsub.f32 %v4571, %v4587
  %v4604 = vsub.f32 %v4572, %v4588
  %v4605 = vsub.f32 %v4573, %v4589
  %v4606 = vsub.f32 %v4574, %v4590
  %v4607 = vsub.f32 %v4575, %v4591
  %v4608 = vsub.f32 %v4576, %v4592
  %v4609 = vsub.f32 %v4413, %v4481
  %v4610 = vsub.f32 %v4414, %v4482
  %v4611 = vsub.f32 %v4415, %v4483
  %v4612 = vsub.f32 %v4416, %v4484
  %v4613 = vsub.f32 %v4417, %v4485
  %v4614 = vsub.f32 %v4418, %v4486
  %v4615 = vsub.f32 %v4419, %v4487
  %v4616 = vsub.f32 %v4420, %v4488
  %v4617 = vsub.f32 %v4421, %v4489
  %v4618 = vsub.f32 %v4422, %v4490
  %v4619 = vsub.f32 %v4423, %v4491
  %v4620 = vsub.f32 %v4424, %v4492
  %v4621 = vsub.f32 %v4425, %v4493
  %v4622 = vsub.f32 %v4426, %v4494
  %v4623 = vsub.f32 %v4427, %v4495
  %v4624 = vsub.f32 %v4428, %v4496
  %v4625 = vadd.f32 %v4593, 1e-05
  %v4626 = vadd.f32 %v4594, 1e-05
  %v4627 = vadd.f32 %v4595, 1e-05
  %v4628 = vadd.f32 %v4596, 1e-05
  %v4629 = vadd.f32 %v4597, 1e-05
  %v4630 = vadd.f32 %v4598, 1e-05
  %v4631 = vadd.f32 %v4599, 1e-05
  %v4632 = vadd.f32 %v4600, 1e-05
  %v4633 = vadd.f32 %v4601, 1e-05
  %v4634 = vadd.f32 %v4602, 1e-05
  %v4635 = vadd.f32 %v4603, 1e-05
  %v4636 = vadd.f32 %v4604, 1e-05
  %v4637 = vadd.f32 %v4605, 1e-05
  %v4638 = vadd.f32 %v4606, 1e-05
  %v4639 = vadd.f32 %v4607, 1e-05
  %v4640 = vadd.f32 %v4608, 1e-05
  %v4641 = vrsqrt.pop %v4625
  %v4642 = vrsqrt.pop %v4626
  %v4643 = vrsqrt.pop %v4627
  %v4644 = vrsqrt.pop %v4628
  %v4645 = vrsqrt.pop %v4629
  %v4646 = vrsqrt.pop %v4630
  %v4647 = vrsqrt.pop %v4631
  %v4648 = vrsqrt.pop %v4632
  %v4649 = vrsqrt.pop %v4633
  %v4650 = vrsqrt.pop %v4634
  %v4651 = vrsqrt.pop %v4635
  %v4652 = vrsqrt.pop %v4636
  %v4653 = vrsqrt.pop %v4637
  %v4654 = vrsqrt.pop %v4638
  %v4655 = vrsqrt.pop %v4639
  %v4656 = vrsqrt.pop %v4640
  %v4657 = vmul.f32 %v4609, %v4641
  %v4658 = vmul.f32 %v4610, %v4642
  %v4659 = vmul.f32 %v4611, %v4643
  %v4660 = vmul.f32 %v4612, %v4644
  %v4661 = vmul.f32 %v4613, %v4645
  %v4662 = vmul.f32 %v4614, %v4646
  %v4663 = vmul.f32 %v4615, %v4647
  %v4664 = vmul.f32 %v4616, %v4648
  %v4665 = vmul.f32 %v4617, %v4649
  %v4666 = vmul.f32 %v4618, %v4650
  %v4667 = vmul.f32 %v4619, %v4651
  %v4668 = vmul.f32 %v4620, %v4652
  %v4669 = vmul.f32 %v4621, %v4653
  %v4670 = vmul.f32 %v4622, %v4654
  %v4671 = vmul.f32 %v4623, %v4655
  %v4672 = vmul.f32 %v4624, %v4656
  %v4674 = vlaneseq
  %v4675 = vshrl.u32 %v4674, 7
  %v4676 = vsub.s32 0, %v4675
  %v4677 = vrot.slane %v4430, %v4676
  %v4679 = vmul.f32 %v4657, %v4677
  %v4680 = vmul.f32 %v4658, %v4677
  %v4681 = vmul.f32 %v4659, %v4677
  %v4682 = vmul.f32 %v4660, %v4677
  %v4683 = vmul.f32 %v4661, %v4677
  %v4684 = vmul.f32 %v4662, %v4677
  %v4685 = vmul.f32 %v4663, %v4677
  %v4686 = vmul.f32 %v4664, %v4677
  %v4687 = vmul.f32 %v4665, %v4677
  %v4688 = vmul.f32 %v4666, %v4677
  %v4689 = vmul.f32 %v4667, %v4677
  %v4690 = vmul.f32 %v4668, %v4677
  %v4691 = vmul.f32 %v4669, %v4677
  %v4692 = vmul.f32 %v4670, %v4677
  %v4693 = vmul.f32 %v4671, %v4677
  %v4694 = vmul.f32 %v4672, %v4677
  %v4696 = vlaneseq
  %v4697 = vshrl.u32 %v4696, 7
  %v4698 = vsub.s32 0, %v4697
  %v4699 = vrot.slane %v4432, %v4698
  %v4701 = vadd.f32 %v4679, %v4699
  %v4702 = vadd.f32 %v4680, %v4699
  %v4703 = vadd.f32 %v4681, %v4699
  %v4704 = vadd.f32 %v4682, %v4699
  %v4705 = vadd.f32 %v4683, %v4699
  %v4706 = vadd.f32 %v4684, %v4699
  %v4707 = vadd.f32 %v4685, %v4699
  %v4708 = vadd.f32 %v4686, %v4699
  %v4709 = vadd.f32 %v4687, %v4699
  %v4710 = vadd.f32 %v4688, %v4699
  %v4711 = vadd.f32 %v4689, %v4699
  %v4712 = vadd.f32 %v4690, %v4699
  %v4713 = vadd.f32 %v4691, %v4699
  %v4714 = vadd.f32 %v4692, %v4699
  %v4715 = vadd.f32 %v4693, %v4699
  %v4716 = vadd.f32 %v4694, %v4699
  %v4717 = vpack.c.bf16 %v4702, %v4701
  %v4718 = vpack.c.bf16 %v4704, %v4703
  %v4719 = vpack.c.bf16 %v4706, %v4705
  %v4720 = vpack.c.bf16 %v4708, %v4707
  %v4721 = vpack.c.bf16 %v4710, %v4709
  %v4722 = vpack.c.bf16 %v4712, %v4711
  %v4723 = vpack.c.bf16 %v4714, %v4713
  %v4724 = vpack.c.bf16 %v4716, %v4715
  %s4725 = scalar_lea.vmem %s8, 32
  %v4726 = vld [vmem:[%s4725] sm:$0xf]
  %v4727 = vld [vmem:[%s4725 + $0x4] sm:$0xf]
  %v4728 = vld [vmem:[%s4725 + $0x8] sm:$0xf]
  %v4729 = vld [vmem:[%s4725 + $0xc] sm:$0xf]
  %s4730 = scalar_lea.vmem %s9, 2
  %v4731 = vld [vmem:[%s4730] sm:$0x1]
  %v4733 = vlaneseq
  %v4734 = vshrl.u32 %v4733, 7
  %v4735 = vsub.s32 0, %v4734
  %v4736 = vrot.slane %v4731, %v4735
  %v4742 = vunpack.c.l.b16 %v4726
  %v4743 = vunpack.c.l.b16 %v4727
  %v4744 = vunpack.c.l.b16 %v4728
  %v4745 = vunpack.c.l.b16 %v4729
  %v4746 = vpack.c.b16 %v4743, %v4742
  %v4747 = vpack.c.b16 %v4745, %v4744
  %v4751 = vsel %vm98, %v4717, 0
  %v4754 = vsel %vm98, %v4718, 0
  %v4757 = vsel %vm98, %v4719, 0
  %v4760 = vsel %vm98, %v4720, 0
  %v4763 = vsel %vm98, %v4721, 0
  %v4766 = vsel %vm98, %v4722, 0
  %v4769 = vsel %vm98, %v4723, 0
  %v4772 = vsel %vm98, %v4724, 0
  %4774 = vmatprep.subr.bf16.mxu0 0
  %4775 = vmatpush1.bf16.msra.mxu0 0
  %4776 = vmatprep.subr.bf16.mxu0 0
  %4777 = vmatpush1.bf16.msra.mxu0 0
  %4778 = vmatprep.subr.bf16.mxu0 0
  %4779 = vmatpush1.bf16.msra.mxu0 0
  %4780 = vmatprep.subr.bf16.mxu0 0
  %4781 = vmatpush1.bf16.msra.mxu0 0
  %4782 = vmatprep.subr.bf16.mxu0 0
  %4783 = vmatpush1.bf16.msra.mxu0 0
  %4784 = vmatprep.subr.bf16.mxu0 0
  %4785 = vmatpush1.bf16.msra.mxu0 0
  %4786 = vmatprep.subr.bf16.mxu0 0
  %4787 = vmatpush1.bf16.msra.mxu0 %v4747
  %4788 = vmatprep.subr.bf16.mxu0 0
  %4789 = vmatpush1.bf16.msra.mxu0 %v4746
  %4790 = vmatprep.subr.bf16.mxu0 0
  %4791 = vmatpush2.bf16.msra.mxu0 0
  %4792 = vmatprep.subr.bf16.mxu0 0
  %4793 = vmatpush2.bf16.msra.mxu0 0
  %4794 = vmatprep.subr.bf16.mxu0 0
  %4795 = vmatpush2.bf16.msra.mxu0 0
  %4796 = vmatprep.subr.bf16.mxu0 0
  %4797 = vmatpush2.bf16.msra.mxu0 0
  %4798 = vmatprep.subr.bf16.mxu0 0
  %4799 = vmatpush2.bf16.msra.mxu0 0
  %4800 = vmatprep.subr.bf16.mxu0 0
  %4801 = vmatpush2.bf16.msra.mxu0 0
  %4802 = vmatprep.subr.bf16.mxu0 0
  %4803 = vmatpush2.bf16.msra.mxu0 0
  %4804 = vmatprep.subr.bf16.mxu0 0
  %4805 = vmatpush2.bf16.msra.mxu0 0
  %4806 = vmatprep.mubr.bf16.mxu0 0
  %4807 = vmatmul.mubr.bf16.gmra.mxu0 %v4751
  %v4808 = vpop.f32.mrf.mxu0
  %v4809 = vadd.f32 %v4736, %v4808
  %v4810 = vpop.f32.mrf.mxu0
  %v4811 = vpop.f32.mrf.mxu0
  %v4812 = vadd.f32 %v4736, %v4811
  %v4813 = vpop.f32.mrf.mxu0
  %4814 = vmatprep.mubr.bf16.mxu0 0
  %4815 = vmatmul.mubr.bf16.gmra.mxu0 %v4754
  %v4816 = vpop.f32.mrf.mxu0
  %v4817 = vadd.f32 %v4736, %v4816
  %v4818 = vpop.f32.mrf.mxu0
  %v4819 = vpop.f32.mrf.mxu0
  %v4820 = vadd.f32 %v4736, %v4819
  %v4821 = vpop.f32.mrf.mxu0
  %4822 = vmatprep.mubr.bf16.mxu0 0
  %4823 = vmatmul.mubr.bf16.gmra.mxu0 %v4757
  %v4824 = vpop.f32.mrf.mxu0
  %v4825 = vadd.f32 %v4736, %v4824
  %v4826 = vpop.f32.mrf.mxu0
  %v4827 = vpop.f32.mrf.mxu0
  %v4828 = vadd.f32 %v4736, %v4827
  %v4829 = vpop.f32.mrf.mxu0
  %4830 = vmatprep.mubr.bf16.mxu0 0
  %4831 = vmatmul.mubr.bf16.gmra.mxu0 %v4760
  %v4832 = vpop.f32.mrf.mxu0
  %v4833 = vadd.f32 %v4736, %v4832
  %v4834 = vpop.f32.mrf.mxu0
  %v4835 = vpop.f32.mrf.mxu0
  %v4836 = vadd.f32 %v4736, %v4835
  %v4837 = vpop.f32.mrf.mxu0
  %4838 = vmatprep.mubr.bf16.mxu0 0
  %4839 = vmatmul.mubr.bf16.gmra.mxu0 %v4763
  %v4840 = vpop.f32.mrf.mxu0
  %v4841 = vadd.f32 %v4736, %v4840
  %v4842 = vpop.f32.mrf.mxu0
  %v4843 = vpop.f32.mrf.mxu0
  %v4844 = vadd.f32 %v4736, %v4843
  %v4845 = vpop.f32.mrf.mxu0
  %4846 = vmatprep.mubr.bf16.mxu0 0
  %4847 = vmatmul.mubr.bf16.gmra.mxu0 %v4766
  %v4848 = vpop.f32.mrf.mxu0
  %v4849 = vadd.f32 %v4736, %v4848
  %v4850 = vpop.f32.mrf.mxu0
  %v4851 = vpop.f32.mrf.mxu0
  %v4852 = vadd.f32 %v4736, %v4851
  %v4853 = vpop.f32.mrf.mxu0
  %4854 = vmatprep.mubr.bf16.mxu0 0
  %4855 = vmatmul.mubr.bf16.gmra.mxu0 %v4769
  %v4856 = vpop.f32.mrf.mxu0
  %v4857 = vadd.f32 %v4736, %v4856
  %v4858 = vpop.f32.mrf.mxu0
  %v4859 = vpop.f32.mrf.mxu0
  %v4860 = vadd.f32 %v4736, %v4859
  %v4861 = vpop.f32.mrf.mxu0
  %4862 = vmatprep.mubr.bf16.mxu0 0
  %4863 = vmatmul.mubr.bf16.gmra.mxu0 %v4772
  %v4864 = vpop.f32.mrf.mxu0
  %v4865 = vadd.f32 %v4736, %v4864
  %v4866 = vpop.f32.mrf.mxu0
  %v4867 = vpop.f32.mrf.mxu0
  %v4868 = vadd.f32 %v4736, %v4867
  %v4869 = vpop.f32.mrf.mxu0
  %4870 = vdwg.mxu0
  %v4871 = vmax.f32 %v4809, 0.0
  %v4872 = vmax.f32 %v4812, 0.0
  %v4873 = vmax.f32 %v4817, 0.0
  %v4874 = vmax.f32 %v4820, 0.0
  %v4875 = vmax.f32 %v4825, 0.0
  %v4876 = vmax.f32 %v4828, 0.0
  %v4877 = vmax.f32 %v4833, 0.0
  %v4878 = vmax.f32 %v4836, 0.0
  %v4879 = vmax.f32 %v4841, 0.0
  %v4880 = vmax.f32 %v4844, 0.0
  %v4881 = vmax.f32 %v4849, 0.0
  %v4882 = vmax.f32 %v4852, 0.0
  %v4883 = vmax.f32 %v4857, 0.0
  %v4884 = vmax.f32 %v4860, 0.0
  %v4885 = vmax.f32 %v4865, 0.0
  %v4886 = vmax.f32 %v4868, 0.0
  %v4887 = vpack.c.bf16 %v4872, %v4871
  %v4888 = vpack.c.bf16 %v4874, %v4873
  %v4889 = vpack.c.bf16 %v4876, %v4875
  %v4890 = vpack.c.bf16 %v4878, %v4877
  %v4891 = vpack.c.bf16 %v4880, %v4879
  %v4892 = vpack.c.bf16 %v4882, %v4881
  %v4893 = vpack.c.bf16 %v4884, %v4883
  %v4894 = vpack.c.bf16 %v4886, %v4885
  %s4895 = scalar_lea.vmem %s10, 64
  %v4896 = vld [vmem:[%s4895] sm:$0xf]
  %v4897 = vld [vmem:[%s4895 + $0x4] sm:$0xf]
  %v4898 = vld [vmem:[%s4895 + $0x8] sm:$0xf]
  %v4899 = vld [vmem:[%s4895 + $0xc] sm:$0xf]
  %v4900 = vld [vmem:[%s4895 + $0x10] sm:$0xf]
  %v4901 = vld [vmem:[%s4895 + $0x14] sm:$0xf]
  %v4902 = vld [vmem:[%s4895 + $0x18] sm:$0xf]
  %v4903 = vld [vmem:[%s4895 + $0x1c] sm:$0xf]
  %s4904 = scalar_lea.vmem %s11, 2
  %v4905 = vld [vmem:[%s4904] sm:$0x1]
  %v4907 = vlaneseq
  %v4908 = vshrl.u32 %v4907, 7
  %v4909 = vsub.s32 0, %v4908
  %v4910 = vrot.slane %v4905, %v4909
  %v4920 = vunpack.c.l.b16 %v4896
  %v4921 = vunpack.c.l.b16 %v4897
  %v4922 = vunpack.c.l.b16 %v4898
  %v4923 = vunpack.c.l.b16 %v4899
  %v4924 = vunpack.c.l.b16 %v4900
  %v4925 = vunpack.c.l.b16 %v4901
  %v4926 = vunpack.c.l.b16 %v4902
  %v4927 = vunpack.c.l.b16 %v4903
  %v4928 = vpack.c.b16 %v4921, %v4920
  %v4929 = vpack.c.b16 %v4923, %v4922
  %v4930 = vpack.c.b16 %v4925, %v4924
  %v4931 = vpack.c.b16 %v4927, %v4926
  %v4937 = vsel %vm1401, %v4887, 0
  %v4940 = vsel %vm1401, %v4888, 0
  %v4943 = vsel %vm1401, %v4889, 0
  %v4946 = vsel %vm1401, %v4890, 0
  %v4949 = vsel %vm1401, %v4891, 0
  %v4952 = vsel %vm1401, %v4892, 0
  %v4955 = vsel %vm1401, %v4893, 0
  %v4958 = vsel %vm1401, %v4894, 0
  %4960 = vmatprep.subr.bf16.mxu0 0
  %4961 = vmatpush1.bf16.msra.mxu0 0
  %4962 = vmatprep.subr.bf16.mxu0 0
  %4963 = vmatpush1.bf16.msra.mxu0 0
  %4964 = vmatprep.subr.bf16.mxu0 0
  %4965 = vmatpush1.bf16.msra.mxu0 0
  %4966 = vmatprep.subr.bf16.mxu0 0
  %4967 = vmatpush1.bf16.msra.mxu0 0
  %4968 = vmatprep.subr.bf16.mxu0 0
  %4969 = vmatpush1.bf16.msra.mxu0 %v4931
  %4970 = vmatprep.subr.bf16.mxu0 0
  %4971 = vmatpush1.bf16.msra.mxu0 %v4930
  %4972 = vmatprep.subr.bf16.mxu0 0
  %4973 = vmatpush1.bf16.msra.mxu0 %v4929
  %4974 = vmatprep.subr.bf16.mxu0 0
  %4975 = vmatpush1.bf16.msra.mxu0 %v4928
  %4976 = vmatprep.subr.bf16.mxu0 0
  %4977 = vmatpush2.bf16.msra.mxu0 0
  %4978 = vmatprep.subr.bf16.mxu0 0
  %4979 = vmatpush2.bf16.msra.mxu0 0
  %4980 = vmatprep.subr.bf16.mxu0 0
  %4981 = vmatpush2.bf16.msra.mxu0 0
  %4982 = vmatprep.subr.bf16.mxu0 0
  %4983 = vmatpush2.bf16.msra.mxu0 0
  %4984 = vmatprep.subr.bf16.mxu0 0
  %4985 = vmatpush2.bf16.msra.mxu0 0
  %4986 = vmatprep.subr.bf16.mxu0 0
  %4987 = vmatpush2.bf16.msra.mxu0 0
  %4988 = vmatprep.subr.bf16.mxu0 0
  %4989 = vmatpush2.bf16.msra.mxu0 0
  %4990 = vmatprep.subr.bf16.mxu0 0
  %4991 = vmatpush2.bf16.msra.mxu0 0
  %4992 = vmatprep.mubr.bf16.mxu0 0
  %4993 = vmatmul.mubr.bf16.gmra.mxu0 %v4937
  %v4994 = vpop.f32.mrf.mxu0
  %v4995 = vadd.f32 %v4910, %v4994
  %v4996 = vpop.f32.mrf.mxu0
  %v4997 = vpop.f32.mrf.mxu0
  %v4998 = vadd.f32 %v4910, %v4997
  %v4999 = vpop.f32.mrf.mxu0
  %5000 = vmatprep.mubr.bf16.mxu0 0
  %5001 = vmatmul.mubr.bf16.gmra.mxu0 %v4940
  %v5002 = vpop.f32.mrf.mxu0
  %v5003 = vadd.f32 %v4910, %v5002
  %v5004 = vpop.f32.mrf.mxu0
  %v5005 = vpop.f32.mrf.mxu0
  %v5006 = vadd.f32 %v4910, %v5005
  %v5007 = vpop.f32.mrf.mxu0
  %5008 = vmatprep.mubr.bf16.mxu0 0
  %5009 = vmatmul.mubr.bf16.gmra.mxu0 %v4943
  %v5010 = vpop.f32.mrf.mxu0
  %v5011 = vadd.f32 %v4910, %v5010
  %v5012 = vpop.f32.mrf.mxu0
  %v5013 = vpop.f32.mrf.mxu0
  %v5014 = vadd.f32 %v4910, %v5013
  %v5015 = vpop.f32.mrf.mxu0
  %5016 = vmatprep.mubr.bf16.mxu0 0
  %5017 = vmatmul.mubr.bf16.gmra.mxu0 %v4946
  %v5018 = vpop.f32.mrf.mxu0
  %v5019 = vadd.f32 %v4910, %v5018
  %v5020 = vpop.f32.mrf.mxu0
  %v5021 = vpop.f32.mrf.mxu0
  %v5022 = vadd.f32 %v4910, %v5021
  %v5023 = vpop.f32.mrf.mxu0
  %5024 = vmatprep.mubr.bf16.mxu0 0
  %5025 = vmatmul.mubr.bf16.gmra.mxu0 %v4949
  %v5026 = vpop.f32.mrf.mxu0
  %v5027 = vadd.f32 %v4910, %v5026
  %v5028 = vpop.f32.mrf.mxu0
  %v5029 = vpop.f32.mrf.mxu0
  %v5030 = vadd.f32 %v4910, %v5029
  %v5031 = vpop.f32.mrf.mxu0
  %5032 = vmatprep.mubr.bf16.mxu0 0
  %5033 = vmatmul.mubr.bf16.gmra.mxu0 %v4952
  %v5034 = vpop.f32.mrf.mxu0
  %v5035 = vadd.f32 %v4910, %v5034
  %v5036 = vpop.f32.mrf.mxu0
  %v5037 = vpop.f32.mrf.mxu0
  %v5038 = vadd.f32 %v4910, %v5037
  %v5039 = vpop.f32.mrf.mxu0
  %5040 = vmatprep.mubr.bf16.mxu0 0
  %5041 = vmatmul.mubr.bf16.gmra.mxu0 %v4955
  %v5042 = vpop.f32.mrf.mxu0
  %v5043 = vadd.f32 %v4910, %v5042
  %v5044 = vpop.f32.mrf.mxu0
  %v5045 = vpop.f32.mrf.mxu0
  %v5046 = vadd.f32 %v4910, %v5045
  %v5047 = vpop.f32.mrf.mxu0
  %5048 = vmatprep.mubr.bf16.mxu0 0
  %5049 = vmatmul.mubr.bf16.gmra.mxu0 %v4958
  %v5050 = vpop.f32.mrf.mxu0
  %v5051 = vadd.f32 %v4910, %v5050
  %v5052 = vpop.f32.mrf.mxu0
  %v5053 = vpop.f32.mrf.mxu0
  %v5054 = vadd.f32 %v4910, %v5053
  %v5055 = vpop.f32.mrf.mxu0
  %5056 = vdwg.mxu0
  %v5057 = vadd.f32 %v4701, %v4995
  %v5058 = vadd.f32 %v4702, %v4998
  %v5059 = vadd.f32 %v4703, %v5003
  %v5060 = vadd.f32 %v4704, %v5006
  %v5061 = vadd.f32 %v4705, %v5011
  %v5062 = vadd.f32 %v4706, %v5014
  %v5063 = vadd.f32 %v4707, %v5019
  %v5064 = vadd.f32 %v4708, %v5022
  %v5065 = vadd.f32 %v4709, %v5027
  %v5066 = vadd.f32 %v4710, %v5030
  %v5067 = vadd.f32 %v4711, %v5035
  %v5068 = vadd.f32 %v4712, %v5038
  %v5069 = vadd.f32 %v4713, %v5043
  %v5070 = vadd.f32 %v4714, %v5046
  %v5071 = vadd.f32 %v4715, %v5051
  %v5072 = vadd.f32 %v4716, %v5054
  %s5073 = scalar_lea.vmem %s12, 2
  %v5074 = vld [vmem:[%s5073] sm:$0x1]
  %s5075 = scalar_lea.vmem %s13, 2
  %v5076 = vld [vmem:[%s5075] sm:$0x1]
  %v5077 = vsel %vm98, %v5057, 0.0
  %5078 = vadd.xlane.f32.xlu0 %v5077
  %v5079 = vpop.xlane.xlu0 %5078
  %v5080 = vsel %vm98, %v5058, 0.0
  %5081 = vadd.xlane.f32.xlu0 %v5080
  %v5082 = vpop.xlane.xlu0 %5081
  %v5083 = vsel %vm98, %v5059, 0.0
  %5084 = vadd.xlane.f32.xlu0 %v5083
  %v5085 = vpop.xlane.xlu0 %5084
  %v5086 = vsel %vm98, %v5060, 0.0
  %5087 = vadd.xlane.f32.xlu0 %v5086
  %v5088 = vpop.xlane.xlu0 %5087
  %v5089 = vsel %vm98, %v5061, 0.0
  %5090 = vadd.xlane.f32.xlu0 %v5089
  %v5091 = vpop.xlane.xlu0 %5090
  %v5092 = vsel %vm98, %v5062, 0.0
  %5093 = vadd.xlane.f32.xlu0 %v5092
  %v5094 = vpop.xlane.xlu0 %5093
  %v5095 = vsel %vm98, %v5063, 0.0
  %5096 = vadd.xlane.f32.xlu0 %v5095
  %v5097 = vpop.xlane.xlu0 %5096
  %v5098 = vsel %vm98, %v5064, 0.0
  %5099 = vadd.xlane.f32.xlu0 %v5098
  %v5100 = vpop.xlane.xlu0 %5099
  %v5101 = vsel %vm98, %v5065, 0.0
  %5102 = vadd.xlane.f32.xlu0 %v5101
  %v5103 = vpop.xlane.xlu0 %5102
  %v5104 = vsel %vm98, %v5066, 0.0
  %5105 = vadd.xlane.f32.xlu0 %v5104
  %v5106 = vpop.xlane.xlu0 %5105
  %v5107 = vsel %vm98, %v5067, 0.0
  %5108 = vadd.xlane.f32.xlu0 %v5107
  %v5109 = vpop.xlane.xlu0 %5108
  %v5110 = vsel %vm98, %v5068, 0.0
  %5111 = vadd.xlane.f32.xlu0 %v5110
  %v5112 = vpop.xlane.xlu0 %5111
  %v5113 = vsel %vm98, %v5069, 0.0
  %5114 = vadd.xlane.f32.xlu0 %v5113
  %v5115 = vpop.xlane.xlu0 %5114
  %v5116 = vsel %vm98, %v5070, 0.0
  %5117 = vadd.xlane.f32.xlu0 %v5116
  %v5118 = vpop.xlane.xlu0 %5117
  %v5119 = vsel %vm98, %v5071, 0.0
  %5120 = vadd.xlane.f32.xlu0 %v5119
  %v5121 = vpop.xlane.xlu0 %5120
  %v5122 = vsel %vm98, %v5072, 0.0
  %5123 = vadd.xlane.f32.xlu0 %v5122
  %v5124 = vpop.xlane.xlu0 %5123
  %v5125 = vmul.f32 %v5079, %v949
  %v5126 = vmul.f32 %v5082, %v949
  %v5127 = vmul.f32 %v5085, %v949
  %v5128 = vmul.f32 %v5088, %v949
  %v5129 = vmul.f32 %v5091, %v949
  %v5130 = vmul.f32 %v5094, %v949
  %v5131 = vmul.f32 %v5097, %v949
  %v5132 = vmul.f32 %v5100, %v949
  %v5133 = vmul.f32 %v5103, %v949
  %v5134 = vmul.f32 %v5106, %v949
  %v5135 = vmul.f32 %v5109, %v949
  %v5136 = vmul.f32 %v5112, %v949
  %v5137 = vmul.f32 %v5115, %v949
  %v5138 = vmul.f32 %v5118, %v949
  %v5139 = vmul.f32 %v5121, %v949
  %v5140 = vmul.f32 %v5124, %v949
  %v5141 = vmul.f32 %v5057, %v5057
  %v5142 = vmul.f32 %v5058, %v5058
  %v5143 = vmul.f32 %v5059, %v5059
  %v5144 = vmul.f32 %v5060, %v5060
  %v5145 = vmul.f32 %v5061, %v5061
  %v5146 = vmul.f32 %v5062, %v5062
  %v5147 = vmul.f32 %v5063, %v5063
  %v5148 = vmul.f32 %v5064, %v5064
  %v5149 = vmul.f32 %v5065, %v5065
  %v5150 = vmul.f32 %v5066, %v5066
  %v5151 = vmul.f32 %v5067, %v5067
  %v5152 = vmul.f32 %v5068, %v5068
  %v5153 = vmul.f32 %v5069, %v5069
  %v5154 = vmul.f32 %v5070, %v5070
  %v5155 = vmul.f32 %v5071, %v5071
  %v5156 = vmul.f32 %v5072, %v5072
  %v5157 = vsel %vm98, %v5141, 0.0
  %5158 = vadd.xlane.f32.xlu0 %v5157
  %v5159 = vpop.xlane.xlu0 %5158
  %v5160 = vsel %vm98, %v5142, 0.0
  %5161 = vadd.xlane.f32.xlu0 %v5160
  %v5162 = vpop.xlane.xlu0 %5161
  %v5163 = vsel %vm98, %v5143, 0.0
  %5164 = vadd.xlane.f32.xlu0 %v5163
  %v5165 = vpop.xlane.xlu0 %5164
  %v5166 = vsel %vm98, %v5144, 0.0
  %5167 = vadd.xlane.f32.xlu0 %v5166
  %v5168 = vpop.xlane.xlu0 %5167
  %v5169 = vsel %vm98, %v5145, 0.0
  %5170 = vadd.xlane.f32.xlu0 %v5169
  %v5171 = vpop.xlane.xlu0 %5170
  %v5172 = vsel %vm98, %v5146, 0.0
  %5173 = vadd.xlane.f32.xlu0 %v5172
  %v5174 = vpop.xlane.xlu0 %5173
  %v5175 = vsel %vm98, %v5147, 0.0
  %5176 = vadd.xlane.f32.xlu0 %v5175
  %v5177 = vpop.xlane.xlu0 %5176
  %v5178 = vsel %vm98, %v5148, 0.0
  %5179 = vadd.xlane.f32.xlu0 %v5178
  %v5180 = vpop.xlane.xlu0 %5179
  %v5181 = vsel %vm98, %v5149, 0.0
  %5182 = vadd.xlane.f32.xlu0 %v5181
  %v5183 = vpop.xlane.xlu0 %5182
  %v5184 = vsel %vm98, %v5150, 0.0
  %5185 = vadd.xlane.f32.xlu0 %v5184
  %v5186 = vpop.xlane.xlu0 %5185
  %v5187 = vsel %vm98, %v5151, 0.0
  %5188 = vadd.xlane.f32.xlu0 %v5187
  %v5189 = vpop.xlane.xlu0 %5188
  %v5190 = vsel %vm98, %v5152, 0.0
  %5191 = vadd.xlane.f32.xlu0 %v5190
  %v5192 = vpop.xlane.xlu0 %5191
  %v5193 = vsel %vm98, %v5153, 0.0
  %5194 = vadd.xlane.f32.xlu0 %v5193
  %v5195 = vpop.xlane.xlu0 %5194
  %v5196 = vsel %vm98, %v5154, 0.0
  %5197 = vadd.xlane.f32.xlu0 %v5196
  %v5198 = vpop.xlane.xlu0 %5197
  %v5199 = vsel %vm98, %v5155, 0.0
  %5200 = vadd.xlane.f32.xlu0 %v5199
  %v5201 = vpop.xlane.xlu0 %5200
  %v5202 = vsel %vm98, %v5156, 0.0
  %5203 = vadd.xlane.f32.xlu0 %v5202
  %v5204 = vpop.xlane.xlu0 %5203
  %v5205 = vmul.f32 %v5159, %v949
  %v5206 = vmul.f32 %v5162, %v949
  %v5207 = vmul.f32 %v5165, %v949
  %v5208 = vmul.f32 %v5168, %v949
  %v5209 = vmul.f32 %v5171, %v949
  %v5210 = vmul.f32 %v5174, %v949
  %v5211 = vmul.f32 %v5177, %v949
  %v5212 = vmul.f32 %v5180, %v949
  %v5213 = vmul.f32 %v5183, %v949
  %v5214 = vmul.f32 %v5186, %v949
  %v5215 = vmul.f32 %v5189, %v949
  %v5216 = vmul.f32 %v5192, %v949
  %v5217 = vmul.f32 %v5195, %v949
  %v5218 = vmul.f32 %v5198, %v949
  %v5219 = vmul.f32 %v5201, %v949
  %v5220 = vmul.f32 %v5204, %v949
  %v5221 = vmul.f32 %v5125, %v5125
  %v5222 = vmul.f32 %v5126, %v5126
  %v5223 = vmul.f32 %v5127, %v5127
  %v5224 = vmul.f32 %v5128, %v5128
  %v5225 = vmul.f32 %v5129, %v5129
  %v5226 = vmul.f32 %v5130, %v5130
  %v5227 = vmul.f32 %v5131, %v5131
  %v5228 = vmul.f32 %v5132, %v5132
  %v5229 = vmul.f32 %v5133, %v5133
  %v5230 = vmul.f32 %v5134, %v5134
  %v5231 = vmul.f32 %v5135, %v5135
  %v5232 = vmul.f32 %v5136, %v5136
  %v5233 = vmul.f32 %v5137, %v5137
  %v5234 = vmul.f32 %v5138, %v5138
  %v5235 = vmul.f32 %v5139, %v5139
  %v5236 = vmul.f32 %v5140, %v5140
  %v5237 = vsub.f32 %v5205, %v5221
  %v5238 = vsub.f32 %v5206, %v5222
  %v5239 = vsub.f32 %v5207, %v5223
  %v5240 = vsub.f32 %v5208, %v5224
  %v5241 = vsub.f32 %v5209, %v5225
  %v5242 = vsub.f32 %v5210, %v5226
  %v5243 = vsub.f32 %v5211, %v5227
  %v5244 = vsub.f32 %v5212, %v5228
  %v5245 = vsub.f32 %v5213, %v5229
  %v5246 = vsub.f32 %v5214, %v5230
  %v5247 = vsub.f32 %v5215, %v5231
  %v5248 = vsub.f32 %v5216, %v5232
  %v5249 = vsub.f32 %v5217, %v5233
  %v5250 = vsub.f32 %v5218, %v5234
  %v5251 = vsub.f32 %v5219, %v5235
  %v5252 = vsub.f32 %v5220, %v5236
  %v5253 = vsub.f32 %v5057, %v5125
  %v5254 = vsub.f32 %v5058, %v5126
  %v5255 = vsub.f32 %v5059, %v5127
  %v5256 = vsub.f32 %v5060, %v5128
  %v5257 = vsub.f32 %v5061, %v5129
  %v5258 = vsub.f32 %v5062, %v5130
  %v5259 = vsub.f32 %v5063, %v5131
  %v5260 = vsub.f32 %v5064, %v5132
  %v5261 = vsub.f32 %v5065, %v5133
  %v5262 = vsub.f32 %v5066, %v5134
  %v5263 = vsub.f32 %v5067, %v5135
  %v5264 = vsub.f32 %v5068, %v5136
  %v5265 = vsub.f32 %v5069, %v5137
  %v5266 = vsub.f32 %v5070, %v5138
  %v5267 = vsub.f32 %v5071, %v5139
  %v5268 = vsub.f32 %v5072, %v5140
  %v5269 = vadd.f32 %v5237, 1e-05
  %v5270 = vadd.f32 %v5238, 1e-05
  %v5271 = vadd.f32 %v5239, 1e-05
  %v5272 = vadd.f32 %v5240, 1e-05
  %v5273 = vadd.f32 %v5241, 1e-05
  %v5274 = vadd.f32 %v5242, 1e-05
  %v5275 = vadd.f32 %v5243, 1e-05
  %v5276 = vadd.f32 %v5244, 1e-05
  %v5277 = vadd.f32 %v5245, 1e-05
  %v5278 = vadd.f32 %v5246, 1e-05
  %v5279 = vadd.f32 %v5247, 1e-05
  %v5280 = vadd.f32 %v5248, 1e-05
  %v5281 = vadd.f32 %v5249, 1e-05
  %v5282 = vadd.f32 %v5250, 1e-05
  %v5283 = vadd.f32 %v5251, 1e-05
  %v5284 = vadd.f32 %v5252, 1e-05
  %v5285 = vrsqrt.pop %v5269
  %v5286 = vrsqrt.pop %v5270
  %v5287 = vrsqrt.pop %v5271
  %v5288 = vrsqrt.pop %v5272
  %v5289 = vrsqrt.pop %v5273
  %v5290 = vrsqrt.pop %v5274
  %v5291 = vrsqrt.pop %v5275
  %v5292 = vrsqrt.pop %v5276
  %v5293 = vrsqrt.pop %v5277
  %v5294 = vrsqrt.pop %v5278
  %v5295 = vrsqrt.pop %v5279
  %v5296 = vrsqrt.pop %v5280
  %v5297 = vrsqrt.pop %v5281
  %v5298 = vrsqrt.pop %v5282
  %v5299 = vrsqrt.pop %v5283
  %v5300 = vrsqrt.pop %v5284
  %v5301 = vmul.f32 %v5253, %v5285
  %v5302 = vmul.f32 %v5254, %v5286
  %v5303 = vmul.f32 %v5255, %v5287
  %v5304 = vmul.f32 %v5256, %v5288
  %v5305 = vmul.f32 %v5257, %v5289
  %v5306 = vmul.f32 %v5258, %v5290
  %v5307 = vmul.f32 %v5259, %v5291
  %v5308 = vmul.f32 %v5260, %v5292
  %v5309 = vmul.f32 %v5261, %v5293
  %v5310 = vmul.f32 %v5262, %v5294
  %v5311 = vmul.f32 %v5263, %v5295
  %v5312 = vmul.f32 %v5264, %v5296
  %v5313 = vmul.f32 %v5265, %v5297
  %v5314 = vmul.f32 %v5266, %v5298
  %v5315 = vmul.f32 %v5267, %v5299
  %v5316 = vmul.f32 %v5268, %v5300
  %v5318 = vlaneseq
  %v5319 = vshrl.u32 %v5318, 7
  %v5320 = vsub.s32 0, %v5319
  %v5321 = vrot.slane %v5074, %v5320
  %v5323 = vmul.f32 %v5301, %v5321
  %v5324 = vmul.f32 %v5302, %v5321
  %v5325 = vmul.f32 %v5303, %v5321
  %v5326 = vmul.f32 %v5304, %v5321
  %v5327 = vmul.f32 %v5305, %v5321
  %v5328 = vmul.f32 %v5306, %v5321
  %v5329 = vmul.f32 %v5307, %v5321
  %v5330 = vmul.f32 %v5308, %v5321
  %v5331 = vmul.f32 %v5309, %v5321
  %v5332 = vmul.f32 %v5310, %v5321
  %v5333 = vmul.f32 %v5311, %v5321
  %v5334 = vmul.f32 %v5312, %v5321
  %v5335 = vmul.f32 %v5313, %v5321
  %v5336 = vmul.f32 %v5314, %v5321
  %v5337 = vmul.f32 %v5315, %v5321
  %v5338 = vmul.f32 %v5316, %v5321
  %v5340 = vlaneseq
  %v5341 = vshrl.u32 %v5340, 7
  %v5342 = vsub.s32 0, %v5341
  %v5343 = vrot.slane %v5076, %v5342
  %v5345 = vadd.f32 %v5323, %v5343
  %v5346 = vadd.f32 %v5324, %v5343
  %v5347 = vadd.f32 %v5325, %v5343
  %v5348 = vadd.f32 %v5326, %v5343
  %v5349 = vadd.f32 %v5327, %v5343
  %v5350 = vadd.f32 %v5328, %v5343
  %v5351 = vadd.f32 %v5329, %v5343
  %v5352 = vadd.f32 %v5330, %v5343
  %v5353 = vadd.f32 %v5331, %v5343
  %v5354 = vadd.f32 %v5332, %v5343
  %v5355 = vadd.f32 %v5333, %v5343
  %v5356 = vadd.f32 %v5334, %v5343
  %v5357 = vadd.f32 %v5335, %v5343
  %v5358 = vadd.f32 %v5336, %v5343
  %v5359 = vadd.f32 %v5337, %v5343
  %v5360 = vadd.f32 %v5338, %v5343
  %v5361 = vpack.c.bf16 %v5346, %v5345
  %v5362 = vpack.c.bf16 %v5348, %v5347
  %v5363 = vpack.c.bf16 %v5350, %v5349
  %v5364 = vpack.c.bf16 %v5352, %v5351
  %v5365 = vpack.c.bf16 %v5354, %v5353
  %v5366 = vpack.c.bf16 %v5356, %v5355
  %v5367 = vpack.c.bf16 %v5358, %v5357
  %v5368 = vpack.c.bf16 %v5360, %v5359
  %s5369 = scalar_lea.vmem %s1, 48
  %v5370 = vld [vmem:[%s5369] sm:$0xf]
  %v5371 = vld [vmem:[%s5369 + $0x4] sm:$0xf]
  %v5372 = vld [vmem:[%s5369 + $0x8] sm:$0xf]
  %v5373 = vld [vmem:[%s5369 + $0xc] sm:$0xf]
  %s5374 = scalar_lea.vmem %s2, 3
  %v5375 = vld [vmem:[%s5374] sm:$0x1]
  %v5377 = vlaneseq
  %v5378 = vshrl.u32 %v5377, 7
  %v5379 = vsub.s32 0, %v5378
  %v5380 = vrot.slane %v5375, %v5379
  %v5386 = vunpack.c.l.b16 %v5370
  %v5387 = vunpack.c.l.b16 %v5371
  %v5388 = vunpack.c.l.b16 %v5372
  %v5389 = vunpack.c.l.b16 %v5373
  %v5390 = vpack.c.b16 %v5387, %v5386
  %v5391 = vpack.c.b16 %v5389, %v5388
  %v5395 = vsel %vm98, %v5361, 0
  %v5398 = vsel %vm98, %v5362, 0
  %v5401 = vsel %vm98, %v5363, 0
  %v5404 = vsel %vm98, %v5364, 0
  %v5407 = vsel %vm98, %v5365, 0
  %v5410 = vsel %vm98, %v5366, 0
  %v5413 = vsel %vm98, %v5367, 0
  %v5416 = vsel %vm98, %v5368, 0
  %5418 = vmatprep.subr.bf16.mxu0 0
  %5419 = vmatpush1.bf16.msra.mxu0 0
  %5420 = vmatprep.subr.bf16.mxu0 0
  %5421 = vmatpush1.bf16.msra.mxu0 0
  %5422 = vmatprep.subr.bf16.mxu0 0
  %5423 = vmatpush1.bf16.msra.mxu0 0
  %5424 = vmatprep.subr.bf16.mxu0 0
  %5425 = vmatpush1.bf16.msra.mxu0 0
  %5426 = vmatprep.subr.bf16.mxu0 0
  %5427 = vmatpush1.bf16.msra.mxu0 0
  %5428 = vmatprep.subr.bf16.mxu0 0
  %5429 = vmatpush1.bf16.msra.mxu0 0
  %5430 = vmatprep.subr.bf16.mxu0 0
  %5431 = vmatpush1.bf16.msra.mxu0 %v5391
  %5432 = vmatprep.subr.bf16.mxu0 0
  %5433 = vmatpush1.bf16.msra.mxu0 %v5390
  %5434 = vmatprep.subr.bf16.mxu0 0
  %5435 = vmatpush2.bf16.msra.mxu0 0
  %5436 = vmatprep.subr.bf16.mxu0 0
  %5437 = vmatpush2.bf16.msra.mxu0 0
  %5438 = vmatprep.subr.bf16.mxu0 0
  %5439 = vmatpush2.bf16.msra.mxu0 0
  %5440 = vmatprep.subr.bf16.mxu0 0
  %5441 = vmatpush2.bf16.msra.mxu0 0
  %5442 = vmatprep.subr.bf16.mxu0 0
  %5443 = vmatpush2.bf16.msra.mxu0 0
  %5444 = vmatprep.subr.bf16.mxu0 0
  %5445 = vmatpush2.bf16.msra.mxu0 0
  %5446 = vmatprep.subr.bf16.mxu0 0
  %5447 = vmatpush2.bf16.msra.mxu0 0
  %5448 = vmatprep.subr.bf16.mxu0 0
  %5449 = vmatpush2.bf16.msra.mxu0 0
  %5450 = vmatprep.mubr.bf16.mxu0 0
  %5451 = vmatmul.mubr.bf16.gmra.mxu0 %v5395
  %v5452 = vpop.f32.mrf.mxu0
  %v5453 = vadd.f32 %v5380, %v5452
  %v5454 = vpop.f32.mrf.mxu0
  %v5455 = vpop.f32.mrf.mxu0
  %v5456 = vadd.f32 %v5380, %v5455
  %v5457 = vpop.f32.mrf.mxu0
  %5458 = vmatprep.mubr.bf16.mxu0 0
  %5459 = vmatmul.mubr.bf16.gmra.mxu0 %v5398
  %v5460 = vpop.f32.mrf.mxu0
  %v5461 = vadd.f32 %v5380, %v5460
  %v5462 = vpop.f32.mrf.mxu0
  %v5463 = vpop.f32.mrf.mxu0
  %v5464 = vadd.f32 %v5380, %v5463
  %v5465 = vpop.f32.mrf.mxu0
  %5466 = vmatprep.mubr.bf16.mxu0 0
  %5467 = vmatmul.mubr.bf16.gmra.mxu0 %v5401
  %v5468 = vpop.f32.mrf.mxu0
  %v5469 = vadd.f32 %v5380, %v5468
  %v5470 = vpop.f32.mrf.mxu0
  %v5471 = vpop.f32.mrf.mxu0
  %v5472 = vadd.f32 %v5380, %v5471
  %v5473 = vpop.f32.mrf.mxu0
  %5474 = vmatprep.mubr.bf16.mxu0 0
  %5475 = vmatmul.mubr.bf16.gmra.mxu0 %v5404
  %v5476 = vpop.f32.mrf.mxu0
  %v5477 = vadd.f32 %v5380, %v5476
  %v5478 = vpop.f32.mrf.mxu0
  %v5479 = vpop.f32.mrf.mxu0
  %v5480 = vadd.f32 %v5380, %v5479
  %v5481 = vpop.f32.mrf.mxu0
  %5482 = vmatprep.mubr.bf16.mxu0 0
  %5483 = vmatmul.mubr.bf16.gmra.mxu0 %v5407
  %v5484 = vpop.f32.mrf.mxu0
  %v5485 = vadd.f32 %v5380, %v5484
  %v5486 = vpop.f32.mrf.mxu0
  %v5487 = vpop.f32.mrf.mxu0
  %v5488 = vadd.f32 %v5380, %v5487
  %v5489 = vpop.f32.mrf.mxu0
  %5490 = vmatprep.mubr.bf16.mxu0 0
  %5491 = vmatmul.mubr.bf16.gmra.mxu0 %v5410
  %v5492 = vpop.f32.mrf.mxu0
  %v5493 = vadd.f32 %v5380, %v5492
  %v5494 = vpop.f32.mrf.mxu0
  %v5495 = vpop.f32.mrf.mxu0
  %v5496 = vadd.f32 %v5380, %v5495
  %v5497 = vpop.f32.mrf.mxu0
  %5498 = vmatprep.mubr.bf16.mxu0 0
  %5499 = vmatmul.mubr.bf16.gmra.mxu0 %v5413
  %v5500 = vpop.f32.mrf.mxu0
  %v5501 = vadd.f32 %v5380, %v5500
  %v5502 = vpop.f32.mrf.mxu0
  %v5503 = vpop.f32.mrf.mxu0
  %v5504 = vadd.f32 %v5380, %v5503
  %v5505 = vpop.f32.mrf.mxu0
  %5506 = vmatprep.mubr.bf16.mxu0 0
  %5507 = vmatmul.mubr.bf16.gmra.mxu0 %v5416
  %v5508 = vpop.f32.mrf.mxu0
  %v5509 = vadd.f32 %v5380, %v5508
  %v5510 = vpop.f32.mrf.mxu0
  %v5511 = vpop.f32.mrf.mxu0
  %v5512 = vadd.f32 %v5380, %v5511
  %v5513 = vpop.f32.mrf.mxu0
  %5514 = vdwg.mxu0
  %v5515 = vpack.c.bf16 %v5456, %v5453
  %v5516 = vpack.c.bf16 %v5464, %v5461
  %v5517 = vpack.c.bf16 %v5472, %v5469
  %v5518 = vpack.c.bf16 %v5480, %v5477
  %v5519 = vpack.c.bf16 %v5488, %v5485
  %v5520 = vpack.c.bf16 %v5496, %v5493
  %v5521 = vpack.c.bf16 %v5504, %v5501
  %v5522 = vpack.c.bf16 %v5512, %v5509
  %5531 = vrot.lane.b32.xlu0 %v5515, 96
  %v5532 = vpop.permute.xlu0 %5531
  %5533 = vrot.lane.b32.xlu0 %v5516, 96
  %v5534 = vpop.permute.xlu0 %5533
  %5535 = vrot.lane.b32.xlu0 %v5517, 96
  %v5536 = vpop.permute.xlu0 %5535
  %5537 = vrot.lane.b32.xlu0 %v5518, 96
  %v5538 = vpop.permute.xlu0 %5537
  %5539 = vrot.lane.b32.xlu0 %v5519, 96
  %v5540 = vpop.permute.xlu0 %5539
  %5541 = vrot.lane.b32.xlu0 %v5520, 96
  %v5542 = vpop.permute.xlu0 %5541
  %5543 = vrot.lane.b32.xlu0 %v5521, 96
  %v5544 = vpop.permute.xlu0 %5543
  %5545 = vrot.lane.b32.xlu0 %v5522, 96
  %v5546 = vpop.permute.xlu0 %5545
  %v5548 = vsel %vm98, %v5515, 0
  %v5551 = vsel %vm98, %v5516, 0
  %v5554 = vsel %vm98, %v5517, 0
  %v5557 = vsel %vm98, %v5518, 0
  %v5560 = vsel %vm98, %v5519, 0
  %v5563 = vsel %vm98, %v5520, 0
  %v5566 = vsel %vm98, %v5521, 0
  %v5569 = vsel %vm98, %v5522, 0
  %v5572 = vsel %vm98, %v5532, 0
  %v5575 = vsel %vm98, %v5534, 0
  %v5578 = vsel %vm98, %v5536, 0
  %v5581 = vsel %vm98, %v5538, 0
  %v5584 = vsel %vm98, %v5540, 0
  %v5587 = vsel %vm98, %v5542, 0
  %v5590 = vsel %vm98, %v5544, 0
  %v5593 = vsel %vm98, %v5546, 0
  %5595 = vmatprep.subr.bf16.mxu0 0
  %5596 = vmatpush1.bf16.xpose.msra.mxu0 %v5593
  %5597 = vmatprep.subr.bf16.mxu0 0
  %5598 = vmatpush1.bf16.xpose.msra.mxu0 %v5590
  %5599 = vmatprep.subr.bf16.mxu0 0
  %5600 = vmatpush1.bf16.xpose.msra.mxu0 %v5587
  %5601 = vmatprep.subr.bf16.mxu0 0
  %5602 = vmatpush1.bf16.xpose.msra.mxu0 %v5584
  %5603 = vmatprep.subr.bf16.mxu0 0
  %5604 = vmatpush1.bf16.xpose.msra.mxu0 %v5581
  %5605 = vmatprep.subr.bf16.mxu0 0
  %5606 = vmatpush1.bf16.xpose.msra.mxu0 %v5578
  %5607 = vmatprep.subr.bf16.mxu0 0
  %5608 = vmatpush1.bf16.xpose.msra.mxu0 %v5575
  %5609 = vmatprep.subr.bf16.mxu0 0
  %5610 = vmatpush1.bf16.xpose.msra.mxu0 %v5572
  %5611 = vmatprep.subr.bf16.mxu0 0
  %5612 = vmatpush2.bf16.xpose.msra.mxu0 0
  %5613 = vmatprep.subr.bf16.mxu0 0
  %5614 = vmatpush2.bf16.xpose.msra.mxu0 0
  %5615 = vmatprep.subr.bf16.mxu0 0
  %5616 = vmatpush2.bf16.xpose.msra.mxu0 0
  %5617 = vmatprep.subr.bf16.mxu0 0
  %5618 = vmatpush2.bf16.xpose.msra.mxu0 0
  %5619 = vmatprep.subr.bf16.mxu0 0
  %5620 = vmatpush2.bf16.xpose.msra.mxu0 0
  %5621 = vmatprep.subr.bf16.mxu0 0
  %5622 = vmatpush2.bf16.xpose.msra.mxu0 0
  %5623 = vmatprep.subr.bf16.mxu0 0
  %5624 = vmatpush2.bf16.xpose.msra.mxu0 0
  %5625 = vmatprep.subr.bf16.mxu0 0
  %5626 = vmatpush2.bf16.xpose.msra.mxu0 0
  %5627 = vmatprep.mubr.bf16.mxu0 0
  %5628 = vmatmul.mubr.bf16.gmra.mxu0 %v5548
  %v5629 = vpop.f32.mrf.mxu0
  %v5630 = vadd.f32 0.0, %v5629
  %v5631 = vpop.f32.mrf.mxu0
  %v5632 = vpop.f32.mrf.mxu0
  %v5633 = vadd.f32 0.0, %v5632
  %v5634 = vpop.f32.mrf.mxu0
  %5635 = vmatprep.mubr.bf16.mxu0 0
  %5636 = vmatmul.mubr.bf16.gmra.mxu0 %v5551
  %v5637 = vpop.f32.mrf.mxu0
  %v5638 = vadd.f32 0.0, %v5637
  %v5639 = vpop.f32.mrf.mxu0
  %v5640 = vpop.f32.mrf.mxu0
  %v5641 = vadd.f32 0.0, %v5640
  %v5642 = vpop.f32.mrf.mxu0
  %5643 = vmatprep.mubr.bf16.mxu0 0
  %5644 = vmatmul.mubr.bf16.gmra.mxu0 %v5554
  %v5645 = vpop.f32.mrf.mxu0
  %v5646 = vadd.f32 0.0, %v5645
  %v5647 = vpop.f32.mrf.mxu0
  %v5648 = vpop.f32.mrf.mxu0
  %v5649 = vadd.f32 0.0, %v5648
  %v5650 = vpop.f32.mrf.mxu0
  %5651 = vmatprep.mubr.bf16.mxu0 0
  %5652 = vmatmul.mubr.bf16.gmra.mxu0 %v5557
  %v5653 = vpop.f32.mrf.mxu0
  %v5654 = vadd.f32 0.0, %v5653
  %v5655 = vpop.f32.mrf.mxu0
  %v5656 = vpop.f32.mrf.mxu0
  %v5657 = vadd.f32 0.0, %v5656
  %v5658 = vpop.f32.mrf.mxu0
  %5659 = vmatprep.mubr.bf16.mxu0 0
  %5660 = vmatmul.mubr.bf16.gmra.mxu0 %v5560
  %v5661 = vpop.f32.mrf.mxu0
  %v5662 = vadd.f32 0.0, %v5661
  %v5663 = vpop.f32.mrf.mxu0
  %v5664 = vpop.f32.mrf.mxu0
  %v5665 = vadd.f32 0.0, %v5664
  %v5666 = vpop.f32.mrf.mxu0
  %5667 = vmatprep.mubr.bf16.mxu0 0
  %5668 = vmatmul.mubr.bf16.gmra.mxu0 %v5563
  %v5669 = vpop.f32.mrf.mxu0
  %v5670 = vadd.f32 0.0, %v5669
  %v5671 = vpop.f32.mrf.mxu0
  %v5672 = vpop.f32.mrf.mxu0
  %v5673 = vadd.f32 0.0, %v5672
  %v5674 = vpop.f32.mrf.mxu0
  %5675 = vmatprep.mubr.bf16.mxu0 0
  %5676 = vmatmul.mubr.bf16.gmra.mxu0 %v5566
  %v5677 = vpop.f32.mrf.mxu0
  %v5678 = vadd.f32 0.0, %v5677
  %v5679 = vpop.f32.mrf.mxu0
  %v5680 = vpop.f32.mrf.mxu0
  %v5681 = vadd.f32 0.0, %v5680
  %v5682 = vpop.f32.mrf.mxu0
  %5683 = vmatprep.mubr.bf16.mxu0 0
  %5684 = vmatmul.mubr.bf16.gmra.mxu0 %v5569
  %v5685 = vpop.f32.mrf.mxu0
  %v5686 = vadd.f32 0.0, %v5685
  %v5687 = vpop.f32.mrf.mxu0
  %v5688 = vpop.f32.mrf.mxu0
  %v5689 = vadd.f32 0.0, %v5688
  %v5690 = vpop.f32.mrf.mxu0
  %5691 = vdwg.mxu0
  %5692 = vmax.xlane.f32.xlu0 %v5630
  %v5693 = vpop.xlane.xlu0 %5692
  %5694 = vmax.xlane.f32.xlu0 %v5633
  %v5695 = vpop.xlane.xlu0 %5694
  %5696 = vmax.xlane.f32.xlu0 %v5638
  %v5697 = vpop.xlane.xlu0 %5696
  %5698 = vmax.xlane.f32.xlu0 %v5641
  %v5699 = vpop.xlane.xlu0 %5698
  %5700 = vmax.xlane.f32.xlu0 %v5646
  %v5701 = vpop.xlane.xlu0 %5700
  %5702 = vmax.xlane.f32.xlu0 %v5649
  %v5703 = vpop.xlane.xlu0 %5702
  %5704 = vmax.xlane.f32.xlu0 %v5654
  %v5705 = vpop.xlane.xlu0 %5704
  %5706 = vmax.xlane.f32.xlu0 %v5657
  %v5707 = vpop.xlane.xlu0 %5706
  %5708 = vmax.xlane.f32.xlu0 %v5662
  %v5709 = vpop.xlane.xlu0 %5708
  %5710 = vmax.xlane.f32.xlu0 %v5665
  %v5711 = vpop.xlane.xlu0 %5710
  %5712 = vmax.xlane.f32.xlu0 %v5670
  %v5713 = vpop.xlane.xlu0 %5712
  %5714 = vmax.xlane.f32.xlu0 %v5673
  %v5715 = vpop.xlane.xlu0 %5714
  %5716 = vmax.xlane.f32.xlu0 %v5678
  %v5717 = vpop.xlane.xlu0 %5716
  %5718 = vmax.xlane.f32.xlu0 %v5681
  %v5719 = vpop.xlane.xlu0 %5718
  %5720 = vmax.xlane.f32.xlu0 %v5686
  %v5721 = vpop.xlane.xlu0 %5720
  %5722 = vmax.xlane.f32.xlu0 %v5689
  %v5723 = vpop.xlane.xlu0 %5722
  %v5724 = vsub.f32 %v5630, %v5693
  %v5725 = vsub.f32 %v5633, %v5695
  %v5726 = vsub.f32 %v5638, %v5697
  %v5727 = vsub.f32 %v5641, %v5699
  %v5728 = vsub.f32 %v5646, %v5701
  %v5729 = vsub.f32 %v5649, %v5703
  %v5730 = vsub.f32 %v5654, %v5705
  %v5731 = vsub.f32 %v5657, %v5707
  %v5732 = vsub.f32 %v5662, %v5709
  %v5733 = vsub.f32 %v5665, %v5711
  %v5734 = vsub.f32 %v5670, %v5713
  %v5735 = vsub.f32 %v5673, %v5715
  %v5736 = vsub.f32 %v5678, %v5717
  %v5737 = vsub.f32 %v5681, %v5719
  %v5738 = vsub.f32 %v5686, %v5721
  %v5739 = vsub.f32 %v5689, %v5723
  %v5740 = vmul.f32 %v5724, 1.442695
  %v5741 = vpow.pop %v5740
  %v5742 = vmul.f32 %v5725, 1.442695
  %v5743 = vpow.pop %v5742
  %v5744 = vmul.f32 %v5726, 1.442695
  %v5745 = vpow.pop %v5744
  %v5746 = vmul.f32 %v5727, 1.442695
  %v5747 = vpow.pop %v5746
  %v5748 = vmul.f32 %v5728, 1.442695
  %v5749 = vpow.pop %v5748
  %v5750 = vmul.f32 %v5729, 1.442695
  %v5751 = vpow.pop %v5750
  %v5752 = vmul.f32 %v5730, 1.442695
  %v5753 = vpow.pop %v5752
  %v5754 = vmul.f32 %v5731, 1.442695
  %v5755 = vpow.pop %v5754
  %v5756 = vmul.f32 %v5732, 1.442695
  %v5757 = vpow.pop %v5756
  %v5758 = vmul.f32 %v5733, 1.442695
  %v5759 = vpow.pop %v5758
  %v5760 = vmul.f32 %v5734, 1.442695
  %v5761 = vpow.pop %v5760
  %v5762 = vmul.f32 %v5735, 1.442695
  %v5763 = vpow.pop %v5762
  %v5764 = vmul.f32 %v5736, 1.442695
  %v5765 = vpow.pop %v5764
  %v5766 = vmul.f32 %v5737, 1.442695
  %v5767 = vpow.pop %v5766
  %v5768 = vmul.f32 %v5738, 1.442695
  %v5769 = vpow.pop %v5768
  %v5770 = vmul.f32 %v5739, 1.442695
  %v5771 = vpow.pop %v5770
  %5772 = vadd.xlane.f32.xlu0 %v5741
  %v5773 = vpop.xlane.xlu0 %5772
  %5774 = vadd.xlane.f32.xlu0 %v5743
  %v5775 = vpop.xlane.xlu0 %5774
  %5776 = vadd.xlane.f32.xlu0 %v5745
  %v5777 = vpop.xlane.xlu0 %5776
  %5778 = vadd.xlane.f32.xlu0 %v5747
  %v5779 = vpop.xlane.xlu0 %5778
  %5780 = vadd.xlane.f32.xlu0 %v5749
  %v5781 = vpop.xlane.xlu0 %5780
  %5782 = vadd.xlane.f32.xlu0 %v5751
  %v5783 = vpop.xlane.xlu0 %5782
  %5784 = vadd.xlane.f32.xlu0 %v5753
  %v5785 = vpop.xlane.xlu0 %5784
  %5786 = vadd.xlane.f32.xlu0 %v5755
  %v5787 = vpop.xlane.xlu0 %5786
  %5788 = vadd.xlane.f32.xlu0 %v5757
  %v5789 = vpop.xlane.xlu0 %5788
  %5790 = vadd.xlane.f32.xlu0 %v5759
  %v5791 = vpop.xlane.xlu0 %5790
  %5792 = vadd.xlane.f32.xlu0 %v5761
  %v5793 = vpop.xlane.xlu0 %5792
  %5794 = vadd.xlane.f32.xlu0 %v5763
  %v5795 = vpop.xlane.xlu0 %5794
  %5796 = vadd.xlane.f32.xlu0 %v5765
  %v5797 = vpop.xlane.xlu0 %5796
  %5798 = vadd.xlane.f32.xlu0 %v5767
  %v5799 = vpop.xlane.xlu0 %5798
  %5800 = vadd.xlane.f32.xlu0 %v5769
  %v5801 = vpop.xlane.xlu0 %5800
  %5802 = vadd.xlane.f32.xlu0 %v5771
  %v5803 = vpop.xlane.xlu0 %5802
  %s5804 = scalar_lea.vmem %s3, 3
  %v5805 = vld [vmem:[%s5804] sm:$0x1]
  %v5807 = vlaneseq
  %v5808 = vshrl.u32 %v5807, 7
  %v5809 = vsub.s32 0, %v5808
  %v5810 = vrot.slane %v5805, %v5809
  %v5812 = vmul.f32 %v5345, %v5810
  %v5813 = vmul.f32 %v5346, %v5810
  %v5814 = vmul.f32 %v5347, %v5810
  %v5815 = vmul.f32 %v5348, %v5810
  %v5816 = vmul.f32 %v5349, %v5810
  %v5817 = vmul.f32 %v5350, %v5810
  %v5818 = vmul.f32 %v5351, %v5810
  %v5819 = vmul.f32 %v5352, %v5810
  %v5820 = vmul.f32 %v5353, %v5810
  %v5821 = vmul.f32 %v5354, %v5810
  %v5822 = vmul.f32 %v5355, %v5810
  %v5823 = vmul.f32 %v5356, %v5810
  %v5824 = vmul.f32 %v5357, %v5810
  %v5825 = vmul.f32 %v5358, %v5810
  %v5826 = vmul.f32 %v5359, %v5810
  %v5827 = vmul.f32 %v5360, %v5810
  %v5828 = vsel %vm98, %v5812, 0.0
  %5829 = vadd.xlane.f32.xlu0 %v5828
  %v5830 = vpop.xlane.xlu0 %5829
  %v5831 = vsel %vm98, %v5813, 0.0
  %5832 = vadd.xlane.f32.xlu0 %v5831
  %v5833 = vpop.xlane.xlu0 %5832
  %v5834 = vsel %vm98, %v5814, 0.0
  %5835 = vadd.xlane.f32.xlu0 %v5834
  %v5836 = vpop.xlane.xlu0 %5835
  %v5837 = vsel %vm98, %v5815, 0.0
  %5838 = vadd.xlane.f32.xlu0 %v5837
  %v5839 = vpop.xlane.xlu0 %5838
  %v5840 = vsel %vm98, %v5816, 0.0
  %5841 = vadd.xlane.f32.xlu0 %v5840
  %v5842 = vpop.xlane.xlu0 %5841
  %v5843 = vsel %vm98, %v5817, 0.0
  %5844 = vadd.xlane.f32.xlu0 %v5843
  %v5845 = vpop.xlane.xlu0 %5844
  %v5846 = vsel %vm98, %v5818, 0.0
  %5847 = vadd.xlane.f32.xlu0 %v5846
  %v5848 = vpop.xlane.xlu0 %5847
  %v5849 = vsel %vm98, %v5819, 0.0
  %5850 = vadd.xlane.f32.xlu0 %v5849
  %v5851 = vpop.xlane.xlu0 %5850
  %v5852 = vsel %vm98, %v5820, 0.0
  %5853 = vadd.xlane.f32.xlu0 %v5852
  %v5854 = vpop.xlane.xlu0 %5853
  %v5855 = vsel %vm98, %v5821, 0.0
  %5856 = vadd.xlane.f32.xlu0 %v5855
  %v5857 = vpop.xlane.xlu0 %5856
  %v5858 = vsel %vm98, %v5822, 0.0
  %5859 = vadd.xlane.f32.xlu0 %v5858
  %v5860 = vpop.xlane.xlu0 %5859
  %v5861 = vsel %vm98, %v5823, 0.0
  %5862 = vadd.xlane.f32.xlu0 %v5861
  %v5863 = vpop.xlane.xlu0 %5862
  %v5864 = vsel %vm98, %v5824, 0.0
  %5865 = vadd.xlane.f32.xlu0 %v5864
  %v5866 = vpop.xlane.xlu0 %5865
  %v5867 = vsel %vm98, %v5825, 0.0
  %5868 = vadd.xlane.f32.xlu0 %v5867
  %v5869 = vpop.xlane.xlu0 %5868
  %v5870 = vsel %vm98, %v5826, 0.0
  %5871 = vadd.xlane.f32.xlu0 %v5870
  %v5872 = vpop.xlane.xlu0 %5871
  %v5873 = vsel %vm98, %v5827, 0.0
  %5874 = vadd.xlane.f32.xlu0 %v5873
  %v5875 = vpop.xlane.xlu0 %5874
  %s5876 = scalar_lea.vmem %s4, 3
  %v5877 = vld [vmem:[%s5876] sm:$0x1]
  %v5879 = vlaneseq
  %v5880 = vshrl.u32 %v5879, 7
  %v5881 = vsub.s32 0, %v5880
  %v5882 = vrot.slane %v5877, %v5881
  %v5884 = vadd.f32 %v5830, %v5882
  %v5885 = vadd.f32 %v5833, %v5882
  %v5886 = vadd.f32 %v5836, %v5882
  %v5887 = vadd.f32 %v5839, %v5882
  %v5888 = vadd.f32 %v5842, %v5882
  %v5889 = vadd.f32 %v5845, %v5882
  %v5890 = vadd.f32 %v5848, %v5882
  %v5891 = vadd.f32 %v5851, %v5882
  %v5892 = vadd.f32 %v5854, %v5882
  %v5893 = vadd.f32 %v5857, %v5882
  %v5894 = vadd.f32 %v5860, %v5882
  %v5895 = vadd.f32 %v5863, %v5882
  %v5896 = vadd.f32 %v5866, %v5882
  %v5897 = vadd.f32 %v5869, %v5882
  %v5898 = vadd.f32 %v5872, %v5882
  %v5899 = vadd.f32 %v5875, %v5882
  %5900 = vmatprep.subr.mxu0 0.0
  %5901 = vmatpush1.msra.mxu0 %v5899
  %5902 = vmatprep.subr.mxu0 0.0
  %5903 = vmatpush1.msra.mxu0 %v5898
  %5904 = vmatprep.subr.mxu0 0.0
  %5905 = vmatpush1.msra.mxu0 %v5897
  %5906 = vmatprep.subr.mxu0 0.0
  %5907 = vmatpush1.msra.mxu0 %v5896
  %5908 = vmatprep.subr.mxu0 0.0
  %5909 = vmatpush1.msra.mxu0 %v5895
  %5910 = vmatprep.subr.mxu0 0.0
  %5911 = vmatpush1.msra.mxu0 %v5894
  %5912 = vmatprep.subr.mxu0 0.0
  %5913 = vmatpush1.msra.mxu0 %v5893
  %5914 = vmatprep.subr.mxu0 0.0
  %5915 = vmatpush1.msra.mxu0 %v5892
  %5916 = vmatprep.subr.mxu0 0.0
  %5917 = vmatpush1.msra.mxu0 %v5891
  %5918 = vmatprep.subr.mxu0 0.0
  %5919 = vmatpush1.msra.mxu0 %v5890
  %5920 = vmatprep.subr.mxu0 0.0
  %5921 = vmatpush1.msra.mxu0 %v5889
  %5922 = vmatprep.subr.mxu0 0.0
  %5923 = vmatpush1.msra.mxu0 %v5888
  %5924 = vmatprep.subr.mxu0 0.0
  %5925 = vmatpush1.msra.mxu0 %v5887
  %5926 = vmatprep.subr.mxu0 0.0
  %5927 = vmatpush1.msra.mxu0 %v5886
  %5928 = vmatprep.subr.mxu0 0.0
  %5929 = vmatpush1.msra.mxu0 %v5885
  %5930 = vmatprep.subr.mxu0 0.0
  %5931 = vmatpush1.msra.mxu0 %v5884
  %5932 = vmatprep.subr.mxu0 0.0
  %5933 = vmatpush2.msra.mxu0 0.0
  %5934 = vmatprep.subr.mxu0 0.0
  %5935 = vmatpush2.msra.mxu0 0.0
  %5936 = vmatprep.subr.mxu0 0.0
  %5937 = vmatpush2.msra.mxu0 0.0
  %5938 = vmatprep.subr.mxu0 0.0
  %5939 = vmatpush2.msra.mxu0 0.0
  %5940 = vmatprep.subr.mxu0 0.0
  %5941 = vmatpush2.msra.mxu0 0.0
  %5942 = vmatprep.subr.mxu0 0.0
  %5943 = vmatpush2.msra.mxu0 0.0
  %5944 = vmatprep.subr.mxu0 0.0
  %5945 = vmatpush2.msra.mxu0 0.0
  %5946 = vmatprep.subr.mxu0 0.0
  %5947 = vmatpush2.msra.mxu0 0.0
  %5948 = vmatprep.subr.mxu0 0.0
  %5949 = vmatpush2.msra.mxu0 0.0
  %5950 = vmatprep.subr.mxu0 0.0
  %5951 = vmatpush2.msra.mxu0 0.0
  %5952 = vmatprep.subr.mxu0 0.0
  %5953 = vmatpush2.msra.mxu0 0.0
  %5954 = vmatprep.subr.mxu0 0.0
  %5955 = vmatpush2.msra.mxu0 0.0
  %5956 = vmatprep.subr.mxu0 0.0
  %5957 = vmatpush2.msra.mxu0 0.0
  %5958 = vmatprep.subr.mxu0 0.0
  %5959 = vmatpush2.msra.mxu0 0.0
  %5960 = vmatprep.subr.mxu0 0.0
  %5961 = vmatpush2.msra.mxu0 0.0
  %5962 = vmatprep.subr.mxu0 0.0
  %5963 = vmatpush2.msra.mxu0 0.0
  %5964 = vmatprep.mubr.f32.mxu0 0.0
  %5965 = vmatmul.mubr.f32.gmra.mxu0 %v5741
  %v5966 = vpop.f32.mrf.mxu0
  %v5967 = vadd.f32 0.0, %v5966
  %v5968 = vpop.f32.mrf.mxu0
  %5969 = vmatprep.mubr.f32.mxu0 0.0
  %5970 = vmatmul.mubr.f32.gmra.mxu0 %v5743
  %v5971 = vpop.f32.mrf.mxu0
  %v5972 = vadd.f32 0.0, %v5971
  %v5973 = vpop.f32.mrf.mxu0
  %5974 = vmatprep.mubr.f32.mxu0 0.0
  %5975 = vmatmul.mubr.f32.gmra.mxu0 %v5745
  %v5976 = vpop.f32.mrf.mxu0
  %v5977 = vadd.f32 0.0, %v5976
  %v5978 = vpop.f32.mrf.mxu0
  %5979 = vmatprep.mubr.f32.mxu0 0.0
  %5980 = vmatmul.mubr.f32.gmra.mxu0 %v5747
  %v5981 = vpop.f32.mrf.mxu0
  %v5982 = vadd.f32 0.0, %v5981
  %v5983 = vpop.f32.mrf.mxu0
  %5984 = vmatprep.mubr.f32.mxu0 0.0
  %5985 = vmatmul.mubr.f32.gmra.mxu0 %v5749
  %v5986 = vpop.f32.mrf.mxu0
  %v5987 = vadd.f32 0.0, %v5986
  %v5988 = vpop.f32.mrf.mxu0
  %5989 = vmatprep.mubr.f32.mxu0 0.0
  %5990 = vmatmul.mubr.f32.gmra.mxu0 %v5751
  %v5991 = vpop.f32.mrf.mxu0
  %v5992 = vadd.f32 0.0, %v5991
  %v5993 = vpop.f32.mrf.mxu0
  %5994 = vmatprep.mubr.f32.mxu0 0.0
  %5995 = vmatmul.mubr.f32.gmra.mxu0 %v5753
  %v5996 = vpop.f32.mrf.mxu0
  %v5997 = vadd.f32 0.0, %v5996
  %v5998 = vpop.f32.mrf.mxu0
  %5999 = vmatprep.mubr.f32.mxu0 0.0
  %6000 = vmatmul.mubr.f32.gmra.mxu0 %v5755
  %v6001 = vpop.f32.mrf.mxu0
  %v6002 = vadd.f32 0.0, %v6001
  %v6003 = vpop.f32.mrf.mxu0
  %6004 = vmatprep.mubr.f32.mxu0 0.0
  %6005 = vmatmul.mubr.f32.gmra.mxu0 %v5757
  %v6006 = vpop.f32.mrf.mxu0
  %v6007 = vadd.f32 0.0, %v6006
  %v6008 = vpop.f32.mrf.mxu0
  %6009 = vmatprep.mubr.f32.mxu0 0.0
  %6010 = vmatmul.mubr.f32.gmra.mxu0 %v5759
  %v6011 = vpop.f32.mrf.mxu0
  %v6012 = vadd.f32 0.0, %v6011
  %v6013 = vpop.f32.mrf.mxu0
  %6014 = vmatprep.mubr.f32.mxu0 0.0
  %6015 = vmatmul.mubr.f32.gmra.mxu0 %v5761
  %v6016 = vpop.f32.mrf.mxu0
  %v6017 = vadd.f32 0.0, %v6016
  %v6018 = vpop.f32.mrf.mxu0
  %6019 = vmatprep.mubr.f32.mxu0 0.0
  %6020 = vmatmul.mubr.f32.gmra.mxu0 %v5763
  %v6021 = vpop.f32.mrf.mxu0
  %v6022 = vadd.f32 0.0, %v6021
  %v6023 = vpop.f32.mrf.mxu0
  %6024 = vmatprep.mubr.f32.mxu0 0.0
  %6025 = vmatmul.mubr.f32.gmra.mxu0 %v5765
  %v6026 = vpop.f32.mrf.mxu0
  %v6027 = vadd.f32 0.0, %v6026
  %v6028 = vpop.f32.mrf.mxu0
  %6029 = vmatprep.mubr.f32.mxu0 0.0
  %6030 = vmatmul.mubr.f32.gmra.mxu0 %v5767
  %v6031 = vpop.f32.mrf.mxu0
  %v6032 = vadd.f32 0.0, %v6031
  %v6033 = vpop.f32.mrf.mxu0
  %6034 = vmatprep.mubr.f32.mxu0 0.0
  %6035 = vmatmul.mubr.f32.gmra.mxu0 %v5769
  %v6036 = vpop.f32.mrf.mxu0
  %v6037 = vadd.f32 0.0, %v6036
  %v6038 = vpop.f32.mrf.mxu0
  %6039 = vmatprep.mubr.f32.mxu0 0.0
  %6040 = vmatmul.mubr.f32.gmra.mxu0 %v5771
  %v6041 = vpop.f32.mrf.mxu0
  %v6042 = vadd.f32 0.0, %v6041
  %v6043 = vpop.f32.mrf.mxu0
  %6044 = vdwg.mxu0
  %v6045 = vrcp.pop %v5773
  %v6046 = vrcp.pop %v5775
  %v6047 = vrcp.pop %v5777
  %v6048 = vrcp.pop %v5779
  %v6049 = vrcp.pop %v5781
  %v6050 = vrcp.pop %v5783
  %v6051 = vrcp.pop %v5785
  %v6052 = vrcp.pop %v5787
  %v6053 = vrcp.pop %v5789
  %v6054 = vrcp.pop %v5791
  %v6055 = vrcp.pop %v5793
  %v6056 = vrcp.pop %v5795
  %v6057 = vrcp.pop %v5797
  %v6058 = vrcp.pop %v5799
  %v6059 = vrcp.pop %v5801
  %v6060 = vrcp.pop %v5803
  %v6061 = vmul.f32 %v5967, %v6045
  %v6062 = vmul.f32 %v5972, %v6046
  %v6063 = vmul.f32 %v5977, %v6047
  %v6064 = vmul.f32 %v5982, %v6048
  %v6065 = vmul.f32 %v5987, %v6049
  %v6066 = vmul.f32 %v5992, %v6050
  %v6067 = vmul.f32 %v5997, %v6051
  %v6068 = vmul.f32 %v6002, %v6052
  %v6069 = vmul.f32 %v6007, %v6053
  %v6070 = vmul.f32 %v6012, %v6054
  %v6071 = vmul.f32 %v6017, %v6055
  %v6072 = vmul.f32 %v6022, %v6056
  %v6073 = vmul.f32 %v6027, %v6057
  %v6074 = vmul.f32 %v6032, %v6058
  %v6075 = vmul.f32 %v6037, %v6059
  %v6076 = vmul.f32 %v6042, %v6060
  %s6077 = scalar_lea.vmem %s5, 3
  %v6078 = vld [vmem:[%s6077] sm:$0x1]
  %v6080 = vlaneseq
  %v6081 = vshrl.u32 %v6080, 7
  %v6082 = vsub.s32 0, %v6081
  %v6083 = vrot.slane %v6078, %v6082
  %v6085 = vadd.f32 %v6061, %v6083
  %v6086 = vadd.f32 %v6062, %v6083
  %v6087 = vadd.f32 %v6063, %v6083
  %v6088 = vadd.f32 %v6064, %v6083
  %v6089 = vadd.f32 %v6065, %v6083
  %v6090 = vadd.f32 %v6066, %v6083
  %v6091 = vadd.f32 %v6067, %v6083
  %v6092 = vadd.f32 %v6068, %v6083
  %v6093 = vadd.f32 %v6069, %v6083
  %v6094 = vadd.f32 %v6070, %v6083
  %v6095 = vadd.f32 %v6071, %v6083
  %v6096 = vadd.f32 %v6072, %v6083
  %v6097 = vadd.f32 %v6073, %v6083
  %v6098 = vadd.f32 %v6074, %v6083
  %v6099 = vadd.f32 %v6075, %v6083
  %v6100 = vadd.f32 %v6076, %v6083
  %6102 = vset.pattern.permute.xlu0 0
  %6103 = vperm.xlu0 %6102, %v6085
  %v6104 = vpop.permute.xlu0 %6103
  %6107 = vset.pattern.permute.xlu0 0
  %6108 = vperm.xlu0 %6107, %v6086
  %v6109 = vpop.permute.xlu0 %6108
  %6112 = vset.pattern.permute.xlu0 0
  %6113 = vperm.xlu0 %6112, %v6087
  %v6114 = vpop.permute.xlu0 %6113
  %6117 = vset.pattern.permute.xlu0 0
  %6118 = vperm.xlu0 %6117, %v6088
  %v6119 = vpop.permute.xlu0 %6118
  %6122 = vset.pattern.permute.xlu0 0
  %6123 = vperm.xlu0 %6122, %v6089
  %v6124 = vpop.permute.xlu0 %6123
  %6127 = vset.pattern.permute.xlu0 0
  %6128 = vperm.xlu0 %6127, %v6090
  %v6129 = vpop.permute.xlu0 %6128
  %6132 = vset.pattern.permute.xlu0 0
  %6133 = vperm.xlu0 %6132, %v6091
  %v6134 = vpop.permute.xlu0 %6133
  %6137 = vset.pattern.permute.xlu0 0
  %6138 = vperm.xlu0 %6137, %v6092
  %v6139 = vpop.permute.xlu0 %6138
  %6142 = vset.pattern.permute.xlu0 0
  %6143 = vperm.xlu0 %6142, %v6093
  %v6144 = vpop.permute.xlu0 %6143
  %6147 = vset.pattern.permute.xlu0 0
  %6148 = vperm.xlu0 %6147, %v6094
  %v6149 = vpop.permute.xlu0 %6148
  %6152 = vset.pattern.permute.xlu0 0
  %6153 = vperm.xlu0 %6152, %v6095
  %v6154 = vpop.permute.xlu0 %6153
  %6157 = vset.pattern.permute.xlu0 0
  %6158 = vperm.xlu0 %6157, %v6096
  %v6159 = vpop.permute.xlu0 %6158
  %6162 = vset.pattern.permute.xlu0 0
  %6163 = vperm.xlu0 %6162, %v6097
  %v6164 = vpop.permute.xlu0 %6163
  %6167 = vset.pattern.permute.xlu0 0
  %6168 = vperm.xlu0 %6167, %v6098
  %v6169 = vpop.permute.xlu0 %6168
  %6172 = vset.pattern.permute.xlu0 0
  %6173 = vperm.xlu0 %6172, %v6099
  %v6174 = vpop.permute.xlu0 %6173
  %6177 = vset.pattern.permute.xlu0 0
  %6178 = vperm.xlu0 %6177, %v6100
  %v6179 = vpop.permute.xlu0 %6178
  %v6181 = vadd.f32 %v5345, %v6104
  %v6182 = vadd.f32 %v5346, %v6109
  %v6183 = vadd.f32 %v5347, %v6114
  %v6184 = vadd.f32 %v5348, %v6119
  %v6185 = vadd.f32 %v5349, %v6124
  %v6186 = vadd.f32 %v5350, %v6129
  %v6187 = vadd.f32 %v5351, %v6134
  %v6188 = vadd.f32 %v5352, %v6139
  %v6189 = vadd.f32 %v5353, %v6144
  %v6190 = vadd.f32 %v5354, %v6149
  %v6191 = vadd.f32 %v5355, %v6154
  %v6192 = vadd.f32 %v5356, %v6159
  %v6193 = vadd.f32 %v5357, %v6164
  %v6194 = vadd.f32 %v5358, %v6169
  %v6195 = vadd.f32 %v5359, %v6174
  %v6196 = vadd.f32 %v5360, %v6179
  %s6197 = scalar_lea.vmem %s6, 3
  %v6198 = vld [vmem:[%s6197] sm:$0x1]
  %s6199 = scalar_lea.vmem %s7, 3
  %v6200 = vld [vmem:[%s6199] sm:$0x1]
  %v6201 = vsel %vm98, %v6181, 0.0
  %6202 = vadd.xlane.f32.xlu0 %v6201
  %v6203 = vpop.xlane.xlu0 %6202
  %v6204 = vsel %vm98, %v6182, 0.0
  %6205 = vadd.xlane.f32.xlu0 %v6204
  %v6206 = vpop.xlane.xlu0 %6205
  %v6207 = vsel %vm98, %v6183, 0.0
  %6208 = vadd.xlane.f32.xlu0 %v6207
  %v6209 = vpop.xlane.xlu0 %6208
  %v6210 = vsel %vm98, %v6184, 0.0
  %6211 = vadd.xlane.f32.xlu0 %v6210
  %v6212 = vpop.xlane.xlu0 %6211
  %v6213 = vsel %vm98, %v6185, 0.0
  %6214 = vadd.xlane.f32.xlu0 %v6213
  %v6215 = vpop.xlane.xlu0 %6214
  %v6216 = vsel %vm98, %v6186, 0.0
  %6217 = vadd.xlane.f32.xlu0 %v6216
  %v6218 = vpop.xlane.xlu0 %6217
  %v6219 = vsel %vm98, %v6187, 0.0
  %6220 = vadd.xlane.f32.xlu0 %v6219
  %v6221 = vpop.xlane.xlu0 %6220
  %v6222 = vsel %vm98, %v6188, 0.0
  %6223 = vadd.xlane.f32.xlu0 %v6222
  %v6224 = vpop.xlane.xlu0 %6223
  %v6225 = vsel %vm98, %v6189, 0.0
  %6226 = vadd.xlane.f32.xlu0 %v6225
  %v6227 = vpop.xlane.xlu0 %6226
  %v6228 = vsel %vm98, %v6190, 0.0
  %6229 = vadd.xlane.f32.xlu0 %v6228
  %v6230 = vpop.xlane.xlu0 %6229
  %v6231 = vsel %vm98, %v6191, 0.0
  %6232 = vadd.xlane.f32.xlu0 %v6231
  %v6233 = vpop.xlane.xlu0 %6232
  %v6234 = vsel %vm98, %v6192, 0.0
  %6235 = vadd.xlane.f32.xlu0 %v6234
  %v6236 = vpop.xlane.xlu0 %6235
  %v6237 = vsel %vm98, %v6193, 0.0
  %6238 = vadd.xlane.f32.xlu0 %v6237
  %v6239 = vpop.xlane.xlu0 %6238
  %v6240 = vsel %vm98, %v6194, 0.0
  %6241 = vadd.xlane.f32.xlu0 %v6240
  %v6242 = vpop.xlane.xlu0 %6241
  %v6243 = vsel %vm98, %v6195, 0.0
  %6244 = vadd.xlane.f32.xlu0 %v6243
  %v6245 = vpop.xlane.xlu0 %6244
  %v6246 = vsel %vm98, %v6196, 0.0
  %6247 = vadd.xlane.f32.xlu0 %v6246
  %v6248 = vpop.xlane.xlu0 %6247
  %v6249 = vmul.f32 %v6203, %v949
  %v6250 = vmul.f32 %v6206, %v949
  %v6251 = vmul.f32 %v6209, %v949
  %v6252 = vmul.f32 %v6212, %v949
  %v6253 = vmul.f32 %v6215, %v949
  %v6254 = vmul.f32 %v6218, %v949
  %v6255 = vmul.f32 %v6221, %v949
  %v6256 = vmul.f32 %v6224, %v949
  %v6257 = vmul.f32 %v6227, %v949
  %v6258 = vmul.f32 %v6230, %v949
  %v6259 = vmul.f32 %v6233, %v949
  %v6260 = vmul.f32 %v6236, %v949
  %v6261 = vmul.f32 %v6239, %v949
  %v6262 = vmul.f32 %v6242, %v949
  %v6263 = vmul.f32 %v6245, %v949
  %v6264 = vmul.f32 %v6248, %v949
  %v6265 = vmul.f32 %v6181, %v6181
  %v6266 = vmul.f32 %v6182, %v6182
  %v6267 = vmul.f32 %v6183, %v6183
  %v6268 = vmul.f32 %v6184, %v6184
  %v6269 = vmul.f32 %v6185, %v6185
  %v6270 = vmul.f32 %v6186, %v6186
  %v6271 = vmul.f32 %v6187, %v6187
  %v6272 = vmul.f32 %v6188, %v6188
  %v6273 = vmul.f32 %v6189, %v6189
  %v6274 = vmul.f32 %v6190, %v6190
  %v6275 = vmul.f32 %v6191, %v6191
  %v6276 = vmul.f32 %v6192, %v6192
  %v6277 = vmul.f32 %v6193, %v6193
  %v6278 = vmul.f32 %v6194, %v6194
  %v6279 = vmul.f32 %v6195, %v6195
  %v6280 = vmul.f32 %v6196, %v6196
  %v6281 = vsel %vm98, %v6265, 0.0
  %6282 = vadd.xlane.f32.xlu0 %v6281
  %v6283 = vpop.xlane.xlu0 %6282
  %v6284 = vsel %vm98, %v6266, 0.0
  %6285 = vadd.xlane.f32.xlu0 %v6284
  %v6286 = vpop.xlane.xlu0 %6285
  %v6287 = vsel %vm98, %v6267, 0.0
  %6288 = vadd.xlane.f32.xlu0 %v6287
  %v6289 = vpop.xlane.xlu0 %6288
  %v6290 = vsel %vm98, %v6268, 0.0
  %6291 = vadd.xlane.f32.xlu0 %v6290
  %v6292 = vpop.xlane.xlu0 %6291
  %v6293 = vsel %vm98, %v6269, 0.0
  %6294 = vadd.xlane.f32.xlu0 %v6293
  %v6295 = vpop.xlane.xlu0 %6294
  %v6296 = vsel %vm98, %v6270, 0.0
  %6297 = vadd.xlane.f32.xlu0 %v6296
  %v6298 = vpop.xlane.xlu0 %6297
  %v6299 = vsel %vm98, %v6271, 0.0
  %6300 = vadd.xlane.f32.xlu0 %v6299
  %v6301 = vpop.xlane.xlu0 %6300
  %v6302 = vsel %vm98, %v6272, 0.0
  %6303 = vadd.xlane.f32.xlu0 %v6302
  %v6304 = vpop.xlane.xlu0 %6303
  %v6305 = vsel %vm98, %v6273, 0.0
  %6306 = vadd.xlane.f32.xlu0 %v6305
  %v6307 = vpop.xlane.xlu0 %6306
  %v6308 = vsel %vm98, %v6274, 0.0
  %6309 = vadd.xlane.f32.xlu0 %v6308
  %v6310 = vpop.xlane.xlu0 %6309
  %v6311 = vsel %vm98, %v6275, 0.0
  %6312 = vadd.xlane.f32.xlu0 %v6311
  %v6313 = vpop.xlane.xlu0 %6312
  %v6314 = vsel %vm98, %v6276, 0.0
  %6315 = vadd.xlane.f32.xlu0 %v6314
  %v6316 = vpop.xlane.xlu0 %6315
  %v6317 = vsel %vm98, %v6277, 0.0
  %6318 = vadd.xlane.f32.xlu0 %v6317
  %v6319 = vpop.xlane.xlu0 %6318
  %v6320 = vsel %vm98, %v6278, 0.0
  %6321 = vadd.xlane.f32.xlu0 %v6320
  %v6322 = vpop.xlane.xlu0 %6321
  %v6323 = vsel %vm98, %v6279, 0.0
  %6324 = vadd.xlane.f32.xlu0 %v6323
  %v6325 = vpop.xlane.xlu0 %6324
  %v6326 = vsel %vm98, %v6280, 0.0
  %6327 = vadd.xlane.f32.xlu0 %v6326
  %v6328 = vpop.xlane.xlu0 %6327
  %v6329 = vmul.f32 %v6283, %v949
  %v6330 = vmul.f32 %v6286, %v949
  %v6331 = vmul.f32 %v6289, %v949
  %v6332 = vmul.f32 %v6292, %v949
  %v6333 = vmul.f32 %v6295, %v949
  %v6334 = vmul.f32 %v6298, %v949
  %v6335 = vmul.f32 %v6301, %v949
  %v6336 = vmul.f32 %v6304, %v949
  %v6337 = vmul.f32 %v6307, %v949
  %v6338 = vmul.f32 %v6310, %v949
  %v6339 = vmul.f32 %v6313, %v949
  %v6340 = vmul.f32 %v6316, %v949
  %v6341 = vmul.f32 %v6319, %v949
  %v6342 = vmul.f32 %v6322, %v949
  %v6343 = vmul.f32 %v6325, %v949
  %v6344 = vmul.f32 %v6328, %v949
  %v6345 = vmul.f32 %v6249, %v6249
  %v6346 = vmul.f32 %v6250, %v6250
  %v6347 = vmul.f32 %v6251, %v6251
  %v6348 = vmul.f32 %v6252, %v6252
  %v6349 = vmul.f32 %v6253, %v6253
  %v6350 = vmul.f32 %v6254, %v6254
  %v6351 = vmul.f32 %v6255, %v6255
  %v6352 = vmul.f32 %v6256, %v6256
  %v6353 = vmul.f32 %v6257, %v6257
  %v6354 = vmul.f32 %v6258, %v6258
  %v6355 = vmul.f32 %v6259, %v6259
  %v6356 = vmul.f32 %v6260, %v6260
  %v6357 = vmul.f32 %v6261, %v6261
  %v6358 = vmul.f32 %v6262, %v6262
  %v6359 = vmul.f32 %v6263, %v6263
  %v6360 = vmul.f32 %v6264, %v6264
  %v6361 = vsub.f32 %v6329, %v6345
  %v6362 = vsub.f32 %v6330, %v6346
  %v6363 = vsub.f32 %v6331, %v6347
  %v6364 = vsub.f32 %v6332, %v6348
  %v6365 = vsub.f32 %v6333, %v6349
  %v6366 = vsub.f32 %v6334, %v6350
  %v6367 = vsub.f32 %v6335, %v6351
  %v6368 = vsub.f32 %v6336, %v6352
  %v6369 = vsub.f32 %v6337, %v6353
  %v6370 = vsub.f32 %v6338, %v6354
  %v6371 = vsub.f32 %v6339, %v6355
  %v6372 = vsub.f32 %v6340, %v6356
  %v6373 = vsub.f32 %v6341, %v6357
  %v6374 = vsub.f32 %v6342, %v6358
  %v6375 = vsub.f32 %v6343, %v6359
  %v6376 = vsub.f32 %v6344, %v6360
  %v6377 = vsub.f32 %v6181, %v6249
  %v6378 = vsub.f32 %v6182, %v6250
  %v6379 = vsub.f32 %v6183, %v6251
  %v6380 = vsub.f32 %v6184, %v6252
  %v6381 = vsub.f32 %v6185, %v6253
  %v6382 = vsub.f32 %v6186, %v6254
  %v6383 = vsub.f32 %v6187, %v6255
  %v6384 = vsub.f32 %v6188, %v6256
  %v6385 = vsub.f32 %v6189, %v6257
  %v6386 = vsub.f32 %v6190, %v6258
  %v6387 = vsub.f32 %v6191, %v6259
  %v6388 = vsub.f32 %v6192, %v6260
  %v6389 = vsub.f32 %v6193, %v6261
  %v6390 = vsub.f32 %v6194, %v6262
  %v6391 = vsub.f32 %v6195, %v6263
  %v6392 = vsub.f32 %v6196, %v6264
  %v6393 = vadd.f32 %v6361, 1e-05
  %v6394 = vadd.f32 %v6362, 1e-05
  %v6395 = vadd.f32 %v6363, 1e-05
  %v6396 = vadd.f32 %v6364, 1e-05
  %v6397 = vadd.f32 %v6365, 1e-05
  %v6398 = vadd.f32 %v6366, 1e-05
  %v6399 = vadd.f32 %v6367, 1e-05
  %v6400 = vadd.f32 %v6368, 1e-05
  %v6401 = vadd.f32 %v6369, 1e-05
  %v6402 = vadd.f32 %v6370, 1e-05
  %v6403 = vadd.f32 %v6371, 1e-05
  %v6404 = vadd.f32 %v6372, 1e-05
  %v6405 = vadd.f32 %v6373, 1e-05
  %v6406 = vadd.f32 %v6374, 1e-05
  %v6407 = vadd.f32 %v6375, 1e-05
  %v6408 = vadd.f32 %v6376, 1e-05
  %v6409 = vrsqrt.pop %v6393
  %v6410 = vrsqrt.pop %v6394
  %v6411 = vrsqrt.pop %v6395
  %v6412 = vrsqrt.pop %v6396
  %v6413 = vrsqrt.pop %v6397
  %v6414 = vrsqrt.pop %v6398
  %v6415 = vrsqrt.pop %v6399
  %v6416 = vrsqrt.pop %v6400
  %v6417 = vrsqrt.pop %v6401
  %v6418 = vrsqrt.pop %v6402
  %v6419 = vrsqrt.pop %v6403
  %v6420 = vrsqrt.pop %v6404
  %v6421 = vrsqrt.pop %v6405
  %v6422 = vrsqrt.pop %v6406
  %v6423 = vrsqrt.pop %v6407
  %v6424 = vrsqrt.pop %v6408
  %v6425 = vmul.f32 %v6377, %v6409
  %v6426 = vmul.f32 %v6378, %v6410
  %v6427 = vmul.f32 %v6379, %v6411
  %v6428 = vmul.f32 %v6380, %v6412
  %v6429 = vmul.f32 %v6381, %v6413
  %v6430 = vmul.f32 %v6382, %v6414
  %v6431 = vmul.f32 %v6383, %v6415
  %v6432 = vmul.f32 %v6384, %v6416
  %v6433 = vmul.f32 %v6385, %v6417
  %v6434 = vmul.f32 %v6386, %v6418
  %v6435 = vmul.f32 %v6387, %v6419
  %v6436 = vmul.f32 %v6388, %v6420
  %v6437 = vmul.f32 %v6389, %v6421
  %v6438 = vmul.f32 %v6390, %v6422
  %v6439 = vmul.f32 %v6391, %v6423
  %v6440 = vmul.f32 %v6392, %v6424
  %v6442 = vlaneseq
  %v6443 = vshrl.u32 %v6442, 7
  %v6444 = vsub.s32 0, %v6443
  %v6445 = vrot.slane %v6198, %v6444
  %v6447 = vmul.f32 %v6425, %v6445
  %v6448 = vmul.f32 %v6426, %v6445
  %v6449 = vmul.f32 %v6427, %v6445
  %v6450 = vmul.f32 %v6428, %v6445
  %v6451 = vmul.f32 %v6429, %v6445
  %v6452 = vmul.f32 %v6430, %v6445
  %v6453 = vmul.f32 %v6431, %v6445
  %v6454 = vmul.f32 %v6432, %v6445
  %v6455 = vmul.f32 %v6433, %v6445
  %v6456 = vmul.f32 %v6434, %v6445
  %v6457 = vmul.f32 %v6435, %v6445
  %v6458 = vmul.f32 %v6436, %v6445
  %v6459 = vmul.f32 %v6437, %v6445
  %v6460 = vmul.f32 %v6438, %v6445
  %v6461 = vmul.f32 %v6439, %v6445
  %v6462 = vmul.f32 %v6440, %v6445
  %v6464 = vlaneseq
  %v6465 = vshrl.u32 %v6464, 7
  %v6466 = vsub.s32 0, %v6465
  %v6467 = vrot.slane %v6200, %v6466
  %v6469 = vadd.f32 %v6447, %v6467
  %v6470 = vadd.f32 %v6448, %v6467
  %v6471 = vadd.f32 %v6449, %v6467
  %v6472 = vadd.f32 %v6450, %v6467
  %v6473 = vadd.f32 %v6451, %v6467
  %v6474 = vadd.f32 %v6452, %v6467
  %v6475 = vadd.f32 %v6453, %v6467
  %v6476 = vadd.f32 %v6454, %v6467
  %v6477 = vadd.f32 %v6455, %v6467
  %v6478 = vadd.f32 %v6456, %v6467
  %v6479 = vadd.f32 %v6457, %v6467
  %v6480 = vadd.f32 %v6458, %v6467
  %v6481 = vadd.f32 %v6459, %v6467
  %v6482 = vadd.f32 %v6460, %v6467
  %v6483 = vadd.f32 %v6461, %v6467
  %v6484 = vadd.f32 %v6462, %v6467
  %v6485 = vpack.c.bf16 %v6470, %v6469
  %v6486 = vpack.c.bf16 %v6472, %v6471
  %v6487 = vpack.c.bf16 %v6474, %v6473
  %v6488 = vpack.c.bf16 %v6476, %v6475
  %v6489 = vpack.c.bf16 %v6478, %v6477
  %v6490 = vpack.c.bf16 %v6480, %v6479
  %v6491 = vpack.c.bf16 %v6482, %v6481
  %v6492 = vpack.c.bf16 %v6484, %v6483
  %s6493 = scalar_lea.vmem %s8, 48
  %v6494 = vld [vmem:[%s6493] sm:$0xf]
  %v6495 = vld [vmem:[%s6493 + $0x4] sm:$0xf]
  %v6496 = vld [vmem:[%s6493 + $0x8] sm:$0xf]
  %v6497 = vld [vmem:[%s6493 + $0xc] sm:$0xf]
  %s6498 = scalar_lea.vmem %s9, 3
  %v6499 = vld [vmem:[%s6498] sm:$0x1]
  %v6501 = vlaneseq
  %v6502 = vshrl.u32 %v6501, 7
  %v6503 = vsub.s32 0, %v6502
  %v6504 = vrot.slane %v6499, %v6503
  %v6510 = vunpack.c.l.b16 %v6494
  %v6511 = vunpack.c.l.b16 %v6495
  %v6512 = vunpack.c.l.b16 %v6496
  %v6513 = vunpack.c.l.b16 %v6497
  %v6514 = vpack.c.b16 %v6511, %v6510
  %v6515 = vpack.c.b16 %v6513, %v6512
  %v6519 = vsel %vm98, %v6485, 0
  %v6522 = vsel %vm98, %v6486, 0
  %v6525 = vsel %vm98, %v6487, 0
  %v6528 = vsel %vm98, %v6488, 0
  %v6531 = vsel %vm98, %v6489, 0
  %v6534 = vsel %vm98, %v6490, 0
  %v6537 = vsel %vm98, %v6491, 0
  %v6540 = vsel %vm98, %v6492, 0
  %6542 = vmatprep.subr.bf16.mxu0 0
  %6543 = vmatpush1.bf16.msra.mxu0 0
  %6544 = vmatprep.subr.bf16.mxu0 0
  %6545 = vmatpush1.bf16.msra.mxu0 0
  %6546 = vmatprep.subr.bf16.mxu0 0
  %6547 = vmatpush1.bf16.msra.mxu0 0
  %6548 = vmatprep.subr.bf16.mxu0 0
  %6549 = vmatpush1.bf16.msra.mxu0 0
  %6550 = vmatprep.subr.bf16.mxu0 0
  %6551 = vmatpush1.bf16.msra.mxu0 0
  %6552 = vmatprep.subr.bf16.mxu0 0
  %6553 = vmatpush1.bf16.msra.mxu0 0
  %6554 = vmatprep.subr.bf16.mxu0 0
  %6555 = vmatpush1.bf16.msra.mxu0 %v6515
  %6556 = vmatprep.subr.bf16.mxu0 0
  %6557 = vmatpush1.bf16.msra.mxu0 %v6514
  %6558 = vmatprep.subr.bf16.mxu0 0
  %6559 = vmatpush2.bf16.msra.mxu0 0
  %6560 = vmatprep.subr.bf16.mxu0 0
  %6561 = vmatpush2.bf16.msra.mxu0 0
  %6562 = vmatprep.subr.bf16.mxu0 0
  %6563 = vmatpush2.bf16.msra.mxu0 0
  %6564 = vmatprep.subr.bf16.mxu0 0
  %6565 = vmatpush2.bf16.msra.mxu0 0
  %6566 = vmatprep.subr.bf16.mxu0 0
  %6567 = vmatpush2.bf16.msra.mxu0 0
  %6568 = vmatprep.subr.bf16.mxu0 0
  %6569 = vmatpush2.bf16.msra.mxu0 0
  %6570 = vmatprep.subr.bf16.mxu0 0
  %6571 = vmatpush2.bf16.msra.mxu0 0
  %6572 = vmatprep.subr.bf16.mxu0 0
  %6573 = vmatpush2.bf16.msra.mxu0 0
  %6574 = vmatprep.mubr.bf16.mxu0 0
  %6575 = vmatmul.mubr.bf16.gmra.mxu0 %v6519
  %v6576 = vpop.f32.mrf.mxu0
  %v6577 = vadd.f32 %v6504, %v6576
  %v6578 = vpop.f32.mrf.mxu0
  %v6579 = vpop.f32.mrf.mxu0
  %v6580 = vadd.f32 %v6504, %v6579
  %v6581 = vpop.f32.mrf.mxu0
  %6582 = vmatprep.mubr.bf16.mxu0 0
  %6583 = vmatmul.mubr.bf16.gmra.mxu0 %v6522
  %v6584 = vpop.f32.mrf.mxu0
  %v6585 = vadd.f32 %v6504, %v6584
  %v6586 = vpop.f32.mrf.mxu0
  %v6587 = vpop.f32.mrf.mxu0
  %v6588 = vadd.f32 %v6504, %v6587
  %v6589 = vpop.f32.mrf.mxu0
  %6590 = vmatprep.mubr.bf16.mxu0 0
  %6591 = vmatmul.mubr.bf16.gmra.mxu0 %v6525
  %v6592 = vpop.f32.mrf.mxu0
  %v6593 = vadd.f32 %v6504, %v6592
  %v6594 = vpop.f32.mrf.mxu0
  %v6595 = vpop.f32.mrf.mxu0
  %v6596 = vadd.f32 %v6504, %v6595
  %v6597 = vpop.f32.mrf.mxu0
  %6598 = vmatprep.mubr.bf16.mxu0 0
  %6599 = vmatmul.mubr.bf16.gmra.mxu0 %v6528
  %v6600 = vpop.f32.mrf.mxu0
  %v6601 = vadd.f32 %v6504, %v6600
  %v6602 = vpop.f32.mrf.mxu0
  %v6603 = vpop.f32.mrf.mxu0
  %v6604 = vadd.f32 %v6504, %v6603
  %v6605 = vpop.f32.mrf.mxu0
  %6606 = vmatprep.mubr.bf16.mxu0 0
  %6607 = vmatmul.mubr.bf16.gmra.mxu0 %v6531
  %v6608 = vpop.f32.mrf.mxu0
  %v6609 = vadd.f32 %v6504, %v6608
  %v6610 = vpop.f32.mrf.mxu0
  %v6611 = vpop.f32.mrf.mxu0
  %v6612 = vadd.f32 %v6504, %v6611
  %v6613 = vpop.f32.mrf.mxu0
  %6614 = vmatprep.mubr.bf16.mxu0 0
  %6615 = vmatmul.mubr.bf16.gmra.mxu0 %v6534
  %v6616 = vpop.f32.mrf.mxu0
  %v6617 = vadd.f32 %v6504, %v6616
  %v6618 = vpop.f32.mrf.mxu0
  %v6619 = vpop.f32.mrf.mxu0
  %v6620 = vadd.f32 %v6504, %v6619
  %v6621 = vpop.f32.mrf.mxu0
  %6622 = vmatprep.mubr.bf16.mxu0 0
  %6623 = vmatmul.mubr.bf16.gmra.mxu0 %v6537
  %v6624 = vpop.f32.mrf.mxu0
  %v6625 = vadd.f32 %v6504, %v6624
  %v6626 = vpop.f32.mrf.mxu0
  %v6627 = vpop.f32.mrf.mxu0
  %v6628 = vadd.f32 %v6504, %v6627
  %v6629 = vpop.f32.mrf.mxu0
  %6630 = vmatprep.mubr.bf16.mxu0 0
  %6631 = vmatmul.mubr.bf16.gmra.mxu0 %v6540
  %v6632 = vpop.f32.mrf.mxu0
  %v6633 = vadd.f32 %v6504, %v6632
  %v6634 = vpop.f32.mrf.mxu0
  %v6635 = vpop.f32.mrf.mxu0
  %v6636 = vadd.f32 %v6504, %v6635
  %v6637 = vpop.f32.mrf.mxu0
  %6638 = vdwg.mxu0
  %v6639 = vmax.f32 %v6577, 0.0
  %v6640 = vmax.f32 %v6580, 0.0
  %v6641 = vmax.f32 %v6585, 0.0
  %v6642 = vmax.f32 %v6588, 0.0
  %v6643 = vmax.f32 %v6593, 0.0
  %v6644 = vmax.f32 %v6596, 0.0
  %v6645 = vmax.f32 %v6601, 0.0
  %v6646 = vmax.f32 %v6604, 0.0
  %v6647 = vmax.f32 %v6609, 0.0
  %v6648 = vmax.f32 %v6612, 0.0
  %v6649 = vmax.f32 %v6617, 0.0
  %v6650 = vmax.f32 %v6620, 0.0
  %v6651 = vmax.f32 %v6625, 0.0
  %v6652 = vmax.f32 %v6628, 0.0
  %v6653 = vmax.f32 %v6633, 0.0
  %v6654 = vmax.f32 %v6636, 0.0
  %v6655 = vpack.c.bf16 %v6640, %v6639
  %v6656 = vpack.c.bf16 %v6642, %v6641
  %v6657 = vpack.c.bf16 %v6644, %v6643
  %v6658 = vpack.c.bf16 %v6646, %v6645
  %v6659 = vpack.c.bf16 %v6648, %v6647
  %v6660 = vpack.c.bf16 %v6650, %v6649
  %v6661 = vpack.c.bf16 %v6652, %v6651
  %v6662 = vpack.c.bf16 %v6654, %v6653
  %s6663 = scalar_lea.vmem %s10, 96
  %v6664 = vld [vmem:[%s6663] sm:$0xf]
  %v6665 = vld [vmem:[%s6663 + $0x4] sm:$0xf]
  %v6666 = vld [vmem:[%s6663 + $0x8] sm:$0xf]
  %v6667 = vld [vmem:[%s6663 + $0xc] sm:$0xf]
  %v6668 = vld [vmem:[%s6663 + $0x10] sm:$0xf]
  %v6669 = vld [vmem:[%s6663 + $0x14] sm:$0xf]
  %v6670 = vld [vmem:[%s6663 + $0x18] sm:$0xf]
  %v6671 = vld [vmem:[%s6663 + $0x1c] sm:$0xf]
  %s6672 = scalar_lea.vmem %s11, 3
  %v6673 = vld [vmem:[%s6672] sm:$0x1]
  %v6675 = vlaneseq
  %v6676 = vshrl.u32 %v6675, 7
  %v6677 = vsub.s32 0, %v6676
  %v6678 = vrot.slane %v6673, %v6677
  %v6688 = vunpack.c.l.b16 %v6664
  %v6689 = vunpack.c.l.b16 %v6665
  %v6690 = vunpack.c.l.b16 %v6666
  %v6691 = vunpack.c.l.b16 %v6667
  %v6692 = vunpack.c.l.b16 %v6668
  %v6693 = vunpack.c.l.b16 %v6669
  %v6694 = vunpack.c.l.b16 %v6670
  %v6695 = vunpack.c.l.b16 %v6671
  %v6696 = vpack.c.b16 %v6689, %v6688
  %v6697 = vpack.c.b16 %v6691, %v6690
  %v6698 = vpack.c.b16 %v6693, %v6692
  %v6699 = vpack.c.b16 %v6695, %v6694
  %v6705 = vsel %vm1401, %v6655, 0
  %v6708 = vsel %vm1401, %v6656, 0
  %v6711 = vsel %vm1401, %v6657, 0
  %v6714 = vsel %vm1401, %v6658, 0
  %v6717 = vsel %vm1401, %v6659, 0
  %v6720 = vsel %vm1401, %v6660, 0
  %v6723 = vsel %vm1401, %v6661, 0
  %v6726 = vsel %vm1401, %v6662, 0
  %6728 = vmatprep.subr.bf16.mxu0 0
  %6729 = vmatpush1.bf16.msra.mxu0 0
  %6730 = vmatprep.subr.bf16.mxu0 0
  %6731 = vmatpush1.bf16.msra.mxu0 0
  %6732 = vmatprep.subr.bf16.mxu0 0
  %6733 = vmatpush1.bf16.msra.mxu0 0
  %6734 = vmatprep.subr.bf16.mxu0 0
  %6735 = vmatpush1.bf16.msra.mxu0 0
  %6736 = vmatprep.subr.bf16.mxu0 0
  %6737 = vmatpush1.bf16.msra.mxu0 %v6699
  %6738 = vmatprep.subr.bf16.mxu0 0
  %6739 = vmatpush1.bf16.msra.mxu0 %v6698
  %6740 = vmatprep.subr.bf16.mxu0 0
  %6741 = vmatpush1.bf16.msra.mxu0 %v6697
  %6742 = vmatprep.subr.bf16.mxu0 0
  %6743 = vmatpush1.bf16.msra.mxu0 %v6696
  %6744 = vmatprep.subr.bf16.mxu0 0
  %6745 = vmatpush2.bf16.msra.mxu0 0
  %6746 = vmatprep.subr.bf16.mxu0 0
  %6747 = vmatpush2.bf16.msra.mxu0 0
  %6748 = vmatprep.subr.bf16.mxu0 0
  %6749 = vmatpush2.bf16.msra.mxu0 0
  %6750 = vmatprep.subr.bf16.mxu0 0
  %6751 = vmatpush2.bf16.msra.mxu0 0
  %6752 = vmatprep.subr.bf16.mxu0 0
  %6753 = vmatpush2.bf16.msra.mxu0 0
  %6754 = vmatprep.subr.bf16.mxu0 0
  %6755 = vmatpush2.bf16.msra.mxu0 0
  %6756 = vmatprep.subr.bf16.mxu0 0
  %6757 = vmatpush2.bf16.msra.mxu0 0
  %6758 = vmatprep.subr.bf16.mxu0 0
  %6759 = vmatpush2.bf16.msra.mxu0 0
  %6760 = vmatprep.mubr.bf16.mxu0 0
  %6761 = vmatmul.mubr.bf16.gmra.mxu0 %v6705
  %v6762 = vpop.f32.mrf.mxu0
  %v6763 = vadd.f32 %v6678, %v6762
  %v6764 = vpop.f32.mrf.mxu0
  %v6765 = vpop.f32.mrf.mxu0
  %v6766 = vadd.f32 %v6678, %v6765
  %v6767 = vpop.f32.mrf.mxu0
  %6768 = vmatprep.mubr.bf16.mxu0 0
  %6769 = vmatmul.mubr.bf16.gmra.mxu0 %v6708
  %v6770 = vpop.f32.mrf.mxu0
  %v6771 = vadd.f32 %v6678, %v6770
  %v6772 = vpop.f32.mrf.mxu0
  %v6773 = vpop.f32.mrf.mxu0
  %v6774 = vadd.f32 %v6678, %v6773
  %v6775 = vpop.f32.mrf.mxu0
  %6776 = vmatprep.mubr.bf16.mxu0 0
  %6777 = vmatmul.mubr.bf16.gmra.mxu0 %v6711
  %v6778 = vpop.f32.mrf.mxu0
  %v6779 = vadd.f32 %v6678, %v6778
  %v6780 = vpop.f32.mrf.mxu0
  %v6781 = vpop.f32.mrf.mxu0
  %v6782 = vadd.f32 %v6678, %v6781
  %v6783 = vpop.f32.mrf.mxu0
  %6784 = vmatprep.mubr.bf16.mxu0 0
  %6785 = vmatmul.mubr.bf16.gmra.mxu0 %v6714
  %v6786 = vpop.f32.mrf.mxu0
  %v6787 = vadd.f32 %v6678, %v6786
  %v6788 = vpop.f32.mrf.mxu0
  %v6789 = vpop.f32.mrf.mxu0
  %v6790 = vadd.f32 %v6678, %v6789
  %v6791 = vpop.f32.mrf.mxu0
  %6792 = vmatprep.mubr.bf16.mxu0 0
  %6793 = vmatmul.mubr.bf16.gmra.mxu0 %v6717
  %v6794 = vpop.f32.mrf.mxu0
  %v6795 = vadd.f32 %v6678, %v6794
  %v6796 = vpop.f32.mrf.mxu0
  %v6797 = vpop.f32.mrf.mxu0
  %v6798 = vadd.f32 %v6678, %v6797
  %v6799 = vpop.f32.mrf.mxu0
  %6800 = vmatprep.mubr.bf16.mxu0 0
  %6801 = vmatmul.mubr.bf16.gmra.mxu0 %v6720
  %v6802 = vpop.f32.mrf.mxu0
  %v6803 = vadd.f32 %v6678, %v6802
  %v6804 = vpop.f32.mrf.mxu0
  %v6805 = vpop.f32.mrf.mxu0
  %v6806 = vadd.f32 %v6678, %v6805
  %v6807 = vpop.f32.mrf.mxu0
  %6808 = vmatprep.mubr.bf16.mxu0 0
  %6809 = vmatmul.mubr.bf16.gmra.mxu0 %v6723
  %v6810 = vpop.f32.mrf.mxu0
  %v6811 = vadd.f32 %v6678, %v6810
  %v6812 = vpop.f32.mrf.mxu0
  %v6813 = vpop.f32.mrf.mxu0
  %v6814 = vadd.f32 %v6678, %v6813
  %v6815 = vpop.f32.mrf.mxu0
  %6816 = vmatprep.mubr.bf16.mxu0 0
  %6817 = vmatmul.mubr.bf16.gmra.mxu0 %v6726
  %v6818 = vpop.f32.mrf.mxu0
  %v6819 = vadd.f32 %v6678, %v6818
  %v6820 = vpop.f32.mrf.mxu0
  %v6821 = vpop.f32.mrf.mxu0
  %v6822 = vadd.f32 %v6678, %v6821
  %v6823 = vpop.f32.mrf.mxu0
  %6824 = vdwg.mxu0
  %v6825 = vadd.f32 %v6469, %v6763
  %v6826 = vadd.f32 %v6470, %v6766
  %v6827 = vadd.f32 %v6471, %v6771
  %v6828 = vadd.f32 %v6472, %v6774
  %v6829 = vadd.f32 %v6473, %v6779
  %v6830 = vadd.f32 %v6474, %v6782
  %v6831 = vadd.f32 %v6475, %v6787
  %v6832 = vadd.f32 %v6476, %v6790
  %v6833 = vadd.f32 %v6477, %v6795
  %v6834 = vadd.f32 %v6478, %v6798
  %v6835 = vadd.f32 %v6479, %v6803
  %v6836 = vadd.f32 %v6480, %v6806
  %v6837 = vadd.f32 %v6481, %v6811
  %v6838 = vadd.f32 %v6482, %v6814
  %v6839 = vadd.f32 %v6483, %v6819
  %v6840 = vadd.f32 %v6484, %v6822
  %s6841 = scalar_lea.vmem %s12, 3
  %v6842 = vld [vmem:[%s6841] sm:$0x1]
  %s6843 = scalar_lea.vmem %s13, 3
  %v6844 = vld [vmem:[%s6843] sm:$0x1]
  %v6845 = vsel %vm98, %v6825, 0.0
  %6846 = vadd.xlane.f32.xlu0 %v6845
  %v6847 = vpop.xlane.xlu0 %6846
  %v6848 = vsel %vm98, %v6826, 0.0
  %6849 = vadd.xlane.f32.xlu0 %v6848
  %v6850 = vpop.xlane.xlu0 %6849
  %v6851 = vsel %vm98, %v6827, 0.0
  %6852 = vadd.xlane.f32.xlu0 %v6851
  %v6853 = vpop.xlane.xlu0 %6852
  %v6854 = vsel %vm98, %v6828, 0.0
  %6855 = vadd.xlane.f32.xlu0 %v6854
  %v6856 = vpop.xlane.xlu0 %6855
  %v6857 = vsel %vm98, %v6829, 0.0
  %6858 = vadd.xlane.f32.xlu0 %v6857
  %v6859 = vpop.xlane.xlu0 %6858
  %v6860 = vsel %vm98, %v6830, 0.0
  %6861 = vadd.xlane.f32.xlu0 %v6860
  %v6862 = vpop.xlane.xlu0 %6861
  %v6863 = vsel %vm98, %v6831, 0.0
  %6864 = vadd.xlane.f32.xlu0 %v6863
  %v6865 = vpop.xlane.xlu0 %6864
  %v6866 = vsel %vm98, %v6832, 0.0
  %6867 = vadd.xlane.f32.xlu0 %v6866
  %v6868 = vpop.xlane.xlu0 %6867
  %v6869 = vsel %vm98, %v6833, 0.0
  %6870 = vadd.xlane.f32.xlu0 %v6869
  %v6871 = vpop.xlane.xlu0 %6870
  %v6872 = vsel %vm98, %v6834, 0.0
  %6873 = vadd.xlane.f32.xlu0 %v6872
  %v6874 = vpop.xlane.xlu0 %6873
  %v6875 = vsel %vm98, %v6835, 0.0
  %6876 = vadd.xlane.f32.xlu0 %v6875
  %v6877 = vpop.xlane.xlu0 %6876
  %v6878 = vsel %vm98, %v6836, 0.0
  %6879 = vadd.xlane.f32.xlu0 %v6878
  %v6880 = vpop.xlane.xlu0 %6879
  %v6881 = vsel %vm98, %v6837, 0.0
  %6882 = vadd.xlane.f32.xlu0 %v6881
  %v6883 = vpop.xlane.xlu0 %6882
  %v6884 = vsel %vm98, %v6838, 0.0
  %6885 = vadd.xlane.f32.xlu0 %v6884
  %v6886 = vpop.xlane.xlu0 %6885
  %v6887 = vsel %vm98, %v6839, 0.0
  %6888 = vadd.xlane.f32.xlu0 %v6887
  %v6889 = vpop.xlane.xlu0 %6888
  %v6890 = vsel %vm98, %v6840, 0.0
  %6891 = vadd.xlane.f32.xlu0 %v6890
  %v6892 = vpop.xlane.xlu0 %6891
  %v6893 = vmul.f32 %v6847, %v949
  %v6894 = vmul.f32 %v6850, %v949
  %v6895 = vmul.f32 %v6853, %v949
  %v6896 = vmul.f32 %v6856, %v949
  %v6897 = vmul.f32 %v6859, %v949
  %v6898 = vmul.f32 %v6862, %v949
  %v6899 = vmul.f32 %v6865, %v949
  %v6900 = vmul.f32 %v6868, %v949
  %v6901 = vmul.f32 %v6871, %v949
  %v6902 = vmul.f32 %v6874, %v949
  %v6903 = vmul.f32 %v6877, %v949
  %v6904 = vmul.f32 %v6880, %v949
  %v6905 = vmul.f32 %v6883, %v949
  %v6906 = vmul.f32 %v6886, %v949
  %v6907 = vmul.f32 %v6889, %v949
  %v6908 = vmul.f32 %v6892, %v949
  %v6909 = vmul.f32 %v6825, %v6825
  %v6910 = vmul.f32 %v6826, %v6826
  %v6911 = vmul.f32 %v6827, %v6827
  %v6912 = vmul.f32 %v6828, %v6828
  %v6913 = vmul.f32 %v6829, %v6829
  %v6914 = vmul.f32 %v6830, %v6830
  %v6915 = vmul.f32 %v6831, %v6831
  %v6916 = vmul.f32 %v6832, %v6832
  %v6917 = vmul.f32 %v6833, %v6833
  %v6918 = vmul.f32 %v6834, %v6834
  %v6919 = vmul.f32 %v6835, %v6835
  %v6920 = vmul.f32 %v6836, %v6836
  %v6921 = vmul.f32 %v6837, %v6837
  %v6922 = vmul.f32 %v6838, %v6838
  %v6923 = vmul.f32 %v6839, %v6839
  %v6924 = vmul.f32 %v6840, %v6840
  %v6925 = vsel %vm98, %v6909, 0.0
  %6926 = vadd.xlane.f32.xlu0 %v6925
  %v6927 = vpop.xlane.xlu0 %6926
  %v6928 = vsel %vm98, %v6910, 0.0
  %6929 = vadd.xlane.f32.xlu0 %v6928
  %v6930 = vpop.xlane.xlu0 %6929
  %v6931 = vsel %vm98, %v6911, 0.0
  %6932 = vadd.xlane.f32.xlu0 %v6931
  %v6933 = vpop.xlane.xlu0 %6932
  %v6934 = vsel %vm98, %v6912, 0.0
  %6935 = vadd.xlane.f32.xlu0 %v6934
  %v6936 = vpop.xlane.xlu0 %6935
  %v6937 = vsel %vm98, %v6913, 0.0
  %6938 = vadd.xlane.f32.xlu0 %v6937
  %v6939 = vpop.xlane.xlu0 %6938
  %v6940 = vsel %vm98, %v6914, 0.0
  %6941 = vadd.xlane.f32.xlu0 %v6940
  %v6942 = vpop.xlane.xlu0 %6941
  %v6943 = vsel %vm98, %v6915, 0.0
  %6944 = vadd.xlane.f32.xlu0 %v6943
  %v6945 = vpop.xlane.xlu0 %6944
  %v6946 = vsel %vm98, %v6916, 0.0
  %6947 = vadd.xlane.f32.xlu0 %v6946
  %v6948 = vpop.xlane.xlu0 %6947
  %v6949 = vsel %vm98, %v6917, 0.0
  %6950 = vadd.xlane.f32.xlu0 %v6949
  %v6951 = vpop.xlane.xlu0 %6950
  %v6952 = vsel %vm98, %v6918, 0.0
  %6953 = vadd.xlane.f32.xlu0 %v6952
  %v6954 = vpop.xlane.xlu0 %6953
  %v6955 = vsel %vm98, %v6919, 0.0
  %6956 = vadd.xlane.f32.xlu0 %v6955
  %v6957 = vpop.xlane.xlu0 %6956
  %v6958 = vsel %vm98, %v6920, 0.0
  %6959 = vadd.xlane.f32.xlu0 %v6958
  %v6960 = vpop.xlane.xlu0 %6959
  %v6961 = vsel %vm98, %v6921, 0.0
  %6962 = vadd.xlane.f32.xlu0 %v6961
  %v6963 = vpop.xlane.xlu0 %6962
  %v6964 = vsel %vm98, %v6922, 0.0
  %6965 = vadd.xlane.f32.xlu0 %v6964
  %v6966 = vpop.xlane.xlu0 %6965
  %v6967 = vsel %vm98, %v6923, 0.0
  %6968 = vadd.xlane.f32.xlu0 %v6967
  %v6969 = vpop.xlane.xlu0 %6968
  %v6970 = vsel %vm98, %v6924, 0.0
  %6971 = vadd.xlane.f32.xlu0 %v6970
  %v6972 = vpop.xlane.xlu0 %6971
  %v6973 = vmul.f32 %v6927, %v949
  %v6974 = vmul.f32 %v6930, %v949
  %v6975 = vmul.f32 %v6933, %v949
  %v6976 = vmul.f32 %v6936, %v949
  %v6977 = vmul.f32 %v6939, %v949
  %v6978 = vmul.f32 %v6942, %v949
  %v6979 = vmul.f32 %v6945, %v949
  %v6980 = vmul.f32 %v6948, %v949
  %v6981 = vmul.f32 %v6951, %v949
  %v6982 = vmul.f32 %v6954, %v949
  %v6983 = vmul.f32 %v6957, %v949
  %v6984 = vmul.f32 %v6960, %v949
  %v6985 = vmul.f32 %v6963, %v949
  %v6986 = vmul.f32 %v6966, %v949
  %v6987 = vmul.f32 %v6969, %v949
  %v6988 = vmul.f32 %v6972, %v949
  %v6989 = vmul.f32 %v6893, %v6893
  %v6990 = vmul.f32 %v6894, %v6894
  %v6991 = vmul.f32 %v6895, %v6895
  %v6992 = vmul.f32 %v6896, %v6896
  %v6993 = vmul.f32 %v6897, %v6897
  %v6994 = vmul.f32 %v6898, %v6898
  %v6995 = vmul.f32 %v6899, %v6899
  %v6996 = vmul.f32 %v6900, %v6900
  %v6997 = vmul.f32 %v6901, %v6901
  %v6998 = vmul.f32 %v6902, %v6902
  %v6999 = vmul.f32 %v6903, %v6903
  %v7000 = vmul.f32 %v6904, %v6904
  %v7001 = vmul.f32 %v6905, %v6905
  %v7002 = vmul.f32 %v6906, %v6906
  %v7003 = vmul.f32 %v6907, %v6907
  %v7004 = vmul.f32 %v6908, %v6908
  %v7005 = vsub.f32 %v6973, %v6989
  %v7006 = vsub.f32 %v6974, %v6990
  %v7007 = vsub.f32 %v6975, %v6991
  %v7008 = vsub.f32 %v6976, %v6992
  %v7009 = vsub.f32 %v6977, %v6993
  %v7010 = vsub.f32 %v6978, %v6994
  %v7011 = vsub.f32 %v6979, %v6995
  %v7012 = vsub.f32 %v6980, %v6996
  %v7013 = vsub.f32 %v6981, %v6997
  %v7014 = vsub.f32 %v6982, %v6998
  %v7015 = vsub.f32 %v6983, %v6999
  %v7016 = vsub.f32 %v6984, %v7000
  %v7017 = vsub.f32 %v6985, %v7001
  %v7018 = vsub.f32 %v6986, %v7002
  %v7019 = vsub.f32 %v6987, %v7003
  %v7020 = vsub.f32 %v6988, %v7004
  %v7021 = vsub.f32 %v6825, %v6893
  %v7022 = vsub.f32 %v6826, %v6894
  %v7023 = vsub.f32 %v6827, %v6895
  %v7024 = vsub.f32 %v6828, %v6896
  %v7025 = vsub.f32 %v6829, %v6897
  %v7026 = vsub.f32 %v6830, %v6898
  %v7027 = vsub.f32 %v6831, %v6899
  %v7028 = vsub.f32 %v6832, %v6900
  %v7029 = vsub.f32 %v6833, %v6901
  %v7030 = vsub.f32 %v6834, %v6902
  %v7031 = vsub.f32 %v6835, %v6903
  %v7032 = vsub.f32 %v6836, %v6904
  %v7033 = vsub.f32 %v6837, %v6905
  %v7034 = vsub.f32 %v6838, %v6906
  %v7035 = vsub.f32 %v6839, %v6907
  %v7036 = vsub.f32 %v6840, %v6908
  %v7037 = vadd.f32 %v7005, 1e-05
  %v7038 = vadd.f32 %v7006, 1e-05
  %v7039 = vadd.f32 %v7007, 1e-05
  %v7040 = vadd.f32 %v7008, 1e-05
  %v7041 = vadd.f32 %v7009, 1e-05
  %v7042 = vadd.f32 %v7010, 1e-05
  %v7043 = vadd.f32 %v7011, 1e-05
  %v7044 = vadd.f32 %v7012, 1e-05
  %v7045 = vadd.f32 %v7013, 1e-05
  %v7046 = vadd.f32 %v7014, 1e-05
  %v7047 = vadd.f32 %v7015, 1e-05
  %v7048 = vadd.f32 %v7016, 1e-05
  %v7049 = vadd.f32 %v7017, 1e-05
  %v7050 = vadd.f32 %v7018, 1e-05
  %v7051 = vadd.f32 %v7019, 1e-05
  %v7052 = vadd.f32 %v7020, 1e-05
  %v7053 = vrsqrt.pop %v7037
  %v7054 = vrsqrt.pop %v7038
  %v7055 = vrsqrt.pop %v7039
  %v7056 = vrsqrt.pop %v7040
  %v7057 = vrsqrt.pop %v7041
  %v7058 = vrsqrt.pop %v7042
  %v7059 = vrsqrt.pop %v7043
  %v7060 = vrsqrt.pop %v7044
  %v7061 = vrsqrt.pop %v7045
  %v7062 = vrsqrt.pop %v7046
  %v7063 = vrsqrt.pop %v7047
  %v7064 = vrsqrt.pop %v7048
  %v7065 = vrsqrt.pop %v7049
  %v7066 = vrsqrt.pop %v7050
  %v7067 = vrsqrt.pop %v7051
  %v7068 = vrsqrt.pop %v7052
  %v7069 = vmul.f32 %v7021, %v7053
  %v7070 = vmul.f32 %v7022, %v7054
  %v7071 = vmul.f32 %v7023, %v7055
  %v7072 = vmul.f32 %v7024, %v7056
  %v7073 = vmul.f32 %v7025, %v7057
  %v7074 = vmul.f32 %v7026, %v7058
  %v7075 = vmul.f32 %v7027, %v7059
  %v7076 = vmul.f32 %v7028, %v7060
  %v7077 = vmul.f32 %v7029, %v7061
  %v7078 = vmul.f32 %v7030, %v7062
  %v7079 = vmul.f32 %v7031, %v7063
  %v7080 = vmul.f32 %v7032, %v7064
  %v7081 = vmul.f32 %v7033, %v7065
  %v7082 = vmul.f32 %v7034, %v7066
  %v7083 = vmul.f32 %v7035, %v7067
  %v7084 = vmul.f32 %v7036, %v7068
  %v7086 = vlaneseq
  %v7087 = vshrl.u32 %v7086, 7
  %v7088 = vsub.s32 0, %v7087
  %v7089 = vrot.slane %v6842, %v7088
  %v7091 = vmul.f32 %v7069, %v7089
  %v7092 = vmul.f32 %v7070, %v7089
  %v7093 = vmul.f32 %v7071, %v7089
  %v7094 = vmul.f32 %v7072, %v7089
  %v7095 = vmul.f32 %v7073, %v7089
  %v7096 = vmul.f32 %v7074, %v7089
  %v7097 = vmul.f32 %v7075, %v7089
  %v7098 = vmul.f32 %v7076, %v7089
  %v7099 = vmul.f32 %v7077, %v7089
  %v7100 = vmul.f32 %v7078, %v7089
  %v7101 = vmul.f32 %v7079, %v7089
  %v7102 = vmul.f32 %v7080, %v7089
  %v7103 = vmul.f32 %v7081, %v7089
  %v7104 = vmul.f32 %v7082, %v7089
  %v7105 = vmul.f32 %v7083, %v7089
  %v7106 = vmul.f32 %v7084, %v7089
  %v7108 = vlaneseq
  %v7109 = vshrl.u32 %v7108, 7
  %v7110 = vsub.s32 0, %v7109
  %v7111 = vrot.slane %v6844, %v7110
  %v7113 = vadd.f32 %v7091, %v7111
  %v7114 = vadd.f32 %v7092, %v7111
  %v7115 = vadd.f32 %v7093, %v7111
  %v7116 = vadd.f32 %v7094, %v7111
  %v7117 = vadd.f32 %v7095, %v7111
  %v7118 = vadd.f32 %v7096, %v7111
  %v7119 = vadd.f32 %v7097, %v7111
  %v7120 = vadd.f32 %v7098, %v7111
  %v7121 = vadd.f32 %v7099, %v7111
  %v7122 = vadd.f32 %v7100, %v7111
  %v7123 = vadd.f32 %v7101, %v7111
  %v7124 = vadd.f32 %v7102, %v7111
  %v7125 = vadd.f32 %v7103, %v7111
  %v7126 = vadd.f32 %v7104, %v7111
  %v7127 = vadd.f32 %v7105, %v7111
  %v7128 = vadd.f32 %v7106, %v7111
  %v7129 = vld [vmem:[%s14] sm:$0x1]
  %v7131 = vlaneseq
  %v7132 = vshrl.u32 %v7131, 7
  %v7133 = vsub.s32 0, %v7132
  %v7134 = vrot.slane %v7129, %v7133
  %v7136 = vmul.f32 %v7113, %v7134
  %v7137 = vmul.f32 %v7114, %v7134
  %v7138 = vmul.f32 %v7115, %v7134
  %v7139 = vmul.f32 %v7116, %v7134
  %v7140 = vmul.f32 %v7117, %v7134
  %v7141 = vmul.f32 %v7118, %v7134
  %v7142 = vmul.f32 %v7119, %v7134
  %v7143 = vmul.f32 %v7120, %v7134
  %v7144 = vmul.f32 %v7121, %v7134
  %v7145 = vmul.f32 %v7122, %v7134
  %v7146 = vmul.f32 %v7123, %v7134
  %v7147 = vmul.f32 %v7124, %v7134
  %v7148 = vmul.f32 %v7125, %v7134
  %v7149 = vmul.f32 %v7126, %v7134
  %v7150 = vmul.f32 %v7127, %v7134
  %v7151 = vmul.f32 %v7128, %v7134
  %v7152 = vsel %vm98, %v7136, 0.0
  %7153 = vadd.xlane.f32.xlu0 %v7152
  %v7154 = vpop.xlane.xlu0 %7153
  %v7155 = vsel %vm98, %v7137, 0.0
  %7156 = vadd.xlane.f32.xlu0 %v7155
  %v7157 = vpop.xlane.xlu0 %7156
  %v7158 = vsel %vm98, %v7138, 0.0
  %7159 = vadd.xlane.f32.xlu0 %v7158
  %v7160 = vpop.xlane.xlu0 %7159
  %v7161 = vsel %vm98, %v7139, 0.0
  %7162 = vadd.xlane.f32.xlu0 %v7161
  %v7163 = vpop.xlane.xlu0 %7162
  %v7164 = vsel %vm98, %v7140, 0.0
  %7165 = vadd.xlane.f32.xlu0 %v7164
  %v7166 = vpop.xlane.xlu0 %7165
  %v7167 = vsel %vm98, %v7141, 0.0
  %7168 = vadd.xlane.f32.xlu0 %v7167
  %v7169 = vpop.xlane.xlu0 %7168
  %v7170 = vsel %vm98, %v7142, 0.0
  %7171 = vadd.xlane.f32.xlu0 %v7170
  %v7172 = vpop.xlane.xlu0 %7171
  %v7173 = vsel %vm98, %v7143, 0.0
  %7174 = vadd.xlane.f32.xlu0 %v7173
  %v7175 = vpop.xlane.xlu0 %7174
  %v7176 = vsel %vm98, %v7144, 0.0
  %7177 = vadd.xlane.f32.xlu0 %v7176
  %v7178 = vpop.xlane.xlu0 %7177
  %v7179 = vsel %vm98, %v7145, 0.0
  %7180 = vadd.xlane.f32.xlu0 %v7179
  %v7181 = vpop.xlane.xlu0 %7180
  %v7182 = vsel %vm98, %v7146, 0.0
  %7183 = vadd.xlane.f32.xlu0 %v7182
  %v7184 = vpop.xlane.xlu0 %7183
  %v7185 = vsel %vm98, %v7147, 0.0
  %7186 = vadd.xlane.f32.xlu0 %v7185
  %v7187 = vpop.xlane.xlu0 %7186
  %v7188 = vsel %vm98, %v7148, 0.0
  %7189 = vadd.xlane.f32.xlu0 %v7188
  %v7190 = vpop.xlane.xlu0 %7189
  %v7191 = vsel %vm98, %v7149, 0.0
  %7192 = vadd.xlane.f32.xlu0 %v7191
  %v7193 = vpop.xlane.xlu0 %7192
  %v7194 = vsel %vm98, %v7150, 0.0
  %7195 = vadd.xlane.f32.xlu0 %v7194
  %v7196 = vpop.xlane.xlu0 %7195
  %v7197 = vsel %vm98, %v7151, 0.0
  %7198 = vadd.xlane.f32.xlu0 %v7197
  %v7199 = vpop.xlane.xlu0 %7198
  %vm7200 = vcmask 7168
  %7201 = vst.msk [vmem:[%s15] sm:$0xff] %vm7200, %v7154
  %7202 = vst.msk [vmem:[%s15 + $0x8] sm:$0xff] %vm7200, %v7157
  %7203 = vst.msk [vmem:[%s15 + $0x10] sm:$0xff] %vm7200, %v7160
  %7204 = vst.msk [vmem:[%s15 + $0x18] sm:$0xff] %vm7200, %v7163
  %7205 = vst.msk [vmem:[%s15 + $0x20] sm:$0xff] %vm7200, %v7166
  %7206 = vst.msk [vmem:[%s15 + $0x28] sm:$0xff] %vm7200, %v7169
  %7207 = vst.msk [vmem:[%s15 + $0x30] sm:$0xff] %vm7200, %v7172
  %7208 = vst.msk [vmem:[%s15 + $0x38] sm:$0xff] %vm7200, %v7175
  %7209 = vst.msk [vmem:[%s15 + $0x40] sm:$0xff] %vm7200, %v7178
  %7210 = vst.msk [vmem:[%s15 + $0x48] sm:$0xff] %vm7200, %v7181
  %7211 = vst.msk [vmem:[%s15 + $0x50] sm:$0xff] %vm7200, %v7184
  %7212 = vst.msk [vmem:[%s15 + $0x58] sm:$0xff] %vm7200, %v7187
  %7213 = vst.msk [vmem:[%s15 + $0x60] sm:$0xff] %vm7200, %v7190
  %7214 = vst.msk [vmem:[%s15 + $0x68] sm:$0xff] %vm7200, %v7193
  %7215 = vst.msk [vmem:[%s15 + $0x70] sm:$0xff] %vm7200, %v7196
  %7216 = vst.msk [vmem:[%s15 + $0x78] sm:$0xff] %vm7200, %v7199
  // Predicated region
  $region62: #{tpu_custom_call.1} parent=0 // pred_check
    _
  $region63: #{tpu_custom_call.1} parent=0 // pred_check_branch
    %7218 = sbr.rel (0) target = $region65
  $region64: #{tpu_custom_call.1} parent=0 // pred_region
    _
  $region65: #{tpu_custom_call.1} parent=0 // pred_fallthru
    _
  // Predicated region
  $region66: #{tpu_custom_call.1} parent=0 // pred_check
    _
  $region67: #{tpu_custom_call.1} parent=0 // pred_check_branch
    %7220 = sbr.rel (0) target = $region69
  $region68: #{tpu_custom_call.1} parent=0 // pred_region
    _
  $region69: #{tpu_custom_call.1} parent=0 // pred_fallthru
    _

</llo_original>
